<compile_context>
chip_gen: v5e
topology: v5e:2x2
jax: 0.10.0
libtpu: 0.0.40
codegen_flags: <defaults>
</compile_context>

<pallas_src>
import functools
import math

import jax
import jax.numpy as jnp
from jax import lax
from jax.experimental import pallas as pl
from jax.experimental.pallas import tpu as pltpu

LN_EPS = 1e-5


# ----------------------------------------------------------------------------
# In-kernel helpers (pure functions on VMEM values / refs)
# ----------------------------------------------------------------------------
def _layernorm(z, g, b):
    mu = jnp.mean(z, axis=-1, keepdims=True)
    var = jnp.mean((z - mu) ** 2, axis=-1, keepdims=True)
    return (z - mu) * lax.rsqrt(var + LN_EPS) * g + b


def _act(x, activation):
    if activation == "relu":
        return jnp.maximum(x, 0.0)
    return jax.nn.gelu(x)


def _attention_block(xq, xkv, phi_ref, wqkv, *, n_heads, inv_scale, causal):
    """Hawkes attention for one batch element.

    xq: [Lq, D] f32, xkv: [Lk, D] f32 (VMEM values)
    phi_ref: block [1, 3H, Lq, Lk]; group g = p*H + h with p=0:Q, 1:K, 2:V
    wqkv:   [D, 3D] value (columns = [Wq | Wk | Wv])
    returns [Lq, D] (heads already merged as in .transpose(1,2).reshape).
    """
    Lq, D = xq.shape
    Lk = xkv.shape[0]
    Dh = D // n_heads
    q = jnp.dot(xq, wqkv[:, :D], preferred_element_type=jnp.float32)     # [Lq, D]
    kv = jnp.dot(xkv, wqkv[:, D:], preferred_element_type=jnp.float32)   # [Lk, 2D]
    if causal:
        row = lax.broadcasted_iota(jnp.int32, (Lq, Lk), 0)
        col = lax.broadcasted_iota(jnp.int32, (Lq, Lk), 1)
        # Matches the reference exactly: mask = triu(ones(Lk, Lq), diagonal=0)
        # broadcast onto [Lq, Lk] scores and ~mask filled with -inf
        # -> keep entries with j >= i.
        keep = col >= row
    heads = []
    for h in range(n_heads):
        qh = q[:, h * Dh:(h + 1) * Dh]                                    # [Lq, Dh]
        kh = kv[:, h * Dh:(h + 1) * Dh]                                   # [Lk, Dh]
        vh = kv[:, D + h * Dh: D + (h + 1) * Dh]                          # [Lk, Dh]
        pq = phi_ref[0, 0 * n_heads + h]                                  # [Lq, Lk]
        pk = phi_ref[0, 1 * n_heads + h]
        pv = phi_ref[0, 2 * n_heads + h]
        # (Q_mod * K_mod).sum(-1) == phiQ*phiK*<Q0,K0> (phi are scalar per (i,j))
        qk = lax.dot_general(qh, kh, (((1,), (1,)), ((), ())),
                             preferred_element_type=jnp.float32)          # [Lq, Lk]
        s = (pq * pk * qk) * inv_scale
        if causal:
            s = jnp.where(keep, s, -jnp.inf)
        m = jnp.max(s, axis=-1, keepdims=True)
        e = jnp.exp(s - m)
        attn = e * pl.reciprocal(jnp.sum(e, axis=-1, keepdims=True), approx=True)
        p = attn * pv
        heads.append(jnp.dot(p, vh, preferred_element_type=jnp.float32))  # [Lq, Dh]
    return jnp.concatenate(heads, axis=-1)                                # [Lq, D]


# ----------------------------------------------------------------------------
# Pallas kernels
# ----------------------------------------------------------------------------
def _linear2d_kernel(x_ref, w_ref, b_ref, o_ref):
    y = jnp.dot(x_ref[...].astype(jnp.float32), w_ref[...],
                preferred_element_type=jnp.float32) + b_ref[...]
    o_ref[...] = y.astype(o_ref.dtype)


def _norm_proj_kernel(x_ref, g_ref, b_ref, w_ref, c_ref, o_ref):
    z = _layernorm(x_ref[...].astype(jnp.float32), g_ref[...], b_ref[...])
    y = jnp.dot(z, w_ref[...], preferred_element_type=jnp.float32) + c_ref[...]
    o_ref[...] = y.astype(o_ref.dtype)


def _phi_kernel(delta_ref, *refs, n_layers, activation):
    """Packed time-MLPs for all 3*H (phiQ/phiK/phiV x head) groups at once.
    delta block [1, LL, T] -> output block [1, LL, 3H]."""
    o_ref = refs[-1]
    wb = refs[:-1]
    y = delta_ref[0].astype(jnp.float32)                   # [LL, T]
    for l in range(n_layers):
        w = wb[2 * l][...]
        b = wb[2 * l + 1][...]
        y = jnp.dot(y, w, preferred_element_type=jnp.float32) + b
        if l < n_layers - 1:
            y = _act(y, activation)
    o_ref[0] = y.astype(o_ref.dtype)                       # [LL, 3H]


def _enc_layer_kernel(x_ref, phi_ref, wqkv_ref, g1_ref, b1_ref,
                      w1_ref, c1_ref, w2_ref, c2_ref, g2_ref, b2_ref, o_ref,
                      *, n_heads, inv_scale, causal, activation):
    x = x_ref[0].astype(jnp.float32)                       # [L, D]
    h = _attention_block(x, x, phi_ref, wqkv_ref[...],
                         n_heads=n_heads, inv_scale=inv_scale, causal=causal)
    x2 = _layernorm(x + h, g1_ref[...], b1_ref[...])
    y = _act(jnp.dot(x2, w1_ref[...], preferred_element_type=jnp.float32)
             + c1_ref[...], activation)
    y = jnp.dot(y, w2_ref[...], preferred_element_type=jnp.float32) + c2_ref[...]
    o_ref[0] = _layernorm(x2 + y, g2_ref[...], b2_ref[...]).astype(o_ref.dtype)


def _dec_layer_kernel(x_ref, cross_ref, phi_s_ref, phi_c_ref, wqkv_s_ref, wqkv_c_ref,
                      g1_ref, b1_ref, g2_ref, b2_ref,
                      w1_ref, c1_ref, w2_ref, c2_ref, g3_ref, b3_ref, o_ref,
                      *, n_heads, inv_scale, activation):
    # TODO(synk): DecoderLayer2 source not provided; standard Informer-style
    # (self-attn -> norm -> cross-attn -> norm -> conv FFN -> norm) assumed.
    x = x_ref[0].astype(jnp.float32)                       # [Ld, D]
    cr = cross_ref[0].astype(jnp.float32)                  # [Le, D]
    sa = _attention_block(x, x, phi_s_ref, wqkv_s_ref[...],
                          n_heads=n_heads, inv_scale=inv_scale, causal=True)
    x1 = _layernorm(x + sa, g1_ref[...], b1_ref[...])
    ca = _attention_block(x1, cr, phi_c_ref, wqkv_c_ref[...],
                          n_heads=n_heads, inv_scale=inv_scale, causal=False)
    x2 = _layernorm(x1 + ca, g2_ref[...], b2_ref[...])
    y = _act(jnp.dot(x2, w1_ref[...], preferred_element_type=jnp.float32)
             + c1_ref[...], activation)
    y = jnp.dot(y, w2_ref[...], preferred_element_type=jnp.float32) + c2_ref[...]
    o_ref[0] = _layernorm(x2 + y, g3_ref[...], b3_ref[...]).astype(o_ref.dtype)


# ----------------------------------------------------------------------------
# pallas_call wrappers
# ----------------------------------------------------------------------------
def _rep_spec(shape):
    """Full-array block replicated to every grid step (1-D grid)."""
    n = len(shape)
    return pl.BlockSpec(tuple(shape), lambda b, _n=n: (0,) * _n)


def linear_pallas(x, w, b):
    """x: [B, L, Din] @ w: [Din, Dout] + b -> [B, L, Dout]; one grid step."""
    B, L, Din = x.shape
    Dout = w.shape[1]
    out = pl.pallas_call(
        _linear2d_kernel,
        out_shape=jax.ShapeDtypeStruct((B * L, Dout), jnp.float32),
        grid=(1,),
        in_specs=[pl.BlockSpec((B * L, Din), lambda i: (0, 0)),
                  pl.BlockSpec((Din, Dout), lambda i: (0, 0)),
                  pl.BlockSpec((1, Dout), lambda i: (0, 0))],
        out_specs=pl.BlockSpec((B * L, Dout), lambda i: (0, 0)),
    )(x.reshape(B * L, Din), w, b.reshape(1, Dout))
    return out.reshape(B, L, Dout)


def norm_proj_pallas(x, g, b, w, c):
    """LayerNorm followed by a linear projection, fused; one grid step."""
    B, L, D = x.shape
    N = w.shape[1]
    out = pl.pallas_call(
        _norm_proj_kernel,
        out_shape=jax.ShapeDtypeStruct((B * L, N), jnp.float32),
        grid=(1,),
        in_specs=[pl.BlockSpec((B * L, D), lambda i: (0, 0)),
                  pl.BlockSpec((1, D), lambda i: (0, 0)),
                  pl.BlockSpec((1, D), lambda i: (0, 0)),
                  pl.BlockSpec((D, N), lambda i: (0, 0)),
                  pl.BlockSpec((1, N), lambda i: (0, 0))],
        out_specs=pl.BlockSpec((B * L, N), lambda i: (0, 0)),
    )(x.reshape(B * L, D), g, b, w, c.reshape(1, N))
    return out.reshape(B, L, N)


def phi_pallas(delta_flat, pws, pbs, *, activation):
    """delta_flat: [B, LL, T]; packed weights pws[l]: [din_l, dout_l],
    pbs[l]: [1, dout_l].  Returns [B, LL, 3H] (column g = p*H + h)."""
    B, LL, T = delta_flat.shape
    G = pws[-1].shape[1]
    in_specs = [pl.BlockSpec((1, LL, T), lambda b: (b, 0, 0))]
    args = [delta_flat]
    for w, bb in zip(pws, pbs):
        in_specs.append(_rep_spec(w.shape))
        in_specs.append(_rep_spec(bb.shape))
        args += [w, bb]
    kern = functools.partial(_phi_kernel, n_layers=len(pws), activation=activation)
    return pl.pallas_call(
        kern,
        out_shape=jax.ShapeDtypeStruct((B, LL, G), jnp.float32),
        grid=(B,),
        in_specs=in_specs,
        out_specs=pl.BlockSpec((1, LL, G), lambda b: (b, 0, 0)),
        compiler_params=pltpu.CompilerParams(dimension_semantics=("parallel",)),
    )(*args)


def enc_layer_pallas(x, phi, p, *, n_heads, inv_scale, activation):
    B, L, D = x.shape
    G = phi.shape[1]
    kern = functools.partial(_enc_layer_kernel, n_heads=n_heads,
                             inv_scale=inv_scale, causal=False,  # mask=False in forecast
                             activation=activation)
    x_spec = pl.BlockSpec((1, L, D), lambda b: (b, 0, 0))
    phi_spec = pl.BlockSpec((1, G, L, L), lambda b: (b, 0, 0, 0))
    a = p["attn"]
    return pl.pallas_call(
        kern,
        out_shape=jax.ShapeDtypeStruct((B, L, D), jnp.float32),
        grid=(B,),
        in_specs=[x_spec, phi_spec,
                  _rep_spec(a["wqkv"].shape),
                  _rep_spec(p["g1"].shape), _rep_spec(p["b1"].shape),
                  _rep_spec(p["w1"].shape), _rep_spec(p["c1"].shape),
                  _rep_spec(p["w2"].shape), _rep_spec(p["c2"].shape),
                  _rep_spec(p["g2"].shape), _rep_spec(p["b2"].shape)],
        out_specs=x_spec,
        compiler_params=pltpu.CompilerParams(dimension_semantics=("parallel",)),
    )(x, phi, a["wqkv"], p["g1"], p["b1"], p["w1"], p["c1"], p["w2"], p["c2"],
      p["g2"], p["b2"])


def dec_layer_pallas(x, cross, phi_s, phi_c, p, *, n_heads, inv_scale, activation):
    B, Ld, D = x.shape
    Le = cross.shape[1]
    G = phi_s.shape[1]
    kern = functools.partial(_dec_layer_kernel, n_heads=n_heads,
                             inv_scale=inv_scale, activation=activation)
    x_spec = pl.BlockSpec((1, Ld, D), lambda b: (b, 0, 0))
    cr_spec = pl.BlockSpec((1, Le, D), lambda b: (b, 0, 0))
    ps_spec = pl.BlockSpec((1, G, Ld, Ld), lambda b: (b, 0, 0, 0))
    pc_spec = pl.BlockSpec((1, G, Ld, Le), lambda b: (b, 0, 0, 0))
    sa, ca = p["self_attn"], p["cross_attn"]
    return pl.pallas_call(
        kern,
        out_shape=jax.ShapeDtypeStruct((B, Ld, D), jnp.float32),
        grid=(B,),
        in_specs=[x_spec, cr_spec, ps_spec, pc_spec,
                  _rep_spec(sa["wqkv"].shape), _rep_spec(ca["wqkv"].shape),
                  _rep_spec(p["g1"].shape), _rep_spec(p["b1"].shape),
                  _rep_spec(p["g2"].shape), _rep_spec(p["b2"].shape),
                  _rep_spec(p["w1"].shape), _rep_spec(p["c1"].shape),
                  _rep_spec(p["w2"].shape), _rep_spec(p["c2"].shape),
                  _rep_spec(p["g3"].shape), _rep_spec(p["b3"].shape)],
        out_specs=x_spec,
        compiler_params=pltpu.CompilerParams(dimension_semantics=("parallel",)),
    )(x, cross, phi_s, phi_c, sa["wqkv"], ca["wqkv"],
      p["g1"], p["b1"], p["g2"], p["b2"],
      p["w1"], p["c1"], p["w2"], p["c2"], p["g3"], p["b3"])


# ----------------------------------------------------------------------------
# Model glue (plain JAX around the Pallas kernels)
# ----------------------------------------------------------------------------
def _delta_flat(tq, tk):
    """delta[b, i*Lk+j, :] = tq[b,i,:] - tk[b,j,:]   -> [B, Lq*Lk, T]."""
    B, Lq, T = tq.shape
    Lk = tk.shape[1]
    return (tq[:, :, None, :] - tk[:, None, :, :]).reshape(B, Lq * Lk, T)


def hawkes_phi(delta_flat, attn_p, *, Lq, Lk, n_heads, activation):
    B = delta_flat.shape[0]
    phi = phi_pallas(delta_flat, attn_p["phi_ws"], attn_p["phi_bs"],
                     activation=activation)               # [B, LL, 3H]
    G = 3 * n_heads
    # trivial XLA reshape/transpose between kernels: [B, LL, 3H] -> [B, 3H, Lq, Lk]
    return phi.reshape(B, Lq, Lk, G).transpose(0, 3, 1, 2)


def model_forward(params, cfg, x_enc, x_mark_enc, x_dec, x_mark_dec):
    pred_len = cfg["pred_len"]
    H = cfg["n_new_heads"]
    D = cfg["new_d_model"]
    inv_scale = 1.0 / math.sqrt(D // H)
    act = cfg["activation"]

    if cfg["use_norm"]:
        means = jnp.mean(x_enc, axis=1, keepdims=True)
        x_enc = x_enc - means
        stdev = jnp.sqrt(jnp.var(x_enc, axis=1, keepdims=True) + 1e-5)
        x_enc = x_enc / stdev

    # TODO(synk): DataEmbedding2 source not provided; approximated by a linear
    # value embedding enc_in -> new_d_model (x_mark is None in the forecast path).
    enc_out = linear_pallas(x_enc, params["emb_w"], params["emb_b"])
    dec = linear_pallas(x_dec, params["emb_w"], params["emb_b"])

    Le = x_enc.shape[1]
    Ld = x_dec.shape[1]

    # Deltas depend only on the time marks -> compute once, reuse across layers.
    d_enc = _delta_flat(x_mark_enc, x_mark_enc)            # [B, Le*Le, T]
    d_self = _delta_flat(x_mark_dec, x_mark_dec)           # [B, Ld*Ld, T]
    d_cross = _delta_flat(x_mark_dec, x_mark_enc)          # [B, Ld*Le, T]

    # patch_flag = False in this config, so PatchEmbedding is skipped.
    for lp in params["enc_layers"]:
        phi = hawkes_phi(d_enc, lp["attn"], Lq=Le, Lk=Le, n_heads=H, activation=act)
        enc_out = enc_layer_pallas(enc_out, phi, lp,
                                   n_heads=H, inv_scale=inv_scale, activation=act)

    for lp in params["dec_layers"]:
        phi_s = hawkes_phi(d_self, lp["self_attn"], Lq=Ld, Lk=Ld,
                           n_heads=H, activation=act)
        phi_c = hawkes_phi(d_cross, lp["cross_attn"], Lq=Ld, Lk=Le,
                           n_heads=H, activation=act)
        dec = dec_layer_pallas(dec, enc_out, phi_s, phi_c, lp,
                               n_heads=H, inv_scale=inv_scale, activation=act)

    dec_out = norm_proj_pallas(dec, params["dec_norm_g"], params["dec_norm_b"],
                               params["proj_w"], params["proj_b"])
    dec_out = dec_out[:, -pred_len:, :]

    if cfg["use_norm"]:
        dec_out = dec_out * stdev[:, 0:1, :] + means[:, 0:1, :]
    return dec_out


# ----------------------------------------------------------------------------
# Deterministic parameter initialization
# ----------------------------------------------------------------------------
def _init_lin(key, din, dout, scale=0.1):
    return jax.random.normal(key, (din, dout), jnp.float32) * scale


def _block_diag(blocks):
    G = len(blocks)
    rin, rout = blocks[0].shape
    out = jnp.zeros((G * rin, G * rout), jnp.float32)
    for g, blk in enumerate(blocks):
        out = out.at[g * rin:(g + 1) * rin, g * rout:(g + 1) * rout].set(blk)
    return out


def _init_phi_packed(key, H, T, W, depth):
    """Pack the 3*H independent per-head time-MLPs (phi_Q, phi_K, phi_V) so the
    whole family runs as one chain of matmuls: layer 0 concatenated over groups
    along the output dim, deeper layers block-diagonal (exactly equivalent)."""
    dims = [T] + [W] * depth + [1]
    G = 3 * H                                   # group g = p*H + h, p in {Q,K,V}
    pws, pbs = [], []
    for l in range(len(dims) - 1):
        key, k1 = jax.random.split(key)
        w = jax.random.normal(k1, (G, dims[l], dims[l + 1]), jnp.float32) * 0.2
        b = jnp.zeros((G, 1, dims[l + 1]), jnp.float32)
        if l == 0:
            pw = jnp.transpose(w, (1, 0, 2)).reshape(dims[l], G * dims[l + 1])
        else:
            pw = _block_diag([w[g] for g in range(G)])
        pb = jnp.transpose(b, (1, 0, 2)).reshape(1, G * dims[l + 1])
        pws.append(pw)
        pbs.append(pb)
    return pws, pbs


def _init_attn(key, D, H, T, W, depth):
    k0, k1 = jax.random.split(key)
    pws, pbs = _init_phi_packed(k1, H, T, W, depth)
    return dict(wqkv=_init_lin(k0, D, 3 * D), phi_ws=pws, phi_bs=pbs)


def _ln_params(D):
    return jnp.ones((1, D), jnp.float32), jnp.zeros((1, D), jnp.float32)


def init_params(key, cfg):
    D, F = cfg["new_d_model"], cfg["d_ff"]
    H, T, W, depth = (cfg["n_new_heads"], cfg["time_dim"],
                      cfg["tmlp_width"], cfg["tmlp_depth"])
    N = cfg["enc_in"]
    keys = iter(jax.random.split(key, 64))

    enc_layers = []
    for _ in range(cfg["num_new_layers"]):
        g1, b1 = _ln_params(D)
        g2, b2 = _ln_params(D)
        enc_layers.append(dict(
            attn=_init_attn(next(keys), D, H, T, W, depth),
            g1=g1, b1=b1, g2=g2, b2=b2,
            w1=_init_lin(next(keys), D, F), c1=jnp.zeros((1, F), jnp.float32),
            w2=_init_lin(next(keys), F, D), c2=jnp.zeros((1, D), jnp.float32),
        ))

    dec_layers = []
    for _ in range(cfg["d_layers"]):
        g1, b1 = _ln_params(D)
        g2, b2 = _ln_params(D)
        g3, b3 = _ln_params(D)
        dec_layers.append(dict(
            self_attn=_init_attn(next(keys), D, H, T, W, depth),
            cross_attn=_init_attn(next(keys), D, H, T, W, depth),
            g1=g1, b1=b1, g2=g2, b2=b2, g3=g3, b3=b3,
            w1=_init_lin(next(keys), D, F), c1=jnp.zeros((1, F), jnp.float32),
            w2=_init_lin(next(keys), F, D), c2=jnp.zeros((1, D), jnp.float32),
        ))

    gf, bf = _ln_params(D)
    return dict(
        emb_w=_init_lin(next(keys), N, D), emb_b=jnp.zeros((D,), jnp.float32),
        enc_layers=enc_layers, dec_layers=dec_layers,
        dec_norm_g=gf, dec_norm_b=bf,
        proj_w=_init_lin(next(keys), D, N), proj_b=jnp.zeros((N,), jnp.float32),
    )


# ----------------------------------------------------------------------------
if __name__ == "__main__":
    cfg = dict(
        enc_in=4, seq_len=16, pred_len=8,
        new_d_model=32, n_new_heads=4,
        time_dim=4, tmlp_width=8, tmlp_depth=2,
        d_ff=64, num_new_layers=1, d_layers=1,
        use_norm=True, activation="relu",
    )
    B = 2
    L_dec = 12  # label_len(4) + pred_len(8)

    key = jax.random.PRNGKey(0)
    k_p, k1, k2, k3, k4 = jax.random.split(key, 5)
    params = init_params(k_p, cfg)

    x_enc = jax.random.normal(k1, (B, cfg["seq_len"], cfg["enc_in"]), jnp.float32)
    x_mark_enc = jax.random.normal(k2, (B, cfg["seq_len"], cfg["time_dim"]), jnp.float32)
    x_dec = jax.random.normal(k3, (B, L_dec, cfg["enc_in"]), jnp.float32)
    x_mark_dec = jax.random.normal(k4, (B, L_dec, cfg["time_dim"]), jnp.float32)

    @jax.jit
    def run(params, x_enc, x_mark_enc, x_dec, x_mark_dec):
        return model_forward(params, cfg, x_enc, x_mark_enc, x_dec, x_mark_dec)

    out = run(params, x_enc, x_mark_enc, x_dec, x_mark_dec)
    out = jax.block_until_ready(out)
    assert out.shape == (B, cfg["pred_len"], cfg["enc_in"]), out.shape
    assert bool(jnp.all(jnp.isfinite(out)))
    print("KERNEL_OK")
</pallas_src>

<mosaic_0001>
module attributes {stable_mosaic.version = 11 : i64} {
  func.func @_linear2d_kernel(%arg0: i32, %arg1: memref<32x4xf32, #tpu.memory_space<vmem>>, %arg2: memref<4x32xf32, #tpu.memory_space<vmem>>, %arg3: memref<1x32xf32, #tpu.memory_space<vmem>>, %arg4: memref<32x32xf32, #tpu.memory_space<vmem>>) attributes {dimension_semantics = [#tpu.dimension_semantics<arbitrary>], iteration_bounds = array<i64: 1>, scalar_prefetch = 0 : i64, scratch_operands = 0 : i64, tpu.core_type = #tpu.core_type<tc>, window_params = [{pipeline_mode = #tpu.pipeline_mode<synchronous>, transform_indices = @transform_0, window_bounds = array<i64: 32, 4>}, {pipeline_mode = #tpu.pipeline_mode<synchronous>, transform_indices = @transform_1, window_bounds = array<i64: 4, 32>}, {pipeline_mode = #tpu.pipeline_mode<synchronous>, transform_indices = @transform_2, window_bounds = array<i64: 1, 32>}, {pipeline_mode = #tpu.pipeline_mode<synchronous>, transform_indices = @transform_3, window_bounds = array<i64: 32, 32>}]} {
    %c0 = arith.constant 0 : index
    %c0_0 = arith.constant 0 : index
    %0 = vector.load %arg1[%c0, %c0_0] : memref<32x4xf32, #tpu.memory_space<vmem>>, vector<32x4xf32>
    %c0_1 = arith.constant 0 : index
    %c0_2 = arith.constant 0 : index
    %1 = vector.load %arg2[%c0_1, %c0_2] : memref<4x32xf32, #tpu.memory_space<vmem>>, vector<4x32xf32>
    %cst = arith.constant dense<0.000000e+00> : vector<32x32xf32>
    %2 = tpu.matmul %0, %1, %cst {dimension_numbers = #tpu.dot_dimension_numbers<[1], [0], [0], [1], [0, 0, 1, 1], [], []>} : vector<32x4xf32>, vector<4x32xf32>, vector<32x32xf32> -> vector<32x32xf32>
    %c0_3 = arith.constant 0 : index
    %c0_4 = arith.constant 0 : index
    %3 = vector.load %arg3[%c0_3, %c0_4] : memref<1x32xf32, #tpu.memory_space<vmem>>, vector<1x32xf32>
    %4 = vector.broadcast %3 : vector<1x32xf32> to vector<32x32xf32>
    %5 = arith.addf %2, %4 : vector<32x32xf32>
    %c0_5 = arith.constant 0 : index
    %c0_6 = arith.constant 0 : index
    %6 = vector.load %arg4[%c0_5, %c0_6] : memref<32x32xf32, #tpu.memory_space<vmem>>, vector<32x32xf32>
    tpu.vector_store %arg4[%c0_5, %c0_6], %5 {strides = array<i32>} : memref<32x32xf32, #tpu.memory_space<vmem>>, vector<32x32xf32>,
    return
  }
  func.func @transform_0(%arg0: i32) -> (i32, i32) {
    %c0_i32 = arith.constant 0 : i32
    %c0_i32_0 = arith.constant 0 : i32
    %c0_i32_1 = arith.constant 0 : i32
    return %c0_i32, %c0_i32_0 : i32, i32
  }
  func.func @transform_1(%arg0: i32) -> (i32, i32) {
    %c0_i32 = arith.constant 0 : i32
    %c0_i32_0 = arith.constant 0 : i32
    %c0_i32_1 = arith.constant 0 : i32
    return %c0_i32, %c0_i32_0 : i32, i32
  }
  func.func @transform_2(%arg0: i32) -> (i32, i32) {
    %c0_i32 = arith.constant 0 : i32
    %c0_i32_0 = arith.constant 0 : i32
    %c0_i32_1 = arith.constant 0 : i32
    return %c0_i32, %c0_i32_0 : i32, i32
  }
  func.func @transform_3(%arg0: i32) -> (i32, i32) {
    %c0_i32 = arith.constant 0 : i32
    %c0_i32_0 = arith.constant 0 : i32
    %c0_i32_1 = arith.constant 0 : i32
    return %c0_i32, %c0_i32_0 : i32, i32
  }
}

module attributes {stable_mosaic.version = 11 : i64} {
  func.func @_phi_kernel(%arg0: i32, %arg1: memref<1x256x4xf32, #tpu.memory_space<vmem>>, %arg2: memref<4x96xf32, #tpu.memory_space<vmem>>, %arg3: memref<1x96xf32, #tpu.memory_space<vmem>>, %arg4: memref<96x96xf32, #tpu.memory_space<vmem>>, %arg5: memref<1x96xf32, #tpu.memory_space<vmem>>, %arg6: memref<96x12xf32, #tpu.memory_space<vmem>>, %arg7: memref<1x12xf32, #tpu.memory_space<vmem>>, %arg8: memref<1x256x12xf32, #tpu.memory_space<vmem>>) attributes {dimension_semantics = [#tpu.dimension_semantics<parallel>], iteration_bounds = array<i64: 2>, scalar_prefetch = 0 : i64, scratch_operands = 0 : i64, tpu.core_type = #tpu.core_type<tc>, window_params = [{transform_indices = @transform_0, window_bounds = array<i64: 1, 256, 4>}, {pipeline_mode = #tpu.pipeline_mode<synchronous>, transform_indices = @transform_1, window_bounds = array<i64: 4, 96>}, {pipeline_mode = #tpu.pipeline_mode<synchronous>, transform_indices = @transform_2, window_bounds = array<i64: 1, 96>}, {pipeline_mode = #tpu.pipeline_mode<synchronous>, transform_indices = @transform_3, window_bounds = array<i64: 96, 96>}, {pipeline_mode = #tpu.pipeline_mode<synchronous>, transform_indices = @transform_4, window_bounds = array<i64: 1, 96>}, {pipeline_mode = #tpu.pipeline_mode<synchronous>, transform_indices = @transform_5, window_bounds = array<i64: 96, 12>}, {pipeline_mode = #tpu.pipeline_mode<synchronous>, transform_indices = @transform_6, window_bounds = array<i64: 1, 12>}, {transform_indices = @transform_7, window_bounds = array<i64: 1, 256, 12>}]} {
    %c0 = arith.constant 0 : index
    %c0_0 = arith.constant 0 : index
    %c0_1 = arith.constant 0 : index
    %0 = vector.load %arg1[%c0, %c0_0, %c0_1] : memref<1x256x4xf32, #tpu.memory_space<vmem>>, vector<1x256x4xf32>
    %1 = vector.shape_cast %0 : vector<1x256x4xf32> to vector<256x4xf32>
    %c0_2 = arith.constant 0 : index
    %c0_3 = arith.constant 0 : index
    %2 = vector.load %arg2[%c0_2, %c0_3] : memref<4x96xf32, #tpu.memory_space<vmem>>, vector<4x96xf32>
    %c0_4 = arith.constant 0 : index
    %c0_5 = arith.constant 0 : index
    %3 = vector.load %arg3[%c0_4, %c0_5] : memref<1x96xf32, #tpu.memory_space<vmem>>, vector<1x96xf32>
    %cst = arith.constant dense<0.000000e+00> : vector<256x96xf32>
    %4 = tpu.matmul %1, %2, %cst {dimension_numbers = #tpu.dot_dimension_numbers<[1], [0], [0], [1], [0, 0, 1, 1], [], []>} : vector<256x4xf32>, vector<4x96xf32>, vector<256x96xf32> -> vector<256x96xf32>
    %5 = vector.broadcast %3 : vector<1x96xf32> to vector<256x96xf32>
    %6 = arith.addf %4, %5 : vector<256x96xf32>
    %cst_6 = arith.constant 0.000000e+00 : f32
    %7 = vector.broadcast %cst_6 : f32 to vector<256x96xf32>
    %8 = arith.maximumf %6, %7 : vector<256x96xf32>
    %c0_7 = arith.constant 0 : index
    %c0_8 = arith.constant 0 : index
    %9 = vector.load %arg4[%c0_7, %c0_8] : memref<96x96xf32, #tpu.memory_space<vmem>>, vector<96x96xf32>
    %c0_9 = arith.constant 0 : index
    %c0_10 = arith.constant 0 : index
    %10 = vector.load %arg5[%c0_9, %c0_10] : memref<1x96xf32, #tpu.memory_space<vmem>>, vector<1x96xf32>
    %cst_11 = arith.constant dense<0.000000e+00> : vector<256x96xf32>
    %11 = tpu.matmul %8, %9, %cst_11 {dimension_numbers = #tpu.dot_dimension_numbers<[1], [0], [0], [1], [0, 0, 1, 1], [], []>} : vector<256x96xf32>, vector<96x96xf32>, vector<256x96xf32> -> vector<256x96xf32>
    %12 = vector.broadcast %10 : vector<1x96xf32> to vector<256x96xf32>
    %13 = arith.addf %11, %12 : vector<256x96xf32>
    %cst_12 = arith.constant 0.000000e+00 : f32
    %14 = vector.broadcast %cst_12 : f32 to vector<256x96xf32>
    %15 = arith.maximumf %13, %14 : vector<256x96xf32>
    %c0_13 = arith.constant 0 : index
    %c0_14 = arith.constant 0 : index
    %16 = vector.load %arg6[%c0_13, %c0_14] : memref<96x12xf32, #tpu.memory_space<vmem>>, vector<96x12xf32>
    %c0_15 = arith.constant 0 : index
    %c0_16 = arith.constant 0 : index
    %17 = vector.load %arg7[%c0_15, %c0_16] : memref<1x12xf32, #tpu.memory_space<vmem>>, vector<1x12xf32>
    %cst_17 = arith.constant dense<0.000000e+00> : vector<256x12xf32>
    %18 = tpu.matmul %15, %16, %cst_17 {dimension_numbers = #tpu.dot_dimension_numbers<[1], [0], [0], [1], [0, 0, 1, 1], [], []>} : vector<256x96xf32>, vector<96x12xf32>, vector<256x12xf32> -> vector<256x12xf32>
    %19 = vector.broadcast %17 : vector<1x12xf32> to vector<256x12xf32>
    %20 = arith.addf %18, %19 : vector<256x12xf32>
    %c0_18 = arith.constant 0 : index
    %c0_19 = arith.constant 0 : index
    %c0_20 = arith.constant 0 : index
    %21 = vector.load %arg8[%c0_18, %c0_19, %c0_20] : memref<1x256x12xf32, #tpu.memory_space<vmem>>, vector<1x256x12xf32>
    %22 = vector.shape_cast %21 : vector<1x256x12xf32> to vector<256x12xf32>
    %23 = vector.shape_cast %20 : vector<256x12xf32> to vector<1x256x12xf32>
    tpu.vector_store %arg8[%c0_18, %c0_19, %c0_20], %23 {strides = array<i32>} : memref<1x256x12xf32, #tpu.memory_space<vmem>>, vector<1x256x12xf32>,
    return
  }
  func.func @transform_0(%arg0: i32) -> (i32, i32, i32) {
    %c0_i32 = arith.constant 0 : i32
    %c0_i32_0 = arith.constant 0 : i32
    %c0_i32_1 = arith.constant 0 : i32
    return %arg0, %c0_i32, %c0_i32_0 : i32, i32, i32
  }
  func.func @transform_1(%arg0: i32) -> (i32, i32) {
    %c0_i32 = arith.constant 0 : i32
    %c0_i32_0 = arith.constant 0 : i32
    %c0_i32_1 = arith.constant 0 : i32
    return %c0_i32, %c0_i32_0 : i32, i32
  }
  func.func @transform_2(%arg0: i32) -> (i32, i32) {
    %c0_i32 = arith.constant 0 : i32
    %c0_i32_0 = arith.constant 0 : i32
    %c0_i32_1 = arith.constant 0 : i32
    return %c0_i32, %c0_i32_0 : i32, i32
  }
  func.func @transform_3(%arg0: i32) -> (i32, i32) {
    %c0_i32 = arith.constant 0 : i32
    %c0_i32_0 = arith.constant 0 : i32
    %c0_i32_1 = arith.constant 0 : i32
    return %c0_i32, %c0_i32_0 : i32, i32
  }
  func.func @transform_4(%arg0: i32) -> (i32, i32) {
    %c0_i32 = arith.constant 0 : i32
    %c0_i32_0 = arith.constant 0 : i32
    %c0_i32_1 = arith.constant 0 : i32
    return %c0_i32, %c0_i32_0 : i32, i32
  }
  func.func @transform_5(%arg0: i32) -> (i32, i32) {
    %c0_i32 = arith.constant 0 : i32
    %c0_i32_0 = arith.constant 0 : i32
    %c0_i32_1 = arith.constant 0 : i32
    return %c0_i32, %c0_i32_0 : i32, i32
  }
  func.func @transform_6(%arg0: i32) -> (i32, i32) {
    %c0_i32 = arith.constant 0 : i32
    %c0_i32_0 = arith.constant 0 : i32
    %c0_i32_1 = arith.constant 0 : i32
    return %c0_i32, %c0_i32_0 : i32, i32
  }
  func.func @transform_7(%arg0: i32) -> (i32, i32, i32) {
    %c0_i32 = arith.constant 0 : i32
    %c0_i32_0 = arith.constant 0 : i32
    %c0_i32_1 = arith.constant 0 : i32
    return %arg0, %c0_i32, %c0_i32_0 : i32, i32, i32
  }
}

module attributes {stable_mosaic.version = 11 : i64} {
  func.func @_enc_layer_kernel(%arg0: i32, %arg1: memref<1x16x32xf32, #tpu.memory_space<vmem>>, %arg2: memref<1x12x16x16xf32, #tpu.memory_space<vmem>>, %arg3: memref<32x96xf32, #tpu.memory_space<vmem>>, %arg4: memref<1x32xf32, #tpu.memory_space<vmem>>, %arg5: memref<1x32xf32, #tpu.memory_space<vmem>>, %arg6: memref<32x64xf32, #tpu.memory_space<vmem>>, %arg7: memref<1x64xf32, #tpu.memory_space<vmem>>, %arg8: memref<64x32xf32, #tpu.memory_space<vmem>>, %arg9: memref<1x32xf32, #tpu.memory_space<vmem>>, %arg10: memref<1x32xf32, #tpu.memory_space<vmem>>, %arg11: memref<1x32xf32, #tpu.memory_space<vmem>>, %arg12: memref<1x16x32xf32, #tpu.memory_space<vmem>>) attributes {dimension_semantics = [#tpu.dimension_semantics<parallel>], iteration_bounds = array<i64: 2>, scalar_prefetch = 0 : i64, scratch_operands = 0 : i64, tpu.core_type = #tpu.core_type<tc>, window_params = [{transform_indices = @transform_0, window_bounds = array<i64: 1, 16, 32>}, {transform_indices = @transform_1, window_bounds = array<i64: 1, 12, 16, 16>}, {pipeline_mode = #tpu.pipeline_mode<synchronous>, transform_indices = @transform_2, window_bounds = array<i64: 32, 96>}, {pipeline_mode = #tpu.pipeline_mode<synchronous>, transform_indices = @transform_3, window_bounds = array<i64: 1, 32>}, {pipeline_mode = #tpu.pipeline_mode<synchronous>, transform_indices = @transform_4, window_bounds = array<i64: 1, 32>}, {pipeline_mode = #tpu.pipeline_mode<synchronous>, transform_indices = @transform_5, window_bounds = array<i64: 32, 64>}, {pipeline_mode = #tpu.pipeline_mode<synchronous>, transform_indices = @transform_6, window_bounds = array<i64: 1, 64>}, {pipeline_mode = #tpu.pipeline_mode<synchronous>, transform_indices = @transform_7, window_bounds = array<i64: 64, 32>}, {pipeline_mode = #tpu.pipeline_mode<synchronous>, transform_indices = @transform_8, window_bounds = array<i64: 1, 32>}, {pipeline_mode = #tpu.pipeline_mode<synchronous>, transform_indices = @transform_9, window_bounds = array<i64: 1, 32>}, {pipeline_mode = #tpu.pipeline_mode<synchronous>, transform_indices = @transform_10, window_bounds = array<i64: 1, 32>}, {transform_indices = @transform_11, window_bounds = array<i64: 1, 16, 32>}]} {
    %c0 = arith.constant 0 : index
    %c0_0 = arith.constant 0 : index
    %c0_1 = arith.constant 0 : index
    %0 = vector.load %arg1[%c0, %c0_0, %c0_1] : memref<1x16x32xf32, #tpu.memory_space<vmem>>, vector<1x16x32xf32>
    %1 = vector.shape_cast %0 : vector<1x16x32xf32> to vector<16x32xf32>
    %c0_2 = arith.constant 0 : index
    %c0_3 = arith.constant 0 : index
    %2 = vector.load %arg3[%c0_2, %c0_3] : memref<32x96xf32, #tpu.memory_space<vmem>>, vector<32x96xf32>
    %3 = vector.extract_strided_slice %2 {offsets = [0, 0], sizes = [32, 32], strides = [1, 1]} : vector<32x96xf32> to vector<32x32xf32>
    %cst = arith.constant dense<0.000000e+00> : vector<16x32xf32>
    %4 = tpu.matmul %1, %3, %cst {dimension_numbers = #tpu.dot_dimension_numbers<[1], [0], [0], [1], [0, 0, 1, 1], [], []>} : vector<16x32xf32>, vector<32x32xf32>, vector<16x32xf32> -> vector<16x32xf32>
    %5 = vector.extract_strided_slice %2 {offsets = [0, 32], sizes = [32, 64], strides = [1, 1]} : vector<32x96xf32> to vector<32x64xf32>
    %cst_4 = arith.constant dense<0.000000e+00> : vector<16x64xf32>
    %6 = tpu.matmul %1, %5, %cst_4 {dimension_numbers = #tpu.dot_dimension_numbers<[1], [0], [0], [1], [0, 0, 1, 1], [], []>} : vector<16x32xf32>, vector<32x64xf32>, vector<16x64xf32> -> vector<16x64xf32>
    %7 = vector.extract_strided_slice %4 {offsets = [0, 0], sizes = [16, 8], strides = [1, 1]} : vector<16x32xf32> to vector<16x8xf32>
    %8 = vector.extract_strided_slice %6 {offsets = [0, 0], sizes = [16, 8], strides = [1, 1]} : vector<16x64xf32> to vector<16x8xf32>
    %9 = vector.extract_strided_slice %6 {offsets = [0, 32], sizes = [16, 8], strides = [1, 1]} : vector<16x64xf32> to vector<16x8xf32>
    %c0_5 = arith.constant 0 : index
    %c0_6 = arith.constant 0 : index
    %c0_7 = arith.constant 0 : index
    %c0_8 = arith.constant 0 : index
    %10 = vector.load %arg2[%c0_5, %c0_6, %c0_7, %c0_8] : memref<1x12x16x16xf32, #tpu.memory_space<vmem>>, vector<1x1x16x16xf32>
    %11 = vector.shape_cast %10 : vector<1x1x16x16xf32> to vector<16x16xf32>
    %c0_9 = arith.constant 0 : index
    %c4 = arith.constant 4 : index
    %c0_10 = arith.constant 0 : index
    %c0_11 = arith.constant 0 : index
    %12 = vector.load %arg2[%c0_9, %c4, %c0_10, %c0_11] : memref<1x12x16x16xf32, #tpu.memory_space<vmem>>, vector<1x1x16x16xf32>
    %13 = vector.shape_cast %12 : vector<1x1x16x16xf32> to vector<16x16xf32>
    %c0_12 = arith.constant 0 : index
    %c8 = arith.constant 8 : index
    %c0_13 = arith.constant 0 : index
    %c0_14 = arith.constant 0 : index
    %14 = vector.load %arg2[%c0_12, %c8, %c0_13, %c0_14] : memref<1x12x16x16xf32, #tpu.memory_space<vmem>>, vector<1x1x16x16xf32>
    %15 = vector.shape_cast %14 : vector<1x1x16x16xf32> to vector<16x16xf32>
    %cst_15 = arith.constant dense<0.000000e+00> : vector<16x16xf32>
    %16 = tpu.matmul %7, %8, %cst_15 {dimension_numbers = #tpu.dot_dimension_numbers<[1], [1], [0], [0], [0, 0, 1, 0], [], []>} : vector<16x8xf32>, vector<16x8xf32>, vector<16x16xf32> -> vector<16x16xf32>
    %17 = arith.mulf %11, %13 : vector<16x16xf32>
    %18 = arith.mulf %17, %16 : vector<16x16xf32>
    %cst_16 = arith.constant 0.353553385 : f32
    %19 = vector.broadcast %cst_16 : f32 to vector<16x16xf32>
    %20 = arith.mulf %18, %19 : vector<16x16xf32>
    %cst_17 = arith.constant dense<0xFF800000> : vector<16xf32>
    %21 = vector.multi_reduction <maximumf>, %20, %cst_17 [1] : vector<16x16xf32> to vector<16xf32>
    %22 = vector.shape_cast %21 : vector<16xf32> to vector<16x1xf32>
    %23 = vector.broadcast %22 : vector<16x1xf32> to vector<16x16xf32>
    %24 = arith.subf %20, %23 : vector<16x16xf32>
    %25 = math.exp %24 : vector<16x16xf32>
    %cst_18 = arith.constant dense<0.000000e+00> : vector<16xf32>
    %26 = vector.multi_reduction <add>, %25, %cst_18 [1] : vector<16x16xf32> to vector<16xf32>
    %27 = vector.shape_cast %26 : vector<16xf32> to vector<16x1xf32>
    %28 = tpu.reciprocal %27 {approx = true} : vector<16x1xf32> -> vector<16x1xf32>
    %29 = vector.broadcast %28 : vector<16x1xf32> to vector<16x16xf32>
    %30 = arith.mulf %25, %29 : vector<16x16xf32>
    %31 = arith.mulf %30, %15 : vector<16x16xf32>
    %cst_19 = arith.constant dense<0.000000e+00> : vector<16x8xf32>
    %32 = tpu.matmul %31, %9, %cst_19 {dimension_numbers = #tpu.dot_dimension_numbers<[1], [0], [0], [1], [0, 0, 1, 1], [], []>} : vector<16x16xf32>, vector<16x8xf32>, vector<16x8xf32> -> vector<16x8xf32>
    %33 = vector.extract_strided_slice %4 {offsets = [0, 8], sizes = [16, 8], strides = [1, 1]} : vector<16x32xf32> to vector<16x8xf32>
    %34 = vector.extract_strided_slice %6 {offsets = [0, 8], sizes = [16, 8], strides = [1, 1]} : vector<16x64xf32> to vector<16x8xf32>
    %35 = vector.extract_strided_slice %6 {offsets = [0, 40], sizes = [16, 8], strides = [1, 1]} : vector<16x64xf32> to vector<16x8xf32>
    %c0_20 = arith.constant 0 : index
    %c1 = arith.constant 1 : index
    %c0_21 = arith.constant 0 : index
    %c0_22 = arith.constant 0 : index
    %36 = vector.load %arg2[%c0_20, %c1, %c0_21, %c0_22] : memref<1x12x16x16xf32, #tpu.memory_space<vmem>>, vector<1x1x16x16xf32>
    %37 = vector.shape_cast %36 : vector<1x1x16x16xf32> to vector<16x16xf32>
    %c0_23 = arith.constant 0 : index
    %c5 = arith.constant 5 : index
    %c0_24 = arith.constant 0 : index
    %c0_25 = arith.constant 0 : index
    %38 = vector.load %arg2[%c0_23, %c5, %c0_24, %c0_25] : memref<1x12x16x16xf32, #tpu.memory_space<vmem>>, vector<1x1x16x16xf32>
    %39 = vector.shape_cast %38 : vector<1x1x16x16xf32> to vector<16x16xf32>
    %c0_26 = arith.constant 0 : index
    %c9 = arith.constant 9 : index
    %c0_27 = arith.constant 0 : index
    %c0_28 = arith.constant 0 : index
    %40 = vector.load %arg2[%c0_26, %c9, %c0_27, %c0_28] : memref<1x12x16x16xf32, #tpu.memory_space<vmem>>, vector<1x1x16x16xf32>
    %41 = vector.shape_cast %40 : vector<1x1x16x16xf32> to vector<16x16xf32>
    %cst_29 = arith.constant dense<0.000000e+00> : vector<16x16xf32>
    %42 = tpu.matmul %33, %34, %cst_29 {dimension_numbers = #tpu.dot_dimension_numbers<[1], [1], [0], [0], [0, 0, 1, 0], [], []>} : vector<16x8xf32>, vector<16x8xf32>, vector<16x16xf32> -> vector<16x16xf32>
    %43 = arith.mulf %37, %39 : vector<16x16xf32>
    %44 = arith.mulf %43, %42 : vector<16x16xf32>
    %cst_30 = arith.constant 0.353553385 : f32
    %45 = vector.broadcast %cst_30 : f32 to vector<16x16xf32>
    %46 = arith.mulf %44, %45 : vector<16x16xf32>
    %cst_31 = arith.constant dense<0xFF800000> : vector<16xf32>
    %47 = vector.multi_reduction <maximumf>, %46, %cst_31 [1] : vector<16x16xf32> to vector<16xf32>
    %48 = vector.shape_cast %47 : vector<16xf32> to vector<16x1xf32>
    %49 = vector.broadcast %48 : vector<16x1xf32> to vector<16x16xf32>
    %50 = arith.subf %46, %49 : vector<16x16xf32>
    %51 = math.exp %50 : vector<16x16xf32>
    %cst_32 = arith.constant dense<0.000000e+00> : vector<16xf32>
    %52 = vector.multi_reduction <add>, %51, %cst_32 [1] : vector<16x16xf32> to vector<16xf32>
    %53 = vector.shape_cast %52 : vector<16xf32> to vector<16x1xf32>
    %54 = tpu.reciprocal %53 {approx = true} : vector<16x1xf32> -> vector<16x1xf32>
    %55 = vector.broadcast %54 : vector<16x1xf32> to vector<16x16xf32>
    %56 = arith.mulf %51, %55 : vector<16x16xf32>
    %57 = arith.mulf %56, %41 : vector<16x16xf32>
    %cst_33 = arith.constant dense<0.000000e+00> : vector<16x8xf32>
    %58 = tpu.matmul %57, %35, %cst_33 {dimension_numbers = #tpu.dot_dimension_numbers<[1], [0], [0], [1], [0, 0, 1, 1], [], []>} : vector<16x16xf32>, vector<16x8xf32>, vector<16x8xf32> -> vector<16x8xf32>
    %59 = vector.extract_strided_slice %4 {offsets = [0, 16], sizes = [16, 8], strides = [1, 1]} : vector<16x32xf32> to vector<16x8xf32>
    %60 = vector.extract_strided_slice %6 {offsets = [0, 16], sizes = [16, 8], strides = [1, 1]} : vector<16x64xf32> to vector<16x8xf32>
    %61 = vector.extract_strided_slice %6 {offsets = [0, 48], sizes = [16, 8], strides = [1, 1]} : vector<16x64xf32> to vector<16x8xf32>
    %c0_34 = arith.constant 0 : index
    %c2 = arith.constant 2 : index
    %c0_35 = arith.constant 0 : index
    %c0_36 = arith.constant 0 : index
    %62 = vector.load %arg2[%c0_34, %c2, %c0_35, %c0_36] : memref<1x12x16x16xf32, #tpu.memory_space<vmem>>, vector<1x1x16x16xf32>
    %63 = vector.shape_cast %62 : vector<1x1x16x16xf32> to vector<16x16xf32>
    %c0_37 = arith.constant 0 : index
    %c6 = arith.constant 6 : index
    %c0_38 = arith.constant 0 : index
    %c0_39 = arith.constant 0 : index
    %64 = vector.load %arg2[%c0_37, %c6, %c0_38, %c0_39] : memref<1x12x16x16xf32, #tpu.memory_space<vmem>>, vector<1x1x16x16xf32>
    %65 = vector.shape_cast %64 : vector<1x1x16x16xf32> to vector<16x16xf32>
    %c0_40 = arith.constant 0 : index
    %c10 = arith.constant 10 : index
    %c0_41 = arith.constant 0 : index
    %c0_42 = arith.constant 0 : index
    %66 = vector.load %arg2[%c0_40, %c10, %c0_41, %c0_42] : memref<1x12x16x16xf32, #tpu.memory_space<vmem>>, vector<1x1x16x16xf32>
    %67 = vector.shape_cast %66 : vector<1x1x16x16xf32> to vector<16x16xf32>
    %cst_43 = arith.constant dense<0.000000e+00> : vector<16x16xf32>
    %68 = tpu.matmul %59, %60, %cst_43 {dimension_numbers = #tpu.dot_dimension_numbers<[1], [1], [0], [0], [0, 0, 1, 0], [], []>} : vector<16x8xf32>, vector<16x8xf32>, vector<16x16xf32> -> vector<16x16xf32>
    %69 = arith.mulf %63, %65 : vector<16x16xf32>
    %70 = arith.mulf %69, %68 : vector<16x16xf32>
    %cst_44 = arith.constant 0.353553385 : f32
    %71 = vector.broadcast %cst_44 : f32 to vector<16x16xf32>
    %72 = arith.mulf %70, %71 : vector<16x16xf32>
    %cst_45 = arith.constant dense<0xFF800000> : vector<16xf32>
    %73 = vector.multi_reduction <maximumf>, %72, %cst_45 [1] : vector<16x16xf32> to vector<16xf32>
    %74 = vector.shape_cast %73 : vector<16xf32> to vector<16x1xf32>
    %75 = vector.broadcast %74 : vector<16x1xf32> to vector<16x16xf32>
    %76 = arith.subf %72, %75 : vector<16x16xf32>
    %77 = math.exp %76 : vector<16x16xf32>
    %cst_46 = arith.constant dense<0.000000e+00> : vector<16xf32>
    %78 = vector.multi_reduction <add>, %77, %cst_46 [1] : vector<16x16xf32> to vector<16xf32>
    %79 = vector.shape_cast %78 : vector<16xf32> to vector<16x1xf32>
    %80 = tpu.reciprocal %79 {approx = true} : vector<16x1xf32> -> vector<16x1xf32>
    %81 = vector.broadcast %80 : vector<16x1xf32> to vector<16x16xf32>
    %82 = arith.mulf %77, %81 : vector<16x16xf32>
    %83 = arith.mulf %82, %67 : vector<16x16xf32>
    %cst_47 = arith.constant dense<0.000000e+00> : vector<16x8xf32>
    %84 = tpu.matmul %83, %61, %cst_47 {dimension_numbers = #tpu.dot_dimension_numbers<[1], [0], [0], [1], [0, 0, 1, 1], [], []>} : vector<16x16xf32>, vector<16x8xf32>, vector<16x8xf32> -> vector<16x8xf32>
    %85 = vector.extract_strided_slice %4 {offsets = [0, 24], sizes = [16, 8], strides = [1, 1]} : vector<16x32xf32> to vector<16x8xf32>
    %86 = vector.extract_strided_slice %6 {offsets = [0, 24], sizes = [16, 8], strides = [1, 1]} : vector<16x64xf32> to vector<16x8xf32>
    %87 = vector.extract_strided_slice %6 {offsets = [0, 56], sizes = [16, 8], strides = [1, 1]} : vector<16x64xf32> to vector<16x8xf32>
    %c0_48 = arith.constant 0 : index
    %c3 = arith.constant 3 : index
    %c0_49 = arith.constant 0 : index
    %c0_50 = arith.constant 0 : index
    %88 = vector.load %arg2[%c0_48, %c3, %c0_49, %c0_50] : memref<1x12x16x16xf32, #tpu.memory_space<vmem>>, vector<1x1x16x16xf32>
    %89 = vector.shape_cast %88 : vector<1x1x16x16xf32> to vector<16x16xf32>
    %c0_51 = arith.constant 0 : index
    %c7 = arith.constant 7 : index
    %c0_52 = arith.constant 0 : index
    %c0_53 = arith.constant 0 : index
    %90 = vector.load %arg2[%c0_51, %c7, %c0_52, %c0_53] : memref<1x12x16x16xf32, #tpu.memory_space<vmem>>, vector<1x1x16x16xf32>
    %91 = vector.shape_cast %90 : vector<1x1x16x16xf32> to vector<16x16xf32>
    %c0_54 = arith.constant 0 : index
    %c11 = arith.constant 11 : index
    %c0_55 = arith.constant 0 : index
    %c0_56 = arith.constant 0 : index
    %92 = vector.load %arg2[%c0_54, %c11, %c0_55, %c0_56] : memref<1x12x16x16xf32, #tpu.memory_space<vmem>>, vector<1x1x16x16xf32>
    %93 = vector.shape_cast %92 : vector<1x1x16x16xf32> to vector<16x16xf32>
    %cst_57 = arith.constant dense<0.000000e+00> : vector<16x16xf32>
    %94 = tpu.matmul %85, %86, %cst_57 {dimension_numbers = #tpu.dot_dimension_numbers<[1], [1], [0], [0], [0, 0, 1, 0], [], []>} : vector<16x8xf32>, vector<16x8xf32>, vector<16x16xf32> -> vector<16x16xf32>
    %95 = arith.mulf %89, %91 : vector<16x16xf32>
    %96 = arith.mulf %95, %94 : vector<16x16xf32>
    %cst_58 = arith.constant 0.353553385 : f32
    %97 = vector.broadcast %cst_58 : f32 to vector<16x16xf32>
    %98 = arith.mulf %96, %97 : vector<16x16xf32>
    %cst_59 = arith.constant dense<0xFF800000> : vector<16xf32>
    %99 = vector.multi_reduction <maximumf>, %98, %cst_59 [1] : vector<16x16xf32> to vector<16xf32>
    %100 = vector.shape_cast %99 : vector<16xf32> to vector<16x1xf32>
    %101 = vector.broadcast %100 : vector<16x1xf32> to vector<16x16xf32>
    %102 = arith.subf %98, %101 : vector<16x16xf32>
    %103 = math.exp %102 : vector<16x16xf32>
    %cst_60 = arith.constant dense<0.000000e+00> : vector<16xf32>
    %104 = vector.multi_reduction <add>, %103, %cst_60 [1] : vector<16x16xf32> to vector<16xf32>
    %105 = vector.shape_cast %104 : vector<16xf32> to vector<16x1xf32>
    %106 = tpu.reciprocal %105 {approx = true} : vector<16x1xf32> -> vector<16x1xf32>
    %107 = vector.broadcast %106 : vector<16x1xf32> to vector<16x16xf32>
    %108 = arith.mulf %103, %107 : vector<16x16xf32>
    %109 = arith.mulf %108, %93 : vector<16x16xf32>
    %cst_61 = arith.constant dense<0.000000e+00> : vector<16x8xf32>
    %110 = tpu.matmul %109, %87, %cst_61 {dimension_numbers = #tpu.dot_dimension_numbers<[1], [0], [0], [1], [0, 0, 1, 1], [], []>} : vector<16x16xf32>, vector<16x8xf32>, vector<16x8xf32> -> vector<16x8xf32>
    %111 = tpu.concatenate %32, %58, %84, %110 in 1 : vector<16x8xf32>, vector<16x8xf32>, vector<16x8xf32>, vector<16x8xf32> -> vector<16x32xf32>
    %112 = arith.addf %1, %111 : vector<16x32xf32>
    %c0_62 = arith.constant 0 : index
    %c0_63 = arith.constant 0 : index
    %113 = vector.load %arg4[%c0_62, %c0_63] : memref<1x32xf32, #tpu.memory_space<vmem>>, vector<1x32xf32>
    %c0_64 = arith.constant 0 : index
    %c0_65 = arith.constant 0 : index
    %114 = vector.load %arg5[%c0_64, %c0_65] : memref<1x32xf32, #tpu.memory_space<vmem>>, vector<1x32xf32>
    %cst_66 = arith.constant dense<0.000000e+00> : vector<16xf32>
    %115 = vector.multi_reduction <add>, %112, %cst_66 [1] : vector<16x32xf32> to vector<16xf32>
    %116 = vector.shape_cast %115 : vector<16xf32> to vector<16x1xf32>
    %cst_67 = arith.constant 3.200000e+01 : f32
    %117 = vector.broadcast %cst_67 : f32 to vector<16x1xf32>
    %118 = arith.divf %116, %117 : vector<16x1xf32>
    %119 = vector.broadcast %118 : vector<16x1xf32> to vector<16x32xf32>
    %120 = arith.subf %112, %119 : vector<16x32xf32>
    %121 = arith.mulf %120, %120 : vector<16x32xf32>
    %cst_68 = arith.constant dense<0.000000e+00> : vector<16xf32>
    %122 = vector.multi_reduction <add>, %121, %cst_68 [1] : vector<16x32xf32> to vector<16xf32>
    %123 = vector.shape_cast %122 : vector<16xf32> to vector<16x1xf32>
    %cst_69 = arith.constant 3.200000e+01 : f32
    %124 = vector.broadcast %cst_69 : f32 to vector<16x1xf32>
    %125 = arith.divf %123, %124 : vector<16x1xf32>
    %126 = vector.broadcast %118 : vector<16x1xf32> to vector<16x32xf32>
    %127 = arith.subf %112, %126 : vector<16x32xf32>
    %cst_70 = arith.constant 9.99999974E-6 : f32
    %128 = vector.broadcast %cst_70 : f32 to vector<16x1xf32>
    %129 = arith.addf %125, %128 : vector<16x1xf32>
    %130 = math.rsqrt %129 : vector<16x1xf32>
    %131 = vector.broadcast %130 : vector<16x1xf32> to vector<16x32xf32>
    %132 = arith.mulf %127, %131 : vector<16x32xf32>
    %133 = vector.broadcast %113 : vector<1x32xf32> to vector<16x32xf32>
    %134 = arith.mulf %132, %133 : vector<16x32xf32>
    %135 = vector.broadcast %114 : vector<1x32xf32> to vector<16x32xf32>
    %136 = arith.addf %134, %135 : vector<16x32xf32>
    %c0_71 = arith.constant 0 : index
    %c0_72 = arith.constant 0 : index
    %137 = vector.load %arg6[%c0_71, %c0_72] : memref<32x64xf32, #tpu.memory_space<vmem>>, vector<32x64xf32>
    %cst_73 = arith.constant dense<0.000000e+00> : vector<16x64xf32>
    %138 = tpu.matmul %136, %137, %cst_73 {dimension_numbers = #tpu.dot_dimension_numbers<[1], [0], [0], [1], [0, 0, 1, 1], [], []>} : vector<16x32xf32>, vector<32x64xf32>, vector<16x64xf32> -> vector<16x64xf32>
    %c0_74 = arith.constant 0 : index
    %c0_75 = arith.constant 0 : index
    %139 = vector.load %arg7[%c0_74, %c0_75] : memref<1x64xf32, #tpu.memory_space<vmem>>, vector<1x64xf32>
    %140 = vector.broadcast %139 : vector<1x64xf32> to vector<16x64xf32>
    %141 = arith.addf %138, %140 : vector<16x64xf32>
    %cst_76 = arith.constant 0.000000e+00 : f32
    %142 = vector.broadcast %cst_76 : f32 to vector<16x64xf32>
    %143 = arith.maximumf %141, %142 : vector<16x64xf32>
    %c0_77 = arith.constant 0 : index
    %c0_78 = arith.constant 0 : index
    %144 = vector.load %arg8[%c0_77, %c0_78] : memref<64x32xf32, #tpu.memory_space<vmem>>, vector<64x32xf32>
    %cst_79 = arith.constant dense<0.000000e+00> : vector<16x32xf32>
    %145 = tpu.matmul %143, %144, %cst_79 {dimension_numbers = #tpu.dot_dimension_numbers<[1], [0], [0], [1], [0, 0, 1, 1], [], []>} : vector<16x64xf32>, vector<64x32xf32>, vector<16x32xf32> -> vector<16x32xf32>
    %c0_80 = arith.constant 0 : index
    %c0_81 = arith.constant 0 : index
    %146 = vector.load %arg9[%c0_80, %c0_81] : memref<1x32xf32, #tpu.memory_space<vmem>>, vector<1x32xf32>
    %147 = vector.broadcast %146 : vector<1x32xf32> to vector<16x32xf32>
    %148 = arith.addf %145, %147 : vector<16x32xf32>
    %149 = arith.addf %136, %148 : vector<16x32xf32>
    %c0_82 = arith.constant 0 : index
    %c0_83 = arith.constant 0 : index
    %150 = vector.load %arg10[%c0_82, %c0_83] : memref<1x32xf32, #tpu.memory_space<vmem>>, vector<1x32xf32>
    %c0_84 = arith.constant 0 : index
    %c0_85 = arith.constant 0 : index
    %151 = vector.load %arg11[%c0_84, %c0_85] : memref<1x32xf32, #tpu.memory_space<vmem>>, vector<1x32xf32>
    %cst_86 = arith.constant dense<0.000000e+00> : vector<16xf32>
    %152 = vector.multi_reduction <add>, %149, %cst_86 [1] : vector<16x32xf32> to vector<16xf32>
    %153 = vector.shape_cast %152 : vector<16xf32> to vector<16x1xf32>
    %cst_87 = arith.constant 3.200000e+01 : f32
    %154 = vector.broadcast %cst_87 : f32 to vector<16x1xf32>
    %155 = arith.divf %153, %154 : vector<16x1xf32>
    %156 = vector.broadcast %155 : vector<16x1xf32> to vector<16x32xf32>
    %157 = arith.subf %149, %156 : vector<16x32xf32>
    %158 = arith.mulf %157, %157 : vector<16x32xf32>
    %cst_88 = arith.constant dense<0.000000e+00> : vector<16xf32>
    %159 = vector.multi_reduction <add>, %158, %cst_88 [1] : vector<16x32xf32> to vector<16xf32>
    %160 = vector.shape_cast %159 : vector<16xf32> to vector<16x1xf32>
    %cst_89 = arith.constant 3.200000e+01 : f32
    %161 = vector.broadcast %cst_89 : f32 to vector<16x1xf32>
    %162 = arith.divf %160, %161 : vector<16x1xf32>
    %163 = vector.broadcast %155 : vector<16x1xf32> to vector<16x32xf32>
    %164 = arith.subf %149, %163 : vector<16x32xf32>
    %cst_90 = arith.constant 9.99999974E-6 : f32
    %165 = vector.broadcast %cst_90 : f32 to vector<16x1xf32>
    %166 = arith.addf %162, %165 : vector<16x1xf32>
    %167 = math.rsqrt %166 : vector<16x1xf32>
    %168 = vector.broadcast %167 : vector<16x1xf32> to vector<16x32xf32>
    %169 = arith.mulf %164, %168 : vector<16x32xf32>
    %170 = vector.broadcast %150 : vector<1x32xf32> to vector<16x32xf32>
    %171 = arith.mulf %169, %170 : vector<16x32xf32>
    %172 = vector.broadcast %151 : vector<1x32xf32> to vector<16x32xf32>
    %173 = arith.addf %171, %172 : vector<16x32xf32>
    %c0_91 = arith.constant 0 : index
    %c0_92 = arith.constant 0 : index
    %c0_93 = arith.constant 0 : index
    %174 = vector.load %arg12[%c0_91, %c0_92, %c0_93] : memref<1x16x32xf32, #tpu.memory_space<vmem>>, vector<1x16x32xf32>
    %175 = vector.shape_cast %174 : vector<1x16x32xf32> to vector<16x32xf32>
    %176 = vector.shape_cast %173 : vector<16x32xf32> to vector<1x16x32xf32>
    tpu.vector_store %arg12[%c0_91, %c0_92, %c0_93], %176 {strides = array<i32>} : memref<1x16x32xf32, #tpu.memory_space<vmem>>, vector<1x16x32xf32>,
    return
  }
  func.func @transform_0(%arg0: i32) -> (i32, i32, i32) {
    %c0_i32 = arith.constant 0 : i32
    %c0_i32_0 = arith.constant 0 : i32
    %c0_i32_1 = arith.constant 0 : i32
    return %arg0, %c0_i32, %c0_i32_0 : i32, i32, i32
  }
  func.func @transform_1(%arg0: i32) -> (i32, i32, i32, i32) {
    %c0_i32 = arith.constant 0 : i32
    %c0_i32_0 = arith.constant 0 : i32
    %c0_i32_1 = arith.constant 0 : i32
    %c0_i32_2 = arith.constant 0 : i32
    return %arg0, %c0_i32, %c0_i32_0, %c0_i32_1 : i32, i32, i32, i32
  }
  func.func @transform_2(%arg0: i32) -> (i32, i32) {
    %c0_i32 = arith.constant 0 : i32
    %c0_i32_0 = arith.constant 0 : i32
    %c0_i32_1 = arith.constant 0 : i32
    return %c0_i32, %c0_i32_0 : i32, i32
  }
  func.func @transform_3(%arg0: i32) -> (i32, i32) {
    %c0_i32 = arith.constant 0 : i32
    %c0_i32_0 = arith.constant 0 : i32
    %c0_i32_1 = arith.constant 0 : i32
    return %c0_i32, %c0_i32_0 : i32, i32
  }
  func.func @transform_4(%arg0: i32) -> (i32, i32) {
    %c0_i32 = arith.constant 0 : i32
    %c0_i32_0 = arith.constant 0 : i32
    %c0_i32_1 = arith.constant 0 : i32
    return %c0_i32, %c0_i32_0 : i32, i32
  }
  func.func @transform_5(%arg0: i32) -> (i32, i32) {
    %c0_i32 = arith.constant 0 : i32
    %c0_i32_0 = arith.constant 0 : i32
    %c0_i32_1 = arith.constant 0 : i32
    return %c0_i32, %c0_i32_0 : i32, i32
  }
  func.func @transform_6(%arg0: i32) -> (i32, i32) {
    %c0_i32 = arith.constant 0 : i32
    %c0_i32_0 = arith.constant 0 : i32
    %c0_i32_1 = arith.constant 0 : i32
    return %c0_i32, %c0_i32_0 : i32, i32
  }
  func.func @transform_7(%arg0: i32) -> (i32, i32) {
    %c0_i32 = arith.constant 0 : i32
    %c0_i32_0 = arith.constant 0 : i32
    %c0_i32_1 = arith.constant 0 : i32
    return %c0_i32, %c0_i32_0 : i32, i32
  }
  func.func @transform_8(%arg0: i32) -> (i32, i32) {
    %c0_i32 = arith.constant 0 : i32
    %c0_i32_0 = arith.constant 0 : i32
    %c0_i32_1 = arith.constant 0 : i32
    return %c0_i32, %c0_i32_0 : i32, i32
  }
  func.func @transform_9(%arg0: i32) -> (i32, i32) {
    %c0_i32 = arith.constant 0 : i32
    %c0_i32_0 = arith.constant 0 : i32
    %c0_i32_1 = arith.constant 0 : i32
    return %c0_i32, %c0_i32_0 : i32, i32
  }
  func.func @transform_10(%arg0: i32) -> (i32, i32) {
    %c0_i32 = arith.constant 0 : i32
    %c0_i32_0 = arith.constant 0 : i32
    %c0_i32_1 = arith.constant 0 : i32
    return %c0_i32, %c0_i32_0 : i32, i32
  }
  func.func @transform_11(%arg0: i32) -> (i32, i32, i32) {
    %c0_i32 = arith.constant 0 : i32
    %c0_i32_0 = arith.constant 0 : i32
    %c0_i32_1 = arith.constant 0 : i32
    return %arg0, %c0_i32, %c0_i32_0 : i32, i32, i32
  }
}

module attributes {stable_mosaic.version = 11 : i64} {
  func.func @_phi_kernel(%arg0: i32, %arg1: memref<1x192x4xf32, #tpu.memory_space<vmem>>, %arg2: memref<4x96xf32, #tpu.memory_space<vmem>>, %arg3: memref<1x96xf32, #tpu.memory_space<vmem>>, %arg4: memref<96x96xf32, #tpu.memory_space<vmem>>, %arg5: memref<1x96xf32, #tpu.memory_space<vmem>>, %arg6: memref<96x12xf32, #tpu.memory_space<vmem>>, %arg7: memref<1x12xf32, #tpu.memory_space<vmem>>, %arg8: memref<1x192x12xf32, #tpu.memory_space<vmem>>) attributes {dimension_semantics = [#tpu.dimension_semantics<parallel>], iteration_bounds = array<i64: 2>, scalar_prefetch = 0 : i64, scratch_operands = 0 : i64, tpu.core_type = #tpu.core_type<tc>, window_params = [{transform_indices = @transform_0, window_bounds = array<i64: 1, 192, 4>}, {pipeline_mode = #tpu.pipeline_mode<synchronous>, transform_indices = @transform_1, window_bounds = array<i64: 4, 96>}, {pipeline_mode = #tpu.pipeline_mode<synchronous>, transform_indices = @transform_2, window_bounds = array<i64: 1, 96>}, {pipeline_mode = #tpu.pipeline_mode<synchronous>, transform_indices = @transform_3, window_bounds = array<i64: 96, 96>}, {pipeline_mode = #tpu.pipeline_mode<synchronous>, transform_indices = @transform_4, window_bounds = array<i64: 1, 96>}, {pipeline_mode = #tpu.pipeline_mode<synchronous>, transform_indices = @transform_5, window_bounds = array<i64: 96, 12>}, {pipeline_mode = #tpu.pipeline_mode<synchronous>, transform_indices = @transform_6, window_bounds = array<i64: 1, 12>}, {transform_indices = @transform_7, window_bounds = array<i64: 1, 192, 12>}]} {
    %c0 = arith.constant 0 : index
    %c0_0 = arith.constant 0 : index
    %c0_1 = arith.constant 0 : index
    %0 = vector.load %arg1[%c0, %c0_0, %c0_1] : memref<1x192x4xf32, #tpu.memory_space<vmem>>, vector<1x192x4xf32>
    %1 = vector.shape_cast %0 : vector<1x192x4xf32> to vector<192x4xf32>
    %c0_2 = arith.constant 0 : index
    %c0_3 = arith.constant 0 : index
    %2 = vector.load %arg2[%c0_2, %c0_3] : memref<4x96xf32, #tpu.memory_space<vmem>>, vector<4x96xf32>
    %c0_4 = arith.constant 0 : index
    %c0_5 = arith.constant 0 : index
    %3 = vector.load %arg3[%c0_4, %c0_5] : memref<1x96xf32, #tpu.memory_space<vmem>>, vector<1x96xf32>
    %cst = arith.constant dense<0.000000e+00> : vector<192x96xf32>
    %4 = tpu.matmul %1, %2, %cst {dimension_numbers = #tpu.dot_dimension_numbers<[1], [0], [0], [1], [0, 0, 1, 1], [], []>} : vector<192x4xf32>, vector<4x96xf32>, vector<192x96xf32> -> vector<192x96xf32>
    %5 = vector.broadcast %3 : vector<1x96xf32> to vector<192x96xf32>
    %6 = arith.addf %4, %5 : vector<192x96xf32>
    %cst_6 = arith.constant 0.000000e+00 : f32
    %7 = vector.broadcast %cst_6 : f32 to vector<192x96xf32>
    %8 = arith.maximumf %6, %7 : vector<192x96xf32>
    %c0_7 = arith.constant 0 : index
    %c0_8 = arith.constant 0 : index
    %9 = vector.load %arg4[%c0_7, %c0_8] : memref<96x96xf32, #tpu.memory_space<vmem>>, vector<96x96xf32>
    %c0_9 = arith.constant 0 : index
    %c0_10 = arith.constant 0 : index
    %10 = vector.load %arg5[%c0_9, %c0_10] : memref<1x96xf32, #tpu.memory_space<vmem>>, vector<1x96xf32>
    %cst_11 = arith.constant dense<0.000000e+00> : vector<192x96xf32>
    %11 = tpu.matmul %8, %9, %cst_11 {dimension_numbers = #tpu.dot_dimension_numbers<[1], [0], [0], [1], [0, 0, 1, 1], [], []>} : vector<192x96xf32>, vector<96x96xf32>, vector<192x96xf32> -> vector<192x96xf32>
    %12 = vector.broadcast %10 : vector<1x96xf32> to vector<192x96xf32>
    %13 = arith.addf %11, %12 : vector<192x96xf32>
    %cst_12 = arith.constant 0.000000e+00 : f32
    %14 = vector.broadcast %cst_12 : f32 to vector<192x96xf32>
    %15 = arith.maximumf %13, %14 : vector<192x96xf32>
    %c0_13 = arith.constant 0 : index
    %c0_14 = arith.constant 0 : index
    %16 = vector.load %arg6[%c0_13, %c0_14] : memref<96x12xf32, #tpu.memory_space<vmem>>, vector<96x12xf32>
    %c0_15 = arith.constant 0 : index
    %c0_16 = arith.constant 0 : index
    %17 = vector.load %arg7[%c0_15, %c0_16] : memref<1x12xf32, #tpu.memory_space<vmem>>, vector<1x12xf32>
    %cst_17 = arith.constant dense<0.000000e+00> : vector<192x12xf32>
    %18 = tpu.matmul %15, %16, %cst_17 {dimension_numbers = #tpu.dot_dimension_numbers<[1], [0], [0], [1], [0, 0, 1, 1], [], []>} : vector<192x96xf32>, vector<96x12xf32>, vector<192x12xf32> -> vector<192x12xf32>
    %19 = vector.broadcast %17 : vector<1x12xf32> to vector<192x12xf32>
    %20 = arith.addf %18, %19 : vector<192x12xf32>
    %c0_18 = arith.constant 0 : index
    %c0_19 = arith.constant 0 : index
    %c0_20 = arith.constant 0 : index
    %21 = vector.load %arg8[%c0_18, %c0_19, %c0_20] : memref<1x192x12xf32, #tpu.memory_space<vmem>>, vector<1x192x12xf32>
    %22 = vector.shape_cast %21 : vector<1x192x12xf32> to vector<192x12xf32>
    %23 = vector.shape_cast %20 : vector<192x12xf32> to vector<1x192x12xf32>
    tpu.vector_store %arg8[%c0_18, %c0_19, %c0_20], %23 {strides = array<i32>} : memref<1x192x12xf32, #tpu.memory_space<vmem>>, vector<1x192x12xf32>,
    return
  }
  func.func @transform_0(%arg0: i32) -> (i32, i32, i32) {
    %c0_i32 = arith.constant 0 : i32
    %c0_i32_0 = arith.constant 0 : i32
    %c0_i32_1 = arith.constant 0 : i32
    return %arg0, %c0_i32, %c0_i32_0 : i32, i32, i32
  }
  func.func @transform_1(%arg0: i32) -> (i32, i32) {
    %c0_i32 = arith.constant 0 : i32
    %c0_i32_0 = arith.constant 0 : i32
    %c0_i32_1 = arith.constant 0 : i32
    return %c0_i32, %c0_i32_0 : i32, i32
  }
  func.func @transform_2(%arg0: i32) -> (i32, i32) {
    %c0_i32 = arith.constant 0 : i32
    %c0_i32_0 = arith.constant 0 : i32
    %c0_i32_1 = arith.constant 0 : i32
    return %c0_i32, %c0_i32_0 : i32, i32
  }
  func.func @transform_3(%arg0: i32) -> (i32, i32) {
    %c0_i32 = arith.constant 0 : i32
    %c0_i32_0 = arith.constant 0 : i32
    %c0_i32_1 = arith.constant 0 : i32
    return %c0_i32, %c0_i32_0 : i32, i32
  }
  func.func @transform_4(%arg0: i32) -> (i32, i32) {
    %c0_i32 = arith.constant 0 : i32
    %c0_i32_0 = arith.constant 0 : i32
    %c0_i32_1 = arith.constant 0 : i32
    return %c0_i32, %c0_i32_0 : i32, i32
  }
  func.func @transform_5(%arg0: i32) -> (i32, i32) {
    %c0_i32 = arith.constant 0 : i32
    %c0_i32_0 = arith.constant 0 : i32
    %c0_i32_1 = arith.constant 0 : i32
    return %c0_i32, %c0_i32_0 : i32, i32
  }
  func.func @transform_6(%arg0: i32) -> (i32, i32) {
    %c0_i32 = arith.constant 0 : i32
    %c0_i32_0 = arith.constant 0 : i32
    %c0_i32_1 = arith.constant 0 : i32
    return %c0_i32, %c0_i32_0 : i32, i32
  }
  func.func @transform_7(%arg0: i32) -> (i32, i32, i32) {
    %c0_i32 = arith.constant 0 : i32
    %c0_i32_0 = arith.constant 0 : i32
    %c0_i32_1 = arith.constant 0 : i32
    return %arg0, %c0_i32, %c0_i32_0 : i32, i32, i32
  }
}

module attributes {stable_mosaic.version = 11 : i64} {
  func.func @_linear2d_kernel(%arg0: i32, %arg1: memref<24x4xf32, #tpu.memory_space<vmem>>, %arg2: memref<4x32xf32, #tpu.memory_space<vmem>>, %arg3: memref<1x32xf32, #tpu.memory_space<vmem>>, %arg4: memref<24x32xf32, #tpu.memory_space<vmem>>) attributes {dimension_semantics = [#tpu.dimension_semantics<arbitrary>], iteration_bounds = array<i64: 1>, scalar_prefetch = 0 : i64, scratch_operands = 0 : i64, tpu.core_type = #tpu.core_type<tc>, window_params = [{pipeline_mode = #tpu.pipeline_mode<synchronous>, transform_indices = @transform_0, window_bounds = array<i64: 24, 4>}, {pipeline_mode = #tpu.pipeline_mode<synchronous>, transform_indices = @transform_1, window_bounds = array<i64: 4, 32>}, {pipeline_mode = #tpu.pipeline_mode<synchronous>, transform_indices = @transform_2, window_bounds = array<i64: 1, 32>}, {pipeline_mode = #tpu.pipeline_mode<synchronous>, transform_indices = @transform_3, window_bounds = array<i64: 24, 32>}]} {
    %c0 = arith.constant 0 : index
    %c0_0 = arith.constant 0 : index
    %0 = vector.load %arg1[%c0, %c0_0] : memref<24x4xf32, #tpu.memory_space<vmem>>, vector<24x4xf32>
    %c0_1 = arith.constant 0 : index
    %c0_2 = arith.constant 0 : index
    %1 = vector.load %arg2[%c0_1, %c0_2] : memref<4x32xf32, #tpu.memory_space<vmem>>, vector<4x32xf32>
    %cst = arith.constant dense<0.000000e+00> : vector<24x32xf32>
    %2 = tpu.matmul %0, %1, %cst {dimension_numbers = #tpu.dot_dimension_numbers<[1], [0], [0], [1], [0, 0, 1, 1], [], []>} : vector<24x4xf32>, vector<4x32xf32>, vector<24x32xf32> -> vector<24x32xf32>
    %c0_3 = arith.constant 0 : index
    %c0_4 = arith.constant 0 : index
    %3 = vector.load %arg3[%c0_3, %c0_4] : memref<1x32xf32, #tpu.memory_space<vmem>>, vector<1x32xf32>
    %4 = vector.broadcast %3 : vector<1x32xf32> to vector<24x32xf32>
    %5 = arith.addf %2, %4 : vector<24x32xf32>
    %c0_5 = arith.constant 0 : index
    %c0_6 = arith.constant 0 : index
    %6 = vector.load %arg4[%c0_5, %c0_6] : memref<24x32xf32, #tpu.memory_space<vmem>>, vector<24x32xf32>
    tpu.vector_store %arg4[%c0_5, %c0_6], %5 {strides = array<i32>} : memref<24x32xf32, #tpu.memory_space<vmem>>, vector<24x32xf32>,
    return
  }
  func.func @transform_0(%arg0: i32) -> (i32, i32) {
    %c0_i32 = arith.constant 0 : i32
    %c0_i32_0 = arith.constant 0 : i32
    %c0_i32_1 = arith.constant 0 : i32
    return %c0_i32, %c0_i32_0 : i32, i32
  }
  func.func @transform_1(%arg0: i32) -> (i32, i32) {
    %c0_i32 = arith.constant 0 : i32
    %c0_i32_0 = arith.constant 0 : i32
    %c0_i32_1 = arith.constant 0 : i32
    return %c0_i32, %c0_i32_0 : i32, i32
  }
  func.func @transform_2(%arg0: i32) -> (i32, i32) {
    %c0_i32 = arith.constant 0 : i32
    %c0_i32_0 = arith.constant 0 : i32
    %c0_i32_1 = arith.constant 0 : i32
    return %c0_i32, %c0_i32_0 : i32, i32
  }
  func.func @transform_3(%arg0: i32) -> (i32, i32) {
    %c0_i32 = arith.constant 0 : i32
    %c0_i32_0 = arith.constant 0 : i32
    %c0_i32_1 = arith.constant 0 : i32
    return %c0_i32, %c0_i32_0 : i32, i32
  }
}

module attributes {stable_mosaic.version = 11 : i64} {
  func.func @_phi_kernel(%arg0: i32, %arg1: memref<1x144x4xf32, #tpu.memory_space<vmem>>, %arg2: memref<4x96xf32, #tpu.memory_space<vmem>>, %arg3: memref<1x96xf32, #tpu.memory_space<vmem>>, %arg4: memref<96x96xf32, #tpu.memory_space<vmem>>, %arg5: memref<1x96xf32, #tpu.memory_space<vmem>>, %arg6: memref<96x12xf32, #tpu.memory_space<vmem>>, %arg7: memref<1x12xf32, #tpu.memory_space<vmem>>, %arg8: memref<1x144x12xf32, #tpu.memory_space<vmem>>) attributes {dimension_semantics = [#tpu.dimension_semantics<parallel>], iteration_bounds = array<i64: 2>, scalar_prefetch = 0 : i64, scratch_operands = 0 : i64, tpu.core_type = #tpu.core_type<tc>, window_params = [{transform_indices = @transform_0, window_bounds = array<i64: 1, 144, 4>}, {pipeline_mode = #tpu.pipeline_mode<synchronous>, transform_indices = @transform_1, window_bounds = array<i64: 4, 96>}, {pipeline_mode = #tpu.pipeline_mode<synchronous>, transform_indices = @transform_2, window_bounds = array<i64: 1, 96>}, {pipeline_mode = #tpu.pipeline_mode<synchronous>, transform_indices = @transform_3, window_bounds = array<i64: 96, 96>}, {pipeline_mode = #tpu.pipeline_mode<synchronous>, transform_indices = @transform_4, window_bounds = array<i64: 1, 96>}, {pipeline_mode = #tpu.pipeline_mode<synchronous>, transform_indices = @transform_5, window_bounds = array<i64: 96, 12>}, {pipeline_mode = #tpu.pipeline_mode<synchronous>, transform_indices = @transform_6, window_bounds = array<i64: 1, 12>}, {transform_indices = @transform_7, window_bounds = array<i64: 1, 144, 12>}]} {
    %c0 = arith.constant 0 : index
    %c0_0 = arith.constant 0 : index
    %c0_1 = arith.constant 0 : index
    %0 = vector.load %arg1[%c0, %c0_0, %c0_1] : memref<1x144x4xf32, #tpu.memory_space<vmem>>, vector<1x144x4xf32>
    %1 = vector.shape_cast %0 : vector<1x144x4xf32> to vector<144x4xf32>
    %c0_2 = arith.constant 0 : index
    %c0_3 = arith.constant 0 : index
    %2 = vector.load %arg2[%c0_2, %c0_3] : memref<4x96xf32, #tpu.memory_space<vmem>>, vector<4x96xf32>
    %c0_4 = arith.constant 0 : index
    %c0_5 = arith.constant 0 : index
    %3 = vector.load %arg3[%c0_4, %c0_5] : memref<1x96xf32, #tpu.memory_space<vmem>>, vector<1x96xf32>
    %cst = arith.constant dense<0.000000e+00> : vector<144x96xf32>
    %4 = tpu.matmul %1, %2, %cst {dimension_numbers = #tpu.dot_dimension_numbers<[1], [0], [0], [1], [0, 0, 1, 1], [], []>} : vector<144x4xf32>, vector<4x96xf32>, vector<144x96xf32> -> vector<144x96xf32>
    %5 = vector.broadcast %3 : vector<1x96xf32> to vector<144x96xf32>
    %6 = arith.addf %4, %5 : vector<144x96xf32>
    %cst_6 = arith.constant 0.000000e+00 : f32
    %7 = vector.broadcast %cst_6 : f32 to vector<144x96xf32>
    %8 = arith.maximumf %6, %7 : vector<144x96xf32>
    %c0_7 = arith.constant 0 : index
    %c0_8 = arith.constant 0 : index
    %9 = vector.load %arg4[%c0_7, %c0_8] : memref<96x96xf32, #tpu.memory_space<vmem>>, vector<96x96xf32>
    %c0_9 = arith.constant 0 : index
    %c0_10 = arith.constant 0 : index
    %10 = vector.load %arg5[%c0_9, %c0_10] : memref<1x96xf32, #tpu.memory_space<vmem>>, vector<1x96xf32>
    %cst_11 = arith.constant dense<0.000000e+00> : vector<144x96xf32>
    %11 = tpu.matmul %8, %9, %cst_11 {dimension_numbers = #tpu.dot_dimension_numbers<[1], [0], [0], [1], [0, 0, 1, 1], [], []>} : vector<144x96xf32>, vector<96x96xf32>, vector<144x96xf32> -> vector<144x96xf32>
    %12 = vector.broadcast %10 : vector<1x96xf32> to vector<144x96xf32>
    %13 = arith.addf %11, %12 : vector<144x96xf32>
    %cst_12 = arith.constant 0.000000e+00 : f32
    %14 = vector.broadcast %cst_12 : f32 to vector<144x96xf32>
    %15 = arith.maximumf %13, %14 : vector<144x96xf32>
    %c0_13 = arith.constant 0 : index
    %c0_14 = arith.constant 0 : index
    %16 = vector.load %arg6[%c0_13, %c0_14] : memref<96x12xf32, #tpu.memory_space<vmem>>, vector<96x12xf32>
    %c0_15 = arith.constant 0 : index
    %c0_16 = arith.constant 0 : index
    %17 = vector.load %arg7[%c0_15, %c0_16] : memref<1x12xf32, #tpu.memory_space<vmem>>, vector<1x12xf32>
    %cst_17 = arith.constant dense<0.000000e+00> : vector<144x12xf32>
    %18 = tpu.matmul %15, %16, %cst_17 {dimension_numbers = #tpu.dot_dimension_numbers<[1], [0], [0], [1], [0, 0, 1, 1], [], []>} : vector<144x96xf32>, vector<96x12xf32>, vector<144x12xf32> -> vector<144x12xf32>
    %19 = vector.broadcast %17 : vector<1x12xf32> to vector<144x12xf32>
    %20 = arith.addf %18, %19 : vector<144x12xf32>
    %c0_18 = arith.constant 0 : index
    %c0_19 = arith.constant 0 : index
    %c0_20 = arith.constant 0 : index
    %21 = vector.load %arg8[%c0_18, %c0_19, %c0_20] : memref<1x144x12xf32, #tpu.memory_space<vmem>>, vector<1x144x12xf32>
    %22 = vector.shape_cast %21 : vector<1x144x12xf32> to vector<144x12xf32>
    %23 = vector.shape_cast %20 : vector<144x12xf32> to vector<1x144x12xf32>
    tpu.vector_store %arg8[%c0_18, %c0_19, %c0_20], %23 {strides = array<i32>} : memref<1x144x12xf32, #tpu.memory_space<vmem>>, vector<1x144x12xf32>,
    return
  }
  func.func @transform_0(%arg0: i32) -> (i32, i32, i32) {
    %c0_i32 = arith.constant 0 : i32
    %c0_i32_0 = arith.constant 0 : i32
    %c0_i32_1 = arith.constant 0 : i32
    return %arg0, %c0_i32, %c0_i32_0 : i32, i32, i32
  }
  func.func @transform_1(%arg0: i32) -> (i32, i32) {
    %c0_i32 = arith.constant 0 : i32
    %c0_i32_0 = arith.constant 0 : i32
    %c0_i32_1 = arith.constant 0 : i32
    return %c0_i32, %c0_i32_0 : i32, i32
  }
  func.func @transform_2(%arg0: i32) -> (i32, i32) {
    %c0_i32 = arith.constant 0 : i32
    %c0_i32_0 = arith.constant 0 : i32
    %c0_i32_1 = arith.constant 0 : i32
    return %c0_i32, %c0_i32_0 : i32, i32
  }
  func.func @transform_3(%arg0: i32) -> (i32, i32) {
    %c0_i32 = arith.constant 0 : i32
    %c0_i32_0 = arith.constant 0 : i32
    %c0_i32_1 = arith.constant 0 : i32
    return %c0_i32, %c0_i32_0 : i32, i32
  }
  func.func @transform_4(%arg0: i32) -> (i32, i32) {
    %c0_i32 = arith.constant 0 : i32
    %c0_i32_0 = arith.constant 0 : i32
    %c0_i32_1 = arith.constant 0 : i32
    return %c0_i32, %c0_i32_0 : i32, i32
  }
  func.func @transform_5(%arg0: i32) -> (i32, i32) {
    %c0_i32 = arith.constant 0 : i32
    %c0_i32_0 = arith.constant 0 : i32
    %c0_i32_1 = arith.constant 0 : i32
    return %c0_i32, %c0_i32_0 : i32, i32
  }
  func.func @transform_6(%arg0: i32) -> (i32, i32) {
    %c0_i32 = arith.constant 0 : i32
    %c0_i32_0 = arith.constant 0 : i32
    %c0_i32_1 = arith.constant 0 : i32
    return %c0_i32, %c0_i32_0 : i32, i32
  }
  func.func @transform_7(%arg0: i32) -> (i32, i32, i32) {
    %c0_i32 = arith.constant 0 : i32
    %c0_i32_0 = arith.constant 0 : i32
    %c0_i32_1 = arith.constant 0 : i32
    return %arg0, %c0_i32, %c0_i32_0 : i32, i32, i32
  }
}

module attributes {stable_mosaic.version = 11 : i64} {
  func.func @_norm_proj_kernel(%arg0: i32, %arg1: memref<24x32xf32, #tpu.memory_space<vmem>>, %arg2: memref<1x32xf32, #tpu.memory_space<vmem>>, %arg3: memref<1x32xf32, #tpu.memory_space<vmem>>, %arg4: memref<32x4xf32, #tpu.memory_space<vmem>>, %arg5: memref<1x4xf32, #tpu.memory_space<vmem>>, %arg6: memref<24x4xf32, #tpu.memory_space<vmem>>) attributes {dimension_semantics = [#tpu.dimension_semantics<arbitrary>], iteration_bounds = array<i64: 1>, scalar_prefetch = 0 : i64, scratch_operands = 0 : i64, tpu.core_type = #tpu.core_type<tc>, window_params = [{pipeline_mode = #tpu.pipeline_mode<synchronous>, transform_indices = @transform_0, window_bounds = array<i64: 24, 32>}, {pipeline_mode = #tpu.pipeline_mode<synchronous>, transform_indices = @transform_1, window_bounds = array<i64: 1, 32>}, {pipeline_mode = #tpu.pipeline_mode<synchronous>, transform_indices = @transform_2, window_bounds = array<i64: 1, 32>}, {pipeline_mode = #tpu.pipeline_mode<synchronous>, transform_indices = @transform_3, window_bounds = array<i64: 32, 4>}, {pipeline_mode = #tpu.pipeline_mode<synchronous>, transform_indices = @transform_4, window_bounds = array<i64: 1, 4>}, {pipeline_mode = #tpu.pipeline_mode<synchronous>, transform_indices = @transform_5, window_bounds = array<i64: 24, 4>}]} {
    %c0 = arith.constant 0 : index
    %c0_0 = arith.constant 0 : index
    %0 = vector.load %arg1[%c0, %c0_0] : memref<24x32xf32, #tpu.memory_space<vmem>>, vector<24x32xf32>
    %c0_1 = arith.constant 0 : index
    %c0_2 = arith.constant 0 : index
    %1 = vector.load %arg2[%c0_1, %c0_2] : memref<1x32xf32, #tpu.memory_space<vmem>>, vector<1x32xf32>
    %c0_3 = arith.constant 0 : index
    %c0_4 = arith.constant 0 : index
    %2 = vector.load %arg3[%c0_3, %c0_4] : memref<1x32xf32, #tpu.memory_space<vmem>>, vector<1x32xf32>
    %cst = arith.constant dense<0.000000e+00> : vector<24xf32>
    %3 = vector.multi_reduction <add>, %0, %cst [1] : vector<24x32xf32> to vector<24xf32>
    %4 = vector.shape_cast %3 : vector<24xf32> to vector<24x1xf32>
    %cst_5 = arith.constant 3.200000e+01 : f32
    %5 = vector.broadcast %cst_5 : f32 to vector<24x1xf32>
    %6 = arith.divf %4, %5 : vector<24x1xf32>
    %7 = vector.broadcast %6 : vector<24x1xf32> to vector<24x32xf32>
    %8 = arith.subf %0, %7 : vector<24x32xf32>
    %9 = arith.mulf %8, %8 : vector<24x32xf32>
    %cst_6 = arith.constant dense<0.000000e+00> : vector<24xf32>
    %10 = vector.multi_reduction <add>, %9, %cst_6 [1] : vector<24x32xf32> to vector<24xf32>
    %11 = vector.shape_cast %10 : vector<24xf32> to vector<24x1xf32>
    %cst_7 = arith.constant 3.200000e+01 : f32
    %12 = vector.broadcast %cst_7 : f32 to vector<24x1xf32>
    %13 = arith.divf %11, %12 : vector<24x1xf32>
    %14 = vector.broadcast %6 : vector<24x1xf32> to vector<24x32xf32>
    %15 = arith.subf %0, %14 : vector<24x32xf32>
    %cst_8 = arith.constant 9.99999974E-6 : f32
    %16 = vector.broadcast %cst_8 : f32 to vector<24x1xf32>
    %17 = arith.addf %13, %16 : vector<24x1xf32>
    %18 = math.rsqrt %17 : vector<24x1xf32>
    %19 = vector.broadcast %18 : vector<24x1xf32> to vector<24x32xf32>
    %20 = arith.mulf %15, %19 : vector<24x32xf32>
    %21 = vector.broadcast %1 : vector<1x32xf32> to vector<24x32xf32>
    %22 = arith.mulf %20, %21 : vector<24x32xf32>
    %23 = vector.broadcast %2 : vector<1x32xf32> to vector<24x32xf32>
    %24 = arith.addf %22, %23 : vector<24x32xf32>
    %c0_9 = arith.constant 0 : index
    %c0_10 = arith.constant 0 : index
    %25 = vector.load %arg4[%c0_9, %c0_10] : memref<32x4xf32, #tpu.memory_space<vmem>>, vector<32x4xf32>
    %cst_11 = arith.constant dense<0.000000e+00> : vector<24x4xf32>
    %26 = tpu.matmul %24, %25, %cst_11 {dimension_numbers = #tpu.dot_dimension_numbers<[1], [0], [0], [1], [0, 0, 1, 1], [], []>} : vector<24x32xf32>, vector<32x4xf32>, vector<24x4xf32> -> vector<24x4xf32>
    %c0_12 = arith.constant 0 : index
    %c0_13 = arith.constant 0 : index
    %27 = vector.load %arg5[%c0_12, %c0_13] : memref<1x4xf32, #tpu.memory_space<vmem>>, vector<1x4xf32>
    %28 = vector.broadcast %27 : vector<1x4xf32> to vector<24x4xf32>
    %29 = arith.addf %26, %28 : vector<24x4xf32>
    %c0_14 = arith.constant 0 : index
    %c0_15 = arith.constant 0 : index
    %30 = vector.load %arg6[%c0_14, %c0_15] : memref<24x4xf32, #tpu.memory_space<vmem>>, vector<24x4xf32>
    tpu.vector_store %arg6[%c0_14, %c0_15], %29 {strides = array<i32>} : memref<24x4xf32, #tpu.memory_space<vmem>>, vector<24x4xf32>,
    return
  }
  func.func @transform_0(%arg0: i32) -> (i32, i32) {
    %c0_i32 = arith.constant 0 : i32
    %c0_i32_0 = arith.constant 0 : i32
    %c0_i32_1 = arith.constant 0 : i32
    return %c0_i32, %c0_i32_0 : i32, i32
  }
  func.func @transform_1(%arg0: i32) -> (i32, i32) {
    %c0_i32 = arith.constant 0 : i32
    %c0_i32_0 = arith.constant 0 : i32
    %c0_i32_1 = arith.constant 0 : i32
    return %c0_i32, %c0_i32_0 : i32, i32
  }
  func.func @transform_2(%arg0: i32) -> (i32, i32) {
    %c0_i32 = arith.constant 0 : i32
    %c0_i32_0 = arith.constant 0 : i32
    %c0_i32_1 = arith.constant 0 : i32
    return %c0_i32, %c0_i32_0 : i32, i32
  }
  func.func @transform_3(%arg0: i32) -> (i32, i32) {
    %c0_i32 = arith.constant 0 : i32
    %c0_i32_0 = arith.constant 0 : i32
    %c0_i32_1 = arith.constant 0 : i32
    return %c0_i32, %c0_i32_0 : i32, i32
  }
  func.func @transform_4(%arg0: i32) -> (i32, i32) {
    %c0_i32 = arith.constant 0 : i32
    %c0_i32_0 = arith.constant 0 : i32
    %c0_i32_1 = arith.constant 0 : i32
    return %c0_i32, %c0_i32_0 : i32, i32
  }
  func.func @transform_5(%arg0: i32) -> (i32, i32) {
    %c0_i32 = arith.constant 0 : i32
    %c0_i32_0 = arith.constant 0 : i32
    %c0_i32_1 = arith.constant 0 : i32
    return %c0_i32, %c0_i32_0 : i32, i32
  }
}

module attributes {stable_mosaic.version = 11 : i64} {
  func.func @_dec_layer_kernel(%arg0: i32, %arg1: memref<1x12x32xf32, #tpu.memory_space<vmem>>, %arg2: memref<1x16x32xf32, #tpu.memory_space<vmem>>, %arg3: memref<1x12x12x12xf32, #tpu.memory_space<vmem>>, %arg4: memref<1x12x12x16xf32, #tpu.memory_space<vmem>>, %arg5: memref<32x96xf32, #tpu.memory_space<vmem>>, %arg6: memref<32x96xf32, #tpu.memory_space<vmem>>, %arg7: memref<1x32xf32, #tpu.memory_space<vmem>>, %arg8: memref<1x32xf32, #tpu.memory_space<vmem>>, %arg9: memref<1x32xf32, #tpu.memory_space<vmem>>, %arg10: memref<1x32xf32, #tpu.memory_space<vmem>>, %arg11: memref<32x64xf32, #tpu.memory_space<vmem>>, %arg12: memref<1x64xf32, #tpu.memory_space<vmem>>, %arg13: memref<64x32xf32, #tpu.memory_space<vmem>>, %arg14: memref<1x32xf32, #tpu.memory_space<vmem>>, %arg15: memref<1x32xf32, #tpu.memory_space<vmem>>, %arg16: memref<1x32xf32, #tpu.memory_space<vmem>>, %arg17: memref<1x12x32xf32, #tpu.memory_space<vmem>>) attributes {dimension_semantics = [#tpu.dimension_semantics<parallel>], iteration_bounds = array<i64: 2>, scalar_prefetch = 0 : i64, scratch_operands = 0 : i64, tpu.core_type = #tpu.core_type<tc>, window_params = [{transform_indices = @transform_0, window_bounds = array<i64: 1, 12, 32>}, {transform_indices = @transform_1, window_bounds = array<i64: 1, 16, 32>}, {transform_indices = @transform_2, window_bounds = array<i64: 1, 12, 12, 12>}, {transform_indices = @transform_3, window_bounds = array<i64: 1, 12, 12, 16>}, {pipeline_mode = #tpu.pipeline_mode<synchronous>, transform_indices = @transform_4, window_bounds = array<i64: 32, 96>}, {pipeline_mode = #tpu.pipeline_mode<synchronous>, transform_indices = @transform_5, window_bounds = array<i64: 32, 96>}, {pipeline_mode = #tpu.pipeline_mode<synchronous>, transform_indices = @transform_6, window_bounds = array<i64: 1, 32>}, {pipeline_mode = #tpu.pipeline_mode<synchronous>, transform_indices = @transform_7, window_bounds = array<i64: 1, 32>}, {pipeline_mode = #tpu.pipeline_mode<synchronous>, transform_indices = @transform_8, window_bounds = array<i64: 1, 32>}, {pipeline_mode = #tpu.pipeline_mode<synchronous>, transform_indices = @transform_9, window_bounds = array<i64: 1, 32>}, {pipeline_mode = #tpu.pipeline_mode<synchronous>, transform_indices = @transform_10, window_bounds = array<i64: 32, 64>}, {pipeline_mode = #tpu.pipeline_mode<synchronous>, transform_indices = @transform_11, window_bounds = array<i64: 1, 64>}, {pipeline_mode = #tpu.pipeline_mode<synchronous>, transform_indices = @transform_12, window_bounds = array<i64: 64, 32>}, {pipeline_mode = #tpu.pipeline_mode<synchronous>, transform_indices = @transform_13, window_bounds = array<i64: 1, 32>}, {pipeline_mode = #tpu.pipeline_mode<synchronous>, transform_indices = @transform_14, window_bounds = array<i64: 1, 32>}, {pipeline_mode = #tpu.pipeline_mode<synchronous>, transform_indices = @transform_15, window_bounds = array<i64: 1, 32>}, {transform_indices = @transform_16, window_bounds = array<i64: 1, 12, 32>}]} {
    %c0 = arith.constant 0 : index
    %c0_0 = arith.constant 0 : index
    %c0_1 = arith.constant 0 : index
    %0 = vector.load %arg1[%c0, %c0_0, %c0_1] : memref<1x12x32xf32, #tpu.memory_space<vmem>>, vector<1x12x32xf32>
    %1 = vector.shape_cast %0 : vector<1x12x32xf32> to vector<12x32xf32>
    %c0_2 = arith.constant 0 : index
    %c0_3 = arith.constant 0 : index
    %c0_4 = arith.constant 0 : index
    %2 = vector.load %arg2[%c0_2, %c0_3, %c0_4] : memref<1x16x32xf32, #tpu.memory_space<vmem>>, vector<1x16x32xf32>
    %3 = vector.shape_cast %2 : vector<1x16x32xf32> to vector<16x32xf32>
    %c0_5 = arith.constant 0 : index
    %c0_6 = arith.constant 0 : index
    %4 = vector.load %arg5[%c0_5, %c0_6] : memref<32x96xf32, #tpu.memory_space<vmem>>, vector<32x96xf32>
    %5 = vector.extract_strided_slice %4 {offsets = [0, 0], sizes = [32, 32], strides = [1, 1]} : vector<32x96xf32> to vector<32x32xf32>
    %cst = arith.constant dense<0.000000e+00> : vector<12x32xf32>
    %6 = tpu.matmul %1, %5, %cst {dimension_numbers = #tpu.dot_dimension_numbers<[1], [0], [0], [1], [0, 0, 1, 1], [], []>} : vector<12x32xf32>, vector<32x32xf32>, vector<12x32xf32> -> vector<12x32xf32>
    %7 = vector.extract_strided_slice %4 {offsets = [0, 32], sizes = [32, 64], strides = [1, 1]} : vector<32x96xf32> to vector<32x64xf32>
    %cst_7 = arith.constant dense<0.000000e+00> : vector<12x64xf32>
    %8 = tpu.matmul %1, %7, %cst_7 {dimension_numbers = #tpu.dot_dimension_numbers<[1], [0], [0], [1], [0, 0, 1, 1], [], []>} : vector<12x32xf32>, vector<32x64xf32>, vector<12x64xf32> -> vector<12x64xf32>
    %9 = tpu.iota {dimensions = array<i32: 0>} : vector<12x12xi32>
    %10 = tpu.iota {dimensions = array<i32: 1>} : vector<12x12xi32>
    %11 = arith.cmpi sge, %10, %9 : vector<12x12xi32>
    %12 = vector.extract_strided_slice %6 {offsets = [0, 0], sizes = [12, 8], strides = [1, 1]} : vector<12x32xf32> to vector<12x8xf32>
    %13 = vector.extract_strided_slice %8 {offsets = [0, 0], sizes = [12, 8], strides = [1, 1]} : vector<12x64xf32> to vector<12x8xf32>
    %14 = vector.extract_strided_slice %8 {offsets = [0, 32], sizes = [12, 8], strides = [1, 1]} : vector<12x64xf32> to vector<12x8xf32>
    %c0_8 = arith.constant 0 : index
    %c0_9 = arith.constant 0 : index
    %c0_10 = arith.constant 0 : index
    %c0_11 = arith.constant 0 : index
    %15 = vector.load %arg3[%c0_8, %c0_9, %c0_10, %c0_11] : memref<1x12x12x12xf32, #tpu.memory_space<vmem>>, vector<1x1x12x12xf32>
    %16 = vector.shape_cast %15 : vector<1x1x12x12xf32> to vector<12x12xf32>
    %c0_12 = arith.constant 0 : index
    %c4 = arith.constant 4 : index
    %c0_13 = arith.constant 0 : index
    %c0_14 = arith.constant 0 : index
    %17 = vector.load %arg3[%c0_12, %c4, %c0_13, %c0_14] : memref<1x12x12x12xf32, #tpu.memory_space<vmem>>, vector<1x1x12x12xf32>
    %18 = vector.shape_cast %17 : vector<1x1x12x12xf32> to vector<12x12xf32>
    %c0_15 = arith.constant 0 : index
    %c8 = arith.constant 8 : index
    %c0_16 = arith.constant 0 : index
    %c0_17 = arith.constant 0 : index
    %19 = vector.load %arg3[%c0_15, %c8, %c0_16, %c0_17] : memref<1x12x12x12xf32, #tpu.memory_space<vmem>>, vector<1x1x12x12xf32>
    %20 = vector.shape_cast %19 : vector<1x1x12x12xf32> to vector<12x12xf32>
    %cst_18 = arith.constant dense<0.000000e+00> : vector<12x12xf32>
    %21 = tpu.matmul %12, %13, %cst_18 {dimension_numbers = #tpu.dot_dimension_numbers<[1], [1], [0], [0], [0, 0, 1, 0], [], []>} : vector<12x8xf32>, vector<12x8xf32>, vector<12x12xf32> -> vector<12x12xf32>
    %22 = arith.mulf %16, %18 : vector<12x12xf32>
    %23 = arith.mulf %22, %21 : vector<12x12xf32>
    %cst_19 = arith.constant 0.353553385 : f32
    %24 = vector.broadcast %cst_19 : f32 to vector<12x12xf32>
    %25 = arith.mulf %23, %24 : vector<12x12xf32>
    %cst_20 = arith.constant 0xFF800000 : f32
    %26 = vector.broadcast %cst_20 : f32 to vector<12x12xf32>
    %27 = arith.select %11, %25, %26 : vector<12x12xi1>, vector<12x12xf32>
    %cst_21 = arith.constant dense<0xFF800000> : vector<12xf32>
    %28 = vector.multi_reduction <maximumf>, %27, %cst_21 [1] : vector<12x12xf32> to vector<12xf32>
    %29 = vector.shape_cast %28 : vector<12xf32> to vector<12x1xf32>
    %30 = vector.broadcast %29 : vector<12x1xf32> to vector<12x12xf32>
    %31 = arith.subf %27, %30 : vector<12x12xf32>
    %32 = math.exp %31 : vector<12x12xf32>
    %cst_22 = arith.constant dense<0.000000e+00> : vector<12xf32>
    %33 = vector.multi_reduction <add>, %32, %cst_22 [1] : vector<12x12xf32> to vector<12xf32>
    %34 = vector.shape_cast %33 : vector<12xf32> to vector<12x1xf32>
    %35 = tpu.reciprocal %34 {approx = true} : vector<12x1xf32> -> vector<12x1xf32>
    %36 = vector.broadcast %35 : vector<12x1xf32> to vector<12x12xf32>
    %37 = arith.mulf %32, %36 : vector<12x12xf32>
    %38 = arith.mulf %37, %20 : vector<12x12xf32>
    %cst_23 = arith.constant dense<0.000000e+00> : vector<12x8xf32>
    %39 = tpu.matmul %38, %14, %cst_23 {dimension_numbers = #tpu.dot_dimension_numbers<[1], [0], [0], [1], [0, 0, 1, 1], [], []>} : vector<12x12xf32>, vector<12x8xf32>, vector<12x8xf32> -> vector<12x8xf32>
    %40 = vector.extract_strided_slice %6 {offsets = [0, 8], sizes = [12, 8], strides = [1, 1]} : vector<12x32xf32> to vector<12x8xf32>
    %41 = vector.extract_strided_slice %8 {offsets = [0, 8], sizes = [12, 8], strides = [1, 1]} : vector<12x64xf32> to vector<12x8xf32>
    %42 = vector.extract_strided_slice %8 {offsets = [0, 40], sizes = [12, 8], strides = [1, 1]} : vector<12x64xf32> to vector<12x8xf32>
    %c0_24 = arith.constant 0 : index
    %c1 = arith.constant 1 : index
    %c0_25 = arith.constant 0 : index
    %c0_26 = arith.constant 0 : index
    %43 = vector.load %arg3[%c0_24, %c1, %c0_25, %c0_26] : memref<1x12x12x12xf32, #tpu.memory_space<vmem>>, vector<1x1x12x12xf32>
    %44 = vector.shape_cast %43 : vector<1x1x12x12xf32> to vector<12x12xf32>
    %c0_27 = arith.constant 0 : index
    %c5 = arith.constant 5 : index
    %c0_28 = arith.constant 0 : index
    %c0_29 = arith.constant 0 : index
    %45 = vector.load %arg3[%c0_27, %c5, %c0_28, %c0_29] : memref<1x12x12x12xf32, #tpu.memory_space<vmem>>, vector<1x1x12x12xf32>
    %46 = vector.shape_cast %45 : vector<1x1x12x12xf32> to vector<12x12xf32>
    %c0_30 = arith.constant 0 : index
    %c9 = arith.constant 9 : index
    %c0_31 = arith.constant 0 : index
    %c0_32 = arith.constant 0 : index
    %47 = vector.load %arg3[%c0_30, %c9, %c0_31, %c0_32] : memref<1x12x12x12xf32, #tpu.memory_space<vmem>>, vector<1x1x12x12xf32>
    %48 = vector.shape_cast %47 : vector<1x1x12x12xf32> to vector<12x12xf32>
    %cst_33 = arith.constant dense<0.000000e+00> : vector<12x12xf32>
    %49 = tpu.matmul %40, %41, %cst_33 {dimension_numbers = #tpu.dot_dimension_numbers<[1], [1], [0], [0], [0, 0, 1, 0], [], []>} : vector<12x8xf32>, vector<12x8xf32>, vector<12x12xf32> -> vector<12x12xf32>
    %50 = arith.mulf %44, %46 : vector<12x12xf32>
    %51 = arith.mulf %50, %49 : vector<12x12xf32>
    %cst_34 = arith.constant 0.353553385 : f32
    %52 = vector.broadcast %cst_34 : f32 to vector<12x12xf32>
    %53 = arith.mulf %51, %52 : vector<12x12xf32>
    %cst_35 = arith.constant 0xFF800000 : f32
    %54 = vector.broadcast %cst_35 : f32 to vector<12x12xf32>
    %55 = arith.select %11, %53, %54 : vector<12x12xi1>, vector<12x12xf32>
    %cst_36 = arith.constant dense<0xFF800000> : vector<12xf32>
    %56 = vector.multi_reduction <maximumf>, %55, %cst_36 [1] : vector<12x12xf32> to vector<12xf32>
    %57 = vector.shape_cast %56 : vector<12xf32> to vector<12x1xf32>
    %58 = vector.broadcast %57 : vector<12x1xf32> to vector<12x12xf32>
    %59 = arith.subf %55, %58 : vector<12x12xf32>
    %60 = math.exp %59 : vector<12x12xf32>
    %cst_37 = arith.constant dense<0.000000e+00> : vector<12xf32>
    %61 = vector.multi_reduction <add>, %60, %cst_37 [1] : vector<12x12xf32> to vector<12xf32>
    %62 = vector.shape_cast %61 : vector<12xf32> to vector<12x1xf32>
    %63 = tpu.reciprocal %62 {approx = true} : vector<12x1xf32> -> vector<12x1xf32>
    %64 = vector.broadcast %63 : vector<12x1xf32> to vector<12x12xf32>
    %65 = arith.mulf %60, %64 : vector<12x12xf32>
    %66 = arith.mulf %65, %48 : vector<12x12xf32>
    %cst_38 = arith.constant dense<0.000000e+00> : vector<12x8xf32>
    %67 = tpu.matmul %66, %42, %cst_38 {dimension_numbers = #tpu.dot_dimension_numbers<[1], [0], [0], [1], [0, 0, 1, 1], [], []>} : vector<12x12xf32>, vector<12x8xf32>, vector<12x8xf32> -> vector<12x8xf32>
    %68 = vector.extract_strided_slice %6 {offsets = [0, 16], sizes = [12, 8], strides = [1, 1]} : vector<12x32xf32> to vector<12x8xf32>
    %69 = vector.extract_strided_slice %8 {offsets = [0, 16], sizes = [12, 8], strides = [1, 1]} : vector<12x64xf32> to vector<12x8xf32>
    %70 = vector.extract_strided_slice %8 {offsets = [0, 48], sizes = [12, 8], strides = [1, 1]} : vector<12x64xf32> to vector<12x8xf32>
    %c0_39 = arith.constant 0 : index
    %c2 = arith.constant 2 : index
    %c0_40 = arith.constant 0 : index
    %c0_41 = arith.constant 0 : index
    %71 = vector.load %arg3[%c0_39, %c2, %c0_40, %c0_41] : memref<1x12x12x12xf32, #tpu.memory_space<vmem>>, vector<1x1x12x12xf32>
    %72 = vector.shape_cast %71 : vector<1x1x12x12xf32> to vector<12x12xf32>
    %c0_42 = arith.constant 0 : index
    %c6 = arith.constant 6 : index
    %c0_43 = arith.constant 0 : index
    %c0_44 = arith.constant 0 : index
    %73 = vector.load %arg3[%c0_42, %c6, %c0_43, %c0_44] : memref<1x12x12x12xf32, #tpu.memory_space<vmem>>, vector<1x1x12x12xf32>
    %74 = vector.shape_cast %73 : vector<1x1x12x12xf32> to vector<12x12xf32>
    %c0_45 = arith.constant 0 : index
    %c10 = arith.constant 10 : index
    %c0_46 = arith.constant 0 : index
    %c0_47 = arith.constant 0 : index
    %75 = vector.load %arg3[%c0_45, %c10, %c0_46, %c0_47] : memref<1x12x12x12xf32, #tpu.memory_space<vmem>>, vector<1x1x12x12xf32>
    %76 = vector.shape_cast %75 : vector<1x1x12x12xf32> to vector<12x12xf32>
    %cst_48 = arith.constant dense<0.000000e+00> : vector<12x12xf32>
    %77 = tpu.matmul %68, %69, %cst_48 {dimension_numbers = #tpu.dot_dimension_numbers<[1], [1], [0], [0], [0, 0, 1, 0], [], []>} : vector<12x8xf32>, vector<12x8xf32>, vector<12x12xf32> -> vector<12x12xf32>
    %78 = arith.mulf %72, %74 : vector<12x12xf32>
    %79 = arith.mulf %78, %77 : vector<12x12xf32>
    %cst_49 = arith.constant 0.353553385 : f32
    %80 = vector.broadcast %cst_49 : f32 to vector<12x12xf32>
    %81 = arith.mulf %79, %80 : vector<12x12xf32>
    %cst_50 = arith.constant 0xFF800000 : f32
    %82 = vector.broadcast %cst_50 : f32 to vector<12x12xf32>
    %83 = arith.select %11, %81, %82 : vector<12x12xi1>, vector<12x12xf32>
    %cst_51 = arith.constant dense<0xFF800000> : vector<12xf32>
    %84 = vector.multi_reduction <maximumf>, %83, %cst_51 [1] : vector<12x12xf32> to vector<12xf32>
    %85 = vector.shape_cast %84 : vector<12xf32> to vector<12x1xf32>
    %86 = vector.broadcast %85 : vector<12x1xf32> to vector<12x12xf32>
    %87 = arith.subf %83, %86 : vector<12x12xf32>
    %88 = math.exp %87 : vector<12x12xf32>
    %cst_52 = arith.constant dense<0.000000e+00> : vector<12xf32>
    %89 = vector.multi_reduction <add>, %88, %cst_52 [1] : vector<12x12xf32> to vector<12xf32>
    %90 = vector.shape_cast %89 : vector<12xf32> to vector<12x1xf32>
    %91 = tpu.reciprocal %90 {approx = true} : vector<12x1xf32> -> vector<12x1xf32>
    %92 = vector.broadcast %91 : vector<12x1xf32> to vector<12x12xf32>
    %93 = arith.mulf %88, %92 : vector<12x12xf32>
    %94 = arith.mulf %93, %76 : vector<12x12xf32>
    %cst_53 = arith.constant dense<0.000000e+00> : vector<12x8xf32>
    %95 = tpu.matmul %94, %70, %cst_53 {dimension_numbers = #tpu.dot_dimension_numbers<[1], [0], [0], [1], [0, 0, 1, 1], [], []>} : vector<12x12xf32>, vector<12x8xf32>, vector<12x8xf32> -> vector<12x8xf32>
    %96 = vector.extract_strided_slice %6 {offsets = [0, 24], sizes = [12, 8], strides = [1, 1]} : vector<12x32xf32> to vector<12x8xf32>
    %97 = vector.extract_strided_slice %8 {offsets = [0, 24], sizes = [12, 8], strides = [1, 1]} : vector<12x64xf32> to vector<12x8xf32>
    %98 = vector.extract_strided_slice %8 {offsets = [0, 56], sizes = [12, 8], strides = [1, 1]} : vector<12x64xf32> to vector<12x8xf32>
    %c0_54 = arith.constant 0 : index
    %c3 = arith.constant 3 : index
    %c0_55 = arith.constant 0 : index
    %c0_56 = arith.constant 0 : index
    %99 = vector.load %arg3[%c0_54, %c3, %c0_55, %c0_56] : memref<1x12x12x12xf32, #tpu.memory_space<vmem>>, vector<1x1x12x12xf32>
    %100 = vector.shape_cast %99 : vector<1x1x12x12xf32> to vector<12x12xf32>
    %c0_57 = arith.constant 0 : index
    %c7 = arith.constant 7 : index
    %c0_58 = arith.constant 0 : index
    %c0_59 = arith.constant 0 : index
    %101 = vector.load %arg3[%c0_57, %c7, %c0_58, %c0_59] : memref<1x12x12x12xf32, #tpu.memory_space<vmem>>, vector<1x1x12x12xf32>
    %102 = vector.shape_cast %101 : vector<1x1x12x12xf32> to vector<12x12xf32>
    %c0_60 = arith.constant 0 : index
    %c11 = arith.constant 11 : index
    %c0_61 = arith.constant 0 : index
    %c0_62 = arith.constant 0 : index
    %103 = vector.load %arg3[%c0_60, %c11, %c0_61, %c0_62] : memref<1x12x12x12xf32, #tpu.memory_space<vmem>>, vector<1x1x12x12xf32>
    %104 = vector.shape_cast %103 : vector<1x1x12x12xf32> to vector<12x12xf32>
    %cst_63 = arith.constant dense<0.000000e+00> : vector<12x12xf32>
    %105 = tpu.matmul %96, %97, %cst_63 {dimension_numbers = #tpu.dot_dimension_numbers<[1], [1], [0], [0], [0, 0, 1, 0], [], []>} : vector<12x8xf32>, vector<12x8xf32>, vector<12x12xf32> -> vector<12x12xf32>
    %106 = arith.mulf %100, %102 : vector<12x12xf32>
    %107 = arith.mulf %106, %105 : vector<12x12xf32>
    %cst_64 = arith.constant 0.353553385 : f32
    %108 = vector.broadcast %cst_64 : f32 to vector<12x12xf32>
    %109 = arith.mulf %107, %108 : vector<12x12xf32>
    %cst_65 = arith.constant 0xFF800000 : f32
    %110 = vector.broadcast %cst_65 : f32 to vector<12x12xf32>
    %111 = arith.select %11, %109, %110 : vector<12x12xi1>, vector<12x12xf32>
    %cst_66 = arith.constant dense<0xFF800000> : vector<12xf32>
    %112 = vector.multi_reduction <maximumf>, %111, %cst_66 [1] : vector<12x12xf32> to vector<12xf32>
    %113 = vector.shape_cast %112 : vector<12xf32> to vector<12x1xf32>
    %114 = vector.broadcast %113 : vector<12x1xf32> to vector<12x12xf32>
    %115 = arith.subf %111, %114 : vector<12x12xf32>
    %116 = math.exp %115 : vector<12x12xf32>
    %cst_67 = arith.constant dense<0.000000e+00> : vector<12xf32>
    %117 = vector.multi_reduction <add>, %116, %cst_67 [1] : vector<12x12xf32> to vector<12xf32>
    %118 = vector.shape_cast %117 : vector<12xf32> to vector<12x1xf32>
    %119 = tpu.reciprocal %118 {approx = true} : vector<12x1xf32> -> vector<12x1xf32>
    %120 = vector.broadcast %119 : vector<12x1xf32> to vector<12x12xf32>
    %121 = arith.mulf %116, %120 : vector<12x12xf32>
    %122 = arith.mulf %121, %104 : vector<12x12xf32>
    %cst_68 = arith.constant dense<0.000000e+00> : vector<12x8xf32>
    %123 = tpu.matmul %122, %98, %cst_68 {dimension_numbers = #tpu.dot_dimension_numbers<[1], [0], [0], [1], [0, 0, 1, 1], [], []>} : vector<12x12xf32>, vector<12x8xf32>, vector<12x8xf32> -> vector<12x8xf32>
    %124 = tpu.concatenate %39, %67, %95, %123 in 1 : vector<12x8xf32>, vector<12x8xf32>, vector<12x8xf32>, vector<12x8xf32> -> vector<12x32xf32>
    %125 = arith.addf %1, %124 : vector<12x32xf32>
    %c0_69 = arith.constant 0 : index
    %c0_70 = arith.constant 0 : index
    %126 = vector.load %arg7[%c0_69, %c0_70] : memref<1x32xf32, #tpu.memory_space<vmem>>, vector<1x32xf32>
    %c0_71 = arith.constant 0 : index
    %c0_72 = arith.constant 0 : index
    %127 = vector.load %arg8[%c0_71, %c0_72] : memref<1x32xf32, #tpu.memory_space<vmem>>, vector<1x32xf32>
    %cst_73 = arith.constant dense<0.000000e+00> : vector<12xf32>
    %128 = vector.multi_reduction <add>, %125, %cst_73 [1] : vector<12x32xf32> to vector<12xf32>
    %129 = vector.shape_cast %128 : vector<12xf32> to vector<12x1xf32>
    %cst_74 = arith.constant 3.200000e+01 : f32
    %130 = vector.broadcast %cst_74 : f32 to vector<12x1xf32>
    %131 = arith.divf %129, %130 : vector<12x1xf32>
    %132 = vector.broadcast %131 : vector<12x1xf32> to vector<12x32xf32>
    %133 = arith.subf %125, %132 : vector<12x32xf32>
    %134 = arith.mulf %133, %133 : vector<12x32xf32>
    %cst_75 = arith.constant dense<0.000000e+00> : vector<12xf32>
    %135 = vector.multi_reduction <add>, %134, %cst_75 [1] : vector<12x32xf32> to vector<12xf32>
    %136 = vector.shape_cast %135 : vector<12xf32> to vector<12x1xf32>
    %cst_76 = arith.constant 3.200000e+01 : f32
    %137 = vector.broadcast %cst_76 : f32 to vector<12x1xf32>
    %138 = arith.divf %136, %137 : vector<12x1xf32>
    %139 = vector.broadcast %131 : vector<12x1xf32> to vector<12x32xf32>
    %140 = arith.subf %125, %139 : vector<12x32xf32>
    %cst_77 = arith.constant 9.99999974E-6 : f32
    %141 = vector.broadcast %cst_77 : f32 to vector<12x1xf32>
    %142 = arith.addf %138, %141 : vector<12x1xf32>
    %143 = math.rsqrt %142 : vector<12x1xf32>
    %144 = vector.broadcast %143 : vector<12x1xf32> to vector<12x32xf32>
    %145 = arith.mulf %140, %144 : vector<12x32xf32>
    %146 = vector.broadcast %126 : vector<1x32xf32> to vector<12x32xf32>
    %147 = arith.mulf %145, %146 : vector<12x32xf32>
    %148 = vector.broadcast %127 : vector<1x32xf32> to vector<12x32xf32>
    %149 = arith.addf %147, %148 : vector<12x32xf32>
    %c0_78 = arith.constant 0 : index
    %c0_79 = arith.constant 0 : index
    %150 = vector.load %arg6[%c0_78, %c0_79] : memref<32x96xf32, #tpu.memory_space<vmem>>, vector<32x96xf32>
    %151 = vector.extract_strided_slice %150 {offsets = [0, 0], sizes = [32, 32], strides = [1, 1]} : vector<32x96xf32> to vector<32x32xf32>
    %cst_80 = arith.constant dense<0.000000e+00> : vector<12x32xf32>
    %152 = tpu.matmul %149, %151, %cst_80 {dimension_numbers = #tpu.dot_dimension_numbers<[1], [0], [0], [1], [0, 0, 1, 1], [], []>} : vector<12x32xf32>, vector<32x32xf32>, vector<12x32xf32> -> vector<12x32xf32>
    %153 = vector.extract_strided_slice %150 {offsets = [0, 32], sizes = [32, 64], strides = [1, 1]} : vector<32x96xf32> to vector<32x64xf32>
    %cst_81 = arith.constant dense<0.000000e+00> : vector<16x64xf32>
    %154 = tpu.matmul %3, %153, %cst_81 {dimension_numbers = #tpu.dot_dimension_numbers<[1], [0], [0], [1], [0, 0, 1, 1], [], []>} : vector<16x32xf32>, vector<32x64xf32>, vector<16x64xf32> -> vector<16x64xf32>
    %155 = vector.extract_strided_slice %152 {offsets = [0, 0], sizes = [12, 8], strides = [1, 1]} : vector<12x32xf32> to vector<12x8xf32>
    %156 = vector.extract_strided_slice %154 {offsets = [0, 0], sizes = [16, 8], strides = [1, 1]} : vector<16x64xf32> to vector<16x8xf32>
    %157 = vector.extract_strided_slice %154 {offsets = [0, 32], sizes = [16, 8], strides = [1, 1]} : vector<16x64xf32> to vector<16x8xf32>
    %c0_82 = arith.constant 0 : index
    %c0_83 = arith.constant 0 : index
    %c0_84 = arith.constant 0 : index
    %c0_85 = arith.constant 0 : index
    %158 = vector.load %arg4[%c0_82, %c0_83, %c0_84, %c0_85] : memref<1x12x12x16xf32, #tpu.memory_space<vmem>>, vector<1x1x12x16xf32>
    %159 = vector.shape_cast %158 : vector<1x1x12x16xf32> to vector<12x16xf32>
    %c0_86 = arith.constant 0 : index
    %c4_87 = arith.constant 4 : index
    %c0_88 = arith.constant 0 : index
    %c0_89 = arith.constant 0 : index
    %160 = vector.load %arg4[%c0_86, %c4_87, %c0_88, %c0_89] : memref<1x12x12x16xf32, #tpu.memory_space<vmem>>, vector<1x1x12x16xf32>
    %161 = vector.shape_cast %160 : vector<1x1x12x16xf32> to vector<12x16xf32>
    %c0_90 = arith.constant 0 : index
    %c8_91 = arith.constant 8 : index
    %c0_92 = arith.constant 0 : index
    %c0_93 = arith.constant 0 : index
    %162 = vector.load %arg4[%c0_90, %c8_91, %c0_92, %c0_93] : memref<1x12x12x16xf32, #tpu.memory_space<vmem>>, vector<1x1x12x16xf32>
    %163 = vector.shape_cast %162 : vector<1x1x12x16xf32> to vector<12x16xf32>
    %cst_94 = arith.constant dense<0.000000e+00> : vector<12x16xf32>
    %164 = tpu.matmul %155, %156, %cst_94 {dimension_numbers = #tpu.dot_dimension_numbers<[1], [1], [0], [0], [0, 0, 1, 0], [], []>} : vector<12x8xf32>, vector<16x8xf32>, vector<12x16xf32> -> vector<12x16xf32>
    %165 = arith.mulf %159, %161 : vector<12x16xf32>
    %166 = arith.mulf %165, %164 : vector<12x16xf32>
    %cst_95 = arith.constant 0.353553385 : f32
    %167 = vector.broadcast %cst_95 : f32 to vector<12x16xf32>
    %168 = arith.mulf %166, %167 : vector<12x16xf32>
    %cst_96 = arith.constant dense<0xFF800000> : vector<12xf32>
    %169 = vector.multi_reduction <maximumf>, %168, %cst_96 [1] : vector<12x16xf32> to vector<12xf32>
    %170 = vector.shape_cast %169 : vector<12xf32> to vector<12x1xf32>
    %171 = vector.broadcast %170 : vector<12x1xf32> to vector<12x16xf32>
    %172 = arith.subf %168, %171 : vector<12x16xf32>
    %173 = math.exp %172 : vector<12x16xf32>
    %cst_97 = arith.constant dense<0.000000e+00> : vector<12xf32>
    %174 = vector.multi_reduction <add>, %173, %cst_97 [1] : vector<12x16xf32> to vector<12xf32>
    %175 = vector.shape_cast %174 : vector<12xf32> to vector<12x1xf32>
    %176 = tpu.reciprocal %175 {approx = true} : vector<12x1xf32> -> vector<12x1xf32>
    %177 = vector.broadcast %176 : vector<12x1xf32> to vector<12x16xf32>
    %178 = arith.mulf %173, %177 : vector<12x16xf32>
    %179 = arith.mulf %178, %163 : vector<12x16xf32>
    %cst_98 = arith.constant dense<0.000000e+00> : vector<12x8xf32>
    %180 = tpu.matmul %179, %157, %cst_98 {dimension_numbers = #tpu.dot_dimension_numbers<[1], [0], [0], [1], [0, 0, 1, 1], [], []>} : vector<12x16xf32>, vector<16x8xf32>, vector<12x8xf32> -> vector<12x8xf32>
    %181 = vector.extract_strided_slice %152 {offsets = [0, 8], sizes = [12, 8], strides = [1, 1]} : vector<12x32xf32> to vector<12x8xf32>
    %182 = vector.extract_strided_slice %154 {offsets = [0, 8], sizes = [16, 8], strides = [1, 1]} : vector<16x64xf32> to vector<16x8xf32>
    %183 = vector.extract_strided_slice %154 {offsets = [0, 40], sizes = [16, 8], strides = [1, 1]} : vector<16x64xf32> to vector<16x8xf32>
    %c0_99 = arith.constant 0 : index
    %c1_100 = arith.constant 1 : index
    %c0_101 = arith.constant 0 : index
    %c0_102 = arith.constant 0 : index
    %184 = vector.load %arg4[%c0_99, %c1_100, %c0_101, %c0_102] : memref<1x12x12x16xf32, #tpu.memory_space<vmem>>, vector<1x1x12x16xf32>
    %185 = vector.shape_cast %184 : vector<1x1x12x16xf32> to vector<12x16xf32>
    %c0_103 = arith.constant 0 : index
    %c5_104 = arith.constant 5 : index
    %c0_105 = arith.constant 0 : index
    %c0_106 = arith.constant 0 : index
    %186 = vector.load %arg4[%c0_103, %c5_104, %c0_105, %c0_106] : memref<1x12x12x16xf32, #tpu.memory_space<vmem>>, vector<1x1x12x16xf32>
    %187 = vector.shape_cast %186 : vector<1x1x12x16xf32> to vector<12x16xf32>
    %c0_107 = arith.constant 0 : index
    %c9_108 = arith.constant 9 : index
    %c0_109 = arith.constant 0 : index
    %c0_110 = arith.constant 0 : index
    %188 = vector.load %arg4[%c0_107, %c9_108, %c0_109, %c0_110] : memref<1x12x12x16xf32, #tpu.memory_space<vmem>>, vector<1x1x12x16xf32>
    %189 = vector.shape_cast %188 : vector<1x1x12x16xf32> to vector<12x16xf32>
    %cst_111 = arith.constant dense<0.000000e+00> : vector<12x16xf32>
    %190 = tpu.matmul %181, %182, %cst_111 {dimension_numbers = #tpu.dot_dimension_numbers<[1], [1], [0], [0], [0, 0, 1, 0], [], []>} : vector<12x8xf32>, vector<16x8xf32>, vector<12x16xf32> -> vector<12x16xf32>
    %191 = arith.mulf %185, %187 : vector<12x16xf32>
    %192 = arith.mulf %191, %190 : vector<12x16xf32>
    %cst_112 = arith.constant 0.353553385 : f32
    %193 = vector.broadcast %cst_112 : f32 to vector<12x16xf32>
    %194 = arith.mulf %192, %193 : vector<12x16xf32>
    %cst_113 = arith.constant dense<0xFF800000> : vector<12xf32>
    %195 = vector.multi_reduction <maximumf>, %194, %cst_113 [1] : vector<12x16xf32> to vector<12xf32>
    %196 = vector.shape_cast %195 : vector<12xf32> to vector<12x1xf32>
    %197 = vector.broadcast %196 : vector<12x1xf32> to vector<12x16xf32>
    %198 = arith.subf %194, %197 : vector<12x16xf32>
    %199 = math.exp %198 : vector<12x16xf32>
    %cst_114 = arith.constant dense<0.000000e+00> : vector<12xf32>
    %200 = vector.multi_reduction <add>, %199, %cst_114 [1] : vector<12x16xf32> to vector<12xf32>
    %201 = vector.shape_cast %200 : vector<12xf32> to vector<12x1xf32>
    %202 = tpu.reciprocal %201 {approx = true} : vector<12x1xf32> -> vector<12x1xf32>
    %203 = vector.broadcast %202 : vector<12x1xf32> to vector<12x16xf32>
    %204 = arith.mulf %199, %203 : vector<12x16xf32>
    %205 = arith.mulf %204, %189 : vector<12x16xf32>
    %cst_115 = arith.constant dense<0.000000e+00> : vector<12x8xf32>
    %206 = tpu.matmul %205, %183, %cst_115 {dimension_numbers = #tpu.dot_dimension_numbers<[1], [0], [0], [1], [0, 0, 1, 1], [], []>} : vector<12x16xf32>, vector<16x8xf32>, vector<12x8xf32> -> vector<12x8xf32>
    %207 = vector.extract_strided_slice %152 {offsets = [0, 16], sizes = [12, 8], strides = [1, 1]} : vector<12x32xf32> to vector<12x8xf32>
    %208 = vector.extract_strided_slice %154 {offsets = [0, 16], sizes = [16, 8], strides = [1, 1]} : vector<16x64xf32> to vector<16x8xf32>
    %209 = vector.extract_strided_slice %154 {offsets = [0, 48], sizes = [16, 8], strides = [1, 1]} : vector<16x64xf32> to vector<16x8xf32>
    %c0_116 = arith.constant 0 : index
    %c2_117 = arith.constant 2 : index
    %c0_118 = arith.constant 0 : index
    %c0_119 = arith.constant 0 : index
    %210 = vector.load %arg4[%c0_116, %c2_117, %c0_118, %c0_119] : memref<1x12x12x16xf32, #tpu.memory_space<vmem>>, vector<1x1x12x16xf32>
    %211 = vector.shape_cast %210 : vector<1x1x12x16xf32> to vector<12x16xf32>
    %c0_120 = arith.constant 0 : index
    %c6_121 = arith.constant 6 : index
    %c0_122 = arith.constant 0 : index
    %c0_123 = arith.constant 0 : index
    %212 = vector.load %arg4[%c0_120, %c6_121, %c0_122, %c0_123] : memref<1x12x12x16xf32, #tpu.memory_space<vmem>>, vector<1x1x12x16xf32>
    %213 = vector.shape_cast %212 : vector<1x1x12x16xf32> to vector<12x16xf32>
    %c0_124 = arith.constant 0 : index
    %c10_125 = arith.constant 10 : index
    %c0_126 = arith.constant 0 : index
    %c0_127 = arith.constant 0 : index
    %214 = vector.load %arg4[%c0_124, %c10_125, %c0_126, %c0_127] : memref<1x12x12x16xf32, #tpu.memory_space<vmem>>, vector<1x1x12x16xf32>
    %215 = vector.shape_cast %214 : vector<1x1x12x16xf32> to vector<12x16xf32>
    %cst_128 = arith.constant dense<0.000000e+00> : vector<12x16xf32>
    %216 = tpu.matmul %207, %208, %cst_128 {dimension_numbers = #tpu.dot_dimension_numbers<[1], [1], [0], [0], [0, 0, 1, 0], [], []>} : vector<12x8xf32>, vector<16x8xf32>, vector<12x16xf32> -> vector<12x16xf32>
    %217 = arith.mulf %211, %213 : vector<12x16xf32>
    %218 = arith.mulf %217, %216 : vector<12x16xf32>
    %cst_129 = arith.constant 0.353553385 : f32
    %219 = vector.broadcast %cst_129 : f32 to vector<12x16xf32>
    %220 = arith.mulf %218, %219 : vector<12x16xf32>
    %cst_130 = arith.constant dense<0xFF800000> : vector<12xf32>
    %221 = vector.multi_reduction <maximumf>, %220, %cst_130 [1] : vector<12x16xf32> to vector<12xf32>
    %222 = vector.shape_cast %221 : vector<12xf32> to vector<12x1xf32>
    %223 = vector.broadcast %222 : vector<12x1xf32> to vector<12x16xf32>
    %224 = arith.subf %220, %223 : vector<12x16xf32>
    %225 = math.exp %224 : vector<12x16xf32>
    %cst_131 = arith.constant dense<0.000000e+00> : vector<12xf32>
    %226 = vector.multi_reduction <add>, %225, %cst_131 [1] : vector<12x16xf32> to vector<12xf32>
    %227 = vector.shape_cast %226 : vector<12xf32> to vector<12x1xf32>
    %228 = tpu.reciprocal %227 {approx = true} : vector<12x1xf32> -> vector<12x1xf32>
    %229 = vector.broadcast %228 : vector<12x1xf32> to vector<12x16xf32>
    %230 = arith.mulf %225, %229 : vector<12x16xf32>
    %231 = arith.mulf %230, %215 : vector<12x16xf32>
    %cst_132 = arith.constant dense<0.000000e+00> : vector<12x8xf32>
    %232 = tpu.matmul %231, %209, %cst_132 {dimension_numbers = #tpu.dot_dimension_numbers<[1], [0], [0], [1], [0, 0, 1, 1], [], []>} : vector<12x16xf32>, vector<16x8xf32>, vector<12x8xf32> -> vector<12x8xf32>
    %233 = vector.extract_strided_slice %152 {offsets = [0, 24], sizes = [12, 8], strides = [1, 1]} : vector<12x32xf32> to vector<12x8xf32>
    %234 = vector.extract_strided_slice %154 {offsets = [0, 24], sizes = [16, 8], strides = [1, 1]} : vector<16x64xf32> to vector<16x8xf32>
    %235 = vector.extract_strided_slice %154 {offsets = [0, 56], sizes = [16, 8], strides = [1, 1]} : vector<16x64xf32> to vector<16x8xf32>
    %c0_133 = arith.constant 0 : index
    %c3_134 = arith.constant 3 : index
    %c0_135 = arith.constant 0 : index
    %c0_136 = arith.constant 0 : index
    %236 = vector.load %arg4[%c0_133, %c3_134, %c0_135, %c0_136] : memref<1x12x12x16xf32, #tpu.memory_space<vmem>>, vector<1x1x12x16xf32>
    %237 = vector.shape_cast %236 : vector<1x1x12x16xf32> to vector<12x16xf32>
    %c0_137 = arith.constant 0 : index
    %c7_138 = arith.constant 7 : index
    %c0_139 = arith.constant 0 : index
    %c0_140 = arith.constant 0 : index
    %238 = vector.load %arg4[%c0_137, %c7_138, %c0_139, %c0_140] : memref<1x12x12x16xf32, #tpu.memory_space<vmem>>, vector<1x1x12x16xf32>
    %239 = vector.shape_cast %238 : vector<1x1x12x16xf32> to vector<12x16xf32>
    %c0_141 = arith.constant 0 : index
    %c11_142 = arith.constant 11 : index
    %c0_143 = arith.constant 0 : index
    %c0_144 = arith.constant 0 : index
    %240 = vector.load %arg4[%c0_141, %c11_142, %c0_143, %c0_144] : memref<1x12x12x16xf32, #tpu.memory_space<vmem>>, vector<1x1x12x16xf32>
    %241 = vector.shape_cast %240 : vector<1x1x12x16xf32> to vector<12x16xf32>
    %cst_145 = arith.constant dense<0.000000e+00> : vector<12x16xf32>
    %242 = tpu.matmul %233, %234, %cst_145 {dimension_numbers = #tpu.dot_dimension_numbers<[1], [1], [0], [0], [0, 0, 1, 0], [], []>} : vector<12x8xf32>, vector<16x8xf32>, vector<12x16xf32> -> vector<12x16xf32>
    %243 = arith.mulf %237, %239 : vector<12x16xf32>
    %244 = arith.mulf %243, %242 : vector<12x16xf32>
    %cst_146 = arith.constant 0.353553385 : f32
    %245 = vector.broadcast %cst_146 : f32 to vector<12x16xf32>
    %246 = arith.mulf %244, %245 : vector<12x16xf32>
    %cst_147 = arith.constant dense<0xFF800000> : vector<12xf32>
    %247 = vector.multi_reduction <maximumf>, %246, %cst_147 [1] : vector<12x16xf32> to vector<12xf32>
    %248 = vector.shape_cast %247 : vector<12xf32> to vector<12x1xf32>
    %249 = vector.broadcast %248 : vector<12x1xf32> to vector<12x16xf32>
    %250 = arith.subf %246, %249 : vector<12x16xf32>
    %251 = math.exp %250 : vector<12x16xf32>
    %cst_148 = arith.constant dense<0.000000e+00> : vector<12xf32>
    %252 = vector.multi_reduction <add>, %251, %cst_148 [1] : vector<12x16xf32> to vector<12xf32>
    %253 = vector.shape_cast %252 : vector<12xf32> to vector<12x1xf32>
    %254 = tpu.reciprocal %253 {approx = true} : vector<12x1xf32> -> vector<12x1xf32>
    %255 = vector.broadcast %254 : vector<12x1xf32> to vector<12x16xf32>
    %256 = arith.mulf %251, %255 : vector<12x16xf32>
    %257 = arith.mulf %256, %241 : vector<12x16xf32>
    %cst_149 = arith.constant dense<0.000000e+00> : vector<12x8xf32>
    %258 = tpu.matmul %257, %235, %cst_149 {dimension_numbers = #tpu.dot_dimension_numbers<[1], [0], [0], [1], [0, 0, 1, 1], [], []>} : vector<12x16xf32>, vector<16x8xf32>, vector<12x8xf32> -> vector<12x8xf32>
    %259 = tpu.concatenate %180, %206, %232, %258 in 1 : vector<12x8xf32>, vector<12x8xf32>, vector<12x8xf32>, vector<12x8xf32> -> vector<12x32xf32>
    %260 = arith.addf %149, %259 : vector<12x32xf32>
    %c0_150 = arith.constant 0 : index
    %c0_151 = arith.constant 0 : index
    %261 = vector.load %arg9[%c0_150, %c0_151] : memref<1x32xf32, #tpu.memory_space<vmem>>, vector<1x32xf32>
    %c0_152 = arith.constant 0 : index
    %c0_153 = arith.constant 0 : index
    %262 = vector.load %arg10[%c0_152, %c0_153] : memref<1x32xf32, #tpu.memory_space<vmem>>, vector<1x32xf32>
    %cst_154 = arith.constant dense<0.000000e+00> : vector<12xf32>
    %263 = vector.multi_reduction <add>, %260, %cst_154 [1] : vector<12x32xf32> to vector<12xf32>
    %264 = vector.shape_cast %263 : vector<12xf32> to vector<12x1xf32>
    %cst_155 = arith.constant 3.200000e+01 : f32
    %265 = vector.broadcast %cst_155 : f32 to vector<12x1xf32>
    %266 = arith.divf %264, %265 : vector<12x1xf32>
    %267 = vector.broadcast %266 : vector<12x1xf32> to vector<12x32xf32>
    %268 = arith.subf %260, %267 : vector<12x32xf32>
    %269 = arith.mulf %268, %268 : vector<12x32xf32>
    %cst_156 = arith.constant dense<0.000000e+00> : vector<12xf32>
    %270 = vector.multi_reduction <add>, %269, %cst_156 [1] : vector<12x32xf32> to vector<12xf32>
    %271 = vector.shape_cast %270 : vector<12xf32> to vector<12x1xf32>
    %cst_157 = arith.constant 3.200000e+01 : f32
    %272 = vector.broadcast %cst_157 : f32 to vector<12x1xf32>
    %273 = arith.divf %271, %272 : vector<12x1xf32>
    %274 = vector.broadcast %266 : vector<12x1xf32> to vector<12x32xf32>
    %275 = arith.subf %260, %274 : vector<12x32xf32>
    %cst_158 = arith.constant 9.99999974E-6 : f32
    %276 = vector.broadcast %cst_158 : f32 to vector<12x1xf32>
    %277 = arith.addf %273, %276 : vector<12x1xf32>
    %278 = math.rsqrt %277 : vector<12x1xf32>
    %279 = vector.broadcast %278 : vector<12x1xf32> to vector<12x32xf32>
    %280 = arith.mulf %275, %279 : vector<12x32xf32>
    %281 = vector.broadcast %261 : vector<1x32xf32> to vector<12x32xf32>
    %282 = arith.mulf %280, %281 : vector<12x32xf32>
    %283 = vector.broadcast %262 : vector<1x32xf32> to vector<12x32xf32>
    %284 = arith.addf %282, %283 : vector<12x32xf32>
    %c0_159 = arith.constant 0 : index
    %c0_160 = arith.constant 0 : index
    %285 = vector.load %arg11[%c0_159, %c0_160] : memref<32x64xf32, #tpu.memory_space<vmem>>, vector<32x64xf32>
    %cst_161 = arith.constant dense<0.000000e+00> : vector<12x64xf32>
    %286 = tpu.matmul %284, %285, %cst_161 {dimension_numbers = #tpu.dot_dimension_numbers<[1], [0], [0], [1], [0, 0, 1, 1], [], []>} : vector<12x32xf32>, vector<32x64xf32>, vector<12x64xf32> -> vector<12x64xf32>
    %c0_162 = arith.constant 0 : index
    %c0_163 = arith.constant 0 : index
    %287 = vector.load %arg12[%c0_162, %c0_163] : memref<1x64xf32, #tpu.memory_space<vmem>>, vector<1x64xf32>
    %288 = vector.broadcast %287 : vector<1x64xf32> to vector<12x64xf32>
    %289 = arith.addf %286, %288 : vector<12x64xf32>
    %cst_164 = arith.constant 0.000000e+00 : f32
    %290 = vector.broadcast %cst_164 : f32 to vector<12x64xf32>
    %291 = arith.maximumf %289, %290 : vector<12x64xf32>
    %c0_165 = arith.constant 0 : index
    %c0_166 = arith.constant 0 : index
    %292 = vector.load %arg13[%c0_165, %c0_166] : memref<64x32xf32, #tpu.memory_space<vmem>>, vector<64x32xf32>
    %cst_167 = arith.constant dense<0.000000e+00> : vector<12x32xf32>
    %293 = tpu.matmul %291, %292, %cst_167 {dimension_numbers = #tpu.dot_dimension_numbers<[1], [0], [0], [1], [0, 0, 1, 1], [], []>} : vector<12x64xf32>, vector<64x32xf32>, vector<12x32xf32> -> vector<12x32xf32>
    %c0_168 = arith.constant 0 : index
    %c0_169 = arith.constant 0 : index
    %294 = vector.load %arg14[%c0_168, %c0_169] : memref<1x32xf32, #tpu.memory_space<vmem>>, vector<1x32xf32>
    %295 = vector.broadcast %294 : vector<1x32xf32> to vector<12x32xf32>
    %296 = arith.addf %293, %295 : vector<12x32xf32>
    %297 = arith.addf %284, %296 : vector<12x32xf32>
    %c0_170 = arith.constant 0 : index
    %c0_171 = arith.constant 0 : index
    %298 = vector.load %arg15[%c0_170, %c0_171] : memref<1x32xf32, #tpu.memory_space<vmem>>, vector<1x32xf32>
    %c0_172 = arith.constant 0 : index
    %c0_173 = arith.constant 0 : index
    %299 = vector.load %arg16[%c0_172, %c0_173] : memref<1x32xf32, #tpu.memory_space<vmem>>, vector<1x32xf32>
    %cst_174 = arith.constant dense<0.000000e+00> : vector<12xf32>
    %300 = vector.multi_reduction <add>, %297, %cst_174 [1] : vector<12x32xf32> to vector<12xf32>
    %301 = vector.shape_cast %300 : vector<12xf32> to vector<12x1xf32>
    %cst_175 = arith.constant 3.200000e+01 : f32
    %302 = vector.broadcast %cst_175 : f32 to vector<12x1xf32>
    %303 = arith.divf %301, %302 : vector<12x1xf32>
    %304 = vector.broadcast %303 : vector<12x1xf32> to vector<12x32xf32>
    %305 = arith.subf %297, %304 : vector<12x32xf32>
    %306 = arith.mulf %305, %305 : vector<12x32xf32>
    %cst_176 = arith.constant dense<0.000000e+00> : vector<12xf32>
    %307 = vector.multi_reduction <add>, %306, %cst_176 [1] : vector<12x32xf32> to vector<12xf32>
    %308 = vector.shape_cast %307 : vector<12xf32> to vector<12x1xf32>
    %cst_177 = arith.constant 3.200000e+01 : f32
    %309 = vector.broadcast %cst_177 : f32 to vector<12x1xf32>
    %310 = arith.divf %308, %309 : vector<12x1xf32>
    %311 = vector.broadcast %303 : vector<12x1xf32> to vector<12x32xf32>
    %312 = arith.subf %297, %311 : vector<12x32xf32>
    %cst_178 = arith.constant 9.99999974E-6 : f32
    %313 = vector.broadcast %cst_178 : f32 to vector<12x1xf32>
    %314 = arith.addf %310, %313 : vector<12x1xf32>
    %315 = math.rsqrt %314 : vector<12x1xf32>
    %316 = vector.broadcast %315 : vector<12x1xf32> to vector<12x32xf32>
    %317 = arith.mulf %312, %316 : vector<12x32xf32>
    %318 = vector.broadcast %298 : vector<1x32xf32> to vector<12x32xf32>
    %319 = arith.mulf %317, %318 : vector<12x32xf32>
    %320 = vector.broadcast %299 : vector<1x32xf32> to vector<12x32xf32>
    %321 = arith.addf %319, %320 : vector<12x32xf32>
    %c0_179 = arith.constant 0 : index
    %c0_180 = arith.constant 0 : index
    %c0_181 = arith.constant 0 : index
    %322 = vector.load %arg17[%c0_179, %c0_180, %c0_181] : memref<1x12x32xf32, #tpu.memory_space<vmem>>, vector<1x12x32xf32>
    %323 = vector.shape_cast %322 : vector<1x12x32xf32> to vector<12x32xf32>
    %324 = vector.shape_cast %321 : vector<12x32xf32> to vector<1x12x32xf32>
    tpu.vector_store %arg17[%c0_179, %c0_180, %c0_181], %324 {strides = array<i32>} : memref<1x12x32xf32, #tpu.memory_space<vmem>>, vector<1x12x32xf32>,
    return
  }
  func.func @transform_0(%arg0: i32) -> (i32, i32, i32) {
    %c0_i32 = arith.constant 0 : i32
    %c0_i32_0 = arith.constant 0 : i32
    %c0_i32_1 = arith.constant 0 : i32
    return %arg0, %c0_i32, %c0_i32_0 : i32, i32, i32
  }
  func.func @transform_1(%arg0: i32) -> (i32, i32, i32) {
    %c0_i32 = arith.constant 0 : i32
    %c0_i32_0 = arith.constant 0 : i32
    %c0_i32_1 = arith.constant 0 : i32
    return %arg0, %c0_i32, %c0_i32_0 : i32, i32, i32
  }
  func.func @transform_2(%arg0: i32) -> (i32, i32, i32, i32) {
    %c0_i32 = arith.constant 0 : i32
    %c0_i32_0 = arith.constant 0 : i32
    %c0_i32_1 = arith.constant 0 : i32
    %c0_i32_2 = arith.constant 0 : i32
    return %arg0, %c0_i32, %c0_i32_0, %c0_i32_1 : i32, i32, i32, i32
  }
  func.func @transform_3(%arg0: i32) -> (i32, i32, i32, i32) {
    %c0_i32 = arith.constant 0 : i32
    %c0_i32_0 = arith.constant 0 : i32
    %c0_i32_1 = arith.constant 0 : i32
    %c0_i32_2 = arith.constant 0 : i32
    return %arg0, %c0_i32, %c0_i32_0, %c0_i32_1 : i32, i32, i32, i32
  }
  func.func @transform_4(%arg0: i32) -> (i32, i32) {
    %c0_i32 = arith.constant 0 : i32
    %c0_i32_0 = arith.constant 0 : i32
    %c0_i32_1 = arith.constant 0 : i32
    return %c0_i32, %c0_i32_0 : i32, i32
  }
  func.func @transform_5(%arg0: i32) -> (i32, i32) {
    %c0_i32 = arith.constant 0 : i32
    %c0_i32_0 = arith.constant 0 : i32
    %c0_i32_1 = arith.constant 0 : i32
    return %c0_i32, %c0_i32_0 : i32, i32
  }
  func.func @transform_6(%arg0: i32) -> (i32, i32) {
    %c0_i32 = arith.constant 0 : i32
    %c0_i32_0 = arith.constant 0 : i32
    %c0_i32_1 = arith.constant 0 : i32
    return %c0_i32, %c0_i32_0 : i32, i32
  }
  func.func @transform_7(%arg0: i32) -> (i32, i32) {
    %c0_i32 = arith.constant 0 : i32
    %c0_i32_0 = arith.constant 0 : i32
    %c0_i32_1 = arith.constant 0 : i32
    return %c0_i32, %c0_i32_0 : i32, i32
  }
  func.func @transform_8(%arg0: i32) -> (i32, i32) {
    %c0_i32 = arith.constant 0 : i32
    %c0_i32_0 = arith.constant 0 : i32
    %c0_i32_1 = arith.constant 0 : i32
    return %c0_i32, %c0_i32_0 : i32, i32
  }
  func.func @transform_9(%arg0: i32) -> (i32, i32) {
    %c0_i32 = arith.constant 0 : i32
    %c0_i32_0 = arith.constant 0 : i32
    %c0_i32_1 = arith.constant 0 : i32
    return %c0_i32, %c0_i32_0 : i32, i32
  }
  func.func @transform_10(%arg0: i32) -> (i32, i32) {
    %c0_i32 = arith.constant 0 : i32
    %c0_i32_0 = arith.constant 0 : i32
    %c0_i32_1 = arith.constant 0 : i32
    return %c0_i32, %c0_i32_0 : i32, i32
  }
  func.func @transform_11(%arg0: i32) -> (i32, i32) {
    %c0_i32 = arith.constant 0 : i32
    %c0_i32_0 = arith.constant 0 : i32
    %c0_i32_1 = arith.constant 0 : i32
    return %c0_i32, %c0_i32_0 : i32, i32
  }
  func.func @transform_12(%arg0: i32) -> (i32, i32) {
    %c0_i32 = arith.constant 0 : i32
    %c0_i32_0 = arith.constant 0 : i32
    %c0_i32_1 = arith.constant 0 : i32
    return %c0_i32, %c0_i32_0 : i32, i32
  }
  func.func @transform_13(%arg0: i32) -> (i32, i32) {
    %c0_i32 = arith.constant 0 : i32
    %c0_i32_0 = arith.constant 0 : i32
    %c0_i32_1 = arith.constant 0 : i32
    return %c0_i32, %c0_i32_0 : i32, i32
  }
  func.func @transform_14(%arg0: i32) -> (i32, i32) {
    %c0_i32 = arith.constant 0 : i32
    %c0_i32_0 = arith.constant 0 : i32
    %c0_i32_1 = arith.constant 0 : i32
    return %c0_i32, %c0_i32_0 : i32, i32
  }
  func.func @transform_15(%arg0: i32) -> (i32, i32) {
    %c0_i32 = arith.constant 0 : i32
    %c0_i32_0 = arith.constant 0 : i32
    %c0_i32_1 = arith.constant 0 : i32
    return %c0_i32, %c0_i32_0 : i32, i32
  }
  func.func @transform_16(%arg0: i32) -> (i32, i32, i32) {
    %c0_i32 = arith.constant 0 : i32
    %c0_i32_0 = arith.constant 0 : i32
    %c0_i32_1 = arith.constant 0 : i32
    return %arg0, %c0_i32, %c0_i32_0 : i32, i32, i32
  }
}

</mosaic_0001>

<llo_original>
// kernel: run.8
$region0: #{run.8}
  #allocation0 [shape = 'u32[]', space=smem, size = 0x4, offset = 0x4, fixed_abs, tag = 'smem constant byte address 0x4 - core index']
  #allocation1 [shape = 'u32[72,128]{1,0:T(1,128)}', space=vmem, size = 0x9000, scoped, tag = 'internal scratch']
  %s0 = inlined_call_operand.vmem [shape: f32[32,4], index: 0, kind: input, shape index: {}]
  %s1 = inlined_call_operand.vmem [shape: f32[4,32], index: 1, kind: input, shape index: {}]
  %s2 = inlined_call_operand.vmem [shape: f32[1,32], index: 2, kind: input, shape index: {}]
  %s3 = inlined_call_operand.vmem [shape: f32[32,32], index: 3, kind: output, shape index: {}]
  %s4 = sld [smem:[#allocation0]]
  $region22: #{run.8} parent=0
    _
  %s6 = ssub.s32 1, %s4
  %s7 = scalar_select 0, %s6, %s4
  // Predicated region
  $region2: #{run.8} parent=0 // pred_check
    _
  $region3: #{run.8} parent=0 // pred_check_branch
    %9 = sbr.rel (0) target = $region5
  $region4: #{run.8} parent=0 // pred_region
    _
  $region5: #{run.8} parent=0 // pred_fallthru
    _
  // Predicated region
  $region6: #{run.8} parent=0 // pred_check
    _
  $region7: #{run.8} parent=0 // pred_check_branch
    %11 = sbr.rel (0) target = $region9
  $region8: #{run.8} parent=0 // pred_region
    _
  $region9: #{run.8} parent=0 // pred_fallthru
    _
  // Predicated region
  $region10: #{run.8} parent=0 // pred_check
    _
  $region11: #{run.8} parent=0 // pred_check_branch
    %13 = sbr.rel (0) target = $region13
  $region12: #{run.8} parent=0 // pred_region
    _
  $region13: #{run.8} parent=0 // pred_fallthru
    _
  %v14 = vld [vmem:[%s0] sm:$0xff]
  %v15 = vld [vmem:[%s0 + $0x8] sm:$0xff]
  %v16 = vld [vmem:[%s0 + $0x10] sm:$0xff]
  %v17 = vld [vmem:[%s0 + $0x18] sm:$0xff]
  %v18 = vld [vmem:[%s1] sm:$0xf]
  %v19 = vld [vmem:[%s2] sm:$0x1]
  %v21 = vperm.slane %v19, 0
  %vm23 = vcmask 31744
  %v25 = vsel %vm23, %v14, 0
  %v28 = vsel %vm23, %v15, 0
  %v31 = vsel %vm23, %v16, 0
  %v34 = vsel %vm23, %v17, 0
  %vm36 = vcmask 1043456
  %v38 = vsel %vm36, %v18, 0
  %40 = vmatpush.msra.mxu0 0.0
  %41 = vmatpush.msra.mxu0 0.0
  %42 = vmatpush.msra.mxu0 0.0
  %43 = vmatpush.msra.mxu0 0.0
  %44 = vmatpush.msra.mxu0 0.0
  %45 = vmatpush.msra.mxu0 0.0
  %46 = vmatpush.msra.mxu0 0.0
  %47 = vmatpush.msra.mxu0 0.0
  %48 = vmatpush.msra.mxu0 0.0
  %49 = vmatpush.msra.mxu0 0.0
  %50 = vmatpush.msra.mxu0 0.0
  %51 = vmatpush.msra.mxu0 0.0
  %52 = vmatpush.msra.mxu0 0.0
  %53 = vmatpush.msra.mxu0 0.0
  %54 = vmatpush.msra.mxu0 0.0
  %55 = vmatpush.msra.mxu0 %v38
  %56 = vmatmul.f32.gmra.mxu0 %v25
  %v57 = vpop.f32.mrf.mxu0
  %v58 = vadd.f32 %v21, %v57
  %59 = vmatmul.f32.gmra.mxu0 %v28
  %v60 = vpop.f32.mrf.mxu0
  %v61 = vadd.f32 %v21, %v60
  %62 = vmatmul.f32.gmra.mxu0 %v31
  %v63 = vpop.f32.mrf.mxu0
  %v64 = vadd.f32 %v21, %v63
  %65 = vmatmul.f32.gmra.mxu0 %v34
  %v66 = vpop.f32.mrf.mxu0
  %v67 = vadd.f32 %v21, %v66
  %68 = vdwg.mxu0
  %vm69 = vcmask 261120
  %70 = vst.msk [vmem:[%s3] sm:$0xff] %vm69, %v58
  %71 = vst.msk [vmem:[%s3 + $0x8] sm:$0xff] %vm69, %v61
  %72 = vst.msk [vmem:[%s3 + $0x10] sm:$0xff] %vm69, %v64
  %73 = vst.msk [vmem:[%s3 + $0x18] sm:$0xff] %vm69, %v67
  // Predicated region
  $region14: #{run.8} parent=0 // pred_check
    _
  $region15: #{run.8} parent=0 // pred_check_branch
    %75 = sbr.rel (0) target = $region17
  $region16: #{run.8} parent=0 // pred_region
    _
  $region17: #{run.8} parent=0 // pred_fallthru
    _
  // Predicated region
  $region18: #{run.8} parent=0 // pred_check
    _
  $region19: #{run.8} parent=0 // pred_check_branch
    %77 = sbr.rel (0) target = $region21
  $region20: #{run.8} parent=0 // pred_region
    _
  $region21: #{run.8} parent=0 // pred_fallthru
    _

// kernel: run.10
$region0: #{run.10}
  #allocation0 [shape = 'u32[]', space=smem, size = 0x4, offset = 0x4, fixed_abs, tag = 'smem constant byte address 0x4 - core index']
  #allocation1 [shape = 'u32[72,128]{1,0:T(1,128)}', space=vmem, size = 0x9000, scoped, tag = 'internal scratch']
  %s0 = inlined_call_operand.vmem [shape: f32[2,256,4], index: 0, kind: input, shape index: {}]
  %s1 = inlined_call_operand.vmem [shape: f32[4,96], index: 1, kind: input, shape index: {}]
  %s2 = inlined_call_operand.vmem [shape: f32[1,96], index: 2, kind: input, shape index: {}]
  %s3 = inlined_call_operand.vmem [shape: f32[96,96], index: 3, kind: input, shape index: {}]
  %s4 = inlined_call_operand.vmem [shape: f32[1,96], index: 4, kind: input, shape index: {}]
  %s5 = inlined_call_operand.vmem [shape: f32[96,12], index: 5, kind: input, shape index: {}]
  %s6 = inlined_call_operand.vmem [shape: f32[1,12], index: 6, kind: input, shape index: {}]
  %s7 = inlined_call_operand.vmem [shape: f32[2,256,12], index: 7, kind: output, shape index: {}]
  %s8 = sld [smem:[#allocation0]]
  $region61: #{run.10} parent=0
    _
  %s10 = ssub.s32 1, %s8
  %s11 = scalar_select 0, %s10, %s8
  loop: start=0, step=1, limit=4
  $region2: #{run.10} parent=0 // loop_pre_header
    _
  $region3: #{run.10} parent=0 // loop_header
    %s13 = sphi 0, %s17
    %p14 = scmp.ge.s32.totalorder %s13, 4
    %s23 = sphi 0, %s25
    %s26 = sphi 0, %s23
    %s27 = sphi 0, %s26
    %s43 = sphi 0, %s27
    %s47 = sphi 0, %s47
    %s49 = sphi 0, %s47
    %s50 = sphi 0, %s49
    %s64 = sphi 0, %s50
    %s68 = sphi 0, %s68
    %s70 = sphi 0, %s68
    %s71 = sphi 0, %s70
    %s85 = sphi 0, %s71
    %s89 = sphi 0, %s89
    %s91 = sphi 0, %s89
    %s92 = sphi 0, %s91
    %s106 = sphi 0, %s92
    %s110 = sphi 0, %s110
    %s112 = sphi 0, %s110
    %s113 = sphi 0, %s112
    %s127 = sphi 0, %s113
    %s131 = sphi 0, %s131
    %s133 = sphi 0, %s131
    %s134 = sphi 0, %s133
    %s148 = sphi 0, %s134
    %s152 = sphi 0, %s152
    %s154 = sphi 0, %s152
    %s155 = sphi 0, %s154
    %s169 = sphi 0, %s155
    %s175 = sphi 0, %s177
    %s178 = sphi 0, %s175
    %s179 = sphi 0, %s178
    %s195 = sphi 0, %s179
  $region4: #{run.10} parent=0 // loop_header_branch
    %16 = sbr.rel (%p14) target = $region8
  $region5: #{run.10} parent=0 // loop_body
    %s18 = ssub.s32 %s13, 1
    %s19 = ssub.s32 %s13, 2
    %s20 = sadd.s32 %s13, 1
    %s21 = ssub.s32 %s13, %s20
    %p22 = scmp.eq.s32.totalorder %s21, 0
    %s24 = sadd.s32 %s23, 1
    %s25 = scalar_select %p22, %s23, %s24
    %p28 = pneg %p22
    %p29 = scmp.eq.s32.totalorder %s13, 1
    %p30 = por %p28, %p29
    %p31 = scmp.ne.s32.totalorder %s23, %s26
    %p32 = scmp.eq.s32.totalorder %s13, 0
    %p33 = por %p31, %p32
    %p34 = scmp.ne.s32.totalorder %s23, %s26
    %p35 = scmp.eq.s32.totalorder %s18, 1
    %p36 = por %p34, %p35
    %p37 = scmp.ne.s32.totalorder %s26, %s27
    %p38 = scmp.eq.s32.totalorder %s18, 0
    %p39 = por %p37, %p38
    %p40 = scmp.ne.s32.totalorder %s26, %s27
    %p41 = scmp.eq.s32.totalorder %s19, 1
    %p42 = por %p40, %p41
    %p44 = scmp.ne.s32.totalorder %s27, %s43
    %p45 = scmp.eq.s32.totalorder %s19, 0
    %p46 = por %p44, %p45
    %s48 = sadd.s32 %s47, 1
    %p51 = scmp.eq.s32.totalorder %s13, 1
    %p52 = scmp.ne.s32.totalorder %s47, %s49
    %p53 = scmp.eq.s32.totalorder %s13, 0
    %p54 = por %p52, %p53
    %p55 = scmp.ne.s32.totalorder %s47, %s49
    %p56 = scmp.eq.s32.totalorder %s18, 1
    %p57 = por %p55, %p56
    %p58 = scmp.ne.s32.totalorder %s49, %s50
    %p59 = scmp.eq.s32.totalorder %s18, 0
    %p60 = por %p58, %p59
    %p61 = scmp.ne.s32.totalorder %s49, %s50
    %p62 = scmp.eq.s32.totalorder %s19, 1
    %p63 = por %p61, %p62
    %p65 = scmp.ne.s32.totalorder %s50, %s64
    %p66 = scmp.eq.s32.totalorder %s19, 0
    %p67 = por %p65, %p66
    %s69 = sadd.s32 %s68, 1
    %p72 = scmp.eq.s32.totalorder %s13, 1
    %p73 = scmp.ne.s32.totalorder %s68, %s70
    %p74 = scmp.eq.s32.totalorder %s13, 0
    %p75 = por %p73, %p74
    %p76 = scmp.ne.s32.totalorder %s68, %s70
    %p77 = scmp.eq.s32.totalorder %s18, 1
    %p78 = por %p76, %p77
    %p79 = scmp.ne.s32.totalorder %s70, %s71
    %p80 = scmp.eq.s32.totalorder %s18, 0
    %p81 = por %p79, %p80
    %p82 = scmp.ne.s32.totalorder %s70, %s71
    %p83 = scmp.eq.s32.totalorder %s19, 1
    %p84 = por %p82, %p83
    %p86 = scmp.ne.s32.totalorder %s71, %s85
    %p87 = scmp.eq.s32.totalorder %s19, 0
    %p88 = por %p86, %p87
    %s90 = sadd.s32 %s89, 1
    %p93 = scmp.eq.s32.totalorder %s13, 1
    %p94 = scmp.ne.s32.totalorder %s89, %s91
    %p95 = scmp.eq.s32.totalorder %s13, 0
    %p96 = por %p94, %p95
    %p97 = scmp.ne.s32.totalorder %s89, %s91
    %p98 = scmp.eq.s32.totalorder %s18, 1
    %p99 = por %p97, %p98
    %p100 = scmp.ne.s32.totalorder %s91, %s92
    %p101 = scmp.eq.s32.totalorder %s18, 0
    %p102 = por %p100, %p101
    %p103 = scmp.ne.s32.totalorder %s91, %s92
    %p104 = scmp.eq.s32.totalorder %s19, 1
    %p105 = por %p103, %p104
    %p107 = scmp.ne.s32.totalorder %s92, %s106
    %p108 = scmp.eq.s32.totalorder %s19, 0
    %p109 = por %p107, %p108
    %s111 = sadd.s32 %s110, 1
    %p114 = scmp.eq.s32.totalorder %s13, 1
    %p115 = scmp.ne.s32.totalorder %s110, %s112
    %p116 = scmp.eq.s32.totalorder %s13, 0
    %p117 = por %p115, %p116
    %p118 = scmp.ne.s32.totalorder %s110, %s112
    %p119 = scmp.eq.s32.totalorder %s18, 1
    %p120 = por %p118, %p119
    %p121 = scmp.ne.s32.totalorder %s112, %s113
    %p122 = scmp.eq.s32.totalorder %s18, 0
    %p123 = por %p121, %p122
    %p124 = scmp.ne.s32.totalorder %s112, %s113
    %p125 = scmp.eq.s32.totalorder %s19, 1
    %p126 = por %p124, %p125
    %p128 = scmp.ne.s32.totalorder %s113, %s127
    %p129 = scmp.eq.s32.totalorder %s19, 0
    %p130 = por %p128, %p129
    %s132 = sadd.s32 %s131, 1
    %p135 = scmp.eq.s32.totalorder %s13, 1
    %p136 = scmp.ne.s32.totalorder %s131, %s133
    %p137 = scmp.eq.s32.totalorder %s13, 0
    %p138 = por %p136, %p137
    %p139 = scmp.ne.s32.totalorder %s131, %s133
    %p140 = scmp.eq.s32.totalorder %s18, 1
    %p141 = por %p139, %p140
    %p142 = scmp.ne.s32.totalorder %s133, %s134
    %p143 = scmp.eq.s32.totalorder %s18, 0
    %p144 = por %p142, %p143
    %p145 = scmp.ne.s32.totalorder %s133, %s134
    %p146 = scmp.eq.s32.totalorder %s19, 1
    %p147 = por %p145, %p146
    %p149 = scmp.ne.s32.totalorder %s134, %s148
    %p150 = scmp.eq.s32.totalorder %s19, 0
    %p151 = por %p149, %p150
    %s153 = sadd.s32 %s152, 1
    %p156 = scmp.eq.s32.totalorder %s13, 1
    %p157 = scmp.ne.s32.totalorder %s152, %s154
    %p158 = scmp.eq.s32.totalorder %s13, 0
    %p159 = por %p157, %p158
    %p160 = scmp.ne.s32.totalorder %s152, %s154
    %p161 = scmp.eq.s32.totalorder %s18, 1
    %p162 = por %p160, %p161
    %p163 = scmp.ne.s32.totalorder %s154, %s155
    %p164 = scmp.eq.s32.totalorder %s18, 0
    %p165 = por %p163, %p164
    %p166 = scmp.ne.s32.totalorder %s154, %s155
    %p167 = scmp.eq.s32.totalorder %s19, 1
    %p168 = por %p166, %p167
    %p170 = scmp.ne.s32.totalorder %s155, %s169
    %p171 = scmp.eq.s32.totalorder %s19, 0
    %p172 = por %p170, %p171
    %s173 = ssub.s32 %s13, %s20
    %p174 = scmp.eq.s32.totalorder %s173, 0
    %s176 = sadd.s32 %s175, 1
    %s177 = scalar_select %p174, %s175, %s176
    %p180 = pneg %p174
    %p181 = scmp.eq.s32.totalorder %s13, 1
    %p182 = por %p180, %p181
    %p183 = scmp.ne.s32.totalorder %s175, %s178
    %p184 = scmp.eq.s32.totalorder %s13, 0
    %p185 = por %p183, %p184
    %p186 = scmp.ne.s32.totalorder %s175, %s178
    %p187 = scmp.eq.s32.totalorder %s18, 1
    %p188 = por %p186, %p187
    %p189 = scmp.ne.s32.totalorder %s178, %s179
    %p190 = scmp.eq.s32.totalorder %s18, 0
    %p191 = por %p189, %p190
    %p192 = scmp.ne.s32.totalorder %s178, %s179
    %p193 = scmp.eq.s32.totalorder %s19, 1
    %p194 = por %p192, %p193
    %p196 = scmp.ne.s32.totalorder %s179, %s195
    %p197 = scmp.eq.s32.totalorder %s19, 0
    %p198 = por %p196, %p197
    %p199 = scmp.le.s32.totalorder 1, %s13
    %p200 = scmp.lt.s32.totalorder %s13, 3
    %p201 = pnand %p199, %p200
    %p202 = pneg %p201
    // Predicated region
    $region9: #{run.10} parent=5 // pred_check
      _
    $region10: #{run.10} parent=5 // pred_check_branch
      %204 = sbr.rel (%p201) target = $region12
    $region11: #{run.10} parent=5 // pred_region
      %s205 = ssub.s32 %s13, 1
      // Predicated region
      $region13: #{run.10} parent=11 // pred_check
        %p206 = pneg %p60
      $region14: #{run.10} parent=11 // pred_check_branch
        %208 = sbr.rel (%p206) target = $region16
      $region15: #{run.10} parent=11 // pred_region
        _
      $region16: #{run.10} parent=11 // pred_fallthru
        _
      // Predicated region
      $region17: #{run.10} parent=11 // pred_check
        %p209 = pneg %p81
      $region18: #{run.10} parent=11 // pred_check_branch
        %211 = sbr.rel (%p209) target = $region20
      $region19: #{run.10} parent=11 // pred_region
        _
      $region20: #{run.10} parent=11 // pred_fallthru
        _
      // Predicated region
      $region21: #{run.10} parent=11 // pred_check
        %p212 = pneg %p102
      $region22: #{run.10} parent=11 // pred_check_branch
        %214 = sbr.rel (%p212) target = $region24
      $region23: #{run.10} parent=11 // pred_region
        _
      $region24: #{run.10} parent=11 // pred_fallthru
        _
      // Predicated region
      $region25: #{run.10} parent=11 // pred_check
        %p215 = pneg %p123
      $region26: #{run.10} parent=11 // pred_check_branch
        %217 = sbr.rel (%p215) target = $region28
      $region27: #{run.10} parent=11 // pred_region
        _
      $region28: #{run.10} parent=11 // pred_fallthru
        _
      // Predicated region
      $region29: #{run.10} parent=11 // pred_check
        %p218 = pneg %p144
      $region30: #{run.10} parent=11 // pred_check_branch
        %220 = sbr.rel (%p218) target = $region32
      $region31: #{run.10} parent=11 // pred_region
        _
      $region32: #{run.10} parent=11 // pred_fallthru
        _
      // Predicated region
      $region33: #{run.10} parent=11 // pred_check
        %p221 = pneg %p165
      $region34: #{run.10} parent=11 // pred_check_branch
        %223 = sbr.rel (%p221) target = $region36
      $region35: #{run.10} parent=11 // pred_region
        _
      $region36: #{run.10} parent=11 // pred_fallthru
        _
    $region12: #{run.10} parent=5 // pred_fallthru
      _
    %p224 = scmp.lt.s32.totalorder %s13, 2
    // Predicated region
    $region37: #{run.10} parent=5 // pred_check
      %p225 = pneg %p224
    $region38: #{run.10} parent=5 // pred_check_branch
      %227 = sbr.rel (%p225) target = $region40
    $region39: #{run.10} parent=5 // pred_region
      // Predicated region
      $region41: #{run.10} parent=39 // pred_check
        %p228 = pneg %p33
      $region42: #{run.10} parent=39 // pred_check_branch
        %230 = sbr.rel (%p228) target = $region44
      $region43: #{run.10} parent=39 // pred_region
        %p231 = scmp.lt.s32.totalorder %s13, 1
        %s232 = scalar_select %p231, %s13, 1
        %s233 = smul.addr %s232, 32
        %s234 = smul.addr %s233, 8
        %s235 = scalar_lea.vmem %s0, %s234
      $region44: #{run.10} parent=39 // pred_fallthru
        _
    $region40: #{run.10} parent=5 // pred_fallthru
      _
    %p236 = scmp.le.s32.totalorder 1, %s13
    %p237 = scmp.lt.s32.totalorder %s13, 3
    %p238 = pnand %p236, %p237
    %p239 = pneg %p238
    // Predicated region
    $region45: #{run.10} parent=5 // pred_check
      _
    $region46: #{run.10} parent=5 // pred_check_branch
      %241 = sbr.rel (%p238) target = $region48
    $region47: #{run.10} parent=5 // pred_region
      %s242 = ssub.s32 %s13, 1
      %p243 = scmp.lt.s32.totalorder %s18, 1
      %s244 = scalar_select %p243, %s18, 1
      %s245 = smul.addr %s244, 32
      %s246 = smul.addr %s245, 8
      %s247 = scalar_lea.vmem %s0, %s246
      %p248 = pneg %p39
      %p249 = pneg %p36
      %p250 = pneg %p60
      %p251 = pneg %p57
      %p252 = pneg %p81
      %p253 = pneg %p78
      %p254 = pneg %p102
      %p255 = pneg %p99
      %p256 = pneg %p123
      %p257 = pneg %p120
      %p258 = pneg %p144
      %p259 = pneg %p141
      %p260 = pneg %p165
      %p261 = pneg %p162
      %p262 = pneg %p191
      %p263 = pneg %p188
      %p264 = scmp.lt.s32.totalorder %s18, 1
      %s265 = scalar_select %p264, %s18, 1
      %s266 = smul.addr %s265, 32
      %s267 = smul.addr %s266, 8
      %s268 = scalar_lea.vmem %s7, %s267
      %p269 = scmp.lt.s32.totalorder %s18, 1
      %s270 = scalar_select %p269, %s18, 1
      %s271 = smul.addr %s270, 32
      %s272 = smul.addr %s271, 8
      %s273 = scalar_lea.vmem %s0, %s272
      %p274 = scmp.lt.s32.totalorder %s18, 1
      %s275 = scalar_select %p274, %s18, 1
      %s276 = smul.addr %s275, 32
      %s277 = smul.addr %s276, 8
      %s278 = scalar_lea.vmem %s7, %s277
      %v279 = vld [vmem:[%s273] sm:$0xff]
      %v280 = vld [vmem:[%s273 + $0x8] sm:$0xff]
      %v281 = vld [vmem:[%s273 + $0x10] sm:$0xff]
      %v282 = vld [vmem:[%s273 + $0x18] sm:$0xff]
      %v283 = vld [vmem:[%s273 + $0x20] sm:$0xff]
      %v284 = vld [vmem:[%s273 + $0x28] sm:$0xff]
      %v285 = vld [vmem:[%s273 + $0x30] sm:$0xff]
      %v286 = vld [vmem:[%s273 + $0x38] sm:$0xff]
      %v287 = vld [vmem:[%s273 + $0x40] sm:$0xff]
      %v288 = vld [vmem:[%s273 + $0x48] sm:$0xff]
      %v289 = vld [vmem:[%s273 + $0x50] sm:$0xff]
      %v290 = vld [vmem:[%s273 + $0x58] sm:$0xff]
      %v291 = vld [vmem:[%s273 + $0x60] sm:$0xff]
      %v292 = vld [vmem:[%s273 + $0x68] sm:$0xff]
      %v293 = vld [vmem:[%s273 + $0x70] sm:$0xff]
      %v294 = vld [vmem:[%s273 + $0x78] sm:$0xff]
      %v295 = vld [vmem:[%s273 + $0x80] sm:$0xff]
      %v296 = vld [vmem:[%s273 + $0x88] sm:$0xff]
      %v297 = vld [vmem:[%s273 + $0x90] sm:$0xff]
      %v298 = vld [vmem:[%s273 + $0x98] sm:$0xff]
      %v299 = vld [vmem:[%s273 + $0xa0] sm:$0xff]
      %v300 = vld [vmem:[%s273 + $0xa8] sm:$0xff]
      %v301 = vld [vmem:[%s273 + $0xb0] sm:$0xff]
      %v302 = vld [vmem:[%s273 + $0xb8] sm:$0xff]
      %v303 = vld [vmem:[%s273 + $0xc0] sm:$0xff]
      %v304 = vld [vmem:[%s273 + $0xc8] sm:$0xff]
      %v305 = vld [vmem:[%s273 + $0xd0] sm:$0xff]
      %v306 = vld [vmem:[%s273 + $0xd8] sm:$0xff]
      %v307 = vld [vmem:[%s273 + $0xe0] sm:$0xff]
      %v308 = vld [vmem:[%s273 + $0xe8] sm:$0xff]
      %v309 = vld [vmem:[%s273 + $0xf0] sm:$0xff]
      %v310 = vld [vmem:[%s273 + $0xf8] sm:$0xff]
      %v311 = vld [vmem:[%s1] sm:$0xf]
      %v312 = vld [vmem:[%s2] sm:$0x1]
      %v314 = vperm.slane %v312, 0
      %vm316 = vcmask 31744
      %v318 = vsel %vm316, %v279, 0
      %v321 = vsel %vm316, %v280, 0
      %v324 = vsel %vm316, %v281, 0
      %v327 = vsel %vm316, %v282, 0
      %v330 = vsel %vm316, %v283, 0
      %v333 = vsel %vm316, %v284, 0
      %v336 = vsel %vm316, %v285, 0
      %v339 = vsel %vm316, %v286, 0
      %v342 = vsel %vm316, %v287, 0
      %v345 = vsel %vm316, %v288, 0
      %v348 = vsel %vm316, %v289, 0
      %v351 = vsel %vm316, %v290, 0
      %v354 = vsel %vm316, %v291, 0
      %v357 = vsel %vm316, %v292, 0
      %v360 = vsel %vm316, %v293, 0
      %v363 = vsel %vm316, %v294, 0
      %v366 = vsel %vm316, %v295, 0
      %v369 = vsel %vm316, %v296, 0
      %v372 = vsel %vm316, %v297, 0
      %v375 = vsel %vm316, %v298, 0
      %v378 = vsel %vm316, %v299, 0
      %v381 = vsel %vm316, %v300, 0
      %v384 = vsel %vm316, %v301, 0
      %v387 = vsel %vm316, %v302, 0
      %v390 = vsel %vm316, %v303, 0
      %v393 = vsel %vm316, %v304, 0
      %v396 = vsel %vm316, %v305, 0
      %v399 = vsel %vm316, %v306, 0
      %v402 = vsel %vm316, %v307, 0
      %v405 = vsel %vm316, %v308, 0
      %v408 = vsel %vm316, %v309, 0
      %v411 = vsel %vm316, %v310, 0
      %vm413 = vcmask 1043456
      %v415 = vsel %vm413, %v311, 0
      %417 = vmatpush.msra.mxu0 0.0
      %418 = vmatpush.msra.mxu0 0.0
      %419 = vmatpush.msra.mxu0 0.0
      %420 = vmatpush.msra.mxu0 0.0
      %421 = vmatpush.msra.mxu0 0.0
      %422 = vmatpush.msra.mxu0 0.0
      %423 = vmatpush.msra.mxu0 0.0
      %424 = vmatpush.msra.mxu0 0.0
      %425 = vmatpush.msra.mxu0 0.0
      %426 = vmatpush.msra.mxu0 0.0
      %427 = vmatpush.msra.mxu0 0.0
      %428 = vmatpush.msra.mxu0 0.0
      %429 = vmatpush.msra.mxu0 0.0
      %430 = vmatpush.msra.mxu0 0.0
      %431 = vmatpush.msra.mxu0 0.0
      %432 = vmatpush.msra.mxu0 %v415
      %433 = vmatmul.f32.gmra.mxu0 %v318
      %v434 = vpop.f32.mrf.mxu0
      %v435 = vadd.f32 %v314, %v434
      %436 = vmatmul.f32.gmra.mxu0 %v321
      %v437 = vpop.f32.mrf.mxu0
      %v438 = vadd.f32 %v314, %v437
      %439 = vmatmul.f32.gmra.mxu0 %v324
      %v440 = vpop.f32.mrf.mxu0
      %v441 = vadd.f32 %v314, %v440
      %442 = vmatmul.f32.gmra.mxu0 %v327
      %v443 = vpop.f32.mrf.mxu0
      %v444 = vadd.f32 %v314, %v443
      %445 = vmatmul.f32.gmra.mxu0 %v330
      %v446 = vpop.f32.mrf.mxu0
      %v447 = vadd.f32 %v314, %v446
      %448 = vmatmul.f32.gmra.mxu0 %v333
      %v449 = vpop.f32.mrf.mxu0
      %v450 = vadd.f32 %v314, %v449
      %451 = vmatmul.f32.gmra.mxu0 %v336
      %v452 = vpop.f32.mrf.mxu0
      %v453 = vadd.f32 %v314, %v452
      %454 = vmatmul.f32.gmra.mxu0 %v339
      %v455 = vpop.f32.mrf.mxu0
      %v456 = vadd.f32 %v314, %v455
      %457 = vmatmul.f32.gmra.mxu0 %v342
      %v458 = vpop.f32.mrf.mxu0
      %v459 = vadd.f32 %v314, %v458
      %460 = vmatmul.f32.gmra.mxu0 %v345
      %v461 = vpop.f32.mrf.mxu0
      %v462 = vadd.f32 %v314, %v461
      %463 = vmatmul.f32.gmra.mxu0 %v348
      %v464 = vpop.f32.mrf.mxu0
      %v465 = vadd.f32 %v314, %v464
      %466 = vmatmul.f32.gmra.mxu0 %v351
      %v467 = vpop.f32.mrf.mxu0
      %v468 = vadd.f32 %v314, %v467
      %469 = vmatmul.f32.gmra.mxu0 %v354
      %v470 = vpop.f32.mrf.mxu0
      %v471 = vadd.f32 %v314, %v470
      %472 = vmatmul.f32.gmra.mxu0 %v357
      %v473 = vpop.f32.mrf.mxu0
      %v474 = vadd.f32 %v314, %v473
      %475 = vmatmul.f32.gmra.mxu0 %v360
      %v476 = vpop.f32.mrf.mxu0
      %v477 = vadd.f32 %v314, %v476
      %478 = vmatmul.f32.gmra.mxu0 %v363
      %v479 = vpop.f32.mrf.mxu0
      %v480 = vadd.f32 %v314, %v479
      %481 = vmatmul.f32.gmra.mxu0 %v366
      %v482 = vpop.f32.mrf.mxu0
      %v483 = vadd.f32 %v314, %v482
      %484 = vmatmul.f32.gmra.mxu0 %v369
      %v485 = vpop.f32.mrf.mxu0
      %v486 = vadd.f32 %v314, %v485
      %487 = vmatmul.f32.gmra.mxu0 %v372
      %v488 = vpop.f32.mrf.mxu0
      %v489 = vadd.f32 %v314, %v488
      %490 = vmatmul.f32.gmra.mxu0 %v375
      %v491 = vpop.f32.mrf.mxu0
      %v492 = vadd.f32 %v314, %v491
      %493 = vmatmul.f32.gmra.mxu0 %v378
      %v494 = vpop.f32.mrf.mxu0
      %v495 = vadd.f32 %v314, %v494
      %496 = vmatmul.f32.gmra.mxu0 %v381
      %v497 = vpop.f32.mrf.mxu0
      %v498 = vadd.f32 %v314, %v497
      %499 = vmatmul.f32.gmra.mxu0 %v384
      %v500 = vpop.f32.mrf.mxu0
      %v501 = vadd.f32 %v314, %v500
      %502 = vmatmul.f32.gmra.mxu0 %v387
      %v503 = vpop.f32.mrf.mxu0
      %v504 = vadd.f32 %v314, %v503
      %505 = vmatmul.f32.gmra.mxu0 %v390
      %v506 = vpop.f32.mrf.mxu0
      %v507 = vadd.f32 %v314, %v506
      %508 = vmatmul.f32.gmra.mxu0 %v393
      %v509 = vpop.f32.mrf.mxu0
      %v510 = vadd.f32 %v314, %v509
      %511 = vmatmul.f32.gmra.mxu0 %v396
      %v512 = vpop.f32.mrf.mxu0
      %v513 = vadd.f32 %v314, %v512
      %514 = vmatmul.f32.gmra.mxu0 %v399
      %v515 = vpop.f32.mrf.mxu0
      %v516 = vadd.f32 %v314, %v515
      %517 = vmatmul.f32.gmra.mxu0 %v402
      %v518 = vpop.f32.mrf.mxu0
      %v519 = vadd.f32 %v314, %v518
      %520 = vmatmul.f32.gmra.mxu0 %v405
      %v521 = vpop.f32.mrf.mxu0
      %v522 = vadd.f32 %v314, %v521
      %523 = vmatmul.f32.gmra.mxu0 %v408
      %v524 = vpop.f32.mrf.mxu0
      %v525 = vadd.f32 %v314, %v524
      %526 = vmatmul.f32.gmra.mxu0 %v411
      %v527 = vpop.f32.mrf.mxu0
      %v528 = vadd.f32 %v314, %v527
      %529 = vdwg.mxu0
      %v530 = vmax.f32 %v435, 0.0
      %v531 = vmax.f32 %v438, 0.0
      %v532 = vmax.f32 %v441, 0.0
      %v533 = vmax.f32 %v444, 0.0
      %v534 = vmax.f32 %v447, 0.0
      %v535 = vmax.f32 %v450, 0.0
      %v536 = vmax.f32 %v453, 0.0
      %v537 = vmax.f32 %v456, 0.0
      %v538 = vmax.f32 %v459, 0.0
      %v539 = vmax.f32 %v462, 0.0
      %v540 = vmax.f32 %v465, 0.0
      %v541 = vmax.f32 %v468, 0.0
      %v542 = vmax.f32 %v471, 0.0
      %v543 = vmax.f32 %v474, 0.0
      %v544 = vmax.f32 %v477, 0.0
      %v545 = vmax.f32 %v480, 0.0
      %v546 = vmax.f32 %v483, 0.0
      %v547 = vmax.f32 %v486, 0.0
      %v548 = vmax.f32 %v489, 0.0
      %v549 = vmax.f32 %v492, 0.0
      %v550 = vmax.f32 %v495, 0.0
      %v551 = vmax.f32 %v498, 0.0
      %v552 = vmax.f32 %v501, 0.0
      %v553 = vmax.f32 %v504, 0.0
      %v554 = vmax.f32 %v507, 0.0
      %v555 = vmax.f32 %v510, 0.0
      %v556 = vmax.f32 %v513, 0.0
      %v557 = vmax.f32 %v516, 0.0
      %v558 = vmax.f32 %v519, 0.0
      %v559 = vmax.f32 %v522, 0.0
      %v560 = vmax.f32 %v525, 0.0
      %v561 = vmax.f32 %v528, 0.0
      %v562 = vld [vmem:[%s3] sm:$0xff]
      %v563 = vld [vmem:[%s3 + $0x8] sm:$0xff]
      %v564 = vld [vmem:[%s3 + $0x10] sm:$0xff]
      %v565 = vld [vmem:[%s3 + $0x18] sm:$0xff]
      %v566 = vld [vmem:[%s3 + $0x20] sm:$0xff]
      %v567 = vld [vmem:[%s3 + $0x28] sm:$0xff]
      %v568 = vld [vmem:[%s3 + $0x30] sm:$0xff]
      %v569 = vld [vmem:[%s3 + $0x38] sm:$0xff]
      %v570 = vld [vmem:[%s3 + $0x40] sm:$0xff]
      %v571 = vld [vmem:[%s3 + $0x48] sm:$0xff]
      %v572 = vld [vmem:[%s3 + $0x50] sm:$0xff]
      %v573 = vld [vmem:[%s3 + $0x58] sm:$0xff]
      %v574 = vld [vmem:[%s4] sm:$0x1]
      %v576 = vperm.slane %v574, 0
      %vm578 = vcmask 785408
      %v580 = vsel %vm578, %v530, 0
      %v583 = vsel %vm578, %v531, 0
      %v586 = vsel %vm578, %v532, 0
      %v589 = vsel %vm578, %v533, 0
      %v592 = vsel %vm578, %v534, 0
      %v595 = vsel %vm578, %v535, 0
      %v598 = vsel %vm578, %v536, 0
      %v601 = vsel %vm578, %v537, 0
      %v604 = vsel %vm578, %v538, 0
      %v607 = vsel %vm578, %v539, 0
      %v610 = vsel %vm578, %v540, 0
      %v613 = vsel %vm578, %v541, 0
      %v616 = vsel %vm578, %v542, 0
      %v619 = vsel %vm578, %v543, 0
      %v622 = vsel %vm578, %v544, 0
      %v625 = vsel %vm578, %v545, 0
      %v628 = vsel %vm578, %v546, 0
      %v631 = vsel %vm578, %v547, 0
      %v634 = vsel %vm578, %v548, 0
      %v637 = vsel %vm578, %v549, 0
      %v640 = vsel %vm578, %v550, 0
      %v643 = vsel %vm578, %v551, 0
      %v646 = vsel %vm578, %v552, 0
      %v649 = vsel %vm578, %v553, 0
      %v652 = vsel %vm578, %v554, 0
      %v655 = vsel %vm578, %v555, 0
      %v658 = vsel %vm578, %v556, 0
      %v661 = vsel %vm578, %v557, 0
      %v664 = vsel %vm578, %v558, 0
      %v667 = vsel %vm578, %v559, 0
      %v670 = vsel %vm578, %v560, 0
      %v673 = vsel %vm578, %v561, 0
      %675 = vmatpush.msra.mxu0 0.0
      %676 = vmatpush.msra.mxu0 0.0
      %677 = vmatpush.msra.mxu0 0.0
      %678 = vmatpush.msra.mxu0 0.0
      %679 = vmatpush.msra.mxu0 %v573
      %680 = vmatpush.msra.mxu0 %v572
      %681 = vmatpush.msra.mxu0 %v571
      %682 = vmatpush.msra.mxu0 %v570
      %683 = vmatpush.msra.mxu0 %v569
      %684 = vmatpush.msra.mxu0 %v568
      %685 = vmatpush.msra.mxu0 %v567
      %686 = vmatpush.msra.mxu0 %v566
      %687 = vmatpush.msra.mxu0 %v565
      %688 = vmatpush.msra.mxu0 %v564
      %689 = vmatpush.msra.mxu0 %v563
      %690 = vmatpush.msra.mxu0 %v562
      %691 = vmatmul.f32.gmra.mxu0 %v580
      %v692 = vpop.f32.mrf.mxu0
      %v693 = vadd.f32 %v576, %v692
      %694 = vmatmul.f32.gmra.mxu0 %v583
      %v695 = vpop.f32.mrf.mxu0
      %v696 = vadd.f32 %v576, %v695
      %697 = vmatmul.f32.gmra.mxu0 %v586
      %v698 = vpop.f32.mrf.mxu0
      %v699 = vadd.f32 %v576, %v698
      %700 = vmatmul.f32.gmra.mxu0 %v589
      %v701 = vpop.f32.mrf.mxu0
      %v702 = vadd.f32 %v576, %v701
      %703 = vmatmul.f32.gmra.mxu0 %v592
      %v704 = vpop.f32.mrf.mxu0
      %v705 = vadd.f32 %v576, %v704
      %706 = vmatmul.f32.gmra.mxu0 %v595
      %v707 = vpop.f32.mrf.mxu0
      %v708 = vadd.f32 %v576, %v707
      %709 = vmatmul.f32.gmra.mxu0 %v598
      %v710 = vpop.f32.mrf.mxu0
      %v711 = vadd.f32 %v576, %v710
      %712 = vmatmul.f32.gmra.mxu0 %v601
      %v713 = vpop.f32.mrf.mxu0
      %v714 = vadd.f32 %v576, %v713
      %715 = vmatmul.f32.gmra.mxu0 %v604
      %v716 = vpop.f32.mrf.mxu0
      %v717 = vadd.f32 %v576, %v716
      %718 = vmatmul.f32.gmra.mxu0 %v607
      %v719 = vpop.f32.mrf.mxu0
      %v720 = vadd.f32 %v576, %v719
      %721 = vmatmul.f32.gmra.mxu0 %v610
      %v722 = vpop.f32.mrf.mxu0
      %v723 = vadd.f32 %v576, %v722
      %724 = vmatmul.f32.gmra.mxu0 %v613
      %v725 = vpop.f32.mrf.mxu0
      %v726 = vadd.f32 %v576, %v725
      %727 = vmatmul.f32.gmra.mxu0 %v616
      %v728 = vpop.f32.mrf.mxu0
      %v729 = vadd.f32 %v576, %v728
      %730 = vmatmul.f32.gmra.mxu0 %v619
      %v731 = vpop.f32.mrf.mxu0
      %v732 = vadd.f32 %v576, %v731
      %733 = vmatmul.f32.gmra.mxu0 %v622
      %v734 = vpop.f32.mrf.mxu0
      %v735 = vadd.f32 %v576, %v734
      %736 = vmatmul.f32.gmra.mxu0 %v625
      %v737 = vpop.f32.mrf.mxu0
      %v738 = vadd.f32 %v576, %v737
      %739 = vmatmul.f32.gmra.mxu0 %v628
      %v740 = vpop.f32.mrf.mxu0
      %v741 = vadd.f32 %v576, %v740
      %742 = vmatmul.f32.gmra.mxu0 %v631
      %v743 = vpop.f32.mrf.mxu0
      %v744 = vadd.f32 %v576, %v743
      %745 = vmatmul.f32.gmra.mxu0 %v634
      %v746 = vpop.f32.mrf.mxu0
      %v747 = vadd.f32 %v576, %v746
      %748 = vmatmul.f32.gmra.mxu0 %v637
      %v749 = vpop.f32.mrf.mxu0
      %v750 = vadd.f32 %v576, %v749
      %751 = vmatmul.f32.gmra.mxu0 %v640
      %v752 = vpop.f32.mrf.mxu0
      %v753 = vadd.f32 %v576, %v752
      %754 = vmatmul.f32.gmra.mxu0 %v643
      %v755 = vpop.f32.mrf.mxu0
      %v756 = vadd.f32 %v576, %v755
      %757 = vmatmul.f32.gmra.mxu0 %v646
      %v758 = vpop.f32.mrf.mxu0
      %v759 = vadd.f32 %v576, %v758
      %760 = vmatmul.f32.gmra.mxu0 %v649
      %v761 = vpop.f32.mrf.mxu0
      %v762 = vadd.f32 %v576, %v761
      %763 = vmatmul.f32.gmra.mxu0 %v652
      %v764 = vpop.f32.mrf.mxu0
      %v765 = vadd.f32 %v576, %v764
      %766 = vmatmul.f32.gmra.mxu0 %v655
      %v767 = vpop.f32.mrf.mxu0
      %v768 = vadd.f32 %v576, %v767
      %769 = vmatmul.f32.gmra.mxu0 %v658
      %v770 = vpop.f32.mrf.mxu0
      %v771 = vadd.f32 %v576, %v770
      %772 = vmatmul.f32.gmra.mxu0 %v661
      %v773 = vpop.f32.mrf.mxu0
      %v774 = vadd.f32 %v576, %v773
      %775 = vmatmul.f32.gmra.mxu0 %v664
      %v776 = vpop.f32.mrf.mxu0
      %v777 = vadd.f32 %v576, %v776
      %778 = vmatmul.f32.gmra.mxu0 %v667
      %v779 = vpop.f32.mrf.mxu0
      %v780 = vadd.f32 %v576, %v779
      %781 = vmatmul.f32.gmra.mxu0 %v670
      %v782 = vpop.f32.mrf.mxu0
      %v783 = vadd.f32 %v576, %v782
      %784 = vmatmul.f32.gmra.mxu0 %v673
      %v785 = vpop.f32.mrf.mxu0
      %v786 = vadd.f32 %v576, %v785
      %787 = vdwg.mxu0
      %v788 = vmax.f32 %v693, 0.0
      %v789 = vmax.f32 %v696, 0.0
      %v790 = vmax.f32 %v699, 0.0
      %v791 = vmax.f32 %v702, 0.0
      %v792 = vmax.f32 %v705, 0.0
      %v793 = vmax.f32 %v708, 0.0
      %v794 = vmax.f32 %v711, 0.0
      %v795 = vmax.f32 %v714, 0.0
      %v796 = vmax.f32 %v717, 0.0
      %v797 = vmax.f32 %v720, 0.0
      %v798 = vmax.f32 %v723, 0.0
      %v799 = vmax.f32 %v726, 0.0
      %v800 = vmax.f32 %v729, 0.0
      %v801 = vmax.f32 %v732, 0.0
      %v802 = vmax.f32 %v735, 0.0
      %v803 = vmax.f32 %v738, 0.0
      %v804 = vmax.f32 %v741, 0.0
      %v805 = vmax.f32 %v744, 0.0
      %v806 = vmax.f32 %v747, 0.0
      %v807 = vmax.f32 %v750, 0.0
      %v808 = vmax.f32 %v753, 0.0
      %v809 = vmax.f32 %v756, 0.0
      %v810 = vmax.f32 %v759, 0.0
      %v811 = vmax.f32 %v762, 0.0
      %v812 = vmax.f32 %v765, 0.0
      %v813 = vmax.f32 %v768, 0.0
      %v814 = vmax.f32 %v771, 0.0
      %v815 = vmax.f32 %v774, 0.0
      %v816 = vmax.f32 %v777, 0.0
      %v817 = vmax.f32 %v780, 0.0
      %v818 = vmax.f32 %v783, 0.0
      %v819 = vmax.f32 %v786, 0.0
      %v820 = vld [vmem:[%s5] sm:$0xff]
      %v821 = vld [vmem:[%s5 + $0x8] sm:$0xff]
      %v822 = vld [vmem:[%s5 + $0x10] sm:$0xff]
      %v823 = vld [vmem:[%s5 + $0x18] sm:$0xff]
      %v824 = vld [vmem:[%s5 + $0x20] sm:$0xff]
      %v825 = vld [vmem:[%s5 + $0x28] sm:$0xff]
      %v826 = vld [vmem:[%s5 + $0x30] sm:$0xff]
      %v827 = vld [vmem:[%s5 + $0x38] sm:$0xff]
      %v828 = vld [vmem:[%s5 + $0x40] sm:$0xff]
      %v829 = vld [vmem:[%s5 + $0x48] sm:$0xff]
      %v830 = vld [vmem:[%s5 + $0x50] sm:$0xff]
      %v831 = vld [vmem:[%s5 + $0x58] sm:$0xff]
      %v832 = vld [vmem:[%s6] sm:$0x1]
      %v834 = vperm.slane %v832, 0
      %v837 = vsel %vm578, %v788, 0
      %v840 = vsel %vm578, %v789, 0
      %v843 = vsel %vm578, %v790, 0
      %v846 = vsel %vm578, %v791, 0
      %v849 = vsel %vm578, %v792, 0
      %v852 = vsel %vm578, %v793, 0
      %v855 = vsel %vm578, %v794, 0
      %v858 = vsel %vm578, %v795, 0
      %v861 = vsel %vm578, %v796, 0
      %v864 = vsel %vm578, %v797, 0
      %v867 = vsel %vm578, %v798, 0
      %v870 = vsel %vm578, %v799, 0
      %v873 = vsel %vm578, %v800, 0
      %v876 = vsel %vm578, %v801, 0
      %v879 = vsel %vm578, %v802, 0
      %v882 = vsel %vm578, %v803, 0
      %v885 = vsel %vm578, %v804, 0
      %v888 = vsel %vm578, %v805, 0
      %v891 = vsel %vm578, %v806, 0
      %v894 = vsel %vm578, %v807, 0
      %v897 = vsel %vm578, %v808, 0
      %v900 = vsel %vm578, %v809, 0
      %v903 = vsel %vm578, %v810, 0
      %v906 = vsel %vm578, %v811, 0
      %v909 = vsel %vm578, %v812, 0
      %v912 = vsel %vm578, %v813, 0
      %v915 = vsel %vm578, %v814, 0
      %v918 = vsel %vm578, %v815, 0
      %v921 = vsel %vm578, %v816, 0
      %v924 = vsel %vm578, %v817, 0
      %v927 = vsel %vm578, %v818, 0
      %v930 = vsel %vm578, %v819, 0
      %932 = vmatpush.msra.mxu0 0.0
      %933 = vmatpush.msra.mxu0 0.0
      %934 = vmatpush.msra.mxu0 0.0
      %935 = vmatpush.msra.mxu0 0.0
      %936 = vmatpush.msra.mxu0 %v831
      %937 = vmatpush.msra.mxu0 %v830
      %938 = vmatpush.msra.mxu0 %v829
      %939 = vmatpush.msra.mxu0 %v828
      %940 = vmatpush.msra.mxu0 %v827
      %941 = vmatpush.msra.mxu0 %v826
      %942 = vmatpush.msra.mxu0 %v825
      %943 = vmatpush.msra.mxu0 %v824
      %944 = vmatpush.msra.mxu0 %v823
      %945 = vmatpush.msra.mxu0 %v822
      %946 = vmatpush.msra.mxu0 %v821
      %947 = vmatpush.msra.mxu0 %v820
      %948 = vmatmul.f32.gmra.mxu0 %v837
      %v949 = vpop.f32.mrf.mxu0
      %v950 = vadd.f32 %v834, %v949
      %951 = vmatmul.f32.gmra.mxu0 %v840
      %v952 = vpop.f32.mrf.mxu0
      %v953 = vadd.f32 %v834, %v952
      %954 = vmatmul.f32.gmra.mxu0 %v843
      %v955 = vpop.f32.mrf.mxu0
      %v956 = vadd.f32 %v834, %v955
      %957 = vmatmul.f32.gmra.mxu0 %v846
      %v958 = vpop.f32.mrf.mxu0
      %v959 = vadd.f32 %v834, %v958
      %960 = vmatmul.f32.gmra.mxu0 %v849
      %v961 = vpop.f32.mrf.mxu0
      %v962 = vadd.f32 %v834, %v961
      %963 = vmatmul.f32.gmra.mxu0 %v852
      %v964 = vpop.f32.mrf.mxu0
      %v965 = vadd.f32 %v834, %v964
      %966 = vmatmul.f32.gmra.mxu0 %v855
      %v967 = vpop.f32.mrf.mxu0
      %v968 = vadd.f32 %v834, %v967
      %969 = vmatmul.f32.gmra.mxu0 %v858
      %v970 = vpop.f32.mrf.mxu0
      %v971 = vadd.f32 %v834, %v970
      %972 = vmatmul.f32.gmra.mxu0 %v861
      %v973 = vpop.f32.mrf.mxu0
      %v974 = vadd.f32 %v834, %v973
      %975 = vmatmul.f32.gmra.mxu0 %v864
      %v976 = vpop.f32.mrf.mxu0
      %v977 = vadd.f32 %v834, %v976
      %978 = vmatmul.f32.gmra.mxu0 %v867
      %v979 = vpop.f32.mrf.mxu0
      %v980 = vadd.f32 %v834, %v979
      %981 = vmatmul.f32.gmra.mxu0 %v870
      %v982 = vpop.f32.mrf.mxu0
      %v983 = vadd.f32 %v834, %v982
      %984 = vmatmul.f32.gmra.mxu0 %v873
      %v985 = vpop.f32.mrf.mxu0
      %v986 = vadd.f32 %v834, %v985
      %987 = vmatmul.f32.gmra.mxu0 %v876
      %v988 = vpop.f32.mrf.mxu0
      %v989 = vadd.f32 %v834, %v988
      %990 = vmatmul.f32.gmra.mxu0 %v879
      %v991 = vpop.f32.mrf.mxu0
      %v992 = vadd.f32 %v834, %v991
      %993 = vmatmul.f32.gmra.mxu0 %v882
      %v994 = vpop.f32.mrf.mxu0
      %v995 = vadd.f32 %v834, %v994
      %996 = vmatmul.f32.gmra.mxu0 %v885
      %v997 = vpop.f32.mrf.mxu0
      %v998 = vadd.f32 %v834, %v997
      %999 = vmatmul.f32.gmra.mxu0 %v888
      %v1000 = vpop.f32.mrf.mxu0
      %v1001 = vadd.f32 %v834, %v1000
      %1002 = vmatmul.f32.gmra.mxu0 %v891
      %v1003 = vpop.f32.mrf.mxu0
      %v1004 = vadd.f32 %v834, %v1003
      %1005 = vmatmul.f32.gmra.mxu0 %v894
      %v1006 = vpop.f32.mrf.mxu0
      %v1007 = vadd.f32 %v834, %v1006
      %1008 = vmatmul.f32.gmra.mxu0 %v897
      %v1009 = vpop.f32.mrf.mxu0
      %v1010 = vadd.f32 %v834, %v1009
      %1011 = vmatmul.f32.gmra.mxu0 %v900
      %v1012 = vpop.f32.mrf.mxu0
      %v1013 = vadd.f32 %v834, %v1012
      %1014 = vmatmul.f32.gmra.mxu0 %v903
      %v1015 = vpop.f32.mrf.mxu0
      %v1016 = vadd.f32 %v834, %v1015
      %1017 = vmatmul.f32.gmra.mxu0 %v906
      %v1018 = vpop.f32.mrf.mxu0
      %v1019 = vadd.f32 %v834, %v1018
      %1020 = vmatmul.f32.gmra.mxu0 %v909
      %v1021 = vpop.f32.mrf.mxu0
      %v1022 = vadd.f32 %v834, %v1021
      %1023 = vmatmul.f32.gmra.mxu0 %v912
      %v1024 = vpop.f32.mrf.mxu0
      %v1025 = vadd.f32 %v834, %v1024
      %1026 = vmatmul.f32.gmra.mxu0 %v915
      %v1027 = vpop.f32.mrf.mxu0
      %v1028 = vadd.f32 %v834, %v1027
      %1029 = vmatmul.f32.gmra.mxu0 %v918
      %v1030 = vpop.f32.mrf.mxu0
      %v1031 = vadd.f32 %v834, %v1030
      %1032 = vmatmul.f32.gmra.mxu0 %v921
      %v1033 = vpop.f32.mrf.mxu0
      %v1034 = vadd.f32 %v834, %v1033
      %1035 = vmatmul.f32.gmra.mxu0 %v924
      %v1036 = vpop.f32.mrf.mxu0
      %v1037 = vadd.f32 %v834, %v1036
      %1038 = vmatmul.f32.gmra.mxu0 %v927
      %v1039 = vpop.f32.mrf.mxu0
      %v1040 = vadd.f32 %v834, %v1039
      %1041 = vmatmul.f32.gmra.mxu0 %v930
      %v1042 = vpop.f32.mrf.mxu0
      %v1043 = vadd.f32 %v834, %v1042
      %1044 = vdwg.mxu0
      %vm1045 = vcmask 97280
      %1046 = vst.msk [vmem:[%s278] sm:$0xff] %vm1045, %v950
      %1047 = vst.msk [vmem:[%s278 + $0x8] sm:$0xff] %vm1045, %v953
      %1048 = vst.msk [vmem:[%s278 + $0x10] sm:$0xff] %vm1045, %v956
      %1049 = vst.msk [vmem:[%s278 + $0x18] sm:$0xff] %vm1045, %v959
      %1050 = vst.msk [vmem:[%s278 + $0x20] sm:$0xff] %vm1045, %v962
      %1051 = vst.msk [vmem:[%s278 + $0x28] sm:$0xff] %vm1045, %v965
      %1052 = vst.msk [vmem:[%s278 + $0x30] sm:$0xff] %vm1045, %v968
      %1053 = vst.msk [vmem:[%s278 + $0x38] sm:$0xff] %vm1045, %v971
      %1054 = vst.msk [vmem:[%s278 + $0x40] sm:$0xff] %vm1045, %v974
      %1055 = vst.msk [vmem:[%s278 + $0x48] sm:$0xff] %vm1045, %v977
      %1056 = vst.msk [vmem:[%s278 + $0x50] sm:$0xff] %vm1045, %v980
      %1057 = vst.msk [vmem:[%s278 + $0x58] sm:$0xff] %vm1045, %v983
      %1058 = vst.msk [vmem:[%s278 + $0x60] sm:$0xff] %vm1045, %v986
      %1059 = vst.msk [vmem:[%s278 + $0x68] sm:$0xff] %vm1045, %v989
      %1060 = vst.msk [vmem:[%s278 + $0x70] sm:$0xff] %vm1045, %v992
      %1061 = vst.msk [vmem:[%s278 + $0x78] sm:$0xff] %vm1045, %v995
      %1062 = vst.msk [vmem:[%s278 + $0x80] sm:$0xff] %vm1045, %v998
      %1063 = vst.msk [vmem:[%s278 + $0x88] sm:$0xff] %vm1045, %v1001
      %1064 = vst.msk [vmem:[%s278 + $0x90] sm:$0xff] %vm1045, %v1004
      %1065 = vst.msk [vmem:[%s278 + $0x98] sm:$0xff] %vm1045, %v1007
      %1066 = vst.msk [vmem:[%s278 + $0xa0] sm:$0xff] %vm1045, %v1010
      %1067 = vst.msk [vmem:[%s278 + $0xa8] sm:$0xff] %vm1045, %v1013
      %1068 = vst.msk [vmem:[%s278 + $0xb0] sm:$0xff] %vm1045, %v1016
      %1069 = vst.msk [vmem:[%s278 + $0xb8] sm:$0xff] %vm1045, %v1019
      %1070 = vst.msk [vmem:[%s278 + $0xc0] sm:$0xff] %vm1045, %v1022
      %1071 = vst.msk [vmem:[%s278 + $0xc8] sm:$0xff] %vm1045, %v1025
      %1072 = vst.msk [vmem:[%s278 + $0xd0] sm:$0xff] %vm1045, %v1028
      %1073 = vst.msk [vmem:[%s278 + $0xd8] sm:$0xff] %vm1045, %v1031
      %1074 = vst.msk [vmem:[%s278 + $0xe0] sm:$0xff] %vm1045, %v1034
      %1075 = vst.msk [vmem:[%s278 + $0xe8] sm:$0xff] %vm1045, %v1037
      %1076 = vst.msk [vmem:[%s278 + $0xf0] sm:$0xff] %vm1045, %v1040
      %1077 = vst.msk [vmem:[%s278 + $0xf8] sm:$0xff] %vm1045, %v1043
      %p1078 = scmp.lt.s32.totalorder %s18, 1
      %s1079 = scalar_select %p1078, %s18, 1
      %s1080 = smul.addr %s1079, 32
      %s1081 = smul.addr %s1080, 8
      %s1082 = scalar_lea.vmem %s7, %s1081
      // Predicated region
      $region49: #{run.10} parent=47 // pred_check
        %p1083 = pneg %p188
      $region50: #{run.10} parent=47 // pred_check_branch
        %1085 = sbr.rel (%p1083) target = $region52
      $region51: #{run.10} parent=47 // pred_region
        _
      $region52: #{run.10} parent=47 // pred_fallthru
        _
    $region48: #{run.10} parent=5 // pred_fallthru
      _
    %p1086 = scmp.le.s32.totalorder 2, %s13
    // Predicated region
    $region53: #{run.10} parent=5 // pred_check
      %p1087 = pneg %p1086
    $region54: #{run.10} parent=5 // pred_check_branch
      %1089 = sbr.rel (%p1087) target = $region56
    $region55: #{run.10} parent=5 // pred_region
      %s1090 = ssub.s32 %s13, 2
      // Predicated region
      $region57: #{run.10} parent=55 // pred_check
        %p1091 = pneg %p194
      $region58: #{run.10} parent=55 // pred_check_branch
        %1093 = sbr.rel (%p1091) target = $region60
      $region59: #{run.10} parent=55 // pred_region
        %p1094 = scmp.lt.s32.totalorder %s19, 1
        %s1095 = scalar_select %p1094, %s19, 1
        %s1096 = smul.addr %s1095, 32
        %s1097 = smul.addr %s1096, 8
        %s1098 = scalar_lea.vmem %s7, %s1097
      $region60: #{run.10} parent=55 // pred_fallthru
        _
    $region56: #{run.10} parent=5 // pred_fallthru
      _
  $region6: #{run.10} parent=0 // loop_footer
    %s17 = sadd.s32 1, %s13
  $region7: #{run.10} parent=0 // loop_footer_branch
    %12 = sbr.rel target = $region3
  $region8: #{run.10} parent=0 // loop_exit
    _

// kernel: run.13
$region0: #{run.13}
  #allocation0 [shape = 'u32[]', space=smem, size = 0x4, offset = 0x4, fixed_abs, tag = 'smem constant byte address 0x4 - core index']
  #allocation1 [shape = 'u32[72,128]{1,0:T(1,128)}', space=vmem, size = 0x9000, scoped, tag = 'internal scratch']
  %s0 = inlined_call_operand.vmem [shape: f32[2,192,4], index: 0, kind: input, shape index: {}]
  %s1 = inlined_call_operand.vmem [shape: f32[4,96], index: 1, kind: input, shape index: {}]
  %s2 = inlined_call_operand.vmem [shape: f32[1,96], index: 2, kind: input, shape index: {}]
  %s3 = inlined_call_operand.vmem [shape: f32[96,96], index: 3, kind: input, shape index: {}]
  %s4 = inlined_call_operand.vmem [shape: f32[1,96], index: 4, kind: input, shape index: {}]
  %s5 = inlined_call_operand.vmem [shape: f32[96,12], index: 5, kind: input, shape index: {}]
  %s6 = inlined_call_operand.vmem [shape: f32[1,12], index: 6, kind: input, shape index: {}]
  %s7 = inlined_call_operand.vmem [shape: f32[2,192,12], index: 7, kind: output, shape index: {}]
  %s8 = sld [smem:[#allocation0]]
  $region61: #{run.13} parent=0
    _
  %s10 = ssub.s32 1, %s8
  %s11 = scalar_select 0, %s10, %s8
  loop: start=0, step=1, limit=4
  $region2: #{run.13} parent=0 // loop_pre_header
    _
  $region3: #{run.13} parent=0 // loop_header
    %s13 = sphi 0, %s17
    %p14 = scmp.ge.s32.totalorder %s13, 4
    %s23 = sphi 0, %s25
    %s26 = sphi 0, %s23
    %s27 = sphi 0, %s26
    %s43 = sphi 0, %s27
    %s47 = sphi 0, %s47
    %s49 = sphi 0, %s47
    %s50 = sphi 0, %s49
    %s64 = sphi 0, %s50
    %s68 = sphi 0, %s68
    %s70 = sphi 0, %s68
    %s71 = sphi 0, %s70
    %s85 = sphi 0, %s71
    %s89 = sphi 0, %s89
    %s91 = sphi 0, %s89
    %s92 = sphi 0, %s91
    %s106 = sphi 0, %s92
    %s110 = sphi 0, %s110
    %s112 = sphi 0, %s110
    %s113 = sphi 0, %s112
    %s127 = sphi 0, %s113
    %s131 = sphi 0, %s131
    %s133 = sphi 0, %s131
    %s134 = sphi 0, %s133
    %s148 = sphi 0, %s134
    %s152 = sphi 0, %s152
    %s154 = sphi 0, %s152
    %s155 = sphi 0, %s154
    %s169 = sphi 0, %s155
    %s175 = sphi 0, %s177
    %s178 = sphi 0, %s175
    %s179 = sphi 0, %s178
    %s195 = sphi 0, %s179
  $region4: #{run.13} parent=0 // loop_header_branch
    %16 = sbr.rel (%p14) target = $region8
  $region5: #{run.13} parent=0 // loop_body
    %s18 = ssub.s32 %s13, 1
    %s19 = ssub.s32 %s13, 2
    %s20 = sadd.s32 %s13, 1
    %s21 = ssub.s32 %s13, %s20
    %p22 = scmp.eq.s32.totalorder %s21, 0
    %s24 = sadd.s32 %s23, 1
    %s25 = scalar_select %p22, %s23, %s24
    %p28 = pneg %p22
    %p29 = scmp.eq.s32.totalorder %s13, 1
    %p30 = por %p28, %p29
    %p31 = scmp.ne.s32.totalorder %s23, %s26
    %p32 = scmp.eq.s32.totalorder %s13, 0
    %p33 = por %p31, %p32
    %p34 = scmp.ne.s32.totalorder %s23, %s26
    %p35 = scmp.eq.s32.totalorder %s18, 1
    %p36 = por %p34, %p35
    %p37 = scmp.ne.s32.totalorder %s26, %s27
    %p38 = scmp.eq.s32.totalorder %s18, 0
    %p39 = por %p37, %p38
    %p40 = scmp.ne.s32.totalorder %s26, %s27
    %p41 = scmp.eq.s32.totalorder %s19, 1
    %p42 = por %p40, %p41
    %p44 = scmp.ne.s32.totalorder %s27, %s43
    %p45 = scmp.eq.s32.totalorder %s19, 0
    %p46 = por %p44, %p45
    %s48 = sadd.s32 %s47, 1
    %p51 = scmp.eq.s32.totalorder %s13, 1
    %p52 = scmp.ne.s32.totalorder %s47, %s49
    %p53 = scmp.eq.s32.totalorder %s13, 0
    %p54 = por %p52, %p53
    %p55 = scmp.ne.s32.totalorder %s47, %s49
    %p56 = scmp.eq.s32.totalorder %s18, 1
    %p57 = por %p55, %p56
    %p58 = scmp.ne.s32.totalorder %s49, %s50
    %p59 = scmp.eq.s32.totalorder %s18, 0
    %p60 = por %p58, %p59
    %p61 = scmp.ne.s32.totalorder %s49, %s50
    %p62 = scmp.eq.s32.totalorder %s19, 1
    %p63 = por %p61, %p62
    %p65 = scmp.ne.s32.totalorder %s50, %s64
    %p66 = scmp.eq.s32.totalorder %s19, 0
    %p67 = por %p65, %p66
    %s69 = sadd.s32 %s68, 1
    %p72 = scmp.eq.s32.totalorder %s13, 1
    %p73 = scmp.ne.s32.totalorder %s68, %s70
    %p74 = scmp.eq.s32.totalorder %s13, 0
    %p75 = por %p73, %p74
    %p76 = scmp.ne.s32.totalorder %s68, %s70
    %p77 = scmp.eq.s32.totalorder %s18, 1
    %p78 = por %p76, %p77
    %p79 = scmp.ne.s32.totalorder %s70, %s71
    %p80 = scmp.eq.s32.totalorder %s18, 0
    %p81 = por %p79, %p80
    %p82 = scmp.ne.s32.totalorder %s70, %s71
    %p83 = scmp.eq.s32.totalorder %s19, 1
    %p84 = por %p82, %p83
    %p86 = scmp.ne.s32.totalorder %s71, %s85
    %p87 = scmp.eq.s32.totalorder %s19, 0
    %p88 = por %p86, %p87
    %s90 = sadd.s32 %s89, 1
    %p93 = scmp.eq.s32.totalorder %s13, 1
    %p94 = scmp.ne.s32.totalorder %s89, %s91
    %p95 = scmp.eq.s32.totalorder %s13, 0
    %p96 = por %p94, %p95
    %p97 = scmp.ne.s32.totalorder %s89, %s91
    %p98 = scmp.eq.s32.totalorder %s18, 1
    %p99 = por %p97, %p98
    %p100 = scmp.ne.s32.totalorder %s91, %s92
    %p101 = scmp.eq.s32.totalorder %s18, 0
    %p102 = por %p100, %p101
    %p103 = scmp.ne.s32.totalorder %s91, %s92
    %p104 = scmp.eq.s32.totalorder %s19, 1
    %p105 = por %p103, %p104
    %p107 = scmp.ne.s32.totalorder %s92, %s106
    %p108 = scmp.eq.s32.totalorder %s19, 0
    %p109 = por %p107, %p108
    %s111 = sadd.s32 %s110, 1
    %p114 = scmp.eq.s32.totalorder %s13, 1
    %p115 = scmp.ne.s32.totalorder %s110, %s112
    %p116 = scmp.eq.s32.totalorder %s13, 0
    %p117 = por %p115, %p116
    %p118 = scmp.ne.s32.totalorder %s110, %s112
    %p119 = scmp.eq.s32.totalorder %s18, 1
    %p120 = por %p118, %p119
    %p121 = scmp.ne.s32.totalorder %s112, %s113
    %p122 = scmp.eq.s32.totalorder %s18, 0
    %p123 = por %p121, %p122
    %p124 = scmp.ne.s32.totalorder %s112, %s113
    %p125 = scmp.eq.s32.totalorder %s19, 1
    %p126 = por %p124, %p125
    %p128 = scmp.ne.s32.totalorder %s113, %s127
    %p129 = scmp.eq.s32.totalorder %s19, 0
    %p130 = por %p128, %p129
    %s132 = sadd.s32 %s131, 1
    %p135 = scmp.eq.s32.totalorder %s13, 1
    %p136 = scmp.ne.s32.totalorder %s131, %s133
    %p137 = scmp.eq.s32.totalorder %s13, 0
    %p138 = por %p136, %p137
    %p139 = scmp.ne.s32.totalorder %s131, %s133
    %p140 = scmp.eq.s32.totalorder %s18, 1
    %p141 = por %p139, %p140
    %p142 = scmp.ne.s32.totalorder %s133, %s134
    %p143 = scmp.eq.s32.totalorder %s18, 0
    %p144 = por %p142, %p143
    %p145 = scmp.ne.s32.totalorder %s133, %s134
    %p146 = scmp.eq.s32.totalorder %s19, 1
    %p147 = por %p145, %p146
    %p149 = scmp.ne.s32.totalorder %s134, %s148
    %p150 = scmp.eq.s32.totalorder %s19, 0
    %p151 = por %p149, %p150
    %s153 = sadd.s32 %s152, 1
    %p156 = scmp.eq.s32.totalorder %s13, 1
    %p157 = scmp.ne.s32.totalorder %s152, %s154
    %p158 = scmp.eq.s32.totalorder %s13, 0
    %p159 = por %p157, %p158
    %p160 = scmp.ne.s32.totalorder %s152, %s154
    %p161 = scmp.eq.s32.totalorder %s18, 1
    %p162 = por %p160, %p161
    %p163 = scmp.ne.s32.totalorder %s154, %s155
    %p164 = scmp.eq.s32.totalorder %s18, 0
    %p165 = por %p163, %p164
    %p166 = scmp.ne.s32.totalorder %s154, %s155
    %p167 = scmp.eq.s32.totalorder %s19, 1
    %p168 = por %p166, %p167
    %p170 = scmp.ne.s32.totalorder %s155, %s169
    %p171 = scmp.eq.s32.totalorder %s19, 0
    %p172 = por %p170, %p171
    %s173 = ssub.s32 %s13, %s20
    %p174 = scmp.eq.s32.totalorder %s173, 0
    %s176 = sadd.s32 %s175, 1
    %s177 = scalar_select %p174, %s175, %s176
    %p180 = pneg %p174
    %p181 = scmp.eq.s32.totalorder %s13, 1
    %p182 = por %p180, %p181
    %p183 = scmp.ne.s32.totalorder %s175, %s178
    %p184 = scmp.eq.s32.totalorder %s13, 0
    %p185 = por %p183, %p184
    %p186 = scmp.ne.s32.totalorder %s175, %s178
    %p187 = scmp.eq.s32.totalorder %s18, 1
    %p188 = por %p186, %p187
    %p189 = scmp.ne.s32.totalorder %s178, %s179
    %p190 = scmp.eq.s32.totalorder %s18, 0
    %p191 = por %p189, %p190
    %p192 = scmp.ne.s32.totalorder %s178, %s179
    %p193 = scmp.eq.s32.totalorder %s19, 1
    %p194 = por %p192, %p193
    %p196 = scmp.ne.s32.totalorder %s179, %s195
    %p197 = scmp.eq.s32.totalorder %s19, 0
    %p198 = por %p196, %p197
    %p199 = scmp.le.s32.totalorder 1, %s13
    %p200 = scmp.lt.s32.totalorder %s13, 3
    %p201 = pnand %p199, %p200
    %p202 = pneg %p201
    // Predicated region
    $region9: #{run.13} parent=5 // pred_check
      _
    $region10: #{run.13} parent=5 // pred_check_branch
      %204 = sbr.rel (%p201) target = $region12
    $region11: #{run.13} parent=5 // pred_region
      %s205 = ssub.s32 %s13, 1
      // Predicated region
      $region13: #{run.13} parent=11 // pred_check
        %p206 = pneg %p60
      $region14: #{run.13} parent=11 // pred_check_branch
        %208 = sbr.rel (%p206) target = $region16
      $region15: #{run.13} parent=11 // pred_region
        _
      $region16: #{run.13} parent=11 // pred_fallthru
        _
      // Predicated region
      $region17: #{run.13} parent=11 // pred_check
        %p209 = pneg %p81
      $region18: #{run.13} parent=11 // pred_check_branch
        %211 = sbr.rel (%p209) target = $region20
      $region19: #{run.13} parent=11 // pred_region
        _
      $region20: #{run.13} parent=11 // pred_fallthru
        _
      // Predicated region
      $region21: #{run.13} parent=11 // pred_check
        %p212 = pneg %p102
      $region22: #{run.13} parent=11 // pred_check_branch
        %214 = sbr.rel (%p212) target = $region24
      $region23: #{run.13} parent=11 // pred_region
        _
      $region24: #{run.13} parent=11 // pred_fallthru
        _
      // Predicated region
      $region25: #{run.13} parent=11 // pred_check
        %p215 = pneg %p123
      $region26: #{run.13} parent=11 // pred_check_branch
        %217 = sbr.rel (%p215) target = $region28
      $region27: #{run.13} parent=11 // pred_region
        _
      $region28: #{run.13} parent=11 // pred_fallthru
        _
      // Predicated region
      $region29: #{run.13} parent=11 // pred_check
        %p218 = pneg %p144
      $region30: #{run.13} parent=11 // pred_check_branch
        %220 = sbr.rel (%p218) target = $region32
      $region31: #{run.13} parent=11 // pred_region
        _
      $region32: #{run.13} parent=11 // pred_fallthru
        _
      // Predicated region
      $region33: #{run.13} parent=11 // pred_check
        %p221 = pneg %p165
      $region34: #{run.13} parent=11 // pred_check_branch
        %223 = sbr.rel (%p221) target = $region36
      $region35: #{run.13} parent=11 // pred_region
        _
      $region36: #{run.13} parent=11 // pred_fallthru
        _
    $region12: #{run.13} parent=5 // pred_fallthru
      _
    %p224 = scmp.lt.s32.totalorder %s13, 2
    // Predicated region
    $region37: #{run.13} parent=5 // pred_check
      %p225 = pneg %p224
    $region38: #{run.13} parent=5 // pred_check_branch
      %227 = sbr.rel (%p225) target = $region40
    $region39: #{run.13} parent=5 // pred_region
      // Predicated region
      $region41: #{run.13} parent=39 // pred_check
        %p228 = pneg %p33
      $region42: #{run.13} parent=39 // pred_check_branch
        %230 = sbr.rel (%p228) target = $region44
      $region43: #{run.13} parent=39 // pred_region
        %p231 = scmp.lt.s32.totalorder %s13, 1
        %s232 = scalar_select %p231, %s13, 1
        %s233 = smul.addr %s232, 24
        %s234 = smul.addr %s233, 8
        %s235 = scalar_lea.vmem %s0, %s234
      $region44: #{run.13} parent=39 // pred_fallthru
        _
    $region40: #{run.13} parent=5 // pred_fallthru
      _
    %p236 = scmp.le.s32.totalorder 1, %s13
    %p237 = scmp.lt.s32.totalorder %s13, 3
    %p238 = pnand %p236, %p237
    %p239 = pneg %p238
    // Predicated region
    $region45: #{run.13} parent=5 // pred_check
      _
    $region46: #{run.13} parent=5 // pred_check_branch
      %241 = sbr.rel (%p238) target = $region48
    $region47: #{run.13} parent=5 // pred_region
      %s242 = ssub.s32 %s13, 1
      %p243 = scmp.lt.s32.totalorder %s18, 1
      %s244 = scalar_select %p243, %s18, 1
      %s245 = smul.addr %s244, 24
      %s246 = smul.addr %s245, 8
      %s247 = scalar_lea.vmem %s0, %s246
      %p248 = pneg %p39
      %p249 = pneg %p36
      %p250 = pneg %p60
      %p251 = pneg %p57
      %p252 = pneg %p81
      %p253 = pneg %p78
      %p254 = pneg %p102
      %p255 = pneg %p99
      %p256 = pneg %p123
      %p257 = pneg %p120
      %p258 = pneg %p144
      %p259 = pneg %p141
      %p260 = pneg %p165
      %p261 = pneg %p162
      %p262 = pneg %p191
      %p263 = pneg %p188
      %p264 = scmp.lt.s32.totalorder %s18, 1
      %s265 = scalar_select %p264, %s18, 1
      %s266 = smul.addr %s265, 24
      %s267 = smul.addr %s266, 8
      %s268 = scalar_lea.vmem %s7, %s267
      %p269 = scmp.lt.s32.totalorder %s18, 1
      %s270 = scalar_select %p269, %s18, 1
      %s271 = smul.addr %s270, 24
      %s272 = smul.addr %s271, 8
      %s273 = scalar_lea.vmem %s0, %s272
      %p274 = scmp.lt.s32.totalorder %s18, 1
      %s275 = scalar_select %p274, %s18, 1
      %s276 = smul.addr %s275, 24
      %s277 = smul.addr %s276, 8
      %s278 = scalar_lea.vmem %s7, %s277
      %v279 = vld [vmem:[%s273] sm:$0xff]
      %v280 = vld [vmem:[%s273 + $0x8] sm:$0xff]
      %v281 = vld [vmem:[%s273 + $0x10] sm:$0xff]
      %v282 = vld [vmem:[%s273 + $0x18] sm:$0xff]
      %v283 = vld [vmem:[%s273 + $0x20] sm:$0xff]
      %v284 = vld [vmem:[%s273 + $0x28] sm:$0xff]
      %v285 = vld [vmem:[%s273 + $0x30] sm:$0xff]
      %v286 = vld [vmem:[%s273 + $0x38] sm:$0xff]
      %v287 = vld [vmem:[%s273 + $0x40] sm:$0xff]
      %v288 = vld [vmem:[%s273 + $0x48] sm:$0xff]
      %v289 = vld [vmem:[%s273 + $0x50] sm:$0xff]
      %v290 = vld [vmem:[%s273 + $0x58] sm:$0xff]
      %v291 = vld [vmem:[%s273 + $0x60] sm:$0xff]
      %v292 = vld [vmem:[%s273 + $0x68] sm:$0xff]
      %v293 = vld [vmem:[%s273 + $0x70] sm:$0xff]
      %v294 = vld [vmem:[%s273 + $0x78] sm:$0xff]
      %v295 = vld [vmem:[%s273 + $0x80] sm:$0xff]
      %v296 = vld [vmem:[%s273 + $0x88] sm:$0xff]
      %v297 = vld [vmem:[%s273 + $0x90] sm:$0xff]
      %v298 = vld [vmem:[%s273 + $0x98] sm:$0xff]
      %v299 = vld [vmem:[%s273 + $0xa0] sm:$0xff]
      %v300 = vld [vmem:[%s273 + $0xa8] sm:$0xff]
      %v301 = vld [vmem:[%s273 + $0xb0] sm:$0xff]
      %v302 = vld [vmem:[%s273 + $0xb8] sm:$0xff]
      %v303 = vld [vmem:[%s1] sm:$0xf]
      %v304 = vld [vmem:[%s2] sm:$0x1]
      %v306 = vperm.slane %v304, 0
      %vm308 = vcmask 31744
      %v310 = vsel %vm308, %v279, 0
      %v313 = vsel %vm308, %v280, 0
      %v316 = vsel %vm308, %v281, 0
      %v319 = vsel %vm308, %v282, 0
      %v322 = vsel %vm308, %v283, 0
      %v325 = vsel %vm308, %v284, 0
      %v328 = vsel %vm308, %v285, 0
      %v331 = vsel %vm308, %v286, 0
      %v334 = vsel %vm308, %v287, 0
      %v337 = vsel %vm308, %v288, 0
      %v340 = vsel %vm308, %v289, 0
      %v343 = vsel %vm308, %v290, 0
      %v346 = vsel %vm308, %v291, 0
      %v349 = vsel %vm308, %v292, 0
      %v352 = vsel %vm308, %v293, 0
      %v355 = vsel %vm308, %v294, 0
      %v358 = vsel %vm308, %v295, 0
      %v361 = vsel %vm308, %v296, 0
      %v364 = vsel %vm308, %v297, 0
      %v367 = vsel %vm308, %v298, 0
      %v370 = vsel %vm308, %v299, 0
      %v373 = vsel %vm308, %v300, 0
      %v376 = vsel %vm308, %v301, 0
      %v379 = vsel %vm308, %v302, 0
      %vm381 = vcmask 1043456
      %v383 = vsel %vm381, %v303, 0
      %385 = vmatpush.msra.mxu0 0.0
      %386 = vmatpush.msra.mxu0 0.0
      %387 = vmatpush.msra.mxu0 0.0
      %388 = vmatpush.msra.mxu0 0.0
      %389 = vmatpush.msra.mxu0 0.0
      %390 = vmatpush.msra.mxu0 0.0
      %391 = vmatpush.msra.mxu0 0.0
      %392 = vmatpush.msra.mxu0 0.0
      %393 = vmatpush.msra.mxu0 0.0
      %394 = vmatpush.msra.mxu0 0.0
      %395 = vmatpush.msra.mxu0 0.0
      %396 = vmatpush.msra.mxu0 0.0
      %397 = vmatpush.msra.mxu0 0.0
      %398 = vmatpush.msra.mxu0 0.0
      %399 = vmatpush.msra.mxu0 0.0
      %400 = vmatpush.msra.mxu0 %v383
      %401 = vmatmul.f32.gmra.mxu0 %v310
      %v402 = vpop.f32.mrf.mxu0
      %v403 = vadd.f32 %v306, %v402
      %404 = vmatmul.f32.gmra.mxu0 %v313
      %v405 = vpop.f32.mrf.mxu0
      %v406 = vadd.f32 %v306, %v405
      %407 = vmatmul.f32.gmra.mxu0 %v316
      %v408 = vpop.f32.mrf.mxu0
      %v409 = vadd.f32 %v306, %v408
      %410 = vmatmul.f32.gmra.mxu0 %v319
      %v411 = vpop.f32.mrf.mxu0
      %v412 = vadd.f32 %v306, %v411
      %413 = vmatmul.f32.gmra.mxu0 %v322
      %v414 = vpop.f32.mrf.mxu0
      %v415 = vadd.f32 %v306, %v414
      %416 = vmatmul.f32.gmra.mxu0 %v325
      %v417 = vpop.f32.mrf.mxu0
      %v418 = vadd.f32 %v306, %v417
      %419 = vmatmul.f32.gmra.mxu0 %v328
      %v420 = vpop.f32.mrf.mxu0
      %v421 = vadd.f32 %v306, %v420
      %422 = vmatmul.f32.gmra.mxu0 %v331
      %v423 = vpop.f32.mrf.mxu0
      %v424 = vadd.f32 %v306, %v423
      %425 = vmatmul.f32.gmra.mxu0 %v334
      %v426 = vpop.f32.mrf.mxu0
      %v427 = vadd.f32 %v306, %v426
      %428 = vmatmul.f32.gmra.mxu0 %v337
      %v429 = vpop.f32.mrf.mxu0
      %v430 = vadd.f32 %v306, %v429
      %431 = vmatmul.f32.gmra.mxu0 %v340
      %v432 = vpop.f32.mrf.mxu0
      %v433 = vadd.f32 %v306, %v432
      %434 = vmatmul.f32.gmra.mxu0 %v343
      %v435 = vpop.f32.mrf.mxu0
      %v436 = vadd.f32 %v306, %v435
      %437 = vmatmul.f32.gmra.mxu0 %v346
      %v438 = vpop.f32.mrf.mxu0
      %v439 = vadd.f32 %v306, %v438
      %440 = vmatmul.f32.gmra.mxu0 %v349
      %v441 = vpop.f32.mrf.mxu0
      %v442 = vadd.f32 %v306, %v441
      %443 = vmatmul.f32.gmra.mxu0 %v352
      %v444 = vpop.f32.mrf.mxu0
      %v445 = vadd.f32 %v306, %v444
      %446 = vmatmul.f32.gmra.mxu0 %v355
      %v447 = vpop.f32.mrf.mxu0
      %v448 = vadd.f32 %v306, %v447
      %449 = vmatmul.f32.gmra.mxu0 %v358
      %v450 = vpop.f32.mrf.mxu0
      %v451 = vadd.f32 %v306, %v450
      %452 = vmatmul.f32.gmra.mxu0 %v361
      %v453 = vpop.f32.mrf.mxu0
      %v454 = vadd.f32 %v306, %v453
      %455 = vmatmul.f32.gmra.mxu0 %v364
      %v456 = vpop.f32.mrf.mxu0
      %v457 = vadd.f32 %v306, %v456
      %458 = vmatmul.f32.gmra.mxu0 %v367
      %v459 = vpop.f32.mrf.mxu0
      %v460 = vadd.f32 %v306, %v459
      %461 = vmatmul.f32.gmra.mxu0 %v370
      %v462 = vpop.f32.mrf.mxu0
      %v463 = vadd.f32 %v306, %v462
      %464 = vmatmul.f32.gmra.mxu0 %v373
      %v465 = vpop.f32.mrf.mxu0
      %v466 = vadd.f32 %v306, %v465
      %467 = vmatmul.f32.gmra.mxu0 %v376
      %v468 = vpop.f32.mrf.mxu0
      %v469 = vadd.f32 %v306, %v468
      %470 = vmatmul.f32.gmra.mxu0 %v379
      %v471 = vpop.f32.mrf.mxu0
      %v472 = vadd.f32 %v306, %v471
      %473 = vdwg.mxu0
      %v474 = vmax.f32 %v403, 0.0
      %v475 = vmax.f32 %v406, 0.0
      %v476 = vmax.f32 %v409, 0.0
      %v477 = vmax.f32 %v412, 0.0
      %v478 = vmax.f32 %v415, 0.0
      %v479 = vmax.f32 %v418, 0.0
      %v480 = vmax.f32 %v421, 0.0
      %v481 = vmax.f32 %v424, 0.0
      %v482 = vmax.f32 %v427, 0.0
      %v483 = vmax.f32 %v430, 0.0
      %v484 = vmax.f32 %v433, 0.0
      %v485 = vmax.f32 %v436, 0.0
      %v486 = vmax.f32 %v439, 0.0
      %v487 = vmax.f32 %v442, 0.0
      %v488 = vmax.f32 %v445, 0.0
      %v489 = vmax.f32 %v448, 0.0
      %v490 = vmax.f32 %v451, 0.0
      %v491 = vmax.f32 %v454, 0.0
      %v492 = vmax.f32 %v457, 0.0
      %v493 = vmax.f32 %v460, 0.0
      %v494 = vmax.f32 %v463, 0.0
      %v495 = vmax.f32 %v466, 0.0
      %v496 = vmax.f32 %v469, 0.0
      %v497 = vmax.f32 %v472, 0.0
      %v498 = vld [vmem:[%s3] sm:$0xff]
      %v499 = vld [vmem:[%s3 + $0x8] sm:$0xff]
      %v500 = vld [vmem:[%s3 + $0x10] sm:$0xff]
      %v501 = vld [vmem:[%s3 + $0x18] sm:$0xff]
      %v502 = vld [vmem:[%s3 + $0x20] sm:$0xff]
      %v503 = vld [vmem:[%s3 + $0x28] sm:$0xff]
      %v504 = vld [vmem:[%s3 + $0x30] sm:$0xff]
      %v505 = vld [vmem:[%s3 + $0x38] sm:$0xff]
      %v506 = vld [vmem:[%s3 + $0x40] sm:$0xff]
      %v507 = vld [vmem:[%s3 + $0x48] sm:$0xff]
      %v508 = vld [vmem:[%s3 + $0x50] sm:$0xff]
      %v509 = vld [vmem:[%s3 + $0x58] sm:$0xff]
      %v510 = vld [vmem:[%s4] sm:$0x1]
      %v512 = vperm.slane %v510, 0
      %vm514 = vcmask 785408
      %v516 = vsel %vm514, %v474, 0
      %v519 = vsel %vm514, %v475, 0
      %v522 = vsel %vm514, %v476, 0
      %v525 = vsel %vm514, %v477, 0
      %v528 = vsel %vm514, %v478, 0
      %v531 = vsel %vm514, %v479, 0
      %v534 = vsel %vm514, %v480, 0
      %v537 = vsel %vm514, %v481, 0
      %v540 = vsel %vm514, %v482, 0
      %v543 = vsel %vm514, %v483, 0
      %v546 = vsel %vm514, %v484, 0
      %v549 = vsel %vm514, %v485, 0
      %v552 = vsel %vm514, %v486, 0
      %v555 = vsel %vm514, %v487, 0
      %v558 = vsel %vm514, %v488, 0
      %v561 = vsel %vm514, %v489, 0
      %v564 = vsel %vm514, %v490, 0
      %v567 = vsel %vm514, %v491, 0
      %v570 = vsel %vm514, %v492, 0
      %v573 = vsel %vm514, %v493, 0
      %v576 = vsel %vm514, %v494, 0
      %v579 = vsel %vm514, %v495, 0
      %v582 = vsel %vm514, %v496, 0
      %v585 = vsel %vm514, %v497, 0
      %587 = vmatpush.msra.mxu0 0.0
      %588 = vmatpush.msra.mxu0 0.0
      %589 = vmatpush.msra.mxu0 0.0
      %590 = vmatpush.msra.mxu0 0.0
      %591 = vmatpush.msra.mxu0 %v509
      %592 = vmatpush.msra.mxu0 %v508
      %593 = vmatpush.msra.mxu0 %v507
      %594 = vmatpush.msra.mxu0 %v506
      %595 = vmatpush.msra.mxu0 %v505
      %596 = vmatpush.msra.mxu0 %v504
      %597 = vmatpush.msra.mxu0 %v503
      %598 = vmatpush.msra.mxu0 %v502
      %599 = vmatpush.msra.mxu0 %v501
      %600 = vmatpush.msra.mxu0 %v500
      %601 = vmatpush.msra.mxu0 %v499
      %602 = vmatpush.msra.mxu0 %v498
      %603 = vmatmul.f32.gmra.mxu0 %v516
      %v604 = vpop.f32.mrf.mxu0
      %v605 = vadd.f32 %v512, %v604
      %606 = vmatmul.f32.gmra.mxu0 %v519
      %v607 = vpop.f32.mrf.mxu0
      %v608 = vadd.f32 %v512, %v607
      %609 = vmatmul.f32.gmra.mxu0 %v522
      %v610 = vpop.f32.mrf.mxu0
      %v611 = vadd.f32 %v512, %v610
      %612 = vmatmul.f32.gmra.mxu0 %v525
      %v613 = vpop.f32.mrf.mxu0
      %v614 = vadd.f32 %v512, %v613
      %615 = vmatmul.f32.gmra.mxu0 %v528
      %v616 = vpop.f32.mrf.mxu0
      %v617 = vadd.f32 %v512, %v616
      %618 = vmatmul.f32.gmra.mxu0 %v531
      %v619 = vpop.f32.mrf.mxu0
      %v620 = vadd.f32 %v512, %v619
      %621 = vmatmul.f32.gmra.mxu0 %v534
      %v622 = vpop.f32.mrf.mxu0
      %v623 = vadd.f32 %v512, %v622
      %624 = vmatmul.f32.gmra.mxu0 %v537
      %v625 = vpop.f32.mrf.mxu0
      %v626 = vadd.f32 %v512, %v625
      %627 = vmatmul.f32.gmra.mxu0 %v540
      %v628 = vpop.f32.mrf.mxu0
      %v629 = vadd.f32 %v512, %v628
      %630 = vmatmul.f32.gmra.mxu0 %v543
      %v631 = vpop.f32.mrf.mxu0
      %v632 = vadd.f32 %v512, %v631
      %633 = vmatmul.f32.gmra.mxu0 %v546
      %v634 = vpop.f32.mrf.mxu0
      %v635 = vadd.f32 %v512, %v634
      %636 = vmatmul.f32.gmra.mxu0 %v549
      %v637 = vpop.f32.mrf.mxu0
      %v638 = vadd.f32 %v512, %v637
      %639 = vmatmul.f32.gmra.mxu0 %v552
      %v640 = vpop.f32.mrf.mxu0
      %v641 = vadd.f32 %v512, %v640
      %642 = vmatmul.f32.gmra.mxu0 %v555
      %v643 = vpop.f32.mrf.mxu0
      %v644 = vadd.f32 %v512, %v643
      %645 = vmatmul.f32.gmra.mxu0 %v558
      %v646 = vpop.f32.mrf.mxu0
      %v647 = vadd.f32 %v512, %v646
      %648 = vmatmul.f32.gmra.mxu0 %v561
      %v649 = vpop.f32.mrf.mxu0
      %v650 = vadd.f32 %v512, %v649
      %651 = vmatmul.f32.gmra.mxu0 %v564
      %v652 = vpop.f32.mrf.mxu0
      %v653 = vadd.f32 %v512, %v652
      %654 = vmatmul.f32.gmra.mxu0 %v567
      %v655 = vpop.f32.mrf.mxu0
      %v656 = vadd.f32 %v512, %v655
      %657 = vmatmul.f32.gmra.mxu0 %v570
      %v658 = vpop.f32.mrf.mxu0
      %v659 = vadd.f32 %v512, %v658
      %660 = vmatmul.f32.gmra.mxu0 %v573
      %v661 = vpop.f32.mrf.mxu0
      %v662 = vadd.f32 %v512, %v661
      %663 = vmatmul.f32.gmra.mxu0 %v576
      %v664 = vpop.f32.mrf.mxu0
      %v665 = vadd.f32 %v512, %v664
      %666 = vmatmul.f32.gmra.mxu0 %v579
      %v667 = vpop.f32.mrf.mxu0
      %v668 = vadd.f32 %v512, %v667
      %669 = vmatmul.f32.gmra.mxu0 %v582
      %v670 = vpop.f32.mrf.mxu0
      %v671 = vadd.f32 %v512, %v670
      %672 = vmatmul.f32.gmra.mxu0 %v585
      %v673 = vpop.f32.mrf.mxu0
      %v674 = vadd.f32 %v512, %v673
      %675 = vdwg.mxu0
      %v676 = vmax.f32 %v605, 0.0
      %v677 = vmax.f32 %v608, 0.0
      %v678 = vmax.f32 %v611, 0.0
      %v679 = vmax.f32 %v614, 0.0
      %v680 = vmax.f32 %v617, 0.0
      %v681 = vmax.f32 %v620, 0.0
      %v682 = vmax.f32 %v623, 0.0
      %v683 = vmax.f32 %v626, 0.0
      %v684 = vmax.f32 %v629, 0.0
      %v685 = vmax.f32 %v632, 0.0
      %v686 = vmax.f32 %v635, 0.0
      %v687 = vmax.f32 %v638, 0.0
      %v688 = vmax.f32 %v641, 0.0
      %v689 = vmax.f32 %v644, 0.0
      %v690 = vmax.f32 %v647, 0.0
      %v691 = vmax.f32 %v650, 0.0
      %v692 = vmax.f32 %v653, 0.0
      %v693 = vmax.f32 %v656, 0.0
      %v694 = vmax.f32 %v659, 0.0
      %v695 = vmax.f32 %v662, 0.0
      %v696 = vmax.f32 %v665, 0.0
      %v697 = vmax.f32 %v668, 0.0
      %v698 = vmax.f32 %v671, 0.0
      %v699 = vmax.f32 %v674, 0.0
      %v700 = vld [vmem:[%s5] sm:$0xff]
      %v701 = vld [vmem:[%s5 + $0x8] sm:$0xff]
      %v702 = vld [vmem:[%s5 + $0x10] sm:$0xff]
      %v703 = vld [vmem:[%s5 + $0x18] sm:$0xff]
      %v704 = vld [vmem:[%s5 + $0x20] sm:$0xff]
      %v705 = vld [vmem:[%s5 + $0x28] sm:$0xff]
      %v706 = vld [vmem:[%s5 + $0x30] sm:$0xff]
      %v707 = vld [vmem:[%s5 + $0x38] sm:$0xff]
      %v708 = vld [vmem:[%s5 + $0x40] sm:$0xff]
      %v709 = vld [vmem:[%s5 + $0x48] sm:$0xff]
      %v710 = vld [vmem:[%s5 + $0x50] sm:$0xff]
      %v711 = vld [vmem:[%s5 + $0x58] sm:$0xff]
      %v712 = vld [vmem:[%s6] sm:$0x1]
      %v714 = vperm.slane %v712, 0
      %v717 = vsel %vm514, %v676, 0
      %v720 = vsel %vm514, %v677, 0
      %v723 = vsel %vm514, %v678, 0
      %v726 = vsel %vm514, %v679, 0
      %v729 = vsel %vm514, %v680, 0
      %v732 = vsel %vm514, %v681, 0
      %v735 = vsel %vm514, %v682, 0
      %v738 = vsel %vm514, %v683, 0
      %v741 = vsel %vm514, %v684, 0
      %v744 = vsel %vm514, %v685, 0
      %v747 = vsel %vm514, %v686, 0
      %v750 = vsel %vm514, %v687, 0
      %v753 = vsel %vm514, %v688, 0
      %v756 = vsel %vm514, %v689, 0
      %v759 = vsel %vm514, %v690, 0
      %v762 = vsel %vm514, %v691, 0
      %v765 = vsel %vm514, %v692, 0
      %v768 = vsel %vm514, %v693, 0
      %v771 = vsel %vm514, %v694, 0
      %v774 = vsel %vm514, %v695, 0
      %v777 = vsel %vm514, %v696, 0
      %v780 = vsel %vm514, %v697, 0
      %v783 = vsel %vm514, %v698, 0
      %v786 = vsel %vm514, %v699, 0
      %788 = vmatpush.msra.mxu0 0.0
      %789 = vmatpush.msra.mxu0 0.0
      %790 = vmatpush.msra.mxu0 0.0
      %791 = vmatpush.msra.mxu0 0.0
      %792 = vmatpush.msra.mxu0 %v711
      %793 = vmatpush.msra.mxu0 %v710
      %794 = vmatpush.msra.mxu0 %v709
      %795 = vmatpush.msra.mxu0 %v708
      %796 = vmatpush.msra.mxu0 %v707
      %797 = vmatpush.msra.mxu0 %v706
      %798 = vmatpush.msra.mxu0 %v705
      %799 = vmatpush.msra.mxu0 %v704
      %800 = vmatpush.msra.mxu0 %v703
      %801 = vmatpush.msra.mxu0 %v702
      %802 = vmatpush.msra.mxu0 %v701
      %803 = vmatpush.msra.mxu0 %v700
      %804 = vmatmul.f32.gmra.mxu0 %v717
      %v805 = vpop.f32.mrf.mxu0
      %v806 = vadd.f32 %v714, %v805
      %807 = vmatmul.f32.gmra.mxu0 %v720
      %v808 = vpop.f32.mrf.mxu0
      %v809 = vadd.f32 %v714, %v808
      %810 = vmatmul.f32.gmra.mxu0 %v723
      %v811 = vpop.f32.mrf.mxu0
      %v812 = vadd.f32 %v714, %v811
      %813 = vmatmul.f32.gmra.mxu0 %v726
      %v814 = vpop.f32.mrf.mxu0
      %v815 = vadd.f32 %v714, %v814
      %816 = vmatmul.f32.gmra.mxu0 %v729
      %v817 = vpop.f32.mrf.mxu0
      %v818 = vadd.f32 %v714, %v817
      %819 = vmatmul.f32.gmra.mxu0 %v732
      %v820 = vpop.f32.mrf.mxu0
      %v821 = vadd.f32 %v714, %v820
      %822 = vmatmul.f32.gmra.mxu0 %v735
      %v823 = vpop.f32.mrf.mxu0
      %v824 = vadd.f32 %v714, %v823
      %825 = vmatmul.f32.gmra.mxu0 %v738
      %v826 = vpop.f32.mrf.mxu0
      %v827 = vadd.f32 %v714, %v826
      %828 = vmatmul.f32.gmra.mxu0 %v741
      %v829 = vpop.f32.mrf.mxu0
      %v830 = vadd.f32 %v714, %v829
      %831 = vmatmul.f32.gmra.mxu0 %v744
      %v832 = vpop.f32.mrf.mxu0
      %v833 = vadd.f32 %v714, %v832
      %834 = vmatmul.f32.gmra.mxu0 %v747
      %v835 = vpop.f32.mrf.mxu0
      %v836 = vadd.f32 %v714, %v835
      %837 = vmatmul.f32.gmra.mxu0 %v750
      %v838 = vpop.f32.mrf.mxu0
      %v839 = vadd.f32 %v714, %v838
      %840 = vmatmul.f32.gmra.mxu0 %v753
      %v841 = vpop.f32.mrf.mxu0
      %v842 = vadd.f32 %v714, %v841
      %843 = vmatmul.f32.gmra.mxu0 %v756
      %v844 = vpop.f32.mrf.mxu0
      %v845 = vadd.f32 %v714, %v844
      %846 = vmatmul.f32.gmra.mxu0 %v759
      %v847 = vpop.f32.mrf.mxu0
      %v848 = vadd.f32 %v714, %v847
      %849 = vmatmul.f32.gmra.mxu0 %v762
      %v850 = vpop.f32.mrf.mxu0
      %v851 = vadd.f32 %v714, %v850
      %852 = vmatmul.f32.gmra.mxu0 %v765
      %v853 = vpop.f32.mrf.mxu0
      %v854 = vadd.f32 %v714, %v853
      %855 = vmatmul.f32.gmra.mxu0 %v768
      %v856 = vpop.f32.mrf.mxu0
      %v857 = vadd.f32 %v714, %v856
      %858 = vmatmul.f32.gmra.mxu0 %v771
      %v859 = vpop.f32.mrf.mxu0
      %v860 = vadd.f32 %v714, %v859
      %861 = vmatmul.f32.gmra.mxu0 %v774
      %v862 = vpop.f32.mrf.mxu0
      %v863 = vadd.f32 %v714, %v862
      %864 = vmatmul.f32.gmra.mxu0 %v777
      %v865 = vpop.f32.mrf.mxu0
      %v866 = vadd.f32 %v714, %v865
      %867 = vmatmul.f32.gmra.mxu0 %v780
      %v868 = vpop.f32.mrf.mxu0
      %v869 = vadd.f32 %v714, %v868
      %870 = vmatmul.f32.gmra.mxu0 %v783
      %v871 = vpop.f32.mrf.mxu0
      %v872 = vadd.f32 %v714, %v871
      %873 = vmatmul.f32.gmra.mxu0 %v786
      %v874 = vpop.f32.mrf.mxu0
      %v875 = vadd.f32 %v714, %v874
      %876 = vdwg.mxu0
      %vm877 = vcmask 97280
      %878 = vst.msk [vmem:[%s278] sm:$0xff] %vm877, %v806
      %879 = vst.msk [vmem:[%s278 + $0x8] sm:$0xff] %vm877, %v809
      %880 = vst.msk [vmem:[%s278 + $0x10] sm:$0xff] %vm877, %v812
      %881 = vst.msk [vmem:[%s278 + $0x18] sm:$0xff] %vm877, %v815
      %882 = vst.msk [vmem:[%s278 + $0x20] sm:$0xff] %vm877, %v818
      %883 = vst.msk [vmem:[%s278 + $0x28] sm:$0xff] %vm877, %v821
      %884 = vst.msk [vmem:[%s278 + $0x30] sm:$0xff] %vm877, %v824
      %885 = vst.msk [vmem:[%s278 + $0x38] sm:$0xff] %vm877, %v827
      %886 = vst.msk [vmem:[%s278 + $0x40] sm:$0xff] %vm877, %v830
      %887 = vst.msk [vmem:[%s278 + $0x48] sm:$0xff] %vm877, %v833
      %888 = vst.msk [vmem:[%s278 + $0x50] sm:$0xff] %vm877, %v836
      %889 = vst.msk [vmem:[%s278 + $0x58] sm:$0xff] %vm877, %v839
      %890 = vst.msk [vmem:[%s278 + $0x60] sm:$0xff] %vm877, %v842
      %891 = vst.msk [vmem:[%s278 + $0x68] sm:$0xff] %vm877, %v845
      %892 = vst.msk [vmem:[%s278 + $0x70] sm:$0xff] %vm877, %v848
      %893 = vst.msk [vmem:[%s278 + $0x78] sm:$0xff] %vm877, %v851
      %894 = vst.msk [vmem:[%s278 + $0x80] sm:$0xff] %vm877, %v854
      %895 = vst.msk [vmem:[%s278 + $0x88] sm:$0xff] %vm877, %v857
      %896 = vst.msk [vmem:[%s278 + $0x90] sm:$0xff] %vm877, %v860
      %897 = vst.msk [vmem:[%s278 + $0x98] sm:$0xff] %vm877, %v863
      %898 = vst.msk [vmem:[%s278 + $0xa0] sm:$0xff] %vm877, %v866
      %899 = vst.msk [vmem:[%s278 + $0xa8] sm:$0xff] %vm877, %v869
      %900 = vst.msk [vmem:[%s278 + $0xb0] sm:$0xff] %vm877, %v872
      %901 = vst.msk [vmem:[%s278 + $0xb8] sm:$0xff] %vm877, %v875
      %p902 = scmp.lt.s32.totalorder %s18, 1
      %s903 = scalar_select %p902, %s18, 1
      %s904 = smul.addr %s903, 24
      %s905 = smul.addr %s904, 8
      %s906 = scalar_lea.vmem %s7, %s905
      // Predicated region
      $region49: #{run.13} parent=47 // pred_check
        %p907 = pneg %p188
      $region50: #{run.13} parent=47 // pred_check_branch
        %909 = sbr.rel (%p907) target = $region52
      $region51: #{run.13} parent=47 // pred_region
        _
      $region52: #{run.13} parent=47 // pred_fallthru
        _
    $region48: #{run.13} parent=5 // pred_fallthru
      _
    %p910 = scmp.le.s32.totalorder 2, %s13
    // Predicated region
    $region53: #{run.13} parent=5 // pred_check
      %p911 = pneg %p910
    $region54: #{run.13} parent=5 // pred_check_branch
      %913 = sbr.rel (%p911) target = $region56
    $region55: #{run.13} parent=5 // pred_region
      %s914 = ssub.s32 %s13, 2
      // Predicated region
      $region57: #{run.13} parent=55 // pred_check
        %p915 = pneg %p194
      $region58: #{run.13} parent=55 // pred_check_branch
        %917 = sbr.rel (%p915) target = $region60
      $region59: #{run.13} parent=55 // pred_region
        %p918 = scmp.lt.s32.totalorder %s19, 1
        %s919 = scalar_select %p918, %s19, 1
        %s920 = smul.addr %s919, 24
        %s921 = smul.addr %s920, 8
        %s922 = scalar_lea.vmem %s7, %s921
      $region60: #{run.13} parent=55 // pred_fallthru
        _
    $region56: #{run.13} parent=5 // pred_fallthru
      _
  $region6: #{run.13} parent=0 // loop_footer
    %s17 = sadd.s32 1, %s13
  $region7: #{run.13} parent=0 // loop_footer_branch
    %12 = sbr.rel target = $region3
  $region8: #{run.13} parent=0 // loop_exit
    _

// kernel: run.11
$region0: #{run.11}
  #allocation0 [shape = 'u32[]', space=smem, size = 0x4, offset = 0x4, fixed_abs, tag = 'smem constant byte address 0x4 - core index']
  #allocation1 [shape = 'u32[72,128]{1,0:T(1,128)}', space=vmem, size = 0x9000, scoped, tag = 'internal scratch']
  %s0 = inlined_call_operand.vmem [shape: f32[2,16,32], index: 0, kind: input, shape index: {}]
  %s1 = inlined_call_operand.vmem [shape: f32[2,12,16,16], index: 1, kind: input, shape index: {}]
  %s2 = inlined_call_operand.vmem [shape: f32[32,96], index: 2, kind: input, shape index: {}]
  %s3 = inlined_call_operand.vmem [shape: f32[1,32], index: 3, kind: input, shape index: {}]
  %s4 = inlined_call_operand.vmem [shape: f32[1,32], index: 4, kind: input, shape index: {}]
  %s5 = inlined_call_operand.vmem [shape: f32[32,64], index: 5, kind: input, shape index: {}]
  %s6 = inlined_call_operand.vmem [shape: f32[1,64], index: 6, kind: input, shape index: {}]
  %s7 = inlined_call_operand.vmem [shape: f32[64,32], index: 7, kind: input, shape index: {}]
  %s8 = inlined_call_operand.vmem [shape: f32[1,32], index: 8, kind: input, shape index: {}]
  %s9 = inlined_call_operand.vmem [shape: f32[1,32], index: 9, kind: input, shape index: {}]
  %s10 = inlined_call_operand.vmem [shape: f32[1,32], index: 10, kind: input, shape index: {}]
  %s11 = inlined_call_operand.vmem [shape: f32[2,16,32], index: 11, kind: output, shape index: {}]
  %s12 = sld [smem:[#allocation0]]
  $region77: #{run.11} parent=0
    _
  %s14 = ssub.s32 1, %s12
  %s15 = scalar_select 0, %s14, %s12
  loop: start=0, step=1, limit=4
  $region2: #{run.11} parent=0 // loop_pre_header
    _
  $region3: #{run.11} parent=0 // loop_header
    %s17 = sphi 0, %s21
    %p18 = scmp.ge.s32.totalorder %s17, 4
    %s27 = sphi 0, %s29
    %s30 = sphi 0, %s27
    %s31 = sphi 0, %s30
    %s47 = sphi 0, %s31
    %s53 = sphi 0, %s55
    %s56 = sphi 0, %s53
    %s57 = sphi 0, %s56
    %s73 = sphi 0, %s57
    %s77 = sphi 0, %s77
    %s79 = sphi 0, %s77
    %s80 = sphi 0, %s79
    %s94 = sphi 0, %s80
    %s98 = sphi 0, %s98
    %s100 = sphi 0, %s98
    %s101 = sphi 0, %s100
    %s115 = sphi 0, %s101
    %s119 = sphi 0, %s119
    %s121 = sphi 0, %s119
    %s122 = sphi 0, %s121
    %s136 = sphi 0, %s122
    %s140 = sphi 0, %s140
    %s142 = sphi 0, %s140
    %s143 = sphi 0, %s142
    %s157 = sphi 0, %s143
    %s161 = sphi 0, %s161
    %s163 = sphi 0, %s161
    %s164 = sphi 0, %s163
    %s178 = sphi 0, %s164
    %s182 = sphi 0, %s182
    %s184 = sphi 0, %s182
    %s185 = sphi 0, %s184
    %s199 = sphi 0, %s185
    %s203 = sphi 0, %s203
    %s205 = sphi 0, %s203
    %s206 = sphi 0, %s205
    %s220 = sphi 0, %s206
    %s224 = sphi 0, %s224
    %s226 = sphi 0, %s224
    %s227 = sphi 0, %s226
    %s241 = sphi 0, %s227
    %s245 = sphi 0, %s245
    %s247 = sphi 0, %s245
    %s248 = sphi 0, %s247
    %s262 = sphi 0, %s248
    %s268 = sphi 0, %s270
    %s271 = sphi 0, %s268
    %s272 = sphi 0, %s271
    %s288 = sphi 0, %s272
  $region4: #{run.11} parent=0 // loop_header_branch
    %20 = sbr.rel (%p18) target = $region8
  $region5: #{run.11} parent=0 // loop_body
    %s22 = ssub.s32 %s17, 1
    %s23 = ssub.s32 %s17, 2
    %s24 = sadd.s32 %s17, 1
    %s25 = ssub.s32 %s17, %s24
    %p26 = scmp.eq.s32.totalorder %s25, 0
    %s28 = sadd.s32 %s27, 1
    %s29 = scalar_select %p26, %s27, %s28
    %p32 = pneg %p26
    %p33 = scmp.eq.s32.totalorder %s17, 1
    %p34 = por %p32, %p33
    %p35 = scmp.ne.s32.totalorder %s27, %s30
    %p36 = scmp.eq.s32.totalorder %s17, 0
    %p37 = por %p35, %p36
    %p38 = scmp.ne.s32.totalorder %s27, %s30
    %p39 = scmp.eq.s32.totalorder %s22, 1
    %p40 = por %p38, %p39
    %p41 = scmp.ne.s32.totalorder %s30, %s31
    %p42 = scmp.eq.s32.totalorder %s22, 0
    %p43 = por %p41, %p42
    %p44 = scmp.ne.s32.totalorder %s30, %s31
    %p45 = scmp.eq.s32.totalorder %s23, 1
    %p46 = por %p44, %p45
    %p48 = scmp.ne.s32.totalorder %s31, %s47
    %p49 = scmp.eq.s32.totalorder %s23, 0
    %p50 = por %p48, %p49
    %s51 = ssub.s32 %s17, %s24
    %p52 = scmp.eq.s32.totalorder %s51, 0
    %s54 = sadd.s32 %s53, 1
    %s55 = scalar_select %p52, %s53, %s54
    %p58 = pneg %p52
    %p59 = scmp.eq.s32.totalorder %s17, 1
    %p60 = por %p58, %p59
    %p61 = scmp.ne.s32.totalorder %s53, %s56
    %p62 = scmp.eq.s32.totalorder %s17, 0
    %p63 = por %p61, %p62
    %p64 = scmp.ne.s32.totalorder %s53, %s56
    %p65 = scmp.eq.s32.totalorder %s22, 1
    %p66 = por %p64, %p65
    %p67 = scmp.ne.s32.totalorder %s56, %s57
    %p68 = scmp.eq.s32.totalorder %s22, 0
    %p69 = por %p67, %p68
    %p70 = scmp.ne.s32.totalorder %s56, %s57
    %p71 = scmp.eq.s32.totalorder %s23, 1
    %p72 = por %p70, %p71
    %p74 = scmp.ne.s32.totalorder %s57, %s73
    %p75 = scmp.eq.s32.totalorder %s23, 0
    %p76 = por %p74, %p75
    %s78 = sadd.s32 %s77, 1
    %p81 = scmp.eq.s32.totalorder %s17, 1
    %p82 = scmp.ne.s32.totalorder %s77, %s79
    %p83 = scmp.eq.s32.totalorder %s17, 0
    %p84 = por %p82, %p83
    %p85 = scmp.ne.s32.totalorder %s77, %s79
    %p86 = scmp.eq.s32.totalorder %s22, 1
    %p87 = por %p85, %p86
    %p88 = scmp.ne.s32.totalorder %s79, %s80
    %p89 = scmp.eq.s32.totalorder %s22, 0
    %p90 = por %p88, %p89
    %p91 = scmp.ne.s32.totalorder %s79, %s80
    %p92 = scmp.eq.s32.totalorder %s23, 1
    %p93 = por %p91, %p92
    %p95 = scmp.ne.s32.totalorder %s80, %s94
    %p96 = scmp.eq.s32.totalorder %s23, 0
    %p97 = por %p95, %p96
    %s99 = sadd.s32 %s98, 1
    %p102 = scmp.eq.s32.totalorder %s17, 1
    %p103 = scmp.ne.s32.totalorder %s98, %s100
    %p104 = scmp.eq.s32.totalorder %s17, 0
    %p105 = por %p103, %p104
    %p106 = scmp.ne.s32.totalorder %s98, %s100
    %p107 = scmp.eq.s32.totalorder %s22, 1
    %p108 = por %p106, %p107
    %p109 = scmp.ne.s32.totalorder %s100, %s101
    %p110 = scmp.eq.s32.totalorder %s22, 0
    %p111 = por %p109, %p110
    %p112 = scmp.ne.s32.totalorder %s100, %s101
    %p113 = scmp.eq.s32.totalorder %s23, 1
    %p114 = por %p112, %p113
    %p116 = scmp.ne.s32.totalorder %s101, %s115
    %p117 = scmp.eq.s32.totalorder %s23, 0
    %p118 = por %p116, %p117
    %s120 = sadd.s32 %s119, 1
    %p123 = scmp.eq.s32.totalorder %s17, 1
    %p124 = scmp.ne.s32.totalorder %s119, %s121
    %p125 = scmp.eq.s32.totalorder %s17, 0
    %p126 = por %p124, %p125
    %p127 = scmp.ne.s32.totalorder %s119, %s121
    %p128 = scmp.eq.s32.totalorder %s22, 1
    %p129 = por %p127, %p128
    %p130 = scmp.ne.s32.totalorder %s121, %s122
    %p131 = scmp.eq.s32.totalorder %s22, 0
    %p132 = por %p130, %p131
    %p133 = scmp.ne.s32.totalorder %s121, %s122
    %p134 = scmp.eq.s32.totalorder %s23, 1
    %p135 = por %p133, %p134
    %p137 = scmp.ne.s32.totalorder %s122, %s136
    %p138 = scmp.eq.s32.totalorder %s23, 0
    %p139 = por %p137, %p138
    %s141 = sadd.s32 %s140, 1
    %p144 = scmp.eq.s32.totalorder %s17, 1
    %p145 = scmp.ne.s32.totalorder %s140, %s142
    %p146 = scmp.eq.s32.totalorder %s17, 0
    %p147 = por %p145, %p146
    %p148 = scmp.ne.s32.totalorder %s140, %s142
    %p149 = scmp.eq.s32.totalorder %s22, 1
    %p150 = por %p148, %p149
    %p151 = scmp.ne.s32.totalorder %s142, %s143
    %p152 = scmp.eq.s32.totalorder %s22, 0
    %p153 = por %p151, %p152
    %p154 = scmp.ne.s32.totalorder %s142, %s143
    %p155 = scmp.eq.s32.totalorder %s23, 1
    %p156 = por %p154, %p155
    %p158 = scmp.ne.s32.totalorder %s143, %s157
    %p159 = scmp.eq.s32.totalorder %s23, 0
    %p160 = por %p158, %p159
    %s162 = sadd.s32 %s161, 1
    %p165 = scmp.eq.s32.totalorder %s17, 1
    %p166 = scmp.ne.s32.totalorder %s161, %s163
    %p167 = scmp.eq.s32.totalorder %s17, 0
    %p168 = por %p166, %p167
    %p169 = scmp.ne.s32.totalorder %s161, %s163
    %p170 = scmp.eq.s32.totalorder %s22, 1
    %p171 = por %p169, %p170
    %p172 = scmp.ne.s32.totalorder %s163, %s164
    %p173 = scmp.eq.s32.totalorder %s22, 0
    %p174 = por %p172, %p173
    %p175 = scmp.ne.s32.totalorder %s163, %s164
    %p176 = scmp.eq.s32.totalorder %s23, 1
    %p177 = por %p175, %p176
    %p179 = scmp.ne.s32.totalorder %s164, %s178
    %p180 = scmp.eq.s32.totalorder %s23, 0
    %p181 = por %p179, %p180
    %s183 = sadd.s32 %s182, 1
    %p186 = scmp.eq.s32.totalorder %s17, 1
    %p187 = scmp.ne.s32.totalorder %s182, %s184
    %p188 = scmp.eq.s32.totalorder %s17, 0
    %p189 = por %p187, %p188
    %p190 = scmp.ne.s32.totalorder %s182, %s184
    %p191 = scmp.eq.s32.totalorder %s22, 1
    %p192 = por %p190, %p191
    %p193 = scmp.ne.s32.totalorder %s184, %s185
    %p194 = scmp.eq.s32.totalorder %s22, 0
    %p195 = por %p193, %p194
    %p196 = scmp.ne.s32.totalorder %s184, %s185
    %p197 = scmp.eq.s32.totalorder %s23, 1
    %p198 = por %p196, %p197
    %p200 = scmp.ne.s32.totalorder %s185, %s199
    %p201 = scmp.eq.s32.totalorder %s23, 0
    %p202 = por %p200, %p201
    %s204 = sadd.s32 %s203, 1
    %p207 = scmp.eq.s32.totalorder %s17, 1
    %p208 = scmp.ne.s32.totalorder %s203, %s205
    %p209 = scmp.eq.s32.totalorder %s17, 0
    %p210 = por %p208, %p209
    %p211 = scmp.ne.s32.totalorder %s203, %s205
    %p212 = scmp.eq.s32.totalorder %s22, 1
    %p213 = por %p211, %p212
    %p214 = scmp.ne.s32.totalorder %s205, %s206
    %p215 = scmp.eq.s32.totalorder %s22, 0
    %p216 = por %p214, %p215
    %p217 = scmp.ne.s32.totalorder %s205, %s206
    %p218 = scmp.eq.s32.totalorder %s23, 1
    %p219 = por %p217, %p218
    %p221 = scmp.ne.s32.totalorder %s206, %s220
    %p222 = scmp.eq.s32.totalorder %s23, 0
    %p223 = por %p221, %p222
    %s225 = sadd.s32 %s224, 1
    %p228 = scmp.eq.s32.totalorder %s17, 1
    %p229 = scmp.ne.s32.totalorder %s224, %s226
    %p230 = scmp.eq.s32.totalorder %s17, 0
    %p231 = por %p229, %p230
    %p232 = scmp.ne.s32.totalorder %s224, %s226
    %p233 = scmp.eq.s32.totalorder %s22, 1
    %p234 = por %p232, %p233
    %p235 = scmp.ne.s32.totalorder %s226, %s227
    %p236 = scmp.eq.s32.totalorder %s22, 0
    %p237 = por %p235, %p236
    %p238 = scmp.ne.s32.totalorder %s226, %s227
    %p239 = scmp.eq.s32.totalorder %s23, 1
    %p240 = por %p238, %p239
    %p242 = scmp.ne.s32.totalorder %s227, %s241
    %p243 = scmp.eq.s32.totalorder %s23, 0
    %p244 = por %p242, %p243
    %s246 = sadd.s32 %s245, 1
    %p249 = scmp.eq.s32.totalorder %s17, 1
    %p250 = scmp.ne.s32.totalorder %s245, %s247
    %p251 = scmp.eq.s32.totalorder %s17, 0
    %p252 = por %p250, %p251
    %p253 = scmp.ne.s32.totalorder %s245, %s247
    %p254 = scmp.eq.s32.totalorder %s22, 1
    %p255 = por %p253, %p254
    %p256 = scmp.ne.s32.totalorder %s247, %s248
    %p257 = scmp.eq.s32.totalorder %s22, 0
    %p258 = por %p256, %p257
    %p259 = scmp.ne.s32.totalorder %s247, %s248
    %p260 = scmp.eq.s32.totalorder %s23, 1
    %p261 = por %p259, %p260
    %p263 = scmp.ne.s32.totalorder %s248, %s262
    %p264 = scmp.eq.s32.totalorder %s23, 0
    %p265 = por %p263, %p264
    %s266 = ssub.s32 %s17, %s24
    %p267 = scmp.eq.s32.totalorder %s266, 0
    %s269 = sadd.s32 %s268, 1
    %s270 = scalar_select %p267, %s268, %s269
    %p273 = pneg %p267
    %p274 = scmp.eq.s32.totalorder %s17, 1
    %p275 = por %p273, %p274
    %p276 = scmp.ne.s32.totalorder %s268, %s271
    %p277 = scmp.eq.s32.totalorder %s17, 0
    %p278 = por %p276, %p277
    %p279 = scmp.ne.s32.totalorder %s268, %s271
    %p280 = scmp.eq.s32.totalorder %s22, 1
    %p281 = por %p279, %p280
    %p282 = scmp.ne.s32.totalorder %s271, %s272
    %p283 = scmp.eq.s32.totalorder %s22, 0
    %p284 = por %p282, %p283
    %p285 = scmp.ne.s32.totalorder %s271, %s272
    %p286 = scmp.eq.s32.totalorder %s23, 1
    %p287 = por %p285, %p286
    %p289 = scmp.ne.s32.totalorder %s272, %s288
    %p290 = scmp.eq.s32.totalorder %s23, 0
    %p291 = por %p289, %p290
    %p292 = scmp.le.s32.totalorder 1, %s17
    %p293 = scmp.lt.s32.totalorder %s17, 3
    %p294 = pnand %p292, %p293
    %p295 = pneg %p294
    // Predicated region
    $region9: #{run.11} parent=5 // pred_check
      _
    $region10: #{run.11} parent=5 // pred_check_branch
      %297 = sbr.rel (%p294) target = $region12
    $region11: #{run.11} parent=5 // pred_region
      %s298 = ssub.s32 %s17, 1
      // Predicated region
      $region13: #{run.11} parent=11 // pred_check
        %p299 = pneg %p90
      $region14: #{run.11} parent=11 // pred_check_branch
        %301 = sbr.rel (%p299) target = $region16
      $region15: #{run.11} parent=11 // pred_region
        _
      $region16: #{run.11} parent=11 // pred_fallthru
        _
      // Predicated region
      $region17: #{run.11} parent=11 // pred_check
        %p302 = pneg %p111
      $region18: #{run.11} parent=11 // pred_check_branch
        %304 = sbr.rel (%p302) target = $region20
      $region19: #{run.11} parent=11 // pred_region
        _
      $region20: #{run.11} parent=11 // pred_fallthru
        _
      // Predicated region
      $region21: #{run.11} parent=11 // pred_check
        %p305 = pneg %p132
      $region22: #{run.11} parent=11 // pred_check_branch
        %307 = sbr.rel (%p305) target = $region24
      $region23: #{run.11} parent=11 // pred_region
        _
      $region24: #{run.11} parent=11 // pred_fallthru
        _
      // Predicated region
      $region25: #{run.11} parent=11 // pred_check
        %p308 = pneg %p153
      $region26: #{run.11} parent=11 // pred_check_branch
        %310 = sbr.rel (%p308) target = $region28
      $region27: #{run.11} parent=11 // pred_region
        _
      $region28: #{run.11} parent=11 // pred_fallthru
        _
      // Predicated region
      $region29: #{run.11} parent=11 // pred_check
        %p311 = pneg %p174
      $region30: #{run.11} parent=11 // pred_check_branch
        %313 = sbr.rel (%p311) target = $region32
      $region31: #{run.11} parent=11 // pred_region
        _
      $region32: #{run.11} parent=11 // pred_fallthru
        _
      // Predicated region
      $region33: #{run.11} parent=11 // pred_check
        %p314 = pneg %p195
      $region34: #{run.11} parent=11 // pred_check_branch
        %316 = sbr.rel (%p314) target = $region36
      $region35: #{run.11} parent=11 // pred_region
        _
      $region36: #{run.11} parent=11 // pred_fallthru
        _
      // Predicated region
      $region37: #{run.11} parent=11 // pred_check
        %p317 = pneg %p216
      $region38: #{run.11} parent=11 // pred_check_branch
        %319 = sbr.rel (%p317) target = $region40
      $region39: #{run.11} parent=11 // pred_region
        _
      $region40: #{run.11} parent=11 // pred_fallthru
        _
      // Predicated region
      $region41: #{run.11} parent=11 // pred_check
        %p320 = pneg %p237
      $region42: #{run.11} parent=11 // pred_check_branch
        %322 = sbr.rel (%p320) target = $region44
      $region43: #{run.11} parent=11 // pred_region
        _
      $region44: #{run.11} parent=11 // pred_fallthru
        _
      // Predicated region
      $region45: #{run.11} parent=11 // pred_check
        %p323 = pneg %p258
      $region46: #{run.11} parent=11 // pred_check_branch
        %325 = sbr.rel (%p323) target = $region48
      $region47: #{run.11} parent=11 // pred_region
        _
      $region48: #{run.11} parent=11 // pred_fallthru
        _
    $region12: #{run.11} parent=5 // pred_fallthru
      _
    %p326 = scmp.lt.s32.totalorder %s17, 2
    // Predicated region
    $region49: #{run.11} parent=5 // pred_check
      %p327 = pneg %p326
    $region50: #{run.11} parent=5 // pred_check_branch
      %329 = sbr.rel (%p327) target = $region52
    $region51: #{run.11} parent=5 // pred_region
      // Predicated region
      $region53: #{run.11} parent=51 // pred_check
        %p330 = pneg %p37
      $region54: #{run.11} parent=51 // pred_check_branch
        %332 = sbr.rel (%p330) target = $region56
      $region55: #{run.11} parent=51 // pred_region
        %p333 = scmp.lt.s32.totalorder %s17, 1
        %s334 = scalar_select %p333, %s17, 1
        %s335 = smul.addr %s334, 2
        %s336 = smul.addr %s335, 8
        %s337 = scalar_lea.vmem %s0, %s336
      $region56: #{run.11} parent=51 // pred_fallthru
        _
      // Predicated region
      $region57: #{run.11} parent=51 // pred_check
        %p338 = pneg %p63
      $region58: #{run.11} parent=51 // pred_check_branch
        %340 = sbr.rel (%p338) target = $region60
      $region59: #{run.11} parent=51 // pred_region
        %p341 = scmp.lt.s32.totalorder %s17, 1
        %s342 = scalar_select %p341, %s17, 1
        %s343 = smul.addr %s342, 24
        %s344 = smul.addr %s343, 8
        %s345 = scalar_lea.vmem %s1, %s344
      $region60: #{run.11} parent=51 // pred_fallthru
        _
    $region52: #{run.11} parent=5 // pred_fallthru
      _
    %p346 = scmp.le.s32.totalorder 1, %s17
    %p347 = scmp.lt.s32.totalorder %s17, 3
    %p348 = pnand %p346, %p347
    %p349 = pneg %p348
    // Predicated region
    $region61: #{run.11} parent=5 // pred_check
      _
    $region62: #{run.11} parent=5 // pred_check_branch
      %351 = sbr.rel (%p348) target = $region64
    $region63: #{run.11} parent=5 // pred_region
      %s352 = ssub.s32 %s17, 1
      %p353 = scmp.lt.s32.totalorder %s22, 1
      %s354 = scalar_select %p353, %s22, 1
      %s355 = smul.addr %s354, 2
      %s356 = smul.addr %s355, 8
      %s357 = scalar_lea.vmem %s0, %s356
      %p358 = pneg %p43
      %p359 = pneg %p40
      %p360 = scmp.lt.s32.totalorder %s22, 1
      %s361 = scalar_select %p360, %s22, 1
      %s362 = smul.addr %s361, 24
      %s363 = smul.addr %s362, 8
      %s364 = scalar_lea.vmem %s1, %s363
      %p365 = pneg %p69
      %p366 = pneg %p66
      %p367 = pneg %p90
      %p368 = pneg %p87
      %p369 = pneg %p111
      %p370 = pneg %p108
      %p371 = pneg %p132
      %p372 = pneg %p129
      %p373 = pneg %p153
      %p374 = pneg %p150
      %p375 = pneg %p174
      %p376 = pneg %p171
      %p377 = pneg %p195
      %p378 = pneg %p192
      %p379 = pneg %p216
      %p380 = pneg %p213
      %p381 = pneg %p237
      %p382 = pneg %p234
      %p383 = pneg %p258
      %p384 = pneg %p255
      %p385 = pneg %p284
      %p386 = pneg %p281
      %p387 = scmp.lt.s32.totalorder %s22, 1
      %s388 = scalar_select %p387, %s22, 1
      %s389 = smul.addr %s388, 2
      %s390 = smul.addr %s389, 8
      %s391 = scalar_lea.vmem %s11, %s390
      %p392 = scmp.lt.s32.totalorder %s22, 1
      %s393 = scalar_select %p392, %s22, 1
      %s394 = smul.addr %s393, 2
      %s395 = smul.addr %s394, 8
      %s396 = scalar_lea.vmem %s0, %s395
      %p397 = scmp.lt.s32.totalorder %s22, 1
      %s398 = scalar_select %p397, %s22, 1
      %s399 = smul.addr %s398, 24
      %s400 = smul.addr %s399, 8
      %s401 = scalar_lea.vmem %s1, %s400
      %p402 = scmp.lt.s32.totalorder %s22, 1
      %s403 = scalar_select %p402, %s22, 1
      %s404 = smul.addr %s403, 2
      %s405 = smul.addr %s404, 8
      %s406 = scalar_lea.vmem %s11, %s405
      %v407 = vld [vmem:[%s396] sm:$0xff]
      %v408 = vld [vmem:[%s396 + $0x8] sm:$0xff]
      %v409 = vld [vmem:[%s2] sm:$0xff]
      %v410 = vld [vmem:[%s2 + $0x8] sm:$0xff]
      %v411 = vld [vmem:[%s2 + $0x10] sm:$0xff]
      %v412 = vld [vmem:[%s2 + $0x18] sm:$0xff]
      %vm413 = vcmask 261120
      %v415 = vsel %vm413, %v407, 0
      %v418 = vsel %vm413, %v408, 0
      %420 = vmatpush.msra.mxu0 0.0
      %421 = vmatpush.msra.mxu0 0.0
      %422 = vmatpush.msra.mxu0 0.0
      %423 = vmatpush.msra.mxu0 0.0
      %424 = vmatpush.msra.mxu0 0.0
      %425 = vmatpush.msra.mxu0 0.0
      %426 = vmatpush.msra.mxu0 0.0
      %427 = vmatpush.msra.mxu0 0.0
      %428 = vmatpush.msra.mxu0 0.0
      %429 = vmatpush.msra.mxu0 0.0
      %430 = vmatpush.msra.mxu0 0.0
      %431 = vmatpush.msra.mxu0 0.0
      %432 = vmatpush.msra.mxu0 %v412
      %433 = vmatpush.msra.mxu0 %v411
      %434 = vmatpush.msra.mxu0 %v410
      %435 = vmatpush.msra.mxu0 %v409
      %436 = vmatmul.f32.gmra.mxu0 %v415
      %v437 = vpop.f32.mrf.mxu0
      %v438 = vadd.f32 0.0, %v437
      %439 = vmatmul.f32.gmra.mxu0 %v418
      %v440 = vpop.f32.mrf.mxu0
      %v441 = vadd.f32 0.0, %v440
      %442 = vdwg.mxu0
      %447 = vrot.lane.b32.xlu0 %v409, 96
      %v448 = vpop.permute.xlu0 %447
      %449 = vrot.lane.b32.xlu0 %v410, 96
      %v450 = vpop.permute.xlu0 %449
      %451 = vrot.lane.b32.xlu0 %v411, 96
      %v452 = vpop.permute.xlu0 %451
      %453 = vrot.lane.b32.xlu0 %v412, 96
      %v454 = vpop.permute.xlu0 %453
      %459 = vmatpush.msra.mxu0 0.0
      %460 = vmatpush.msra.mxu0 0.0
      %461 = vmatpush.msra.mxu0 0.0
      %462 = vmatpush.msra.mxu0 0.0
      %463 = vmatpush.msra.mxu0 0.0
      %464 = vmatpush.msra.mxu0 0.0
      %465 = vmatpush.msra.mxu0 0.0
      %466 = vmatpush.msra.mxu0 0.0
      %467 = vmatpush.msra.mxu0 0.0
      %468 = vmatpush.msra.mxu0 0.0
      %469 = vmatpush.msra.mxu0 0.0
      %470 = vmatpush.msra.mxu0 0.0
      %471 = vmatpush.msra.mxu0 %v454
      %472 = vmatpush.msra.mxu0 %v452
      %473 = vmatpush.msra.mxu0 %v450
      %474 = vmatpush.msra.mxu0 %v448
      %475 = vmatmul.f32.gmra.mxu0 %v415
      %v476 = vpop.f32.mrf.mxu0
      %v477 = vadd.f32 0.0, %v476
      %478 = vmatmul.f32.gmra.mxu0 %v418
      %v479 = vpop.f32.mrf.mxu0
      %v480 = vadd.f32 0.0, %v479
      %481 = vdwg.mxu0
      %v482 = vld [vmem:[%s401] sm:$0xff]
      %v483 = vld [vmem:[%s401 + $0x8] sm:$0xff]
      %s484 = scalar_lea.vmem %s401, 64
      %v485 = vld [vmem:[%s484] sm:$0xff]
      %v486 = vld [vmem:[%s484 + $0x8] sm:$0xff]
      %s487 = scalar_lea.vmem %s401, 128
      %v488 = vld [vmem:[%s487] sm:$0xff]
      %v489 = vld [vmem:[%s487 + $0x8] sm:$0xff]
      %vm490 = vcmask 64512
      %v492 = vsel %vm490, %v438, 0
      %v495 = vsel %vm490, %v441, 0
      %v498 = vsel %vm490, %v477, 0
      %v501 = vsel %vm490, %v480, 0
      %503 = vmatpush.xpose.msra.mxu0 0.0
      %504 = vmatpush.xpose.msra.mxu0 0.0
      %505 = vmatpush.xpose.msra.mxu0 0.0
      %506 = vmatpush.xpose.msra.mxu0 0.0
      %507 = vmatpush.xpose.msra.mxu0 0.0
      %508 = vmatpush.xpose.msra.mxu0 0.0
      %509 = vmatpush.xpose.msra.mxu0 0.0
      %510 = vmatpush.xpose.msra.mxu0 0.0
      %511 = vmatpush.xpose.msra.mxu0 0.0
      %512 = vmatpush.xpose.msra.mxu0 0.0
      %513 = vmatpush.xpose.msra.mxu0 0.0
      %514 = vmatpush.xpose.msra.mxu0 0.0
      %515 = vmatpush.xpose.msra.mxu0 0.0
      %516 = vmatpush.xpose.msra.mxu0 0.0
      %517 = vmatpush.xpose.msra.mxu0 %v501
      %518 = vmatpush.xpose.msra.mxu0 %v498
      %519 = vmatmul.f32.gmra.mxu0 %v492
      %v520 = vpop.f32.mrf.mxu0
      %v521 = vadd.f32 0.0, %v520
      %522 = vmatmul.f32.gmra.mxu0 %v495
      %v523 = vpop.f32.mrf.mxu0
      %v524 = vadd.f32 0.0, %v523
      %525 = vdwg.mxu0
      %v526 = vmul.f32 %v482, %v485
      %v527 = vmul.f32 %v483, %v486
      %v528 = vmul.f32 %v526, %v521
      %v529 = vmul.f32 %v527, %v524
      %v530 = vmul.f32 %v528, 0.35355338
      %v531 = vmul.f32 %v529, 0.35355338
      %vm532 = vcmask 130048
      %v533 = vsel %vm532, %v530, -inf
      %534 = vmax.xlane.f32.xlu0 %v533
      %v535 = vpop.xlane.xlu0 %534
      %v536 = vsel %vm532, %v531, -inf
      %537 = vmax.xlane.f32.xlu0 %v536
      %v538 = vpop.xlane.xlu0 %537
      %v539 = vsub.f32 %v530, %v535
      %v540 = vsub.f32 %v531, %v538
      %v541 = vmul.f32 %v539, 1.442695
      %v542 = vpow.pop %v541
      %v543 = vmul.f32 %v540, 1.442695
      %v544 = vpow.pop %v543
      %v545 = vsel %vm532, %v542, 0.0
      %546 = vadd.xlane.f32.xlu0 %v545
      %v547 = vpop.xlane.xlu0 %546
      %v548 = vsel %vm532, %v544, 0.0
      %549 = vadd.xlane.f32.xlu0 %v548
      %v550 = vpop.xlane.xlu0 %549
      %v551 = vrcp.pop %v547
      %v552 = vrcp.pop %v550
      %v553 = vmul.f32 %v542, %v551
      %v554 = vmul.f32 %v544, %v552
      %v555 = vmul.f32 %v553, %v488
      %v556 = vmul.f32 %v554, %v489
      %557 = vrot.lane.b32.xlu0 %v477, 96
      %v558 = vpop.permute.xlu0 %557
      %559 = vrot.lane.b32.xlu0 %v480, 96
      %v560 = vpop.permute.xlu0 %559
      %v564 = vsel %vm532, %v555, 0
      %v567 = vsel %vm532, %v556, 0
      %569 = vmatpush.msra.mxu0 0.0
      %570 = vmatpush.msra.mxu0 0.0
      %571 = vmatpush.msra.mxu0 0.0
      %572 = vmatpush.msra.mxu0 0.0
      %573 = vmatpush.msra.mxu0 0.0
      %574 = vmatpush.msra.mxu0 0.0
      %575 = vmatpush.msra.mxu0 0.0
      %576 = vmatpush.msra.mxu0 0.0
      %577 = vmatpush.msra.mxu0 0.0
      %578 = vmatpush.msra.mxu0 0.0
      %579 = vmatpush.msra.mxu0 0.0
      %580 = vmatpush.msra.mxu0 0.0
      %581 = vmatpush.msra.mxu0 0.0
      %582 = vmatpush.msra.mxu0 0.0
      %583 = vmatpush.msra.mxu0 %v560
      %584 = vmatpush.msra.mxu0 %v558
      %585 = vmatmul.f32.gmra.mxu0 %v564
      %v586 = vpop.f32.mrf.mxu0
      %v587 = vadd.f32 0.0, %v586
      %588 = vmatmul.f32.gmra.mxu0 %v567
      %v589 = vpop.f32.mrf.mxu0
      %v590 = vadd.f32 0.0, %v589
      %591 = vdwg.mxu0
      %s592 = scalar_lea.vmem %s401, 16
      %v593 = vld [vmem:[%s592] sm:$0xff]
      %v594 = vld [vmem:[%s592 + $0x8] sm:$0xff]
      %s595 = scalar_lea.vmem %s401, 80
      %v596 = vld [vmem:[%s595] sm:$0xff]
      %v597 = vld [vmem:[%s595 + $0x8] sm:$0xff]
      %s598 = scalar_lea.vmem %s401, 144
      %v599 = vld [vmem:[%s598] sm:$0xff]
      %v600 = vld [vmem:[%s598 + $0x8] sm:$0xff]
      %601 = vrot.lane.b32.xlu0 %v438, 120
      %v602 = vpop.permute.xlu0 %601
      %603 = vrot.lane.b32.xlu0 %v441, 120
      %v604 = vpop.permute.xlu0 %603
      %605 = vrot.lane.b32.xlu0 %v477, 120
      %v606 = vpop.permute.xlu0 %605
      %607 = vrot.lane.b32.xlu0 %v480, 120
      %v608 = vpop.permute.xlu0 %607
      %v609 = vsel %vm490, %v602, 0
      %v611 = vsel %vm490, %v604, 0
      %v613 = vsel %vm490, %v606, 0
      %v615 = vsel %vm490, %v608, 0
      %617 = vmatpush.xpose.msra.mxu0 0.0
      %618 = vmatpush.xpose.msra.mxu0 0.0
      %619 = vmatpush.xpose.msra.mxu0 0.0
      %620 = vmatpush.xpose.msra.mxu0 0.0
      %621 = vmatpush.xpose.msra.mxu0 0.0
      %622 = vmatpush.xpose.msra.mxu0 0.0
      %623 = vmatpush.xpose.msra.mxu0 0.0
      %624 = vmatpush.xpose.msra.mxu0 0.0
      %625 = vmatpush.xpose.msra.mxu0 0.0
      %626 = vmatpush.xpose.msra.mxu0 0.0
      %627 = vmatpush.xpose.msra.mxu0 0.0
      %628 = vmatpush.xpose.msra.mxu0 0.0
      %629 = vmatpush.xpose.msra.mxu0 0.0
      %630 = vmatpush.xpose.msra.mxu0 0.0
      %631 = vmatpush.xpose.msra.mxu0 %v615
      %632 = vmatpush.xpose.msra.mxu0 %v613
      %633 = vmatmul.f32.gmra.mxu0 %v609
      %v634 = vpop.f32.mrf.mxu0
      %v635 = vadd.f32 0.0, %v634
      %636 = vmatmul.f32.gmra.mxu0 %v611
      %v637 = vpop.f32.mrf.mxu0
      %v638 = vadd.f32 0.0, %v637
      %639 = vdwg.mxu0
      %v640 = vmul.f32 %v593, %v596
      %v641 = vmul.f32 %v594, %v597
      %v642 = vmul.f32 %v640, %v635
      %v643 = vmul.f32 %v641, %v638
      %v644 = vmul.f32 %v642, 0.35355338
      %v645 = vmul.f32 %v643, 0.35355338
      %v646 = vsel %vm532, %v644, -inf
      %647 = vmax.xlane.f32.xlu0 %v646
      %v648 = vpop.xlane.xlu0 %647
      %v649 = vsel %vm532, %v645, -inf
      %650 = vmax.xlane.f32.xlu0 %v649
      %v651 = vpop.xlane.xlu0 %650
      %v652 = vsub.f32 %v644, %v648
      %v653 = vsub.f32 %v645, %v651
      %v654 = vmul.f32 %v652, 1.442695
      %v655 = vpow.pop %v654
      %v656 = vmul.f32 %v653, 1.442695
      %v657 = vpow.pop %v656
      %v658 = vsel %vm532, %v655, 0.0
      %659 = vadd.xlane.f32.xlu0 %v658
      %v660 = vpop.xlane.xlu0 %659
      %v661 = vsel %vm532, %v657, 0.0
      %662 = vadd.xlane.f32.xlu0 %v661
      %v663 = vpop.xlane.xlu0 %662
      %v664 = vrcp.pop %v660
      %v665 = vrcp.pop %v663
      %v666 = vmul.f32 %v655, %v664
      %v667 = vmul.f32 %v657, %v665
      %v668 = vmul.f32 %v666, %v599
      %v669 = vmul.f32 %v667, %v600
      %670 = vrot.lane.b32.xlu0 %v477, 88
      %v671 = vpop.permute.xlu0 %670
      %672 = vrot.lane.b32.xlu0 %v480, 88
      %v673 = vpop.permute.xlu0 %672
      %v677 = vsel %vm532, %v668, 0
      %v680 = vsel %vm532, %v669, 0
      %682 = vmatpush.msra.mxu0 0.0
      %683 = vmatpush.msra.mxu0 0.0
      %684 = vmatpush.msra.mxu0 0.0
      %685 = vmatpush.msra.mxu0 0.0
      %686 = vmatpush.msra.mxu0 0.0
      %687 = vmatpush.msra.mxu0 0.0
      %688 = vmatpush.msra.mxu0 0.0
      %689 = vmatpush.msra.mxu0 0.0
      %690 = vmatpush.msra.mxu0 0.0
      %691 = vmatpush.msra.mxu0 0.0
      %692 = vmatpush.msra.mxu0 0.0
      %693 = vmatpush.msra.mxu0 0.0
      %694 = vmatpush.msra.mxu0 0.0
      %695 = vmatpush.msra.mxu0 0.0
      %696 = vmatpush.msra.mxu0 %v673
      %697 = vmatpush.msra.mxu0 %v671
      %698 = vmatmul.f32.gmra.mxu0 %v677
      %v699 = vpop.f32.mrf.mxu0
      %v700 = vadd.f32 0.0, %v699
      %701 = vmatmul.f32.gmra.mxu0 %v680
      %v702 = vpop.f32.mrf.mxu0
      %v703 = vadd.f32 0.0, %v702
      %704 = vdwg.mxu0
      %s705 = scalar_lea.vmem %s401, 32
      %v706 = vld [vmem:[%s705] sm:$0xff]
      %v707 = vld [vmem:[%s705 + $0x8] sm:$0xff]
      %s708 = scalar_lea.vmem %s401, 96
      %v709 = vld [vmem:[%s708] sm:$0xff]
      %v710 = vld [vmem:[%s708 + $0x8] sm:$0xff]
      %s711 = scalar_lea.vmem %s401, 160
      %v712 = vld [vmem:[%s711] sm:$0xff]
      %v713 = vld [vmem:[%s711 + $0x8] sm:$0xff]
      %714 = vrot.lane.b32.xlu0 %v438, 112
      %v715 = vpop.permute.xlu0 %714
      %716 = vrot.lane.b32.xlu0 %v441, 112
      %v717 = vpop.permute.xlu0 %716
      %718 = vrot.lane.b32.xlu0 %v477, 112
      %v719 = vpop.permute.xlu0 %718
      %720 = vrot.lane.b32.xlu0 %v480, 112
      %v721 = vpop.permute.xlu0 %720
      %v722 = vsel %vm490, %v715, 0
      %v724 = vsel %vm490, %v717, 0
      %v726 = vsel %vm490, %v719, 0
      %v728 = vsel %vm490, %v721, 0
      %730 = vmatpush.xpose.msra.mxu0 0.0
      %731 = vmatpush.xpose.msra.mxu0 0.0
      %732 = vmatpush.xpose.msra.mxu0 0.0
      %733 = vmatpush.xpose.msra.mxu0 0.0
      %734 = vmatpush.xpose.msra.mxu0 0.0
      %735 = vmatpush.xpose.msra.mxu0 0.0
      %736 = vmatpush.xpose.msra.mxu0 0.0
      %737 = vmatpush.xpose.msra.mxu0 0.0
      %738 = vmatpush.xpose.msra.mxu0 0.0
      %739 = vmatpush.xpose.msra.mxu0 0.0
      %740 = vmatpush.xpose.msra.mxu0 0.0
      %741 = vmatpush.xpose.msra.mxu0 0.0
      %742 = vmatpush.xpose.msra.mxu0 0.0
      %743 = vmatpush.xpose.msra.mxu0 0.0
      %744 = vmatpush.xpose.msra.mxu0 %v728
      %745 = vmatpush.xpose.msra.mxu0 %v726
      %746 = vmatmul.f32.gmra.mxu0 %v722
      %v747 = vpop.f32.mrf.mxu0
      %v748 = vadd.f32 0.0, %v747
      %749 = vmatmul.f32.gmra.mxu0 %v724
      %v750 = vpop.f32.mrf.mxu0
      %v751 = vadd.f32 0.0, %v750
      %752 = vdwg.mxu0
      %v753 = vmul.f32 %v706, %v709
      %v754 = vmul.f32 %v707, %v710
      %v755 = vmul.f32 %v753, %v748
      %v756 = vmul.f32 %v754, %v751
      %v757 = vmul.f32 %v755, 0.35355338
      %v758 = vmul.f32 %v756, 0.35355338
      %v759 = vsel %vm532, %v757, -inf
      %760 = vmax.xlane.f32.xlu0 %v759
      %v761 = vpop.xlane.xlu0 %760
      %v762 = vsel %vm532, %v758, -inf
      %763 = vmax.xlane.f32.xlu0 %v762
      %v764 = vpop.xlane.xlu0 %763
      %v765 = vsub.f32 %v757, %v761
      %v766 = vsub.f32 %v758, %v764
      %v767 = vmul.f32 %v765, 1.442695
      %v768 = vpow.pop %v767
      %v769 = vmul.f32 %v766, 1.442695
      %v770 = vpow.pop %v769
      %v771 = vsel %vm532, %v768, 0.0
      %772 = vadd.xlane.f32.xlu0 %v771
      %v773 = vpop.xlane.xlu0 %772
      %v774 = vsel %vm532, %v770, 0.0
      %775 = vadd.xlane.f32.xlu0 %v774
      %v776 = vpop.xlane.xlu0 %775
      %v777 = vrcp.pop %v773
      %v778 = vrcp.pop %v776
      %v779 = vmul.f32 %v768, %v777
      %v780 = vmul.f32 %v770, %v778
      %v781 = vmul.f32 %v779, %v712
      %v782 = vmul.f32 %v780, %v713
      %783 = vrot.lane.b32.xlu0 %v477, 80
      %v784 = vpop.permute.xlu0 %783
      %785 = vrot.lane.b32.xlu0 %v480, 80
      %v786 = vpop.permute.xlu0 %785
      %v790 = vsel %vm532, %v781, 0
      %v793 = vsel %vm532, %v782, 0
      %795 = vmatpush.msra.mxu0 0.0
      %796 = vmatpush.msra.mxu0 0.0
      %797 = vmatpush.msra.mxu0 0.0
      %798 = vmatpush.msra.mxu0 0.0
      %799 = vmatpush.msra.mxu0 0.0
      %800 = vmatpush.msra.mxu0 0.0
      %801 = vmatpush.msra.mxu0 0.0
      %802 = vmatpush.msra.mxu0 0.0
      %803 = vmatpush.msra.mxu0 0.0
      %804 = vmatpush.msra.mxu0 0.0
      %805 = vmatpush.msra.mxu0 0.0
      %806 = vmatpush.msra.mxu0 0.0
      %807 = vmatpush.msra.mxu0 0.0
      %808 = vmatpush.msra.mxu0 0.0
      %809 = vmatpush.msra.mxu0 %v786
      %810 = vmatpush.msra.mxu0 %v784
      %811 = vmatmul.f32.gmra.mxu0 %v790
      %v812 = vpop.f32.mrf.mxu0
      %v813 = vadd.f32 0.0, %v812
      %814 = vmatmul.f32.gmra.mxu0 %v793
      %v815 = vpop.f32.mrf.mxu0
      %v816 = vadd.f32 0.0, %v815
      %817 = vdwg.mxu0
      %s818 = scalar_lea.vmem %s401, 48
      %v819 = vld [vmem:[%s818] sm:$0xff]
      %v820 = vld [vmem:[%s818 + $0x8] sm:$0xff]
      %s821 = scalar_lea.vmem %s401, 112
      %v822 = vld [vmem:[%s821] sm:$0xff]
      %v823 = vld [vmem:[%s821 + $0x8] sm:$0xff]
      %s824 = scalar_lea.vmem %s401, 176
      %v825 = vld [vmem:[%s824] sm:$0xff]
      %v826 = vld [vmem:[%s824 + $0x8] sm:$0xff]
      %827 = vrot.lane.b32.xlu0 %v438, 104
      %v828 = vpop.permute.xlu0 %827
      %829 = vrot.lane.b32.xlu0 %v441, 104
      %v830 = vpop.permute.xlu0 %829
      %831 = vrot.lane.b32.xlu0 %v477, 104
      %v832 = vpop.permute.xlu0 %831
      %833 = vrot.lane.b32.xlu0 %v480, 104
      %v834 = vpop.permute.xlu0 %833
      %v835 = vsel %vm490, %v828, 0
      %v837 = vsel %vm490, %v830, 0
      %v839 = vsel %vm490, %v832, 0
      %v841 = vsel %vm490, %v834, 0
      %843 = vmatpush.xpose.msra.mxu0 0.0
      %844 = vmatpush.xpose.msra.mxu0 0.0
      %845 = vmatpush.xpose.msra.mxu0 0.0
      %846 = vmatpush.xpose.msra.mxu0 0.0
      %847 = vmatpush.xpose.msra.mxu0 0.0
      %848 = vmatpush.xpose.msra.mxu0 0.0
      %849 = vmatpush.xpose.msra.mxu0 0.0
      %850 = vmatpush.xpose.msra.mxu0 0.0
      %851 = vmatpush.xpose.msra.mxu0 0.0
      %852 = vmatpush.xpose.msra.mxu0 0.0
      %853 = vmatpush.xpose.msra.mxu0 0.0
      %854 = vmatpush.xpose.msra.mxu0 0.0
      %855 = vmatpush.xpose.msra.mxu0 0.0
      %856 = vmatpush.xpose.msra.mxu0 0.0
      %857 = vmatpush.xpose.msra.mxu0 %v841
      %858 = vmatpush.xpose.msra.mxu0 %v839
      %859 = vmatmul.f32.gmra.mxu0 %v835
      %v860 = vpop.f32.mrf.mxu0
      %v861 = vadd.f32 0.0, %v860
      %862 = vmatmul.f32.gmra.mxu0 %v837
      %v863 = vpop.f32.mrf.mxu0
      %v864 = vadd.f32 0.0, %v863
      %865 = vdwg.mxu0
      %v866 = vmul.f32 %v819, %v822
      %v867 = vmul.f32 %v820, %v823
      %v868 = vmul.f32 %v866, %v861
      %v869 = vmul.f32 %v867, %v864
      %v870 = vmul.f32 %v868, 0.35355338
      %v871 = vmul.f32 %v869, 0.35355338
      %v872 = vsel %vm532, %v870, -inf
      %873 = vmax.xlane.f32.xlu0 %v872
      %v874 = vpop.xlane.xlu0 %873
      %v875 = vsel %vm532, %v871, -inf
      %876 = vmax.xlane.f32.xlu0 %v875
      %v877 = vpop.xlane.xlu0 %876
      %v878 = vsub.f32 %v870, %v874
      %v879 = vsub.f32 %v871, %v877
      %v880 = vmul.f32 %v878, 1.442695
      %v881 = vpow.pop %v880
      %v882 = vmul.f32 %v879, 1.442695
      %v883 = vpow.pop %v882
      %v884 = vsel %vm532, %v881, 0.0
      %885 = vadd.xlane.f32.xlu0 %v884
      %v886 = vpop.xlane.xlu0 %885
      %v887 = vsel %vm532, %v883, 0.0
      %888 = vadd.xlane.f32.xlu0 %v887
      %v889 = vpop.xlane.xlu0 %888
      %v890 = vrcp.pop %v886
      %v891 = vrcp.pop %v889
      %v892 = vmul.f32 %v881, %v890
      %v893 = vmul.f32 %v883, %v891
      %v894 = vmul.f32 %v892, %v825
      %v895 = vmul.f32 %v893, %v826
      %896 = vrot.lane.b32.xlu0 %v477, 72
      %v897 = vpop.permute.xlu0 %896
      %898 = vrot.lane.b32.xlu0 %v480, 72
      %v899 = vpop.permute.xlu0 %898
      %v903 = vsel %vm532, %v894, 0
      %v906 = vsel %vm532, %v895, 0
      %908 = vmatpush.msra.mxu0 0.0
      %909 = vmatpush.msra.mxu0 0.0
      %910 = vmatpush.msra.mxu0 0.0
      %911 = vmatpush.msra.mxu0 0.0
      %912 = vmatpush.msra.mxu0 0.0
      %913 = vmatpush.msra.mxu0 0.0
      %914 = vmatpush.msra.mxu0 0.0
      %915 = vmatpush.msra.mxu0 0.0
      %916 = vmatpush.msra.mxu0 0.0
      %917 = vmatpush.msra.mxu0 0.0
      %918 = vmatpush.msra.mxu0 0.0
      %919 = vmatpush.msra.mxu0 0.0
      %920 = vmatpush.msra.mxu0 0.0
      %921 = vmatpush.msra.mxu0 0.0
      %922 = vmatpush.msra.mxu0 %v899
      %923 = vmatpush.msra.mxu0 %v897
      %924 = vmatmul.f32.gmra.mxu0 %v903
      %v925 = vpop.f32.mrf.mxu0
      %v926 = vadd.f32 0.0, %v925
      %927 = vmatmul.f32.gmra.mxu0 %v906
      %v928 = vpop.f32.mrf.mxu0
      %v929 = vadd.f32 0.0, %v928
      %930 = vdwg.mxu0
      %933 = vrot.lane.b32.xlu0 %v700, 8
      %v934 = vpop.permute.xlu0 %933
      %935 = vrot.lane.b32.xlu0 %v703, 8
      %v936 = vpop.permute.xlu0 %935
      %941 = vrot.lane.b32.xlu0 %v813, 16
      %v942 = vpop.permute.xlu0 %941
      %943 = vrot.lane.b32.xlu0 %v816, 16
      %v944 = vpop.permute.xlu0 %943
      %949 = vrot.lane.b32.xlu0 %v926, 24
      %v950 = vpop.permute.xlu0 %949
      %951 = vrot.lane.b32.xlu0 %v929, 24
      %v952 = vpop.permute.xlu0 %951
      %v955 = vsel %vm490, %v587, %v934
      %v956 = vsel %vm490, %v590, %v936
      %v957 = vsel %vm532, %v955, %v942
      %v958 = vsel %vm532, %v956, %v944
      %vm959 = vcmask 195584
      %v960 = vsel %vm959, %v957, %v950
      %v961 = vsel %vm959, %v958, %v952
      %v962 = vadd.f32 %v407, %v960
      %v963 = vadd.f32 %v408, %v961
      %v964 = vld [vmem:[%s3] sm:$0x1]
      %v965 = vld [vmem:[%s4] sm:$0x1]
      %v966 = vsel %vm413, %v962, 0.0
      %967 = vadd.xlane.f32.xlu0 %v966
      %v968 = vpop.xlane.xlu0 %967
      %v969 = vsel %vm413, %v963, 0.0
      %970 = vadd.xlane.f32.xlu0 %v969
      %v971 = vpop.xlane.xlu0 %970
      %v972 = vrcp.pop 32.0
      %v973 = vmul.f32 32.0, %v972
      %v974 = vsub.f32 1.0, %v973
      %v975 = vmul.f32 %v972, %v974
      %v976 = vadd.f32 %v972, %v975
      %vm977 = vweird.f32 %v972
      %v978 = vsel %vm977, %v972, %v976
      %v979 = vmul.f32 %v968, %v978
      %v980 = vmul.f32 %v971, %v978
      %v981 = vsub.f32 %v962, %v979
      %v982 = vsub.f32 %v963, %v980
      %v983 = vmul.f32 %v981, %v981
      %v984 = vmul.f32 %v982, %v982
      %v985 = vsel %vm413, %v983, 0.0
      %986 = vadd.xlane.f32.xlu0 %v985
      %v987 = vpop.xlane.xlu0 %986
      %v988 = vsel %vm413, %v984, 0.0
      %989 = vadd.xlane.f32.xlu0 %v988
      %v990 = vpop.xlane.xlu0 %989
      %v991 = vmul.f32 %v987, %v978
      %v992 = vmul.f32 %v990, %v978
      %v993 = vadd.f32 %v991, 1e-05
      %v994 = vadd.f32 %v992, 1e-05
      %v995 = vrsqrt.pop %v993
      %v996 = vmul.f32 %v995, %v993
      %v997 = vmul.f32 %v996, %v995
      %v998 = vmul.f32 0.5, %v997
      %v999 = vsub.f32 1.5, %v998
      %v1000 = vmul.f32 %v995, %v999
      %vm1001 = vweird.f32 %v993
      %vm1002 = vweird.f32 %v995
      %vm1003 = vmor %vm1001, %vm1002
      %v1004 = vsel %vm1003, %v995, %v1000
      %v1005 = vrsqrt.pop %v994
      %v1006 = vmul.f32 %v1005, %v994
      %v1007 = vmul.f32 %v1006, %v1005
      %v1008 = vmul.f32 0.5, %v1007
      %v1009 = vsub.f32 1.5, %v1008
      %v1010 = vmul.f32 %v1005, %v1009
      %vm1011 = vweird.f32 %v994
      %vm1012 = vweird.f32 %v1005
      %vm1013 = vmor %vm1011, %vm1012
      %v1014 = vsel %vm1013, %v1005, %v1010
      %v1015 = vmul.f32 %v981, %v1004
      %v1016 = vmul.f32 %v982, %v1014
      %v1018 = vperm.slane %v964, 0
      %v1020 = vmul.f32 %v1015, %v1018
      %v1021 = vmul.f32 %v1016, %v1018
      %v1023 = vperm.slane %v965, 0
      %v1025 = vadd.f32 %v1020, %v1023
      %v1026 = vadd.f32 %v1021, %v1023
      %v1027 = vld [vmem:[%s5] sm:$0xff]
      %v1028 = vld [vmem:[%s5 + $0x8] sm:$0xff]
      %v1029 = vld [vmem:[%s5 + $0x10] sm:$0xff]
      %v1030 = vld [vmem:[%s5 + $0x18] sm:$0xff]
      %v1031 = vld [vmem:[%s6] sm:$0x1]
      %v1033 = vperm.slane %v1031, 0
      %v1036 = vsel %vm413, %v1025, 0
      %v1039 = vsel %vm413, %v1026, 0
      %1041 = vmatpush.msra.mxu0 0.0
      %1042 = vmatpush.msra.mxu0 0.0
      %1043 = vmatpush.msra.mxu0 0.0
      %1044 = vmatpush.msra.mxu0 0.0
      %1045 = vmatpush.msra.mxu0 0.0
      %1046 = vmatpush.msra.mxu0 0.0
      %1047 = vmatpush.msra.mxu0 0.0
      %1048 = vmatpush.msra.mxu0 0.0
      %1049 = vmatpush.msra.mxu0 0.0
      %1050 = vmatpush.msra.mxu0 0.0
      %1051 = vmatpush.msra.mxu0 0.0
      %1052 = vmatpush.msra.mxu0 0.0
      %1053 = vmatpush.msra.mxu0 %v1030
      %1054 = vmatpush.msra.mxu0 %v1029
      %1055 = vmatpush.msra.mxu0 %v1028
      %1056 = vmatpush.msra.mxu0 %v1027
      %1057 = vmatmul.f32.gmra.mxu0 %v1036
      %v1058 = vpop.f32.mrf.mxu0
      %v1059 = vadd.f32 %v1033, %v1058
      %1060 = vmatmul.f32.gmra.mxu0 %v1039
      %v1061 = vpop.f32.mrf.mxu0
      %v1062 = vadd.f32 %v1033, %v1061
      %1063 = vdwg.mxu0
      %v1064 = vmax.f32 %v1059, 0.0
      %v1065 = vmax.f32 %v1062, 0.0
      %v1066 = vld [vmem:[%s7] sm:$0xff]
      %v1067 = vld [vmem:[%s7 + $0x8] sm:$0xff]
      %v1068 = vld [vmem:[%s7 + $0x10] sm:$0xff]
      %v1069 = vld [vmem:[%s7 + $0x18] sm:$0xff]
      %v1070 = vld [vmem:[%s7 + $0x20] sm:$0xff]
      %v1071 = vld [vmem:[%s7 + $0x28] sm:$0xff]
      %v1072 = vld [vmem:[%s7 + $0x30] sm:$0xff]
      %v1073 = vld [vmem:[%s7 + $0x38] sm:$0xff]
      %v1074 = vld [vmem:[%s8] sm:$0x1]
      %v1076 = vperm.slane %v1074, 0
      %vm1078 = vcmask 523264
      %v1080 = vsel %vm1078, %v1064, 0
      %v1083 = vsel %vm1078, %v1065, 0
      %1085 = vmatpush.msra.mxu0 0.0
      %1086 = vmatpush.msra.mxu0 0.0
      %1087 = vmatpush.msra.mxu0 0.0
      %1088 = vmatpush.msra.mxu0 0.0
      %1089 = vmatpush.msra.mxu0 0.0
      %1090 = vmatpush.msra.mxu0 0.0
      %1091 = vmatpush.msra.mxu0 0.0
      %1092 = vmatpush.msra.mxu0 0.0
      %1093 = vmatpush.msra.mxu0 %v1073
      %1094 = vmatpush.msra.mxu0 %v1072
      %1095 = vmatpush.msra.mxu0 %v1071
      %1096 = vmatpush.msra.mxu0 %v1070
      %1097 = vmatpush.msra.mxu0 %v1069
      %1098 = vmatpush.msra.mxu0 %v1068
      %1099 = vmatpush.msra.mxu0 %v1067
      %1100 = vmatpush.msra.mxu0 %v1066
      %1101 = vmatmul.f32.gmra.mxu0 %v1080
      %v1102 = vpop.f32.mrf.mxu0
      %v1103 = vadd.f32 %v1076, %v1102
      %1104 = vmatmul.f32.gmra.mxu0 %v1083
      %v1105 = vpop.f32.mrf.mxu0
      %v1106 = vadd.f32 %v1076, %v1105
      %1107 = vdwg.mxu0
      %v1108 = vadd.f32 %v1025, %v1103
      %v1109 = vadd.f32 %v1026, %v1106
      %v1110 = vld [vmem:[%s9] sm:$0x1]
      %v1111 = vld [vmem:[%s10] sm:$0x1]
      %v1112 = vsel %vm413, %v1108, 0.0
      %1113 = vadd.xlane.f32.xlu0 %v1112
      %v1114 = vpop.xlane.xlu0 %1113
      %v1115 = vsel %vm413, %v1109, 0.0
      %1116 = vadd.xlane.f32.xlu0 %v1115
      %v1117 = vpop.xlane.xlu0 %1116
      %v1118 = vmul.f32 %v1114, %v978
      %v1119 = vmul.f32 %v1117, %v978
      %v1120 = vsub.f32 %v1108, %v1118
      %v1121 = vsub.f32 %v1109, %v1119
      %v1122 = vmul.f32 %v1120, %v1120
      %v1123 = vmul.f32 %v1121, %v1121
      %v1124 = vsel %vm413, %v1122, 0.0
      %1125 = vadd.xlane.f32.xlu0 %v1124
      %v1126 = vpop.xlane.xlu0 %1125
      %v1127 = vsel %vm413, %v1123, 0.0
      %1128 = vadd.xlane.f32.xlu0 %v1127
      %v1129 = vpop.xlane.xlu0 %1128
      %v1130 = vmul.f32 %v1126, %v978
      %v1131 = vmul.f32 %v1129, %v978
      %v1132 = vadd.f32 %v1130, 1e-05
      %v1133 = vadd.f32 %v1131, 1e-05
      %v1134 = vrsqrt.pop %v1132
      %v1135 = vmul.f32 %v1134, %v1132
      %v1136 = vmul.f32 %v1135, %v1134
      %v1137 = vmul.f32 0.5, %v1136
      %v1138 = vsub.f32 1.5, %v1137
      %v1139 = vmul.f32 %v1134, %v1138
      %vm1140 = vweird.f32 %v1132
      %vm1141 = vweird.f32 %v1134
      %vm1142 = vmor %vm1140, %vm1141
      %v1143 = vsel %vm1142, %v1134, %v1139
      %v1144 = vrsqrt.pop %v1133
      %v1145 = vmul.f32 %v1144, %v1133
      %v1146 = vmul.f32 %v1145, %v1144
      %v1147 = vmul.f32 0.5, %v1146
      %v1148 = vsub.f32 1.5, %v1147
      %v1149 = vmul.f32 %v1144, %v1148
      %vm1150 = vweird.f32 %v1133
      %vm1151 = vweird.f32 %v1144
      %vm1152 = vmor %vm1150, %vm1151
      %v1153 = vsel %vm1152, %v1144, %v1149
      %v1154 = vmul.f32 %v1120, %v1143
      %v1155 = vmul.f32 %v1121, %v1153
      %v1157 = vperm.slane %v1110, 0
      %v1159 = vmul.f32 %v1154, %v1157
      %v1160 = vmul.f32 %v1155, %v1157
      %v1162 = vperm.slane %v1111, 0
      %v1164 = vadd.f32 %v1159, %v1162
      %v1165 = vadd.f32 %v1160, %v1162
      %1166 = vst.msk [vmem:[%s406] sm:$0xff] %vm413, %v1164
      %1167 = vst.msk [vmem:[%s406 + $0x8] sm:$0xff] %vm413, %v1165
      %p1168 = scmp.lt.s32.totalorder %s22, 1
      %s1169 = scalar_select %p1168, %s22, 1
      %s1170 = smul.addr %s1169, 2
      %s1171 = smul.addr %s1170, 8
      %s1172 = scalar_lea.vmem %s11, %s1171
      // Predicated region
      $region65: #{run.11} parent=63 // pred_check
        %p1173 = pneg %p281
      $region66: #{run.11} parent=63 // pred_check_branch
        %1175 = sbr.rel (%p1173) target = $region68
      $region67: #{run.11} parent=63 // pred_region
        _
      $region68: #{run.11} parent=63 // pred_fallthru
        _
    $region64: #{run.11} parent=5 // pred_fallthru
      _
    %p1176 = scmp.le.s32.totalorder 2, %s17
    // Predicated region
    $region69: #{run.11} parent=5 // pred_check
      %p1177 = pneg %p1176
    $region70: #{run.11} parent=5 // pred_check_branch
      %1179 = sbr.rel (%p1177) target = $region72
    $region71: #{run.11} parent=5 // pred_region
      %s1180 = ssub.s32 %s17, 2
      // Predicated region
      $region73: #{run.11} parent=71 // pred_check
        %p1181 = pneg %p287
      $region74: #{run.11} parent=71 // pred_check_branch
        %1183 = sbr.rel (%p1181) target = $region76
      $region75: #{run.11} parent=71 // pred_region
        %p1184 = scmp.lt.s32.totalorder %s23, 1
        %s1185 = scalar_select %p1184, %s23, 1
        %s1186 = smul.addr %s1185, 2
        %s1187 = smul.addr %s1186, 8
        %s1188 = scalar_lea.vmem %s11, %s1187
      $region76: #{run.11} parent=71 // pred_fallthru
        _
    $region72: #{run.11} parent=5 // pred_fallthru
      _
  $region6: #{run.11} parent=0 // loop_footer
    %s21 = sadd.s32 1, %s17
  $region7: #{run.11} parent=0 // loop_footer_branch
    %16 = sbr.rel target = $region3
  $region8: #{run.11} parent=0 // loop_exit
    _

// kernel: run.9
$region0: #{run.9}
  #allocation0 [shape = 'u32[]', space=smem, size = 0x4, offset = 0x4, fixed_abs, tag = 'smem constant byte address 0x4 - core index']
  #allocation1 [shape = 'u32[72,128]{1,0:T(1,128)}', space=vmem, size = 0x9000, scoped, tag = 'internal scratch']
  %s0 = inlined_call_operand.vmem [shape: f32[24,4], index: 0, kind: input, shape index: {}]
  %s1 = inlined_call_operand.vmem [shape: f32[4,32], index: 1, kind: input, shape index: {}]
  %s2 = inlined_call_operand.vmem [shape: f32[1,32], index: 2, kind: input, shape index: {}]
  %s3 = inlined_call_operand.vmem [shape: f32[24,32], index: 3, kind: output, shape index: {}]
  %s4 = sld [smem:[#allocation0]]
  $region22: #{run.9} parent=0
    _
  %s6 = ssub.s32 1, %s4
  %s7 = scalar_select 0, %s6, %s4
  // Predicated region
  $region2: #{run.9} parent=0 // pred_check
    _
  $region3: #{run.9} parent=0 // pred_check_branch
    %9 = sbr.rel (0) target = $region5
  $region4: #{run.9} parent=0 // pred_region
    _
  $region5: #{run.9} parent=0 // pred_fallthru
    _
  // Predicated region
  $region6: #{run.9} parent=0 // pred_check
    _
  $region7: #{run.9} parent=0 // pred_check_branch
    %11 = sbr.rel (0) target = $region9
  $region8: #{run.9} parent=0 // pred_region
    _
  $region9: #{run.9} parent=0 // pred_fallthru
    _
  // Predicated region
  $region10: #{run.9} parent=0 // pred_check
    _
  $region11: #{run.9} parent=0 // pred_check_branch
    %13 = sbr.rel (0) target = $region13
  $region12: #{run.9} parent=0 // pred_region
    _
  $region13: #{run.9} parent=0 // pred_fallthru
    _
  %v14 = vld [vmem:[%s0] sm:$0xff]
  %v15 = vld [vmem:[%s0 + $0x8] sm:$0xff]
  %v16 = vld [vmem:[%s0 + $0x10] sm:$0xff]
  %v17 = vld [vmem:[%s1] sm:$0xf]
  %v18 = vld [vmem:[%s2] sm:$0x1]
  %v20 = vperm.slane %v18, 0
  %vm22 = vcmask 31744
  %v24 = vsel %vm22, %v14, 0
  %v27 = vsel %vm22, %v15, 0
  %v30 = vsel %vm22, %v16, 0
  %vm32 = vcmask 1043456
  %v34 = vsel %vm32, %v17, 0
  %36 = vmatpush.msra.mxu0 0.0
  %37 = vmatpush.msra.mxu0 0.0
  %38 = vmatpush.msra.mxu0 0.0
  %39 = vmatpush.msra.mxu0 0.0
  %40 = vmatpush.msra.mxu0 0.0
  %41 = vmatpush.msra.mxu0 0.0
  %42 = vmatpush.msra.mxu0 0.0
  %43 = vmatpush.msra.mxu0 0.0
  %44 = vmatpush.msra.mxu0 0.0
  %45 = vmatpush.msra.mxu0 0.0
  %46 = vmatpush.msra.mxu0 0.0
  %47 = vmatpush.msra.mxu0 0.0
  %48 = vmatpush.msra.mxu0 0.0
  %49 = vmatpush.msra.mxu0 0.0
  %50 = vmatpush.msra.mxu0 0.0
  %51 = vmatpush.msra.mxu0 %v34
  %52 = vmatmul.f32.gmra.mxu0 %v24
  %v53 = vpop.f32.mrf.mxu0
  %v54 = vadd.f32 %v20, %v53
  %55 = vmatmul.f32.gmra.mxu0 %v27
  %v56 = vpop.f32.mrf.mxu0
  %v57 = vadd.f32 %v20, %v56
  %58 = vmatmul.f32.gmra.mxu0 %v30
  %v59 = vpop.f32.mrf.mxu0
  %v60 = vadd.f32 %v20, %v59
  %61 = vdwg.mxu0
  %vm62 = vcmask 261120
  %63 = vst.msk [vmem:[%s3] sm:$0xff] %vm62, %v54
  %64 = vst.msk [vmem:[%s3 + $0x8] sm:$0xff] %vm62, %v57
  %65 = vst.msk [vmem:[%s3 + $0x10] sm:$0xff] %vm62, %v60
  // Predicated region
  $region14: #{run.9} parent=0 // pred_check
    _
  $region15: #{run.9} parent=0 // pred_check_branch
    %67 = sbr.rel (0) target = $region17
  $region16: #{run.9} parent=0 // pred_region
    _
  $region17: #{run.9} parent=0 // pred_fallthru
    _
  // Predicated region
  $region18: #{run.9} parent=0 // pred_check
    _
  $region19: #{run.9} parent=0 // pred_check_branch
    %69 = sbr.rel (0) target = $region21
  $region20: #{run.9} parent=0 // pred_region
    _
  $region21: #{run.9} parent=0 // pred_fallthru
    _

// kernel: run.12
$region0: #{run.12}
  #allocation0 [shape = 'u32[]', space=smem, size = 0x4, offset = 0x4, fixed_abs, tag = 'smem constant byte address 0x4 - core index']
  #allocation1 [shape = 'u32[72,128]{1,0:T(1,128)}', space=vmem, size = 0x9000, scoped, tag = 'internal scratch']
  %s0 = inlined_call_operand.vmem [shape: f32[2,144,4], index: 0, kind: input, shape index: {}]
  %s1 = inlined_call_operand.vmem [shape: f32[4,96], index: 1, kind: input, shape index: {}]
  %s2 = inlined_call_operand.vmem [shape: f32[1,96], index: 2, kind: input, shape index: {}]
  %s3 = inlined_call_operand.vmem [shape: f32[96,96], index: 3, kind: input, shape index: {}]
  %s4 = inlined_call_operand.vmem [shape: f32[1,96], index: 4, kind: input, shape index: {}]
  %s5 = inlined_call_operand.vmem [shape: f32[96,12], index: 5, kind: input, shape index: {}]
  %s6 = inlined_call_operand.vmem [shape: f32[1,12], index: 6, kind: input, shape index: {}]
  %s7 = inlined_call_operand.vmem [shape: f32[2,144,12], index: 7, kind: output, shape index: {}]
  %s8 = sld [smem:[#allocation0]]
  $region61: #{run.12} parent=0
    _
  %s10 = ssub.s32 1, %s8
  %s11 = scalar_select 0, %s10, %s8
  loop: start=0, step=1, limit=4
  $region2: #{run.12} parent=0 // loop_pre_header
    _
  $region3: #{run.12} parent=0 // loop_header
    %s13 = sphi 0, %s17
    %p14 = scmp.ge.s32.totalorder %s13, 4
    %s23 = sphi 0, %s25
    %s26 = sphi 0, %s23
    %s27 = sphi 0, %s26
    %s43 = sphi 0, %s27
    %s47 = sphi 0, %s47
    %s49 = sphi 0, %s47
    %s50 = sphi 0, %s49
    %s64 = sphi 0, %s50
    %s68 = sphi 0, %s68
    %s70 = sphi 0, %s68
    %s71 = sphi 0, %s70
    %s85 = sphi 0, %s71
    %s89 = sphi 0, %s89
    %s91 = sphi 0, %s89
    %s92 = sphi 0, %s91
    %s106 = sphi 0, %s92
    %s110 = sphi 0, %s110
    %s112 = sphi 0, %s110
    %s113 = sphi 0, %s112
    %s127 = sphi 0, %s113
    %s131 = sphi 0, %s131
    %s133 = sphi 0, %s131
    %s134 = sphi 0, %s133
    %s148 = sphi 0, %s134
    %s152 = sphi 0, %s152
    %s154 = sphi 0, %s152
    %s155 = sphi 0, %s154
    %s169 = sphi 0, %s155
    %s175 = sphi 0, %s177
    %s178 = sphi 0, %s175
    %s179 = sphi 0, %s178
    %s195 = sphi 0, %s179
  $region4: #{run.12} parent=0 // loop_header_branch
    %16 = sbr.rel (%p14) target = $region8
  $region5: #{run.12} parent=0 // loop_body
    %s18 = ssub.s32 %s13, 1
    %s19 = ssub.s32 %s13, 2
    %s20 = sadd.s32 %s13, 1
    %s21 = ssub.s32 %s13, %s20
    %p22 = scmp.eq.s32.totalorder %s21, 0
    %s24 = sadd.s32 %s23, 1
    %s25 = scalar_select %p22, %s23, %s24
    %p28 = pneg %p22
    %p29 = scmp.eq.s32.totalorder %s13, 1
    %p30 = por %p28, %p29
    %p31 = scmp.ne.s32.totalorder %s23, %s26
    %p32 = scmp.eq.s32.totalorder %s13, 0
    %p33 = por %p31, %p32
    %p34 = scmp.ne.s32.totalorder %s23, %s26
    %p35 = scmp.eq.s32.totalorder %s18, 1
    %p36 = por %p34, %p35
    %p37 = scmp.ne.s32.totalorder %s26, %s27
    %p38 = scmp.eq.s32.totalorder %s18, 0
    %p39 = por %p37, %p38
    %p40 = scmp.ne.s32.totalorder %s26, %s27
    %p41 = scmp.eq.s32.totalorder %s19, 1
    %p42 = por %p40, %p41
    %p44 = scmp.ne.s32.totalorder %s27, %s43
    %p45 = scmp.eq.s32.totalorder %s19, 0
    %p46 = por %p44, %p45
    %s48 = sadd.s32 %s47, 1
    %p51 = scmp.eq.s32.totalorder %s13, 1
    %p52 = scmp.ne.s32.totalorder %s47, %s49
    %p53 = scmp.eq.s32.totalorder %s13, 0
    %p54 = por %p52, %p53
    %p55 = scmp.ne.s32.totalorder %s47, %s49
    %p56 = scmp.eq.s32.totalorder %s18, 1
    %p57 = por %p55, %p56
    %p58 = scmp.ne.s32.totalorder %s49, %s50
    %p59 = scmp.eq.s32.totalorder %s18, 0
    %p60 = por %p58, %p59
    %p61 = scmp.ne.s32.totalorder %s49, %s50
    %p62 = scmp.eq.s32.totalorder %s19, 1
    %p63 = por %p61, %p62
    %p65 = scmp.ne.s32.totalorder %s50, %s64
    %p66 = scmp.eq.s32.totalorder %s19, 0
    %p67 = por %p65, %p66
    %s69 = sadd.s32 %s68, 1
    %p72 = scmp.eq.s32.totalorder %s13, 1
    %p73 = scmp.ne.s32.totalorder %s68, %s70
    %p74 = scmp.eq.s32.totalorder %s13, 0
    %p75 = por %p73, %p74
    %p76 = scmp.ne.s32.totalorder %s68, %s70
    %p77 = scmp.eq.s32.totalorder %s18, 1
    %p78 = por %p76, %p77
    %p79 = scmp.ne.s32.totalorder %s70, %s71
    %p80 = scmp.eq.s32.totalorder %s18, 0
    %p81 = por %p79, %p80
    %p82 = scmp.ne.s32.totalorder %s70, %s71
    %p83 = scmp.eq.s32.totalorder %s19, 1
    %p84 = por %p82, %p83
    %p86 = scmp.ne.s32.totalorder %s71, %s85
    %p87 = scmp.eq.s32.totalorder %s19, 0
    %p88 = por %p86, %p87
    %s90 = sadd.s32 %s89, 1
    %p93 = scmp.eq.s32.totalorder %s13, 1
    %p94 = scmp.ne.s32.totalorder %s89, %s91
    %p95 = scmp.eq.s32.totalorder %s13, 0
    %p96 = por %p94, %p95
    %p97 = scmp.ne.s32.totalorder %s89, %s91
    %p98 = scmp.eq.s32.totalorder %s18, 1
    %p99 = por %p97, %p98
    %p100 = scmp.ne.s32.totalorder %s91, %s92
    %p101 = scmp.eq.s32.totalorder %s18, 0
    %p102 = por %p100, %p101
    %p103 = scmp.ne.s32.totalorder %s91, %s92
    %p104 = scmp.eq.s32.totalorder %s19, 1
    %p105 = por %p103, %p104
    %p107 = scmp.ne.s32.totalorder %s92, %s106
    %p108 = scmp.eq.s32.totalorder %s19, 0
    %p109 = por %p107, %p108
    %s111 = sadd.s32 %s110, 1
    %p114 = scmp.eq.s32.totalorder %s13, 1
    %p115 = scmp.ne.s32.totalorder %s110, %s112
    %p116 = scmp.eq.s32.totalorder %s13, 0
    %p117 = por %p115, %p116
    %p118 = scmp.ne.s32.totalorder %s110, %s112
    %p119 = scmp.eq.s32.totalorder %s18, 1
    %p120 = por %p118, %p119
    %p121 = scmp.ne.s32.totalorder %s112, %s113
    %p122 = scmp.eq.s32.totalorder %s18, 0
    %p123 = por %p121, %p122
    %p124 = scmp.ne.s32.totalorder %s112, %s113
    %p125 = scmp.eq.s32.totalorder %s19, 1
    %p126 = por %p124, %p125
    %p128 = scmp.ne.s32.totalorder %s113, %s127
    %p129 = scmp.eq.s32.totalorder %s19, 0
    %p130 = por %p128, %p129
    %s132 = sadd.s32 %s131, 1
    %p135 = scmp.eq.s32.totalorder %s13, 1
    %p136 = scmp.ne.s32.totalorder %s131, %s133
    %p137 = scmp.eq.s32.totalorder %s13, 0
    %p138 = por %p136, %p137
    %p139 = scmp.ne.s32.totalorder %s131, %s133
    %p140 = scmp.eq.s32.totalorder %s18, 1
    %p141 = por %p139, %p140
    %p142 = scmp.ne.s32.totalorder %s133, %s134
    %p143 = scmp.eq.s32.totalorder %s18, 0
    %p144 = por %p142, %p143
    %p145 = scmp.ne.s32.totalorder %s133, %s134
    %p146 = scmp.eq.s32.totalorder %s19, 1
    %p147 = por %p145, %p146
    %p149 = scmp.ne.s32.totalorder %s134, %s148
    %p150 = scmp.eq.s32.totalorder %s19, 0
    %p151 = por %p149, %p150
    %s153 = sadd.s32 %s152, 1
    %p156 = scmp.eq.s32.totalorder %s13, 1
    %p157 = scmp.ne.s32.totalorder %s152, %s154
    %p158 = scmp.eq.s32.totalorder %s13, 0
    %p159 = por %p157, %p158
    %p160 = scmp.ne.s32.totalorder %s152, %s154
    %p161 = scmp.eq.s32.totalorder %s18, 1
    %p162 = por %p160, %p161
    %p163 = scmp.ne.s32.totalorder %s154, %s155
    %p164 = scmp.eq.s32.totalorder %s18, 0
    %p165 = por %p163, %p164
    %p166 = scmp.ne.s32.totalorder %s154, %s155
    %p167 = scmp.eq.s32.totalorder %s19, 1
    %p168 = por %p166, %p167
    %p170 = scmp.ne.s32.totalorder %s155, %s169
    %p171 = scmp.eq.s32.totalorder %s19, 0
    %p172 = por %p170, %p171
    %s173 = ssub.s32 %s13, %s20
    %p174 = scmp.eq.s32.totalorder %s173, 0
    %s176 = sadd.s32 %s175, 1
    %s177 = scalar_select %p174, %s175, %s176
    %p180 = pneg %p174
    %p181 = scmp.eq.s32.totalorder %s13, 1
    %p182 = por %p180, %p181
    %p183 = scmp.ne.s32.totalorder %s175, %s178
    %p184 = scmp.eq.s32.totalorder %s13, 0
    %p185 = por %p183, %p184
    %p186 = scmp.ne.s32.totalorder %s175, %s178
    %p187 = scmp.eq.s32.totalorder %s18, 1
    %p188 = por %p186, %p187
    %p189 = scmp.ne.s32.totalorder %s178, %s179
    %p190 = scmp.eq.s32.totalorder %s18, 0
    %p191 = por %p189, %p190
    %p192 = scmp.ne.s32.totalorder %s178, %s179
    %p193 = scmp.eq.s32.totalorder %s19, 1
    %p194 = por %p192, %p193
    %p196 = scmp.ne.s32.totalorder %s179, %s195
    %p197 = scmp.eq.s32.totalorder %s19, 0
    %p198 = por %p196, %p197
    %p199 = scmp.le.s32.totalorder 1, %s13
    %p200 = scmp.lt.s32.totalorder %s13, 3
    %p201 = pnand %p199, %p200
    %p202 = pneg %p201
    // Predicated region
    $region9: #{run.12} parent=5 // pred_check
      _
    $region10: #{run.12} parent=5 // pred_check_branch
      %204 = sbr.rel (%p201) target = $region12
    $region11: #{run.12} parent=5 // pred_region
      %s205 = ssub.s32 %s13, 1
      // Predicated region
      $region13: #{run.12} parent=11 // pred_check
        %p206 = pneg %p60
      $region14: #{run.12} parent=11 // pred_check_branch
        %208 = sbr.rel (%p206) target = $region16
      $region15: #{run.12} parent=11 // pred_region
        _
      $region16: #{run.12} parent=11 // pred_fallthru
        _
      // Predicated region
      $region17: #{run.12} parent=11 // pred_check
        %p209 = pneg %p81
      $region18: #{run.12} parent=11 // pred_check_branch
        %211 = sbr.rel (%p209) target = $region20
      $region19: #{run.12} parent=11 // pred_region
        _
      $region20: #{run.12} parent=11 // pred_fallthru
        _
      // Predicated region
      $region21: #{run.12} parent=11 // pred_check
        %p212 = pneg %p102
      $region22: #{run.12} parent=11 // pred_check_branch
        %214 = sbr.rel (%p212) target = $region24
      $region23: #{run.12} parent=11 // pred_region
        _
      $region24: #{run.12} parent=11 // pred_fallthru
        _
      // Predicated region
      $region25: #{run.12} parent=11 // pred_check
        %p215 = pneg %p123
      $region26: #{run.12} parent=11 // pred_check_branch
        %217 = sbr.rel (%p215) target = $region28
      $region27: #{run.12} parent=11 // pred_region
        _
      $region28: #{run.12} parent=11 // pred_fallthru
        _
      // Predicated region
      $region29: #{run.12} parent=11 // pred_check
        %p218 = pneg %p144
      $region30: #{run.12} parent=11 // pred_check_branch
        %220 = sbr.rel (%p218) target = $region32
      $region31: #{run.12} parent=11 // pred_region
        _
      $region32: #{run.12} parent=11 // pred_fallthru
        _
      // Predicated region
      $region33: #{run.12} parent=11 // pred_check
        %p221 = pneg %p165
      $region34: #{run.12} parent=11 // pred_check_branch
        %223 = sbr.rel (%p221) target = $region36
      $region35: #{run.12} parent=11 // pred_region
        _
      $region36: #{run.12} parent=11 // pred_fallthru
        _
    $region12: #{run.12} parent=5 // pred_fallthru
      _
    %p224 = scmp.lt.s32.totalorder %s13, 2
    // Predicated region
    $region37: #{run.12} parent=5 // pred_check
      %p225 = pneg %p224
    $region38: #{run.12} parent=5 // pred_check_branch
      %227 = sbr.rel (%p225) target = $region40
    $region39: #{run.12} parent=5 // pred_region
      // Predicated region
      $region41: #{run.12} parent=39 // pred_check
        %p228 = pneg %p33
      $region42: #{run.12} parent=39 // pred_check_branch
        %230 = sbr.rel (%p228) target = $region44
      $region43: #{run.12} parent=39 // pred_region
        %p231 = scmp.lt.s32.totalorder %s13, 1
        %s232 = scalar_select %p231, %s13, 1
        %s233 = smul.addr %s232, 18
        %s234 = smul.addr %s233, 8
        %s235 = scalar_lea.vmem %s0, %s234
      $region44: #{run.12} parent=39 // pred_fallthru
        _
    $region40: #{run.12} parent=5 // pred_fallthru
      _
    %p236 = scmp.le.s32.totalorder 1, %s13
    %p237 = scmp.lt.s32.totalorder %s13, 3
    %p238 = pnand %p236, %p237
    %p239 = pneg %p238
    // Predicated region
    $region45: #{run.12} parent=5 // pred_check
      _
    $region46: #{run.12} parent=5 // pred_check_branch
      %241 = sbr.rel (%p238) target = $region48
    $region47: #{run.12} parent=5 // pred_region
      %s242 = ssub.s32 %s13, 1
      %p243 = scmp.lt.s32.totalorder %s18, 1
      %s244 = scalar_select %p243, %s18, 1
      %s245 = smul.addr %s244, 18
      %s246 = smul.addr %s245, 8
      %s247 = scalar_lea.vmem %s0, %s246
      %p248 = pneg %p39
      %p249 = pneg %p36
      %p250 = pneg %p60
      %p251 = pneg %p57
      %p252 = pneg %p81
      %p253 = pneg %p78
      %p254 = pneg %p102
      %p255 = pneg %p99
      %p256 = pneg %p123
      %p257 = pneg %p120
      %p258 = pneg %p144
      %p259 = pneg %p141
      %p260 = pneg %p165
      %p261 = pneg %p162
      %p262 = pneg %p191
      %p263 = pneg %p188
      %p264 = scmp.lt.s32.totalorder %s18, 1
      %s265 = scalar_select %p264, %s18, 1
      %s266 = smul.addr %s265, 18
      %s267 = smul.addr %s266, 8
      %s268 = scalar_lea.vmem %s7, %s267
      %p269 = scmp.lt.s32.totalorder %s18, 1
      %s270 = scalar_select %p269, %s18, 1
      %s271 = smul.addr %s270, 18
      %s272 = smul.addr %s271, 8
      %s273 = scalar_lea.vmem %s0, %s272
      %p274 = scmp.lt.s32.totalorder %s18, 1
      %s275 = scalar_select %p274, %s18, 1
      %s276 = smul.addr %s275, 18
      %s277 = smul.addr %s276, 8
      %s278 = scalar_lea.vmem %s7, %s277
      %v279 = vld [vmem:[%s273] sm:$0xff]
      %v280 = vld [vmem:[%s273 + $0x8] sm:$0xff]
      %v281 = vld [vmem:[%s273 + $0x10] sm:$0xff]
      %v282 = vld [vmem:[%s273 + $0x18] sm:$0xff]
      %v283 = vld [vmem:[%s273 + $0x20] sm:$0xff]
      %v284 = vld [vmem:[%s273 + $0x28] sm:$0xff]
      %v285 = vld [vmem:[%s273 + $0x30] sm:$0xff]
      %v286 = vld [vmem:[%s273 + $0x38] sm:$0xff]
      %v287 = vld [vmem:[%s273 + $0x40] sm:$0xff]
      %v288 = vld [vmem:[%s273 + $0x48] sm:$0xff]
      %v289 = vld [vmem:[%s273 + $0x50] sm:$0xff]
      %v290 = vld [vmem:[%s273 + $0x58] sm:$0xff]
      %v291 = vld [vmem:[%s273 + $0x60] sm:$0xff]
      %v292 = vld [vmem:[%s273 + $0x68] sm:$0xff]
      %v293 = vld [vmem:[%s273 + $0x70] sm:$0xff]
      %v294 = vld [vmem:[%s273 + $0x78] sm:$0xff]
      %v295 = vld [vmem:[%s273 + $0x80] sm:$0xff]
      %v296 = vld [vmem:[%s273 + $0x88] sm:$0xff]
      %v297 = vld [vmem:[%s1] sm:$0xf]
      %v298 = vld [vmem:[%s2] sm:$0x1]
      %v300 = vperm.slane %v298, 0
      %vm302 = vcmask 31744
      %v304 = vsel %vm302, %v279, 0
      %v307 = vsel %vm302, %v280, 0
      %v310 = vsel %vm302, %v281, 0
      %v313 = vsel %vm302, %v282, 0
      %v316 = vsel %vm302, %v283, 0
      %v319 = vsel %vm302, %v284, 0
      %v322 = vsel %vm302, %v285, 0
      %v325 = vsel %vm302, %v286, 0
      %v328 = vsel %vm302, %v287, 0
      %v331 = vsel %vm302, %v288, 0
      %v334 = vsel %vm302, %v289, 0
      %v337 = vsel %vm302, %v290, 0
      %v340 = vsel %vm302, %v291, 0
      %v343 = vsel %vm302, %v292, 0
      %v346 = vsel %vm302, %v293, 0
      %v349 = vsel %vm302, %v294, 0
      %v352 = vsel %vm302, %v295, 0
      %v355 = vsel %vm302, %v296, 0
      %vm357 = vcmask 1043456
      %v359 = vsel %vm357, %v297, 0
      %361 = vmatpush.msra.mxu0 0.0
      %362 = vmatpush.msra.mxu0 0.0
      %363 = vmatpush.msra.mxu0 0.0
      %364 = vmatpush.msra.mxu0 0.0
      %365 = vmatpush.msra.mxu0 0.0
      %366 = vmatpush.msra.mxu0 0.0
      %367 = vmatpush.msra.mxu0 0.0
      %368 = vmatpush.msra.mxu0 0.0
      %369 = vmatpush.msra.mxu0 0.0
      %370 = vmatpush.msra.mxu0 0.0
      %371 = vmatpush.msra.mxu0 0.0
      %372 = vmatpush.msra.mxu0 0.0
      %373 = vmatpush.msra.mxu0 0.0
      %374 = vmatpush.msra.mxu0 0.0
      %375 = vmatpush.msra.mxu0 0.0
      %376 = vmatpush.msra.mxu0 %v359
      %377 = vmatmul.f32.gmra.mxu0 %v304
      %v378 = vpop.f32.mrf.mxu0
      %v379 = vadd.f32 %v300, %v378
      %380 = vmatmul.f32.gmra.mxu0 %v307
      %v381 = vpop.f32.mrf.mxu0
      %v382 = vadd.f32 %v300, %v381
      %383 = vmatmul.f32.gmra.mxu0 %v310
      %v384 = vpop.f32.mrf.mxu0
      %v385 = vadd.f32 %v300, %v384
      %386 = vmatmul.f32.gmra.mxu0 %v313
      %v387 = vpop.f32.mrf.mxu0
      %v388 = vadd.f32 %v300, %v387
      %389 = vmatmul.f32.gmra.mxu0 %v316
      %v390 = vpop.f32.mrf.mxu0
      %v391 = vadd.f32 %v300, %v390
      %392 = vmatmul.f32.gmra.mxu0 %v319
      %v393 = vpop.f32.mrf.mxu0
      %v394 = vadd.f32 %v300, %v393
      %395 = vmatmul.f32.gmra.mxu0 %v322
      %v396 = vpop.f32.mrf.mxu0
      %v397 = vadd.f32 %v300, %v396
      %398 = vmatmul.f32.gmra.mxu0 %v325
      %v399 = vpop.f32.mrf.mxu0
      %v400 = vadd.f32 %v300, %v399
      %401 = vmatmul.f32.gmra.mxu0 %v328
      %v402 = vpop.f32.mrf.mxu0
      %v403 = vadd.f32 %v300, %v402
      %404 = vmatmul.f32.gmra.mxu0 %v331
      %v405 = vpop.f32.mrf.mxu0
      %v406 = vadd.f32 %v300, %v405
      %407 = vmatmul.f32.gmra.mxu0 %v334
      %v408 = vpop.f32.mrf.mxu0
      %v409 = vadd.f32 %v300, %v408
      %410 = vmatmul.f32.gmra.mxu0 %v337
      %v411 = vpop.f32.mrf.mxu0
      %v412 = vadd.f32 %v300, %v411
      %413 = vmatmul.f32.gmra.mxu0 %v340
      %v414 = vpop.f32.mrf.mxu0
      %v415 = vadd.f32 %v300, %v414
      %416 = vmatmul.f32.gmra.mxu0 %v343
      %v417 = vpop.f32.mrf.mxu0
      %v418 = vadd.f32 %v300, %v417
      %419 = vmatmul.f32.gmra.mxu0 %v346
      %v420 = vpop.f32.mrf.mxu0
      %v421 = vadd.f32 %v300, %v420
      %422 = vmatmul.f32.gmra.mxu0 %v349
      %v423 = vpop.f32.mrf.mxu0
      %v424 = vadd.f32 %v300, %v423
      %425 = vmatmul.f32.gmra.mxu0 %v352
      %v426 = vpop.f32.mrf.mxu0
      %v427 = vadd.f32 %v300, %v426
      %428 = vmatmul.f32.gmra.mxu0 %v355
      %v429 = vpop.f32.mrf.mxu0
      %v430 = vadd.f32 %v300, %v429
      %431 = vdwg.mxu0
      %v432 = vmax.f32 %v379, 0.0
      %v433 = vmax.f32 %v382, 0.0
      %v434 = vmax.f32 %v385, 0.0
      %v435 = vmax.f32 %v388, 0.0
      %v436 = vmax.f32 %v391, 0.0
      %v437 = vmax.f32 %v394, 0.0
      %v438 = vmax.f32 %v397, 0.0
      %v439 = vmax.f32 %v400, 0.0
      %v440 = vmax.f32 %v403, 0.0
      %v441 = vmax.f32 %v406, 0.0
      %v442 = vmax.f32 %v409, 0.0
      %v443 = vmax.f32 %v412, 0.0
      %v444 = vmax.f32 %v415, 0.0
      %v445 = vmax.f32 %v418, 0.0
      %v446 = vmax.f32 %v421, 0.0
      %v447 = vmax.f32 %v424, 0.0
      %v448 = vmax.f32 %v427, 0.0
      %v449 = vmax.f32 %v430, 0.0
      %v450 = vld [vmem:[%s3] sm:$0xff]
      %v451 = vld [vmem:[%s3 + $0x8] sm:$0xff]
      %v452 = vld [vmem:[%s3 + $0x10] sm:$0xff]
      %v453 = vld [vmem:[%s3 + $0x18] sm:$0xff]
      %v454 = vld [vmem:[%s3 + $0x20] sm:$0xff]
      %v455 = vld [vmem:[%s3 + $0x28] sm:$0xff]
      %v456 = vld [vmem:[%s3 + $0x30] sm:$0xff]
      %v457 = vld [vmem:[%s3 + $0x38] sm:$0xff]
      %v458 = vld [vmem:[%s3 + $0x40] sm:$0xff]
      %v459 = vld [vmem:[%s3 + $0x48] sm:$0xff]
      %v460 = vld [vmem:[%s3 + $0x50] sm:$0xff]
      %v461 = vld [vmem:[%s3 + $0x58] sm:$0xff]
      %v462 = vld [vmem:[%s4] sm:$0x1]
      %v464 = vperm.slane %v462, 0
      %vm466 = vcmask 785408
      %v468 = vsel %vm466, %v432, 0
      %v471 = vsel %vm466, %v433, 0
      %v474 = vsel %vm466, %v434, 0
      %v477 = vsel %vm466, %v435, 0
      %v480 = vsel %vm466, %v436, 0
      %v483 = vsel %vm466, %v437, 0
      %v486 = vsel %vm466, %v438, 0
      %v489 = vsel %vm466, %v439, 0
      %v492 = vsel %vm466, %v440, 0
      %v495 = vsel %vm466, %v441, 0
      %v498 = vsel %vm466, %v442, 0
      %v501 = vsel %vm466, %v443, 0
      %v504 = vsel %vm466, %v444, 0
      %v507 = vsel %vm466, %v445, 0
      %v510 = vsel %vm466, %v446, 0
      %v513 = vsel %vm466, %v447, 0
      %v516 = vsel %vm466, %v448, 0
      %v519 = vsel %vm466, %v449, 0
      %521 = vmatpush.msra.mxu0 0.0
      %522 = vmatpush.msra.mxu0 0.0
      %523 = vmatpush.msra.mxu0 0.0
      %524 = vmatpush.msra.mxu0 0.0
      %525 = vmatpush.msra.mxu0 %v461
      %526 = vmatpush.msra.mxu0 %v460
      %527 = vmatpush.msra.mxu0 %v459
      %528 = vmatpush.msra.mxu0 %v458
      %529 = vmatpush.msra.mxu0 %v457
      %530 = vmatpush.msra.mxu0 %v456
      %531 = vmatpush.msra.mxu0 %v455
      %532 = vmatpush.msra.mxu0 %v454
      %533 = vmatpush.msra.mxu0 %v453
      %534 = vmatpush.msra.mxu0 %v452
      %535 = vmatpush.msra.mxu0 %v451
      %536 = vmatpush.msra.mxu0 %v450
      %537 = vmatmul.f32.gmra.mxu0 %v468
      %v538 = vpop.f32.mrf.mxu0
      %v539 = vadd.f32 %v464, %v538
      %540 = vmatmul.f32.gmra.mxu0 %v471
      %v541 = vpop.f32.mrf.mxu0
      %v542 = vadd.f32 %v464, %v541
      %543 = vmatmul.f32.gmra.mxu0 %v474
      %v544 = vpop.f32.mrf.mxu0
      %v545 = vadd.f32 %v464, %v544
      %546 = vmatmul.f32.gmra.mxu0 %v477
      %v547 = vpop.f32.mrf.mxu0
      %v548 = vadd.f32 %v464, %v547
      %549 = vmatmul.f32.gmra.mxu0 %v480
      %v550 = vpop.f32.mrf.mxu0
      %v551 = vadd.f32 %v464, %v550
      %552 = vmatmul.f32.gmra.mxu0 %v483
      %v553 = vpop.f32.mrf.mxu0
      %v554 = vadd.f32 %v464, %v553
      %555 = vmatmul.f32.gmra.mxu0 %v486
      %v556 = vpop.f32.mrf.mxu0
      %v557 = vadd.f32 %v464, %v556
      %558 = vmatmul.f32.gmra.mxu0 %v489
      %v559 = vpop.f32.mrf.mxu0
      %v560 = vadd.f32 %v464, %v559
      %561 = vmatmul.f32.gmra.mxu0 %v492
      %v562 = vpop.f32.mrf.mxu0
      %v563 = vadd.f32 %v464, %v562
      %564 = vmatmul.f32.gmra.mxu0 %v495
      %v565 = vpop.f32.mrf.mxu0
      %v566 = vadd.f32 %v464, %v565
      %567 = vmatmul.f32.gmra.mxu0 %v498
      %v568 = vpop.f32.mrf.mxu0
      %v569 = vadd.f32 %v464, %v568
      %570 = vmatmul.f32.gmra.mxu0 %v501
      %v571 = vpop.f32.mrf.mxu0
      %v572 = vadd.f32 %v464, %v571
      %573 = vmatmul.f32.gmra.mxu0 %v504
      %v574 = vpop.f32.mrf.mxu0
      %v575 = vadd.f32 %v464, %v574
      %576 = vmatmul.f32.gmra.mxu0 %v507
      %v577 = vpop.f32.mrf.mxu0
      %v578 = vadd.f32 %v464, %v577
      %579 = vmatmul.f32.gmra.mxu0 %v510
      %v580 = vpop.f32.mrf.mxu0
      %v581 = vadd.f32 %v464, %v580
      %582 = vmatmul.f32.gmra.mxu0 %v513
      %v583 = vpop.f32.mrf.mxu0
      %v584 = vadd.f32 %v464, %v583
      %585 = vmatmul.f32.gmra.mxu0 %v516
      %v586 = vpop.f32.mrf.mxu0
      %v587 = vadd.f32 %v464, %v586
      %588 = vmatmul.f32.gmra.mxu0 %v519
      %v589 = vpop.f32.mrf.mxu0
      %v590 = vadd.f32 %v464, %v589
      %591 = vdwg.mxu0
      %v592 = vmax.f32 %v539, 0.0
      %v593 = vmax.f32 %v542, 0.0
      %v594 = vmax.f32 %v545, 0.0
      %v595 = vmax.f32 %v548, 0.0
      %v596 = vmax.f32 %v551, 0.0
      %v597 = vmax.f32 %v554, 0.0
      %v598 = vmax.f32 %v557, 0.0
      %v599 = vmax.f32 %v560, 0.0
      %v600 = vmax.f32 %v563, 0.0
      %v601 = vmax.f32 %v566, 0.0
      %v602 = vmax.f32 %v569, 0.0
      %v603 = vmax.f32 %v572, 0.0
      %v604 = vmax.f32 %v575, 0.0
      %v605 = vmax.f32 %v578, 0.0
      %v606 = vmax.f32 %v581, 0.0
      %v607 = vmax.f32 %v584, 0.0
      %v608 = vmax.f32 %v587, 0.0
      %v609 = vmax.f32 %v590, 0.0
      %v610 = vld [vmem:[%s5] sm:$0xff]
      %v611 = vld [vmem:[%s5 + $0x8] sm:$0xff]
      %v612 = vld [vmem:[%s5 + $0x10] sm:$0xff]
      %v613 = vld [vmem:[%s5 + $0x18] sm:$0xff]
      %v614 = vld [vmem:[%s5 + $0x20] sm:$0xff]
      %v615 = vld [vmem:[%s5 + $0x28] sm:$0xff]
      %v616 = vld [vmem:[%s5 + $0x30] sm:$0xff]
      %v617 = vld [vmem:[%s5 + $0x38] sm:$0xff]
      %v618 = vld [vmem:[%s5 + $0x40] sm:$0xff]
      %v619 = vld [vmem:[%s5 + $0x48] sm:$0xff]
      %v620 = vld [vmem:[%s5 + $0x50] sm:$0xff]
      %v621 = vld [vmem:[%s5 + $0x58] sm:$0xff]
      %v622 = vld [vmem:[%s6] sm:$0x1]
      %v624 = vperm.slane %v622, 0
      %v627 = vsel %vm466, %v592, 0
      %v630 = vsel %vm466, %v593, 0
      %v633 = vsel %vm466, %v594, 0
      %v636 = vsel %vm466, %v595, 0
      %v639 = vsel %vm466, %v596, 0
      %v642 = vsel %vm466, %v597, 0
      %v645 = vsel %vm466, %v598, 0
      %v648 = vsel %vm466, %v599, 0
      %v651 = vsel %vm466, %v600, 0
      %v654 = vsel %vm466, %v601, 0
      %v657 = vsel %vm466, %v602, 0
      %v660 = vsel %vm466, %v603, 0
      %v663 = vsel %vm466, %v604, 0
      %v666 = vsel %vm466, %v605, 0
      %v669 = vsel %vm466, %v606, 0
      %v672 = vsel %vm466, %v607, 0
      %v675 = vsel %vm466, %v608, 0
      %v678 = vsel %vm466, %v609, 0
      %680 = vmatpush.msra.mxu0 0.0
      %681 = vmatpush.msra.mxu0 0.0
      %682 = vmatpush.msra.mxu0 0.0
      %683 = vmatpush.msra.mxu0 0.0
      %684 = vmatpush.msra.mxu0 %v621
      %685 = vmatpush.msra.mxu0 %v620
      %686 = vmatpush.msra.mxu0 %v619
      %687 = vmatpush.msra.mxu0 %v618
      %688 = vmatpush.msra.mxu0 %v617
      %689 = vmatpush.msra.mxu0 %v616
      %690 = vmatpush.msra.mxu0 %v615
      %691 = vmatpush.msra.mxu0 %v614
      %692 = vmatpush.msra.mxu0 %v613
      %693 = vmatpush.msra.mxu0 %v612
      %694 = vmatpush.msra.mxu0 %v611
      %695 = vmatpush.msra.mxu0 %v610
      %696 = vmatmul.f32.gmra.mxu0 %v627
      %v697 = vpop.f32.mrf.mxu0
      %v698 = vadd.f32 %v624, %v697
      %699 = vmatmul.f32.gmra.mxu0 %v630
      %v700 = vpop.f32.mrf.mxu0
      %v701 = vadd.f32 %v624, %v700
      %702 = vmatmul.f32.gmra.mxu0 %v633
      %v703 = vpop.f32.mrf.mxu0
      %v704 = vadd.f32 %v624, %v703
      %705 = vmatmul.f32.gmra.mxu0 %v636
      %v706 = vpop.f32.mrf.mxu0
      %v707 = vadd.f32 %v624, %v706
      %708 = vmatmul.f32.gmra.mxu0 %v639
      %v709 = vpop.f32.mrf.mxu0
      %v710 = vadd.f32 %v624, %v709
      %711 = vmatmul.f32.gmra.mxu0 %v642
      %v712 = vpop.f32.mrf.mxu0
      %v713 = vadd.f32 %v624, %v712
      %714 = vmatmul.f32.gmra.mxu0 %v645
      %v715 = vpop.f32.mrf.mxu0
      %v716 = vadd.f32 %v624, %v715
      %717 = vmatmul.f32.gmra.mxu0 %v648
      %v718 = vpop.f32.mrf.mxu0
      %v719 = vadd.f32 %v624, %v718
      %720 = vmatmul.f32.gmra.mxu0 %v651
      %v721 = vpop.f32.mrf.mxu0
      %v722 = vadd.f32 %v624, %v721
      %723 = vmatmul.f32.gmra.mxu0 %v654
      %v724 = vpop.f32.mrf.mxu0
      %v725 = vadd.f32 %v624, %v724
      %726 = vmatmul.f32.gmra.mxu0 %v657
      %v727 = vpop.f32.mrf.mxu0
      %v728 = vadd.f32 %v624, %v727
      %729 = vmatmul.f32.gmra.mxu0 %v660
      %v730 = vpop.f32.mrf.mxu0
      %v731 = vadd.f32 %v624, %v730
      %732 = vmatmul.f32.gmra.mxu0 %v663
      %v733 = vpop.f32.mrf.mxu0
      %v734 = vadd.f32 %v624, %v733
      %735 = vmatmul.f32.gmra.mxu0 %v666
      %v736 = vpop.f32.mrf.mxu0
      %v737 = vadd.f32 %v624, %v736
      %738 = vmatmul.f32.gmra.mxu0 %v669
      %v739 = vpop.f32.mrf.mxu0
      %v740 = vadd.f32 %v624, %v739
      %741 = vmatmul.f32.gmra.mxu0 %v672
      %v742 = vpop.f32.mrf.mxu0
      %v743 = vadd.f32 %v624, %v742
      %744 = vmatmul.f32.gmra.mxu0 %v675
      %v745 = vpop.f32.mrf.mxu0
      %v746 = vadd.f32 %v624, %v745
      %747 = vmatmul.f32.gmra.mxu0 %v678
      %v748 = vpop.f32.mrf.mxu0
      %v749 = vadd.f32 %v624, %v748
      %750 = vdwg.mxu0
      %vm751 = vcmask 97280
      %752 = vst.msk [vmem:[%s278] sm:$0xff] %vm751, %v698
      %753 = vst.msk [vmem:[%s278 + $0x8] sm:$0xff] %vm751, %v701
      %754 = vst.msk [vmem:[%s278 + $0x10] sm:$0xff] %vm751, %v704
      %755 = vst.msk [vmem:[%s278 + $0x18] sm:$0xff] %vm751, %v707
      %756 = vst.msk [vmem:[%s278 + $0x20] sm:$0xff] %vm751, %v710
      %757 = vst.msk [vmem:[%s278 + $0x28] sm:$0xff] %vm751, %v713
      %758 = vst.msk [vmem:[%s278 + $0x30] sm:$0xff] %vm751, %v716
      %759 = vst.msk [vmem:[%s278 + $0x38] sm:$0xff] %vm751, %v719
      %760 = vst.msk [vmem:[%s278 + $0x40] sm:$0xff] %vm751, %v722
      %761 = vst.msk [vmem:[%s278 + $0x48] sm:$0xff] %vm751, %v725
      %762 = vst.msk [vmem:[%s278 + $0x50] sm:$0xff] %vm751, %v728
      %763 = vst.msk [vmem:[%s278 + $0x58] sm:$0xff] %vm751, %v731
      %764 = vst.msk [vmem:[%s278 + $0x60] sm:$0xff] %vm751, %v734
      %765 = vst.msk [vmem:[%s278 + $0x68] sm:$0xff] %vm751, %v737
      %766 = vst.msk [vmem:[%s278 + $0x70] sm:$0xff] %vm751, %v740
      %767 = vst.msk [vmem:[%s278 + $0x78] sm:$0xff] %vm751, %v743
      %768 = vst.msk [vmem:[%s278 + $0x80] sm:$0xff] %vm751, %v746
      %769 = vst.msk [vmem:[%s278 + $0x88] sm:$0xff] %vm751, %v749
      %p770 = scmp.lt.s32.totalorder %s18, 1
      %s771 = scalar_select %p770, %s18, 1
      %s772 = smul.addr %s771, 18
      %s773 = smul.addr %s772, 8
      %s774 = scalar_lea.vmem %s7, %s773
      // Predicated region
      $region49: #{run.12} parent=47 // pred_check
        %p775 = pneg %p188
      $region50: #{run.12} parent=47 // pred_check_branch
        %777 = sbr.rel (%p775) target = $region52
      $region51: #{run.12} parent=47 // pred_region
        _
      $region52: #{run.12} parent=47 // pred_fallthru
        _
    $region48: #{run.12} parent=5 // pred_fallthru
      _
    %p778 = scmp.le.s32.totalorder 2, %s13
    // Predicated region
    $region53: #{run.12} parent=5 // pred_check
      %p779 = pneg %p778
    $region54: #{run.12} parent=5 // pred_check_branch
      %781 = sbr.rel (%p779) target = $region56
    $region55: #{run.12} parent=5 // pred_region
      %s782 = ssub.s32 %s13, 2
      // Predicated region
      $region57: #{run.12} parent=55 // pred_check
        %p783 = pneg %p194
      $region58: #{run.12} parent=55 // pred_check_branch
        %785 = sbr.rel (%p783) target = $region60
      $region59: #{run.12} parent=55 // pred_region
        %p786 = scmp.lt.s32.totalorder %s19, 1
        %s787 = scalar_select %p786, %s19, 1
        %s788 = smul.addr %s787, 18
        %s789 = smul.addr %s788, 8
        %s790 = scalar_lea.vmem %s7, %s789
      $region60: #{run.12} parent=55 // pred_fallthru
        _
    $region56: #{run.12} parent=5 // pred_fallthru
      _
  $region6: #{run.12} parent=0 // loop_footer
    %s17 = sadd.s32 1, %s13
  $region7: #{run.12} parent=0 // loop_footer_branch
    %12 = sbr.rel target = $region3
  $region8: #{run.12} parent=0 // loop_exit
    _

// kernel: run.15
$region0: #{run.15}
  #allocation0 [shape = 'u32[]', space=smem, size = 0x4, offset = 0x4, fixed_abs, tag = 'smem constant byte address 0x4 - core index']
  #allocation1 [shape = 'u32[72,128]{1,0:T(1,128)}', space=vmem, size = 0x9000, scoped, tag = 'internal scratch']
  %s0 = inlined_call_operand.vmem [shape: f32[24,32], index: 0, kind: input, shape index: {}]
  %s1 = inlined_call_operand.vmem [shape: f32[1,32], index: 1, kind: input, shape index: {}]
  %s2 = inlined_call_operand.vmem [shape: f32[1,32], index: 2, kind: input, shape index: {}]
  %s3 = inlined_call_operand.vmem [shape: f32[32,4], index: 3, kind: input, shape index: {}]
  %s4 = inlined_call_operand.vmem [shape: f32[1,4], index: 4, kind: input, shape index: {}]
  %s5 = inlined_call_operand.vmem [shape: f32[24,4], index: 5, kind: output, shape index: {}]
  %s6 = sld [smem:[#allocation0]]
  $region30: #{run.15} parent=0
    _
  %s8 = ssub.s32 1, %s6
  %s9 = scalar_select 0, %s8, %s6
  // Predicated region
  $region2: #{run.15} parent=0 // pred_check
    _
  $region3: #{run.15} parent=0 // pred_check_branch
    %11 = sbr.rel (0) target = $region5
  $region4: #{run.15} parent=0 // pred_region
    _
  $region5: #{run.15} parent=0 // pred_fallthru
    _
  // Predicated region
  $region6: #{run.15} parent=0 // pred_check
    _
  $region7: #{run.15} parent=0 // pred_check_branch
    %13 = sbr.rel (0) target = $region9
  $region8: #{run.15} parent=0 // pred_region
    _
  $region9: #{run.15} parent=0 // pred_fallthru
    _
  // Predicated region
  $region10: #{run.15} parent=0 // pred_check
    _
  $region11: #{run.15} parent=0 // pred_check_branch
    %15 = sbr.rel (0) target = $region13
  $region12: #{run.15} parent=0 // pred_region
    _
  $region13: #{run.15} parent=0 // pred_fallthru
    _
  // Predicated region
  $region14: #{run.15} parent=0 // pred_check
    _
  $region15: #{run.15} parent=0 // pred_check_branch
    %17 = sbr.rel (0) target = $region17
  $region16: #{run.15} parent=0 // pred_region
    _
  $region17: #{run.15} parent=0 // pred_fallthru
    _
  // Predicated region
  $region18: #{run.15} parent=0 // pred_check
    _
  $region19: #{run.15} parent=0 // pred_check_branch
    %19 = sbr.rel (0) target = $region21
  $region20: #{run.15} parent=0 // pred_region
    _
  $region21: #{run.15} parent=0 // pred_fallthru
    _
  %v20 = vld [vmem:[%s0] sm:$0xff]
  %v21 = vld [vmem:[%s0 + $0x8] sm:$0xff]
  %v22 = vld [vmem:[%s0 + $0x10] sm:$0xff]
  %v23 = vld [vmem:[%s1] sm:$0x1]
  %v24 = vld [vmem:[%s2] sm:$0x1]
  %vm25 = vcmask 261120
  %v26 = vsel %vm25, %v20, 0.0
  %27 = vadd.xlane.f32.xlu0 %v26
  %v28 = vpop.xlane.xlu0 %27
  %v29 = vsel %vm25, %v21, 0.0
  %30 = vadd.xlane.f32.xlu0 %v29
  %v31 = vpop.xlane.xlu0 %30
  %v32 = vsel %vm25, %v22, 0.0
  %33 = vadd.xlane.f32.xlu0 %v32
  %v34 = vpop.xlane.xlu0 %33
  %v35 = vrcp.pop 32.0
  %v36 = vmul.f32 32.0, %v35
  %v37 = vsub.f32 1.0, %v36
  %v38 = vmul.f32 %v35, %v37
  %v39 = vadd.f32 %v35, %v38
  %vm40 = vweird.f32 %v35
  %v41 = vsel %vm40, %v35, %v39
  %v42 = vmul.f32 %v28, %v41
  %v43 = vmul.f32 %v31, %v41
  %v44 = vmul.f32 %v34, %v41
  %v45 = vsub.f32 %v20, %v42
  %v46 = vsub.f32 %v21, %v43
  %v47 = vsub.f32 %v22, %v44
  %v48 = vmul.f32 %v45, %v45
  %v49 = vmul.f32 %v46, %v46
  %v50 = vmul.f32 %v47, %v47
  %v51 = vsel %vm25, %v48, 0.0
  %52 = vadd.xlane.f32.xlu0 %v51
  %v53 = vpop.xlane.xlu0 %52
  %v54 = vsel %vm25, %v49, 0.0
  %55 = vadd.xlane.f32.xlu0 %v54
  %v56 = vpop.xlane.xlu0 %55
  %v57 = vsel %vm25, %v50, 0.0
  %58 = vadd.xlane.f32.xlu0 %v57
  %v59 = vpop.xlane.xlu0 %58
  %v60 = vmul.f32 %v53, %v41
  %v61 = vmul.f32 %v56, %v41
  %v62 = vmul.f32 %v59, %v41
  %v63 = vadd.f32 %v60, 1e-05
  %v64 = vadd.f32 %v61, 1e-05
  %v65 = vadd.f32 %v62, 1e-05
  %v66 = vrsqrt.pop %v63
  %v67 = vmul.f32 %v66, %v63
  %v68 = vmul.f32 %v67, %v66
  %v69 = vmul.f32 0.5, %v68
  %v70 = vsub.f32 1.5, %v69
  %v71 = vmul.f32 %v66, %v70
  %vm72 = vweird.f32 %v63
  %vm73 = vweird.f32 %v66
  %vm74 = vmor %vm72, %vm73
  %v75 = vsel %vm74, %v66, %v71
  %v76 = vrsqrt.pop %v64
  %v77 = vmul.f32 %v76, %v64
  %v78 = vmul.f32 %v77, %v76
  %v79 = vmul.f32 0.5, %v78
  %v80 = vsub.f32 1.5, %v79
  %v81 = vmul.f32 %v76, %v80
  %vm82 = vweird.f32 %v64
  %vm83 = vweird.f32 %v76
  %vm84 = vmor %vm82, %vm83
  %v85 = vsel %vm84, %v76, %v81
  %v86 = vrsqrt.pop %v65
  %v87 = vmul.f32 %v86, %v65
  %v88 = vmul.f32 %v87, %v86
  %v89 = vmul.f32 0.5, %v88
  %v90 = vsub.f32 1.5, %v89
  %v91 = vmul.f32 %v86, %v90
  %vm92 = vweird.f32 %v65
  %vm93 = vweird.f32 %v86
  %vm94 = vmor %vm92, %vm93
  %v95 = vsel %vm94, %v86, %v91
  %v96 = vmul.f32 %v45, %v75
  %v97 = vmul.f32 %v46, %v85
  %v98 = vmul.f32 %v47, %v95
  %v100 = vperm.slane %v23, 0
  %v102 = vmul.f32 %v96, %v100
  %v103 = vmul.f32 %v97, %v100
  %v104 = vmul.f32 %v98, %v100
  %v106 = vperm.slane %v24, 0
  %v108 = vadd.f32 %v102, %v106
  %v109 = vadd.f32 %v103, %v106
  %v110 = vadd.f32 %v104, %v106
  %v111 = vld [vmem:[%s3] sm:$0xff]
  %v112 = vld [vmem:[%s3 + $0x8] sm:$0xff]
  %v113 = vld [vmem:[%s3 + $0x10] sm:$0xff]
  %v114 = vld [vmem:[%s3 + $0x18] sm:$0xff]
  %v115 = vld [vmem:[%s4] sm:$0x1]
  %v117 = vperm.slane %v115, 0
  %v120 = vsel %vm25, %v108, 0
  %v123 = vsel %vm25, %v109, 0
  %v126 = vsel %vm25, %v110, 0
  %128 = vmatpush.msra.mxu0 0.0
  %129 = vmatpush.msra.mxu0 0.0
  %130 = vmatpush.msra.mxu0 0.0
  %131 = vmatpush.msra.mxu0 0.0
  %132 = vmatpush.msra.mxu0 0.0
  %133 = vmatpush.msra.mxu0 0.0
  %134 = vmatpush.msra.mxu0 0.0
  %135 = vmatpush.msra.mxu0 0.0
  %136 = vmatpush.msra.mxu0 0.0
  %137 = vmatpush.msra.mxu0 0.0
  %138 = vmatpush.msra.mxu0 0.0
  %139 = vmatpush.msra.mxu0 0.0
  %140 = vmatpush.msra.mxu0 %v114
  %141 = vmatpush.msra.mxu0 %v113
  %142 = vmatpush.msra.mxu0 %v112
  %143 = vmatpush.msra.mxu0 %v111
  %144 = vmatmul.f32.gmra.mxu0 %v120
  %v145 = vpop.f32.mrf.mxu0
  %v146 = vadd.f32 %v117, %v145
  %147 = vmatmul.f32.gmra.mxu0 %v123
  %v148 = vpop.f32.mrf.mxu0
  %v149 = vadd.f32 %v117, %v148
  %150 = vmatmul.f32.gmra.mxu0 %v126
  %v151 = vpop.f32.mrf.mxu0
  %v152 = vadd.f32 %v117, %v151
  %153 = vdwg.mxu0
  %vm154 = vcmask 31744
  %155 = vst.msk [vmem:[%s5] sm:$0xff] %vm154, %v146
  %156 = vst.msk [vmem:[%s5 + $0x8] sm:$0xff] %vm154, %v149
  %157 = vst.msk [vmem:[%s5 + $0x10] sm:$0xff] %vm154, %v152
  // Predicated region
  $region22: #{run.15} parent=0 // pred_check
    _
  $region23: #{run.15} parent=0 // pred_check_branch
    %159 = sbr.rel (0) target = $region25
  $region24: #{run.15} parent=0 // pred_region
    _
  $region25: #{run.15} parent=0 // pred_fallthru
    _
  // Predicated region
  $region26: #{run.15} parent=0 // pred_check
    _
  $region27: #{run.15} parent=0 // pred_check_branch
    %161 = sbr.rel (0) target = $region29
  $region28: #{run.15} parent=0 // pred_region
    _
  $region29: #{run.15} parent=0 // pred_fallthru
    _

// kernel: run.14
$region0: #{run.14}
  #allocation0 [shape = 'u32[]', space=smem, size = 0x4, offset = 0x4, fixed_abs, tag = 'smem constant byte address 0x4 - core index']
  #allocation1 [shape = 'u32[72,128]{1,0:T(1,128)}', space=vmem, size = 0x9000, scoped, tag = 'internal scratch']
  %s0 = inlined_call_operand.vmem [shape: f32[2,12,32], index: 0, kind: input, shape index: {}]
  %s1 = inlined_call_operand.vmem [shape: f32[2,16,32], index: 1, kind: input, shape index: {}]
  %s2 = inlined_call_operand.vmem [shape: f32[2,12,12,12], index: 2, kind: input, shape index: {}]
  %s3 = inlined_call_operand.vmem [shape: f32[2,12,12,16], index: 3, kind: input, shape index: {}]
  %s4 = inlined_call_operand.vmem [shape: f32[32,96], index: 4, kind: input, shape index: {}]
  %s5 = inlined_call_operand.vmem [shape: f32[32,96], index: 5, kind: input, shape index: {}]
  %s6 = inlined_call_operand.vmem [shape: f32[1,32], index: 6, kind: input, shape index: {}]
  %s7 = inlined_call_operand.vmem [shape: f32[1,32], index: 7, kind: input, shape index: {}]
  %s8 = inlined_call_operand.vmem [shape: f32[1,32], index: 8, kind: input, shape index: {}]
  %s9 = inlined_call_operand.vmem [shape: f32[1,32], index: 9, kind: input, shape index: {}]
  %s10 = inlined_call_operand.vmem [shape: f32[32,64], index: 10, kind: input, shape index: {}]
  %s11 = inlined_call_operand.vmem [shape: f32[1,64], index: 11, kind: input, shape index: {}]
  %s12 = inlined_call_operand.vmem [shape: f32[64,32], index: 12, kind: input, shape index: {}]
  %s13 = inlined_call_operand.vmem [shape: f32[1,32], index: 13, kind: input, shape index: {}]
  %s14 = inlined_call_operand.vmem [shape: f32[1,32], index: 14, kind: input, shape index: {}]
  %s15 = inlined_call_operand.vmem [shape: f32[1,32], index: 15, kind: input, shape index: {}]
  %s16 = inlined_call_operand.vmem [shape: f32[2,12,32], index: 16, kind: output, shape index: {}]
  %s17 = sld [smem:[#allocation0]]
  $region97: #{run.14} parent=0
    _
  %s19 = ssub.s32 1, %s17
  %s20 = scalar_select 0, %s19, %s17
  loop: start=0, step=1, limit=4
  $region2: #{run.14} parent=0 // loop_pre_header
    _
  $region3: #{run.14} parent=0 // loop_header
    %s22 = sphi 0, %s26
    %p23 = scmp.ge.s32.totalorder %s22, 4
    %s32 = sphi 0, %s34
    %s35 = sphi 0, %s32
    %s36 = sphi 0, %s35
    %s52 = sphi 0, %s36
    %s58 = sphi 0, %s60
    %s61 = sphi 0, %s58
    %s62 = sphi 0, %s61
    %s78 = sphi 0, %s62
    %s84 = sphi 0, %s86
    %s87 = sphi 0, %s84
    %s88 = sphi 0, %s87
    %s104 = sphi 0, %s88
    %s110 = sphi 0, %s112
    %s113 = sphi 0, %s110
    %s114 = sphi 0, %s113
    %s130 = sphi 0, %s114
    %s134 = sphi 0, %s134
    %s136 = sphi 0, %s134
    %s137 = sphi 0, %s136
    %s151 = sphi 0, %s137
    %s155 = sphi 0, %s155
    %s157 = sphi 0, %s155
    %s158 = sphi 0, %s157
    %s172 = sphi 0, %s158
    %s176 = sphi 0, %s176
    %s178 = sphi 0, %s176
    %s179 = sphi 0, %s178
    %s193 = sphi 0, %s179
    %s197 = sphi 0, %s197
    %s199 = sphi 0, %s197
    %s200 = sphi 0, %s199
    %s214 = sphi 0, %s200
    %s218 = sphi 0, %s218
    %s220 = sphi 0, %s218
    %s221 = sphi 0, %s220
    %s235 = sphi 0, %s221
    %s239 = sphi 0, %s239
    %s241 = sphi 0, %s239
    %s242 = sphi 0, %s241
    %s256 = sphi 0, %s242
    %s260 = sphi 0, %s260
    %s262 = sphi 0, %s260
    %s263 = sphi 0, %s262
    %s277 = sphi 0, %s263
    %s281 = sphi 0, %s281
    %s283 = sphi 0, %s281
    %s284 = sphi 0, %s283
    %s298 = sphi 0, %s284
    %s302 = sphi 0, %s302
    %s304 = sphi 0, %s302
    %s305 = sphi 0, %s304
    %s319 = sphi 0, %s305
    %s323 = sphi 0, %s323
    %s325 = sphi 0, %s323
    %s326 = sphi 0, %s325
    %s340 = sphi 0, %s326
    %s344 = sphi 0, %s344
    %s346 = sphi 0, %s344
    %s347 = sphi 0, %s346
    %s361 = sphi 0, %s347
    %s365 = sphi 0, %s365
    %s367 = sphi 0, %s365
    %s368 = sphi 0, %s367
    %s382 = sphi 0, %s368
    %s388 = sphi 0, %s390
    %s391 = sphi 0, %s388
    %s392 = sphi 0, %s391
    %s408 = sphi 0, %s392
  $region4: #{run.14} parent=0 // loop_header_branch
    %25 = sbr.rel (%p23) target = $region8
  $region5: #{run.14} parent=0 // loop_body
    %s27 = ssub.s32 %s22, 1
    %s28 = ssub.s32 %s22, 2
    %s29 = sadd.s32 %s22, 1
    %s30 = ssub.s32 %s22, %s29
    %p31 = scmp.eq.s32.totalorder %s30, 0
    %s33 = sadd.s32 %s32, 1
    %s34 = scalar_select %p31, %s32, %s33
    %p37 = pneg %p31
    %p38 = scmp.eq.s32.totalorder %s22, 1
    %p39 = por %p37, %p38
    %p40 = scmp.ne.s32.totalorder %s32, %s35
    %p41 = scmp.eq.s32.totalorder %s22, 0
    %p42 = por %p40, %p41
    %p43 = scmp.ne.s32.totalorder %s32, %s35
    %p44 = scmp.eq.s32.totalorder %s27, 1
    %p45 = por %p43, %p44
    %p46 = scmp.ne.s32.totalorder %s35, %s36
    %p47 = scmp.eq.s32.totalorder %s27, 0
    %p48 = por %p46, %p47
    %p49 = scmp.ne.s32.totalorder %s35, %s36
    %p50 = scmp.eq.s32.totalorder %s28, 1
    %p51 = por %p49, %p50
    %p53 = scmp.ne.s32.totalorder %s36, %s52
    %p54 = scmp.eq.s32.totalorder %s28, 0
    %p55 = por %p53, %p54
    %s56 = ssub.s32 %s22, %s29
    %p57 = scmp.eq.s32.totalorder %s56, 0
    %s59 = sadd.s32 %s58, 1
    %s60 = scalar_select %p57, %s58, %s59
    %p63 = pneg %p57
    %p64 = scmp.eq.s32.totalorder %s22, 1
    %p65 = por %p63, %p64
    %p66 = scmp.ne.s32.totalorder %s58, %s61
    %p67 = scmp.eq.s32.totalorder %s22, 0
    %p68 = por %p66, %p67
    %p69 = scmp.ne.s32.totalorder %s58, %s61
    %p70 = scmp.eq.s32.totalorder %s27, 1
    %p71 = por %p69, %p70
    %p72 = scmp.ne.s32.totalorder %s61, %s62
    %p73 = scmp.eq.s32.totalorder %s27, 0
    %p74 = por %p72, %p73
    %p75 = scmp.ne.s32.totalorder %s61, %s62
    %p76 = scmp.eq.s32.totalorder %s28, 1
    %p77 = por %p75, %p76
    %p79 = scmp.ne.s32.totalorder %s62, %s78
    %p80 = scmp.eq.s32.totalorder %s28, 0
    %p81 = por %p79, %p80
    %s82 = ssub.s32 %s22, %s29
    %p83 = scmp.eq.s32.totalorder %s82, 0
    %s85 = sadd.s32 %s84, 1
    %s86 = scalar_select %p83, %s84, %s85
    %p89 = pneg %p83
    %p90 = scmp.eq.s32.totalorder %s22, 1
    %p91 = por %p89, %p90
    %p92 = scmp.ne.s32.totalorder %s84, %s87
    %p93 = scmp.eq.s32.totalorder %s22, 0
    %p94 = por %p92, %p93
    %p95 = scmp.ne.s32.totalorder %s84, %s87
    %p96 = scmp.eq.s32.totalorder %s27, 1
    %p97 = por %p95, %p96
    %p98 = scmp.ne.s32.totalorder %s87, %s88
    %p99 = scmp.eq.s32.totalorder %s27, 0
    %p100 = por %p98, %p99
    %p101 = scmp.ne.s32.totalorder %s87, %s88
    %p102 = scmp.eq.s32.totalorder %s28, 1
    %p103 = por %p101, %p102
    %p105 = scmp.ne.s32.totalorder %s88, %s104
    %p106 = scmp.eq.s32.totalorder %s28, 0
    %p107 = por %p105, %p106
    %s108 = ssub.s32 %s22, %s29
    %p109 = scmp.eq.s32.totalorder %s108, 0
    %s111 = sadd.s32 %s110, 1
    %s112 = scalar_select %p109, %s110, %s111
    %p115 = pneg %p109
    %p116 = scmp.eq.s32.totalorder %s22, 1
    %p117 = por %p115, %p116
    %p118 = scmp.ne.s32.totalorder %s110, %s113
    %p119 = scmp.eq.s32.totalorder %s22, 0
    %p120 = por %p118, %p119
    %p121 = scmp.ne.s32.totalorder %s110, %s113
    %p122 = scmp.eq.s32.totalorder %s27, 1
    %p123 = por %p121, %p122
    %p124 = scmp.ne.s32.totalorder %s113, %s114
    %p125 = scmp.eq.s32.totalorder %s27, 0
    %p126 = por %p124, %p125
    %p127 = scmp.ne.s32.totalorder %s113, %s114
    %p128 = scmp.eq.s32.totalorder %s28, 1
    %p129 = por %p127, %p128
    %p131 = scmp.ne.s32.totalorder %s114, %s130
    %p132 = scmp.eq.s32.totalorder %s28, 0
    %p133 = por %p131, %p132
    %s135 = sadd.s32 %s134, 1
    %p138 = scmp.eq.s32.totalorder %s22, 1
    %p139 = scmp.ne.s32.totalorder %s134, %s136
    %p140 = scmp.eq.s32.totalorder %s22, 0
    %p141 = por %p139, %p140
    %p142 = scmp.ne.s32.totalorder %s134, %s136
    %p143 = scmp.eq.s32.totalorder %s27, 1
    %p144 = por %p142, %p143
    %p145 = scmp.ne.s32.totalorder %s136, %s137
    %p146 = scmp.eq.s32.totalorder %s27, 0
    %p147 = por %p145, %p146
    %p148 = scmp.ne.s32.totalorder %s136, %s137
    %p149 = scmp.eq.s32.totalorder %s28, 1
    %p150 = por %p148, %p149
    %p152 = scmp.ne.s32.totalorder %s137, %s151
    %p153 = scmp.eq.s32.totalorder %s28, 0
    %p154 = por %p152, %p153
    %s156 = sadd.s32 %s155, 1
    %p159 = scmp.eq.s32.totalorder %s22, 1
    %p160 = scmp.ne.s32.totalorder %s155, %s157
    %p161 = scmp.eq.s32.totalorder %s22, 0
    %p162 = por %p160, %p161
    %p163 = scmp.ne.s32.totalorder %s155, %s157
    %p164 = scmp.eq.s32.totalorder %s27, 1
    %p165 = por %p163, %p164
    %p166 = scmp.ne.s32.totalorder %s157, %s158
    %p167 = scmp.eq.s32.totalorder %s27, 0
    %p168 = por %p166, %p167
    %p169 = scmp.ne.s32.totalorder %s157, %s158
    %p170 = scmp.eq.s32.totalorder %s28, 1
    %p171 = por %p169, %p170
    %p173 = scmp.ne.s32.totalorder %s158, %s172
    %p174 = scmp.eq.s32.totalorder %s28, 0
    %p175 = por %p173, %p174
    %s177 = sadd.s32 %s176, 1
    %p180 = scmp.eq.s32.totalorder %s22, 1
    %p181 = scmp.ne.s32.totalorder %s176, %s178
    %p182 = scmp.eq.s32.totalorder %s22, 0
    %p183 = por %p181, %p182
    %p184 = scmp.ne.s32.totalorder %s176, %s178
    %p185 = scmp.eq.s32.totalorder %s27, 1
    %p186 = por %p184, %p185
    %p187 = scmp.ne.s32.totalorder %s178, %s179
    %p188 = scmp.eq.s32.totalorder %s27, 0
    %p189 = por %p187, %p188
    %p190 = scmp.ne.s32.totalorder %s178, %s179
    %p191 = scmp.eq.s32.totalorder %s28, 1
    %p192 = por %p190, %p191
    %p194 = scmp.ne.s32.totalorder %s179, %s193
    %p195 = scmp.eq.s32.totalorder %s28, 0
    %p196 = por %p194, %p195
    %s198 = sadd.s32 %s197, 1
    %p201 = scmp.eq.s32.totalorder %s22, 1
    %p202 = scmp.ne.s32.totalorder %s197, %s199
    %p203 = scmp.eq.s32.totalorder %s22, 0
    %p204 = por %p202, %p203
    %p205 = scmp.ne.s32.totalorder %s197, %s199
    %p206 = scmp.eq.s32.totalorder %s27, 1
    %p207 = por %p205, %p206
    %p208 = scmp.ne.s32.totalorder %s199, %s200
    %p209 = scmp.eq.s32.totalorder %s27, 0
    %p210 = por %p208, %p209
    %p211 = scmp.ne.s32.totalorder %s199, %s200
    %p212 = scmp.eq.s32.totalorder %s28, 1
    %p213 = por %p211, %p212
    %p215 = scmp.ne.s32.totalorder %s200, %s214
    %p216 = scmp.eq.s32.totalorder %s28, 0
    %p217 = por %p215, %p216
    %s219 = sadd.s32 %s218, 1
    %p222 = scmp.eq.s32.totalorder %s22, 1
    %p223 = scmp.ne.s32.totalorder %s218, %s220
    %p224 = scmp.eq.s32.totalorder %s22, 0
    %p225 = por %p223, %p224
    %p226 = scmp.ne.s32.totalorder %s218, %s220
    %p227 = scmp.eq.s32.totalorder %s27, 1
    %p228 = por %p226, %p227
    %p229 = scmp.ne.s32.totalorder %s220, %s221
    %p230 = scmp.eq.s32.totalorder %s27, 0
    %p231 = por %p229, %p230
    %p232 = scmp.ne.s32.totalorder %s220, %s221
    %p233 = scmp.eq.s32.totalorder %s28, 1
    %p234 = por %p232, %p233
    %p236 = scmp.ne.s32.totalorder %s221, %s235
    %p237 = scmp.eq.s32.totalorder %s28, 0
    %p238 = por %p236, %p237
    %s240 = sadd.s32 %s239, 1
    %p243 = scmp.eq.s32.totalorder %s22, 1
    %p244 = scmp.ne.s32.totalorder %s239, %s241
    %p245 = scmp.eq.s32.totalorder %s22, 0
    %p246 = por %p244, %p245
    %p247 = scmp.ne.s32.totalorder %s239, %s241
    %p248 = scmp.eq.s32.totalorder %s27, 1
    %p249 = por %p247, %p248
    %p250 = scmp.ne.s32.totalorder %s241, %s242
    %p251 = scmp.eq.s32.totalorder %s27, 0
    %p252 = por %p250, %p251
    %p253 = scmp.ne.s32.totalorder %s241, %s242
    %p254 = scmp.eq.s32.totalorder %s28, 1
    %p255 = por %p253, %p254
    %p257 = scmp.ne.s32.totalorder %s242, %s256
    %p258 = scmp.eq.s32.totalorder %s28, 0
    %p259 = por %p257, %p258
    %s261 = sadd.s32 %s260, 1
    %p264 = scmp.eq.s32.totalorder %s22, 1
    %p265 = scmp.ne.s32.totalorder %s260, %s262
    %p266 = scmp.eq.s32.totalorder %s22, 0
    %p267 = por %p265, %p266
    %p268 = scmp.ne.s32.totalorder %s260, %s262
    %p269 = scmp.eq.s32.totalorder %s27, 1
    %p270 = por %p268, %p269
    %p271 = scmp.ne.s32.totalorder %s262, %s263
    %p272 = scmp.eq.s32.totalorder %s27, 0
    %p273 = por %p271, %p272
    %p274 = scmp.ne.s32.totalorder %s262, %s263
    %p275 = scmp.eq.s32.totalorder %s28, 1
    %p276 = por %p274, %p275
    %p278 = scmp.ne.s32.totalorder %s263, %s277
    %p279 = scmp.eq.s32.totalorder %s28, 0
    %p280 = por %p278, %p279
    %s282 = sadd.s32 %s281, 1
    %p285 = scmp.eq.s32.totalorder %s22, 1
    %p286 = scmp.ne.s32.totalorder %s281, %s283
    %p287 = scmp.eq.s32.totalorder %s22, 0
    %p288 = por %p286, %p287
    %p289 = scmp.ne.s32.totalorder %s281, %s283
    %p290 = scmp.eq.s32.totalorder %s27, 1
    %p291 = por %p289, %p290
    %p292 = scmp.ne.s32.totalorder %s283, %s284
    %p293 = scmp.eq.s32.totalorder %s27, 0
    %p294 = por %p292, %p293
    %p295 = scmp.ne.s32.totalorder %s283, %s284
    %p296 = scmp.eq.s32.totalorder %s28, 1
    %p297 = por %p295, %p296
    %p299 = scmp.ne.s32.totalorder %s284, %s298
    %p300 = scmp.eq.s32.totalorder %s28, 0
    %p301 = por %p299, %p300
    %s303 = sadd.s32 %s302, 1
    %p306 = scmp.eq.s32.totalorder %s22, 1
    %p307 = scmp.ne.s32.totalorder %s302, %s304
    %p308 = scmp.eq.s32.totalorder %s22, 0
    %p309 = por %p307, %p308
    %p310 = scmp.ne.s32.totalorder %s302, %s304
    %p311 = scmp.eq.s32.totalorder %s27, 1
    %p312 = por %p310, %p311
    %p313 = scmp.ne.s32.totalorder %s304, %s305
    %p314 = scmp.eq.s32.totalorder %s27, 0
    %p315 = por %p313, %p314
    %p316 = scmp.ne.s32.totalorder %s304, %s305
    %p317 = scmp.eq.s32.totalorder %s28, 1
    %p318 = por %p316, %p317
    %p320 = scmp.ne.s32.totalorder %s305, %s319
    %p321 = scmp.eq.s32.totalorder %s28, 0
    %p322 = por %p320, %p321
    %s324 = sadd.s32 %s323, 1
    %p327 = scmp.eq.s32.totalorder %s22, 1
    %p328 = scmp.ne.s32.totalorder %s323, %s325
    %p329 = scmp.eq.s32.totalorder %s22, 0
    %p330 = por %p328, %p329
    %p331 = scmp.ne.s32.totalorder %s323, %s325
    %p332 = scmp.eq.s32.totalorder %s27, 1
    %p333 = por %p331, %p332
    %p334 = scmp.ne.s32.totalorder %s325, %s326
    %p335 = scmp.eq.s32.totalorder %s27, 0
    %p336 = por %p334, %p335
    %p337 = scmp.ne.s32.totalorder %s325, %s326
    %p338 = scmp.eq.s32.totalorder %s28, 1
    %p339 = por %p337, %p338
    %p341 = scmp.ne.s32.totalorder %s326, %s340
    %p342 = scmp.eq.s32.totalorder %s28, 0
    %p343 = por %p341, %p342
    %s345 = sadd.s32 %s344, 1
    %p348 = scmp.eq.s32.totalorder %s22, 1
    %p349 = scmp.ne.s32.totalorder %s344, %s346
    %p350 = scmp.eq.s32.totalorder %s22, 0
    %p351 = por %p349, %p350
    %p352 = scmp.ne.s32.totalorder %s344, %s346
    %p353 = scmp.eq.s32.totalorder %s27, 1
    %p354 = por %p352, %p353
    %p355 = scmp.ne.s32.totalorder %s346, %s347
    %p356 = scmp.eq.s32.totalorder %s27, 0
    %p357 = por %p355, %p356
    %p358 = scmp.ne.s32.totalorder %s346, %s347
    %p359 = scmp.eq.s32.totalorder %s28, 1
    %p360 = por %p358, %p359
    %p362 = scmp.ne.s32.totalorder %s347, %s361
    %p363 = scmp.eq.s32.totalorder %s28, 0
    %p364 = por %p362, %p363
    %s366 = sadd.s32 %s365, 1
    %p369 = scmp.eq.s32.totalorder %s22, 1
    %p370 = scmp.ne.s32.totalorder %s365, %s367
    %p371 = scmp.eq.s32.totalorder %s22, 0
    %p372 = por %p370, %p371
    %p373 = scmp.ne.s32.totalorder %s365, %s367
    %p374 = scmp.eq.s32.totalorder %s27, 1
    %p375 = por %p373, %p374
    %p376 = scmp.ne.s32.totalorder %s367, %s368
    %p377 = scmp.eq.s32.totalorder %s27, 0
    %p378 = por %p376, %p377
    %p379 = scmp.ne.s32.totalorder %s367, %s368
    %p380 = scmp.eq.s32.totalorder %s28, 1
    %p381 = por %p379, %p380
    %p383 = scmp.ne.s32.totalorder %s368, %s382
    %p384 = scmp.eq.s32.totalorder %s28, 0
    %p385 = por %p383, %p384
    %s386 = ssub.s32 %s22, %s29
    %p387 = scmp.eq.s32.totalorder %s386, 0
    %s389 = sadd.s32 %s388, 1
    %s390 = scalar_select %p387, %s388, %s389
    %p393 = pneg %p387
    %p394 = scmp.eq.s32.totalorder %s22, 1
    %p395 = por %p393, %p394
    %p396 = scmp.ne.s32.totalorder %s388, %s391
    %p397 = scmp.eq.s32.totalorder %s22, 0
    %p398 = por %p396, %p397
    %p399 = scmp.ne.s32.totalorder %s388, %s391
    %p400 = scmp.eq.s32.totalorder %s27, 1
    %p401 = por %p399, %p400
    %p402 = scmp.ne.s32.totalorder %s391, %s392
    %p403 = scmp.eq.s32.totalorder %s27, 0
    %p404 = por %p402, %p403
    %p405 = scmp.ne.s32.totalorder %s391, %s392
    %p406 = scmp.eq.s32.totalorder %s28, 1
    %p407 = por %p405, %p406
    %p409 = scmp.ne.s32.totalorder %s392, %s408
    %p410 = scmp.eq.s32.totalorder %s28, 0
    %p411 = por %p409, %p410
    %p412 = scmp.le.s32.totalorder 1, %s22
    %p413 = scmp.lt.s32.totalorder %s22, 3
    %p414 = pnand %p412, %p413
    %p415 = pneg %p414
    // Predicated region
    $region9: #{run.14} parent=5 // pred_check
      _
    $region10: #{run.14} parent=5 // pred_check_branch
      %417 = sbr.rel (%p414) target = $region12
    $region11: #{run.14} parent=5 // pred_region
      %s418 = ssub.s32 %s22, 1
      // Predicated region
      $region13: #{run.14} parent=11 // pred_check
        %p419 = pneg %p147
      $region14: #{run.14} parent=11 // pred_check_branch
        %421 = sbr.rel (%p419) target = $region16
      $region15: #{run.14} parent=11 // pred_region
        _
      $region16: #{run.14} parent=11 // pred_fallthru
        _
      // Predicated region
      $region17: #{run.14} parent=11 // pred_check
        %p422 = pneg %p168
      $region18: #{run.14} parent=11 // pred_check_branch
        %424 = sbr.rel (%p422) target = $region20
      $region19: #{run.14} parent=11 // pred_region
        _
      $region20: #{run.14} parent=11 // pred_fallthru
        _
      // Predicated region
      $region21: #{run.14} parent=11 // pred_check
        %p425 = pneg %p189
      $region22: #{run.14} parent=11 // pred_check_branch
        %427 = sbr.rel (%p425) target = $region24
      $region23: #{run.14} parent=11 // pred_region
        _
      $region24: #{run.14} parent=11 // pred_fallthru
        _
      // Predicated region
      $region25: #{run.14} parent=11 // pred_check
        %p428 = pneg %p210
      $region26: #{run.14} parent=11 // pred_check_branch
        %430 = sbr.rel (%p428) target = $region28
      $region27: #{run.14} parent=11 // pred_region
        _
      $region28: #{run.14} parent=11 // pred_fallthru
        _
      // Predicated region
      $region29: #{run.14} parent=11 // pred_check
        %p431 = pneg %p231
      $region30: #{run.14} parent=11 // pred_check_branch
        %433 = sbr.rel (%p431) target = $region32
      $region31: #{run.14} parent=11 // pred_region
        _
      $region32: #{run.14} parent=11 // pred_fallthru
        _
      // Predicated region
      $region33: #{run.14} parent=11 // pred_check
        %p434 = pneg %p252
      $region34: #{run.14} parent=11 // pred_check_branch
        %436 = sbr.rel (%p434) target = $region36
      $region35: #{run.14} parent=11 // pred_region
        _
      $region36: #{run.14} parent=11 // pred_fallthru
        _
      // Predicated region
      $region37: #{run.14} parent=11 // pred_check
        %p437 = pneg %p273
      $region38: #{run.14} parent=11 // pred_check_branch
        %439 = sbr.rel (%p437) target = $region40
      $region39: #{run.14} parent=11 // pred_region
        _
      $region40: #{run.14} parent=11 // pred_fallthru
        _
      // Predicated region
      $region41: #{run.14} parent=11 // pred_check
        %p440 = pneg %p294
      $region42: #{run.14} parent=11 // pred_check_branch
        %442 = sbr.rel (%p440) target = $region44
      $region43: #{run.14} parent=11 // pred_region
        _
      $region44: #{run.14} parent=11 // pred_fallthru
        _
      // Predicated region
      $region45: #{run.14} parent=11 // pred_check
        %p443 = pneg %p315
      $region46: #{run.14} parent=11 // pred_check_branch
        %445 = sbr.rel (%p443) target = $region48
      $region47: #{run.14} parent=11 // pred_region
        _
      $region48: #{run.14} parent=11 // pred_fallthru
        _
      // Predicated region
      $region49: #{run.14} parent=11 // pred_check
        %p446 = pneg %p336
      $region50: #{run.14} parent=11 // pred_check_branch
        %448 = sbr.rel (%p446) target = $region52
      $region51: #{run.14} parent=11 // pred_region
        _
      $region52: #{run.14} parent=11 // pred_fallthru
        _
      // Predicated region
      $region53: #{run.14} parent=11 // pred_check
        %p449 = pneg %p357
      $region54: #{run.14} parent=11 // pred_check_branch
        %451 = sbr.rel (%p449) target = $region56
      $region55: #{run.14} parent=11 // pred_region
        _
      $region56: #{run.14} parent=11 // pred_fallthru
        _
      // Predicated region
      $region57: #{run.14} parent=11 // pred_check
        %p452 = pneg %p378
      $region58: #{run.14} parent=11 // pred_check_branch
        %454 = sbr.rel (%p452) target = $region60
      $region59: #{run.14} parent=11 // pred_region
        _
      $region60: #{run.14} parent=11 // pred_fallthru
        _
    $region12: #{run.14} parent=5 // pred_fallthru
      _
    %p455 = scmp.lt.s32.totalorder %s22, 2
    // Predicated region
    $region61: #{run.14} parent=5 // pred_check
      %p456 = pneg %p455
    $region62: #{run.14} parent=5 // pred_check_branch
      %458 = sbr.rel (%p456) target = $region64
    $region63: #{run.14} parent=5 // pred_region
      // Predicated region
      $region65: #{run.14} parent=63 // pred_check
        %p459 = pneg %p42
      $region66: #{run.14} parent=63 // pred_check_branch
        %461 = sbr.rel (%p459) target = $region68
      $region67: #{run.14} parent=63 // pred_region
        %p462 = scmp.lt.s32.totalorder %s22, 1
        %s463 = scalar_select %p462, %s22, 1
        %s464 = smul.addr %s463, 2
        %s465 = smul.addr %s464, 8
        %s466 = scalar_lea.vmem %s0, %s465
      $region68: #{run.14} parent=63 // pred_fallthru
        _
      // Predicated region
      $region69: #{run.14} parent=63 // pred_check
        %p467 = pneg %p68
      $region70: #{run.14} parent=63 // pred_check_branch
        %469 = sbr.rel (%p467) target = $region72
      $region71: #{run.14} parent=63 // pred_region
        %p470 = scmp.lt.s32.totalorder %s22, 1
        %s471 = scalar_select %p470, %s22, 1
        %s472 = smul.addr %s471, 2
        %s473 = smul.addr %s472, 8
        %s474 = scalar_lea.vmem %s1, %s473
      $region72: #{run.14} parent=63 // pred_fallthru
        _
      // Predicated region
      $region73: #{run.14} parent=63 // pred_check
        %p475 = pneg %p94
      $region74: #{run.14} parent=63 // pred_check_branch
        %477 = sbr.rel (%p475) target = $region76
      $region75: #{run.14} parent=63 // pred_region
        %p478 = scmp.lt.s32.totalorder %s22, 1
        %s479 = scalar_select %p478, %s22, 1
        %s480 = smul.addr %s479, 24
        %s481 = smul.addr %s480, 8
        %s482 = scalar_lea.vmem %s2, %s481
      $region76: #{run.14} parent=63 // pred_fallthru
        _
      // Predicated region
      $region77: #{run.14} parent=63 // pred_check
        %p483 = pneg %p120
      $region78: #{run.14} parent=63 // pred_check_branch
        %485 = sbr.rel (%p483) target = $region80
      $region79: #{run.14} parent=63 // pred_region
        %p486 = scmp.lt.s32.totalorder %s22, 1
        %s487 = scalar_select %p486, %s22, 1
        %s488 = smul.addr %s487, 24
        %s489 = smul.addr %s488, 8
        %s490 = scalar_lea.vmem %s3, %s489
      $region80: #{run.14} parent=63 // pred_fallthru
        _
    $region64: #{run.14} parent=5 // pred_fallthru
      _
    %p491 = scmp.le.s32.totalorder 1, %s22
    %p492 = scmp.lt.s32.totalorder %s22, 3
    %p493 = pnand %p491, %p492
    %p494 = pneg %p493
    // Predicated region
    $region81: #{run.14} parent=5 // pred_check
      _
    $region82: #{run.14} parent=5 // pred_check_branch
      %496 = sbr.rel (%p493) target = $region84
    $region83: #{run.14} parent=5 // pred_region
      %s497 = ssub.s32 %s22, 1
      %p498 = scmp.lt.s32.totalorder %s27, 1
      %s499 = scalar_select %p498, %s27, 1
      %s500 = smul.addr %s499, 2
      %s501 = smul.addr %s500, 8
      %s502 = scalar_lea.vmem %s0, %s501
      %p503 = pneg %p48
      %p504 = pneg %p45
      %p505 = scmp.lt.s32.totalorder %s27, 1
      %s506 = scalar_select %p505, %s27, 1
      %s507 = smul.addr %s506, 2
      %s508 = smul.addr %s507, 8
      %s509 = scalar_lea.vmem %s1, %s508
      %p510 = pneg %p74
      %p511 = pneg %p71
      %p512 = scmp.lt.s32.totalorder %s27, 1
      %s513 = scalar_select %p512, %s27, 1
      %s514 = smul.addr %s513, 24
      %s515 = smul.addr %s514, 8
      %s516 = scalar_lea.vmem %s2, %s515
      %p517 = pneg %p100
      %p518 = pneg %p97
      %p519 = scmp.lt.s32.totalorder %s27, 1
      %s520 = scalar_select %p519, %s27, 1
      %s521 = smul.addr %s520, 24
      %s522 = smul.addr %s521, 8
      %s523 = scalar_lea.vmem %s3, %s522
      %p524 = pneg %p126
      %p525 = pneg %p123
      %p526 = pneg %p147
      %p527 = pneg %p144
      %p528 = pneg %p168
      %p529 = pneg %p165
      %p530 = pneg %p189
      %p531 = pneg %p186
      %p532 = pneg %p210
      %p533 = pneg %p207
      %p534 = pneg %p231
      %p535 = pneg %p228
      %p536 = pneg %p252
      %p537 = pneg %p249
      %p538 = pneg %p273
      %p539 = pneg %p270
      %p540 = pneg %p294
      %p541 = pneg %p291
      %p542 = pneg %p315
      %p543 = pneg %p312
      %p544 = pneg %p336
      %p545 = pneg %p333
      %p546 = pneg %p357
      %p547 = pneg %p354
      %p548 = pneg %p378
      %p549 = pneg %p375
      %p550 = pneg %p404
      %p551 = pneg %p401
      %p552 = scmp.lt.s32.totalorder %s27, 1
      %s553 = scalar_select %p552, %s27, 1
      %s554 = smul.addr %s553, 2
      %s555 = smul.addr %s554, 8
      %s556 = scalar_lea.vmem %s16, %s555
      %p557 = scmp.lt.s32.totalorder %s27, 1
      %s558 = scalar_select %p557, %s27, 1
      %s559 = smul.addr %s558, 2
      %s560 = smul.addr %s559, 8
      %s561 = scalar_lea.vmem %s0, %s560
      %p562 = scmp.lt.s32.totalorder %s27, 1
      %s563 = scalar_select %p562, %s27, 1
      %s564 = smul.addr %s563, 2
      %s565 = smul.addr %s564, 8
      %s566 = scalar_lea.vmem %s1, %s565
      %p567 = scmp.lt.s32.totalorder %s27, 1
      %s568 = scalar_select %p567, %s27, 1
      %s569 = smul.addr %s568, 24
      %s570 = smul.addr %s569, 8
      %s571 = scalar_lea.vmem %s2, %s570
      %p572 = scmp.lt.s32.totalorder %s27, 1
      %s573 = scalar_select %p572, %s27, 1
      %s574 = smul.addr %s573, 24
      %s575 = smul.addr %s574, 8
      %s576 = scalar_lea.vmem %s3, %s575
      %p577 = scmp.lt.s32.totalorder %s27, 1
      %s578 = scalar_select %p577, %s27, 1
      %s579 = smul.addr %s578, 2
      %s580 = smul.addr %s579, 8
      %s581 = scalar_lea.vmem %s16, %s580
      %v582 = vld [vmem:[%s561] sm:$0xff]
      %v583 = vld [vmem:[%s561 + $0x8] sm:$0xf]
      %v584 = vld [vmem:[%s566] sm:$0xff]
      %v585 = vld [vmem:[%s566 + $0x8] sm:$0xff]
      %v586 = vld [vmem:[%s4] sm:$0xff]
      %v587 = vld [vmem:[%s4 + $0x8] sm:$0xff]
      %v588 = vld [vmem:[%s4 + $0x10] sm:$0xff]
      %v589 = vld [vmem:[%s4 + $0x18] sm:$0xff]
      %vm590 = vcmask 261120
      %v592 = vsel %vm590, %v582, 0
      %v595 = vsel %vm590, %v583, 0
      %597 = vmatpush.msra.mxu0 0.0
      %598 = vmatpush.msra.mxu0 0.0
      %599 = vmatpush.msra.mxu0 0.0
      %600 = vmatpush.msra.mxu0 0.0
      %601 = vmatpush.msra.mxu0 0.0
      %602 = vmatpush.msra.mxu0 0.0
      %603 = vmatpush.msra.mxu0 0.0
      %604 = vmatpush.msra.mxu0 0.0
      %605 = vmatpush.msra.mxu0 0.0
      %606 = vmatpush.msra.mxu0 0.0
      %607 = vmatpush.msra.mxu0 0.0
      %608 = vmatpush.msra.mxu0 0.0
      %609 = vmatpush.msra.mxu0 %v589
      %610 = vmatpush.msra.mxu0 %v588
      %611 = vmatpush.msra.mxu0 %v587
      %612 = vmatpush.msra.mxu0 %v586
      %613 = vmatmul.f32.gmra.mxu0 %v592
      %v614 = vpop.f32.mrf.mxu0
      %v615 = vadd.f32 0.0, %v614
      %616 = vmatmul.f32.gmra.mxu0 %v595
      %v617 = vpop.f32.mrf.mxu0
      %v618 = vadd.f32 0.0, %v617
      %619 = vdwg.mxu0
      %624 = vrot.lane.b32.xlu0 %v586, 96
      %v625 = vpop.permute.xlu0 %624
      %626 = vrot.lane.b32.xlu0 %v587, 96
      %v627 = vpop.permute.xlu0 %626
      %628 = vrot.lane.b32.xlu0 %v588, 96
      %v629 = vpop.permute.xlu0 %628
      %630 = vrot.lane.b32.xlu0 %v589, 96
      %v631 = vpop.permute.xlu0 %630
      %636 = vmatpush.msra.mxu0 0.0
      %637 = vmatpush.msra.mxu0 0.0
      %638 = vmatpush.msra.mxu0 0.0
      %639 = vmatpush.msra.mxu0 0.0
      %640 = vmatpush.msra.mxu0 0.0
      %641 = vmatpush.msra.mxu0 0.0
      %642 = vmatpush.msra.mxu0 0.0
      %643 = vmatpush.msra.mxu0 0.0
      %644 = vmatpush.msra.mxu0 0.0
      %645 = vmatpush.msra.mxu0 0.0
      %646 = vmatpush.msra.mxu0 0.0
      %647 = vmatpush.msra.mxu0 0.0
      %648 = vmatpush.msra.mxu0 %v631
      %649 = vmatpush.msra.mxu0 %v629
      %650 = vmatpush.msra.mxu0 %v627
      %651 = vmatpush.msra.mxu0 %v625
      %652 = vmatmul.f32.gmra.mxu0 %v592
      %v653 = vpop.f32.mrf.mxu0
      %v654 = vadd.f32 0.0, %v653
      %655 = vmatmul.f32.gmra.mxu0 %v595
      %v656 = vpop.f32.mrf.mxu0
      %v657 = vadd.f32 0.0, %v656
      %658 = vdwg.mxu0
      %v659 = vlaneseq
      %v660 = vshrl.u32 %v659, 7
      %v661 = vadd.s32 %v660, 8
      %v662 = vlaneseq
      %v663 = vand.u32 %v662, 127
      %vm664 = vcmp.ge.s32.totalorder %v663, %v660
      %vm665 = vcmp.ge.s32.totalorder %v663, %v661
      %v666 = vld [vmem:[%s571] sm:$0xff]
      %v667 = vld [vmem:[%s571 + $0x8] sm:$0xf]
      %s668 = scalar_lea.vmem %s571, 64
      %v669 = vld [vmem:[%s668] sm:$0xff]
      %v670 = vld [vmem:[%s668 + $0x8] sm:$0xf]
      %s671 = scalar_lea.vmem %s571, 128
      %v672 = vld [vmem:[%s671] sm:$0xff]
      %v673 = vld [vmem:[%s671 + $0x8] sm:$0xf]
      %vm674 = vcmask 64512
      %v676 = vsel %vm674, %v615, 0
      %v679 = vsel %vm674, %v618, 0
      %v682 = vsel %vm674, %v654, 0
      %v685 = vsel %vm674, %v657, 0
      %687 = vmatpush.xpose.msra.mxu0 0.0
      %688 = vmatpush.xpose.msra.mxu0 0.0
      %689 = vmatpush.xpose.msra.mxu0 0.0
      %690 = vmatpush.xpose.msra.mxu0 0.0
      %691 = vmatpush.xpose.msra.mxu0 0.0
      %692 = vmatpush.xpose.msra.mxu0 0.0
      %693 = vmatpush.xpose.msra.mxu0 0.0
      %694 = vmatpush.xpose.msra.mxu0 0.0
      %695 = vmatpush.xpose.msra.mxu0 0.0
      %696 = vmatpush.xpose.msra.mxu0 0.0
      %697 = vmatpush.xpose.msra.mxu0 0.0
      %698 = vmatpush.xpose.msra.mxu0 0.0
      %699 = vmatpush.xpose.msra.mxu0 0.0
      %700 = vmatpush.xpose.msra.mxu0 0.0
      %701 = vmatpush.xpose.msra.mxu0 %v685
      %702 = vmatpush.xpose.msra.mxu0 %v682
      %703 = vmatmul.f32.gmra.mxu0 %v676
      %v704 = vpop.f32.mrf.mxu0
      %v705 = vadd.f32 0.0, %v704
      %706 = vmatmul.f32.gmra.mxu0 %v679
      %v707 = vpop.f32.mrf.mxu0
      %v708 = vadd.f32 0.0, %v707
      %709 = vdwg.mxu0
      %v710 = vmul.f32 %v666, %v669
      %v711 = vmul.f32 %v667, %v670
      %v712 = vmul.f32 %v710, %v705
      %v713 = vmul.f32 %v711, %v708
      %v714 = vmul.f32 %v712, 0.35355338
      %v715 = vmul.f32 %v713, 0.35355338
      %v716 = vsel %vm664, %v714, -inf
      %v717 = vsel %vm665, %v715, -inf
      %vm718 = vcmask 97280
      %v719 = vsel %vm718, %v716, -inf
      %720 = vmax.xlane.f32.xlu0 %v719
      %v721 = vpop.xlane.xlu0 %720
      %vm722 = vcmask 93184
      %v723 = vsel %vm722, %v717, -inf
      %724 = vmax.xlane.f32.xlu0 %v723
      %v725 = vpop.xlane.xlu0 %724
      %v726 = vsub.f32 %v716, %v721
      %v727 = vsub.f32 %v717, %v725
      %v728 = vmul.f32 %v726, 1.442695
      %v729 = vpow.pop %v728
      %v730 = vmul.f32 %v727, 1.442695
      %v731 = vpow.pop %v730
      %v732 = vsel %vm718, %v729, 0.0
      %733 = vadd.xlane.f32.xlu0 %v732
      %v734 = vpop.xlane.xlu0 %733
      %v735 = vsel %vm722, %v731, 0.0
      %736 = vadd.xlane.f32.xlu0 %v735
      %v737 = vpop.xlane.xlu0 %736
      %v738 = vrcp.pop %v734
      %v739 = vrcp.pop %v737
      %v740 = vmul.f32 %v729, %v738
      %v741 = vmul.f32 %v731, %v739
      %v742 = vmul.f32 %v740, %v672
      %v743 = vmul.f32 %v741, %v673
      %744 = vrot.lane.b32.xlu0 %v654, 96
      %v745 = vpop.permute.xlu0 %744
      %746 = vrot.lane.b32.xlu0 %v657, 96
      %v747 = vpop.permute.xlu0 %746
      %v750 = vsel %vm718, %v742, 0
      %v753 = vsel %vm718, %v743, 0
      %vm755 = vcmask 1043456
      %v756 = vsel %vm755, %v747, 0
      %758 = vmatpush.msra.mxu0 0.0
      %759 = vmatpush.msra.mxu0 0.0
      %760 = vmatpush.msra.mxu0 0.0
      %761 = vmatpush.msra.mxu0 0.0
      %762 = vmatpush.msra.mxu0 0.0
      %763 = vmatpush.msra.mxu0 0.0
      %764 = vmatpush.msra.mxu0 0.0
      %765 = vmatpush.msra.mxu0 0.0
      %766 = vmatpush.msra.mxu0 0.0
      %767 = vmatpush.msra.mxu0 0.0
      %768 = vmatpush.msra.mxu0 0.0
      %769 = vmatpush.msra.mxu0 0.0
      %770 = vmatpush.msra.mxu0 0.0
      %771 = vmatpush.msra.mxu0 0.0
      %772 = vmatpush.msra.mxu0 %v756
      %773 = vmatpush.msra.mxu0 %v745
      %774 = vmatmul.f32.gmra.mxu0 %v750
      %v775 = vpop.f32.mrf.mxu0
      %v776 = vadd.f32 0.0, %v775
      %777 = vmatmul.f32.gmra.mxu0 %v753
      %v778 = vpop.f32.mrf.mxu0
      %v779 = vadd.f32 0.0, %v778
      %780 = vdwg.mxu0
      %s781 = scalar_lea.vmem %s571, 16
      %v782 = vld [vmem:[%s781] sm:$0xff]
      %v783 = vld [vmem:[%s781 + $0x8] sm:$0xf]
      %s784 = scalar_lea.vmem %s571, 80
      %v785 = vld [vmem:[%s784] sm:$0xff]
      %v786 = vld [vmem:[%s784 + $0x8] sm:$0xf]
      %s787 = scalar_lea.vmem %s571, 144
      %v788 = vld [vmem:[%s787] sm:$0xff]
      %v789 = vld [vmem:[%s787 + $0x8] sm:$0xf]
      %790 = vrot.lane.b32.xlu0 %v615, 120
      %v791 = vpop.permute.xlu0 %790
      %792 = vrot.lane.b32.xlu0 %v618, 120
      %v793 = vpop.permute.xlu0 %792
      %794 = vrot.lane.b32.xlu0 %v654, 120
      %v795 = vpop.permute.xlu0 %794
      %796 = vrot.lane.b32.xlu0 %v657, 120
      %v797 = vpop.permute.xlu0 %796
      %v798 = vsel %vm674, %v791, 0
      %v800 = vsel %vm674, %v793, 0
      %v802 = vsel %vm674, %v795, 0
      %v804 = vsel %vm674, %v797, 0
      %806 = vmatpush.xpose.msra.mxu0 0.0
      %807 = vmatpush.xpose.msra.mxu0 0.0
      %808 = vmatpush.xpose.msra.mxu0 0.0
      %809 = vmatpush.xpose.msra.mxu0 0.0
      %810 = vmatpush.xpose.msra.mxu0 0.0
      %811 = vmatpush.xpose.msra.mxu0 0.0
      %812 = vmatpush.xpose.msra.mxu0 0.0
      %813 = vmatpush.xpose.msra.mxu0 0.0
      %814 = vmatpush.xpose.msra.mxu0 0.0
      %815 = vmatpush.xpose.msra.mxu0 0.0
      %816 = vmatpush.xpose.msra.mxu0 0.0
      %817 = vmatpush.xpose.msra.mxu0 0.0
      %818 = vmatpush.xpose.msra.mxu0 0.0
      %819 = vmatpush.xpose.msra.mxu0 0.0
      %820 = vmatpush.xpose.msra.mxu0 %v804
      %821 = vmatpush.xpose.msra.mxu0 %v802
      %822 = vmatmul.f32.gmra.mxu0 %v798
      %v823 = vpop.f32.mrf.mxu0
      %v824 = vadd.f32 0.0, %v823
      %825 = vmatmul.f32.gmra.mxu0 %v800
      %v826 = vpop.f32.mrf.mxu0
      %v827 = vadd.f32 0.0, %v826
      %828 = vdwg.mxu0
      %v829 = vmul.f32 %v782, %v785
      %v830 = vmul.f32 %v783, %v786
      %v831 = vmul.f32 %v829, %v824
      %v832 = vmul.f32 %v830, %v827
      %v833 = vmul.f32 %v831, 0.35355338
      %v834 = vmul.f32 %v832, 0.35355338
      %v835 = vsel %vm664, %v833, -inf
      %v836 = vsel %vm665, %v834, -inf
      %v837 = vsel %vm718, %v835, -inf
      %838 = vmax.xlane.f32.xlu0 %v837
      %v839 = vpop.xlane.xlu0 %838
      %v840 = vsel %vm722, %v836, -inf
      %841 = vmax.xlane.f32.xlu0 %v840
      %v842 = vpop.xlane.xlu0 %841
      %v843 = vsub.f32 %v835, %v839
      %v844 = vsub.f32 %v836, %v842
      %v845 = vmul.f32 %v843, 1.442695
      %v846 = vpow.pop %v845
      %v847 = vmul.f32 %v844, 1.442695
      %v848 = vpow.pop %v847
      %v849 = vsel %vm718, %v846, 0.0
      %850 = vadd.xlane.f32.xlu0 %v849
      %v851 = vpop.xlane.xlu0 %850
      %v852 = vsel %vm722, %v848, 0.0
      %853 = vadd.xlane.f32.xlu0 %v852
      %v854 = vpop.xlane.xlu0 %853
      %v855 = vrcp.pop %v851
      %v856 = vrcp.pop %v854
      %v857 = vmul.f32 %v846, %v855
      %v858 = vmul.f32 %v848, %v856
      %v859 = vmul.f32 %v857, %v788
      %v860 = vmul.f32 %v858, %v789
      %861 = vrot.lane.b32.xlu0 %v654, 88
      %v862 = vpop.permute.xlu0 %861
      %863 = vrot.lane.b32.xlu0 %v657, 88
      %v864 = vpop.permute.xlu0 %863
      %v867 = vsel %vm718, %v859, 0
      %v870 = vsel %vm718, %v860, 0
      %v872 = vsel %vm755, %v864, 0
      %874 = vmatpush.msra.mxu0 0.0
      %875 = vmatpush.msra.mxu0 0.0
      %876 = vmatpush.msra.mxu0 0.0
      %877 = vmatpush.msra.mxu0 0.0
      %878 = vmatpush.msra.mxu0 0.0
      %879 = vmatpush.msra.mxu0 0.0
      %880 = vmatpush.msra.mxu0 0.0
      %881 = vmatpush.msra.mxu0 0.0
      %882 = vmatpush.msra.mxu0 0.0
      %883 = vmatpush.msra.mxu0 0.0
      %884 = vmatpush.msra.mxu0 0.0
      %885 = vmatpush.msra.mxu0 0.0
      %886 = vmatpush.msra.mxu0 0.0
      %887 = vmatpush.msra.mxu0 0.0
      %888 = vmatpush.msra.mxu0 %v872
      %889 = vmatpush.msra.mxu0 %v862
      %890 = vmatmul.f32.gmra.mxu0 %v867
      %v891 = vpop.f32.mrf.mxu0
      %v892 = vadd.f32 0.0, %v891
      %893 = vmatmul.f32.gmra.mxu0 %v870
      %v894 = vpop.f32.mrf.mxu0
      %v895 = vadd.f32 0.0, %v894
      %896 = vdwg.mxu0
      %s897 = scalar_lea.vmem %s571, 32
      %v898 = vld [vmem:[%s897] sm:$0xff]
      %v899 = vld [vmem:[%s897 + $0x8] sm:$0xf]
      %s900 = scalar_lea.vmem %s571, 96
      %v901 = vld [vmem:[%s900] sm:$0xff]
      %v902 = vld [vmem:[%s900 + $0x8] sm:$0xf]
      %s903 = scalar_lea.vmem %s571, 160
      %v904 = vld [vmem:[%s903] sm:$0xff]
      %v905 = vld [vmem:[%s903 + $0x8] sm:$0xf]
      %906 = vrot.lane.b32.xlu0 %v615, 112
      %v907 = vpop.permute.xlu0 %906
      %908 = vrot.lane.b32.xlu0 %v618, 112
      %v909 = vpop.permute.xlu0 %908
      %910 = vrot.lane.b32.xlu0 %v654, 112
      %v911 = vpop.permute.xlu0 %910
      %912 = vrot.lane.b32.xlu0 %v657, 112
      %v913 = vpop.permute.xlu0 %912
      %v914 = vsel %vm674, %v907, 0
      %v916 = vsel %vm674, %v909, 0
      %v918 = vsel %vm674, %v911, 0
      %v920 = vsel %vm674, %v913, 0
      %922 = vmatpush.xpose.msra.mxu0 0.0
      %923 = vmatpush.xpose.msra.mxu0 0.0
      %924 = vmatpush.xpose.msra.mxu0 0.0
      %925 = vmatpush.xpose.msra.mxu0 0.0
      %926 = vmatpush.xpose.msra.mxu0 0.0
      %927 = vmatpush.xpose.msra.mxu0 0.0
      %928 = vmatpush.xpose.msra.mxu0 0.0
      %929 = vmatpush.xpose.msra.mxu0 0.0
      %930 = vmatpush.xpose.msra.mxu0 0.0
      %931 = vmatpush.xpose.msra.mxu0 0.0
      %932 = vmatpush.xpose.msra.mxu0 0.0
      %933 = vmatpush.xpose.msra.mxu0 0.0
      %934 = vmatpush.xpose.msra.mxu0 0.0
      %935 = vmatpush.xpose.msra.mxu0 0.0
      %936 = vmatpush.xpose.msra.mxu0 %v920
      %937 = vmatpush.xpose.msra.mxu0 %v918
      %938 = vmatmul.f32.gmra.mxu0 %v914
      %v939 = vpop.f32.mrf.mxu0
      %v940 = vadd.f32 0.0, %v939
      %941 = vmatmul.f32.gmra.mxu0 %v916
      %v942 = vpop.f32.mrf.mxu0
      %v943 = vadd.f32 0.0, %v942
      %944 = vdwg.mxu0
      %v945 = vmul.f32 %v898, %v901
      %v946 = vmul.f32 %v899, %v902
      %v947 = vmul.f32 %v945, %v940
      %v948 = vmul.f32 %v946, %v943
      %v949 = vmul.f32 %v947, 0.35355338
      %v950 = vmul.f32 %v948, 0.35355338
      %v951 = vsel %vm664, %v949, -inf
      %v952 = vsel %vm665, %v950, -inf
      %v953 = vsel %vm718, %v951, -inf
      %954 = vmax.xlane.f32.xlu0 %v953
      %v955 = vpop.xlane.xlu0 %954
      %v956 = vsel %vm722, %v952, -inf
      %957 = vmax.xlane.f32.xlu0 %v956
      %v958 = vpop.xlane.xlu0 %957
      %v959 = vsub.f32 %v951, %v955
      %v960 = vsub.f32 %v952, %v958
      %v961 = vmul.f32 %v959, 1.442695
      %v962 = vpow.pop %v961
      %v963 = vmul.f32 %v960, 1.442695
      %v964 = vpow.pop %v963
      %v965 = vsel %vm718, %v962, 0.0
      %966 = vadd.xlane.f32.xlu0 %v965
      %v967 = vpop.xlane.xlu0 %966
      %v968 = vsel %vm722, %v964, 0.0
      %969 = vadd.xlane.f32.xlu0 %v968
      %v970 = vpop.xlane.xlu0 %969
      %v971 = vrcp.pop %v967
      %v972 = vrcp.pop %v970
      %v973 = vmul.f32 %v962, %v971
      %v974 = vmul.f32 %v964, %v972
      %v975 = vmul.f32 %v973, %v904
      %v976 = vmul.f32 %v974, %v905
      %977 = vrot.lane.b32.xlu0 %v654, 80
      %v978 = vpop.permute.xlu0 %977
      %979 = vrot.lane.b32.xlu0 %v657, 80
      %v980 = vpop.permute.xlu0 %979
      %v983 = vsel %vm718, %v975, 0
      %v986 = vsel %vm718, %v976, 0
      %v988 = vsel %vm755, %v980, 0
      %990 = vmatpush.msra.mxu0 0.0
      %991 = vmatpush.msra.mxu0 0.0
      %992 = vmatpush.msra.mxu0 0.0
      %993 = vmatpush.msra.mxu0 0.0
      %994 = vmatpush.msra.mxu0 0.0
      %995 = vmatpush.msra.mxu0 0.0
      %996 = vmatpush.msra.mxu0 0.0
      %997 = vmatpush.msra.mxu0 0.0
      %998 = vmatpush.msra.mxu0 0.0
      %999 = vmatpush.msra.mxu0 0.0
      %1000 = vmatpush.msra.mxu0 0.0
      %1001 = vmatpush.msra.mxu0 0.0
      %1002 = vmatpush.msra.mxu0 0.0
      %1003 = vmatpush.msra.mxu0 0.0
      %1004 = vmatpush.msra.mxu0 %v988
      %1005 = vmatpush.msra.mxu0 %v978
      %1006 = vmatmul.f32.gmra.mxu0 %v983
      %v1007 = vpop.f32.mrf.mxu0
      %v1008 = vadd.f32 0.0, %v1007
      %1009 = vmatmul.f32.gmra.mxu0 %v986
      %v1010 = vpop.f32.mrf.mxu0
      %v1011 = vadd.f32 0.0, %v1010
      %1012 = vdwg.mxu0
      %s1013 = scalar_lea.vmem %s571, 48
      %v1014 = vld [vmem:[%s1013] sm:$0xff]
      %v1015 = vld [vmem:[%s1013 + $0x8] sm:$0xf]
      %s1016 = scalar_lea.vmem %s571, 112
      %v1017 = vld [vmem:[%s1016] sm:$0xff]
      %v1018 = vld [vmem:[%s1016 + $0x8] sm:$0xf]
      %s1019 = scalar_lea.vmem %s571, 176
      %v1020 = vld [vmem:[%s1019] sm:$0xff]
      %v1021 = vld [vmem:[%s1019 + $0x8] sm:$0xf]
      %1022 = vrot.lane.b32.xlu0 %v615, 104
      %v1023 = vpop.permute.xlu0 %1022
      %1024 = vrot.lane.b32.xlu0 %v618, 104
      %v1025 = vpop.permute.xlu0 %1024
      %1026 = vrot.lane.b32.xlu0 %v654, 104
      %v1027 = vpop.permute.xlu0 %1026
      %1028 = vrot.lane.b32.xlu0 %v657, 104
      %v1029 = vpop.permute.xlu0 %1028
      %v1030 = vsel %vm674, %v1023, 0
      %v1032 = vsel %vm674, %v1025, 0
      %v1034 = vsel %vm674, %v1027, 0
      %v1036 = vsel %vm674, %v1029, 0
      %1038 = vmatpush.xpose.msra.mxu0 0.0
      %1039 = vmatpush.xpose.msra.mxu0 0.0
      %1040 = vmatpush.xpose.msra.mxu0 0.0
      %1041 = vmatpush.xpose.msra.mxu0 0.0
      %1042 = vmatpush.xpose.msra.mxu0 0.0
      %1043 = vmatpush.xpose.msra.mxu0 0.0
      %1044 = vmatpush.xpose.msra.mxu0 0.0
      %1045 = vmatpush.xpose.msra.mxu0 0.0
      %1046 = vmatpush.xpose.msra.mxu0 0.0
      %1047 = vmatpush.xpose.msra.mxu0 0.0
      %1048 = vmatpush.xpose.msra.mxu0 0.0
      %1049 = vmatpush.xpose.msra.mxu0 0.0
      %1050 = vmatpush.xpose.msra.mxu0 0.0
      %1051 = vmatpush.xpose.msra.mxu0 0.0
      %1052 = vmatpush.xpose.msra.mxu0 %v1036
      %1053 = vmatpush.xpose.msra.mxu0 %v1034
      %1054 = vmatmul.f32.gmra.mxu0 %v1030
      %v1055 = vpop.f32.mrf.mxu0
      %v1056 = vadd.f32 0.0, %v1055
      %1057 = vmatmul.f32.gmra.mxu0 %v1032
      %v1058 = vpop.f32.mrf.mxu0
      %v1059 = vadd.f32 0.0, %v1058
      %1060 = vdwg.mxu0
      %v1061 = vmul.f32 %v1014, %v1017
      %v1062 = vmul.f32 %v1015, %v1018
      %v1063 = vmul.f32 %v1061, %v1056
      %v1064 = vmul.f32 %v1062, %v1059
      %v1065 = vmul.f32 %v1063, 0.35355338
      %v1066 = vmul.f32 %v1064, 0.35355338
      %v1067 = vsel %vm664, %v1065, -inf
      %v1068 = vsel %vm665, %v1066, -inf
      %v1069 = vsel %vm718, %v1067, -inf
      %1070 = vmax.xlane.f32.xlu0 %v1069
      %v1071 = vpop.xlane.xlu0 %1070
      %v1072 = vsel %vm722, %v1068, -inf
      %1073 = vmax.xlane.f32.xlu0 %v1072
      %v1074 = vpop.xlane.xlu0 %1073
      %v1075 = vsub.f32 %v1067, %v1071
      %v1076 = vsub.f32 %v1068, %v1074
      %v1077 = vmul.f32 %v1075, 1.442695
      %v1078 = vpow.pop %v1077
      %v1079 = vmul.f32 %v1076, 1.442695
      %v1080 = vpow.pop %v1079
      %v1081 = vsel %vm718, %v1078, 0.0
      %1082 = vadd.xlane.f32.xlu0 %v1081
      %v1083 = vpop.xlane.xlu0 %1082
      %v1084 = vsel %vm722, %v1080, 0.0
      %1085 = vadd.xlane.f32.xlu0 %v1084
      %v1086 = vpop.xlane.xlu0 %1085
      %v1087 = vrcp.pop %v1083
      %v1088 = vrcp.pop %v1086
      %v1089 = vmul.f32 %v1078, %v1087
      %v1090 = vmul.f32 %v1080, %v1088
      %v1091 = vmul.f32 %v1089, %v1020
      %v1092 = vmul.f32 %v1090, %v1021
      %1093 = vrot.lane.b32.xlu0 %v654, 72
      %v1094 = vpop.permute.xlu0 %1093
      %1095 = vrot.lane.b32.xlu0 %v657, 72
      %v1096 = vpop.permute.xlu0 %1095
      %v1099 = vsel %vm718, %v1091, 0
      %v1102 = vsel %vm718, %v1092, 0
      %v1104 = vsel %vm755, %v1096, 0
      %1106 = vmatpush.msra.mxu0 0.0
      %1107 = vmatpush.msra.mxu0 0.0
      %1108 = vmatpush.msra.mxu0 0.0
      %1109 = vmatpush.msra.mxu0 0.0
      %1110 = vmatpush.msra.mxu0 0.0
      %1111 = vmatpush.msra.mxu0 0.0
      %1112 = vmatpush.msra.mxu0 0.0
      %1113 = vmatpush.msra.mxu0 0.0
      %1114 = vmatpush.msra.mxu0 0.0
      %1115 = vmatpush.msra.mxu0 0.0
      %1116 = vmatpush.msra.mxu0 0.0
      %1117 = vmatpush.msra.mxu0 0.0
      %1118 = vmatpush.msra.mxu0 0.0
      %1119 = vmatpush.msra.mxu0 0.0
      %1120 = vmatpush.msra.mxu0 %v1104
      %1121 = vmatpush.msra.mxu0 %v1094
      %1122 = vmatmul.f32.gmra.mxu0 %v1099
      %v1123 = vpop.f32.mrf.mxu0
      %v1124 = vadd.f32 0.0, %v1123
      %1125 = vmatmul.f32.gmra.mxu0 %v1102
      %v1126 = vpop.f32.mrf.mxu0
      %v1127 = vadd.f32 0.0, %v1126
      %1128 = vdwg.mxu0
      %1131 = vrot.lane.b32.xlu0 %v892, 8
      %v1132 = vpop.permute.xlu0 %1131
      %1133 = vrot.lane.b32.xlu0 %v895, 8
      %v1134 = vpop.permute.xlu0 %1133
      %1139 = vrot.lane.b32.xlu0 %v1008, 16
      %v1140 = vpop.permute.xlu0 %1139
      %1141 = vrot.lane.b32.xlu0 %v1011, 16
      %v1142 = vpop.permute.xlu0 %1141
      %1147 = vrot.lane.b32.xlu0 %v1124, 24
      %v1148 = vpop.permute.xlu0 %1147
      %1149 = vrot.lane.b32.xlu0 %v1127, 24
      %v1150 = vpop.permute.xlu0 %1149
      %v1153 = vsel %vm674, %v776, %v1132
      %v1154 = vsel %vm674, %v779, %v1134
      %vm1155 = vcmask 130048
      %v1156 = vsel %vm1155, %v1153, %v1140
      %v1157 = vsel %vm1155, %v1154, %v1142
      %vm1158 = vcmask 195584
      %v1159 = vsel %vm1158, %v1156, %v1148
      %v1160 = vsel %vm1158, %v1157, %v1150
      %v1161 = vadd.f32 %v582, %v1159
      %v1162 = vadd.f32 %v583, %v1160
      %v1163 = vld [vmem:[%s6] sm:$0x1]
      %v1164 = vld [vmem:[%s7] sm:$0x1]
      %v1165 = vsel %vm590, %v1161, 0.0
      %1166 = vadd.xlane.f32.xlu0 %v1165
      %v1167 = vpop.xlane.xlu0 %1166
      %vm1168 = vcmask 257024
      %v1169 = vsel %vm1168, %v1162, 0.0
      %1170 = vadd.xlane.f32.xlu0 %v1169
      %v1171 = vpop.xlane.xlu0 %1170
      %v1172 = vrcp.pop 32.0
      %v1173 = vmul.f32 32.0, %v1172
      %v1174 = vsub.f32 1.0, %v1173
      %v1175 = vmul.f32 %v1172, %v1174
      %v1176 = vadd.f32 %v1172, %v1175
      %vm1177 = vweird.f32 %v1172
      %v1178 = vsel %vm1177, %v1172, %v1176
      %v1179 = vmul.f32 %v1167, %v1178
      %v1180 = vmul.f32 %v1171, %v1178
      %v1181 = vsub.f32 %v1161, %v1179
      %v1182 = vsub.f32 %v1162, %v1180
      %v1183 = vmul.f32 %v1181, %v1181
      %v1184 = vmul.f32 %v1182, %v1182
      %v1185 = vsel %vm590, %v1183, 0.0
      %1186 = vadd.xlane.f32.xlu0 %v1185
      %v1187 = vpop.xlane.xlu0 %1186
      %v1188 = vsel %vm1168, %v1184, 0.0
      %1189 = vadd.xlane.f32.xlu0 %v1188
      %v1190 = vpop.xlane.xlu0 %1189
      %v1191 = vmul.f32 %v1187, %v1178
      %v1192 = vmul.f32 %v1190, %v1178
      %v1193 = vadd.f32 %v1191, 1e-05
      %v1194 = vadd.f32 %v1192, 1e-05
      %v1195 = vrsqrt.pop %v1193
      %v1196 = vmul.f32 %v1195, %v1193
      %v1197 = vmul.f32 %v1196, %v1195
      %v1198 = vmul.f32 0.5, %v1197
      %v1199 = vsub.f32 1.5, %v1198
      %v1200 = vmul.f32 %v1195, %v1199
      %vm1201 = vweird.f32 %v1193
      %vm1202 = vweird.f32 %v1195
      %vm1203 = vmor %vm1201, %vm1202
      %v1204 = vsel %vm1203, %v1195, %v1200
      %v1205 = vrsqrt.pop %v1194
      %v1206 = vmul.f32 %v1205, %v1194
      %v1207 = vmul.f32 %v1206, %v1205
      %v1208 = vmul.f32 0.5, %v1207
      %v1209 = vsub.f32 1.5, %v1208
      %v1210 = vmul.f32 %v1205, %v1209
      %vm1211 = vweird.f32 %v1194
      %vm1212 = vweird.f32 %v1205
      %vm1213 = vmor %vm1211, %vm1212
      %v1214 = vsel %vm1213, %v1205, %v1210
      %v1215 = vmul.f32 %v1181, %v1204
      %v1216 = vmul.f32 %v1182, %v1214
      %v1218 = vperm.slane %v1163, 0
      %v1220 = vmul.f32 %v1215, %v1218
      %v1221 = vmul.f32 %v1216, %v1218
      %v1223 = vperm.slane %v1164, 0
      %v1225 = vadd.f32 %v1220, %v1223
      %v1226 = vadd.f32 %v1221, %v1223
      %v1227 = vld [vmem:[%s5] sm:$0xff]
      %v1228 = vld [vmem:[%s5 + $0x8] sm:$0xff]
      %v1229 = vld [vmem:[%s5 + $0x10] sm:$0xff]
      %v1230 = vld [vmem:[%s5 + $0x18] sm:$0xff]
      %v1232 = vsel %vm590, %v1225, 0
      %v1235 = vsel %vm590, %v1226, 0
      %1237 = vmatpush.msra.mxu0 0.0
      %1238 = vmatpush.msra.mxu0 0.0
      %1239 = vmatpush.msra.mxu0 0.0
      %1240 = vmatpush.msra.mxu0 0.0
      %1241 = vmatpush.msra.mxu0 0.0
      %1242 = vmatpush.msra.mxu0 0.0
      %1243 = vmatpush.msra.mxu0 0.0
      %1244 = vmatpush.msra.mxu0 0.0
      %1245 = vmatpush.msra.mxu0 0.0
      %1246 = vmatpush.msra.mxu0 0.0
      %1247 = vmatpush.msra.mxu0 0.0
      %1248 = vmatpush.msra.mxu0 0.0
      %1249 = vmatpush.msra.mxu0 %v1230
      %1250 = vmatpush.msra.mxu0 %v1229
      %1251 = vmatpush.msra.mxu0 %v1228
      %1252 = vmatpush.msra.mxu0 %v1227
      %1253 = vmatmul.f32.gmra.mxu0 %v1232
      %v1254 = vpop.f32.mrf.mxu0
      %v1255 = vadd.f32 0.0, %v1254
      %1256 = vmatmul.f32.gmra.mxu0 %v1235
      %v1257 = vpop.f32.mrf.mxu0
      %v1258 = vadd.f32 0.0, %v1257
      %1259 = vdwg.mxu0
      %1264 = vrot.lane.b32.xlu0 %v1227, 96
      %v1265 = vpop.permute.xlu0 %1264
      %1266 = vrot.lane.b32.xlu0 %v1228, 96
      %v1267 = vpop.permute.xlu0 %1266
      %1268 = vrot.lane.b32.xlu0 %v1229, 96
      %v1269 = vpop.permute.xlu0 %1268
      %1270 = vrot.lane.b32.xlu0 %v1230, 96
      %v1271 = vpop.permute.xlu0 %1270
      %v1277 = vsel %vm590, %v584, 0
      %v1280 = vsel %vm590, %v585, 0
      %1282 = vmatpush.msra.mxu0 0.0
      %1283 = vmatpush.msra.mxu0 0.0
      %1284 = vmatpush.msra.mxu0 0.0
      %1285 = vmatpush.msra.mxu0 0.0
      %1286 = vmatpush.msra.mxu0 0.0
      %1287 = vmatpush.msra.mxu0 0.0
      %1288 = vmatpush.msra.mxu0 0.0
      %1289 = vmatpush.msra.mxu0 0.0
      %1290 = vmatpush.msra.mxu0 0.0
      %1291 = vmatpush.msra.mxu0 0.0
      %1292 = vmatpush.msra.mxu0 0.0
      %1293 = vmatpush.msra.mxu0 0.0
      %1294 = vmatpush.msra.mxu0 %v1271
      %1295 = vmatpush.msra.mxu0 %v1269
      %1296 = vmatpush.msra.mxu0 %v1267
      %1297 = vmatpush.msra.mxu0 %v1265
      %1298 = vmatmul.f32.gmra.mxu0 %v1277
      %v1299 = vpop.f32.mrf.mxu0
      %v1300 = vadd.f32 0.0, %v1299
      %1301 = vmatmul.f32.gmra.mxu0 %v1280
      %v1302 = vpop.f32.mrf.mxu0
      %v1303 = vadd.f32 0.0, %v1302
      %1304 = vdwg.mxu0
      %v1305 = vld [vmem:[%s576] sm:$0xff]
      %v1306 = vld [vmem:[%s576 + $0x8] sm:$0xf]
      %s1307 = scalar_lea.vmem %s576, 64
      %v1308 = vld [vmem:[%s1307] sm:$0xff]
      %v1309 = vld [vmem:[%s1307 + $0x8] sm:$0xf]
      %s1310 = scalar_lea.vmem %s576, 128
      %v1311 = vld [vmem:[%s1310] sm:$0xff]
      %v1312 = vld [vmem:[%s1310 + $0x8] sm:$0xf]
      %v1314 = vsel %vm674, %v1255, 0
      %v1317 = vsel %vm674, %v1258, 0
      %v1320 = vsel %vm674, %v1300, 0
      %v1323 = vsel %vm674, %v1303, 0
      %1325 = vmatpush.xpose.msra.mxu0 0.0
      %1326 = vmatpush.xpose.msra.mxu0 0.0
      %1327 = vmatpush.xpose.msra.mxu0 0.0
      %1328 = vmatpush.xpose.msra.mxu0 0.0
      %1329 = vmatpush.xpose.msra.mxu0 0.0
      %1330 = vmatpush.xpose.msra.mxu0 0.0
      %1331 = vmatpush.xpose.msra.mxu0 0.0
      %1332 = vmatpush.xpose.msra.mxu0 0.0
      %1333 = vmatpush.xpose.msra.mxu0 0.0
      %1334 = vmatpush.xpose.msra.mxu0 0.0
      %1335 = vmatpush.xpose.msra.mxu0 0.0
      %1336 = vmatpush.xpose.msra.mxu0 0.0
      %1337 = vmatpush.xpose.msra.mxu0 0.0
      %1338 = vmatpush.xpose.msra.mxu0 0.0
      %1339 = vmatpush.xpose.msra.mxu0 %v1323
      %1340 = vmatpush.xpose.msra.mxu0 %v1320
      %1341 = vmatmul.f32.gmra.mxu0 %v1314
      %v1342 = vpop.f32.mrf.mxu0
      %v1343 = vadd.f32 0.0, %v1342
      %1344 = vmatmul.f32.gmra.mxu0 %v1317
      %v1345 = vpop.f32.mrf.mxu0
      %v1346 = vadd.f32 0.0, %v1345
      %1347 = vdwg.mxu0
      %v1348 = vmul.f32 %v1305, %v1308
      %v1349 = vmul.f32 %v1306, %v1309
      %v1350 = vmul.f32 %v1348, %v1343
      %v1351 = vmul.f32 %v1349, %v1346
      %v1352 = vmul.f32 %v1350, 0.35355338
      %v1353 = vmul.f32 %v1351, 0.35355338
      %v1354 = vsel %vm1155, %v1352, -inf
      %1355 = vmax.xlane.f32.xlu0 %v1354
      %v1356 = vpop.xlane.xlu0 %1355
      %vm1357 = vcmask 125952
      %v1358 = vsel %vm1357, %v1353, -inf
      %1359 = vmax.xlane.f32.xlu0 %v1358
      %v1360 = vpop.xlane.xlu0 %1359
      %v1361 = vsub.f32 %v1352, %v1356
      %v1362 = vsub.f32 %v1353, %v1360
      %v1363 = vmul.f32 %v1361, 1.442695
      %v1364 = vpow.pop %v1363
      %v1365 = vmul.f32 %v1362, 1.442695
      %v1366 = vpow.pop %v1365
      %v1367 = vsel %vm1155, %v1364, 0.0
      %1368 = vadd.xlane.f32.xlu0 %v1367
      %v1369 = vpop.xlane.xlu0 %1368
      %v1370 = vsel %vm1357, %v1366, 0.0
      %1371 = vadd.xlane.f32.xlu0 %v1370
      %v1372 = vpop.xlane.xlu0 %1371
      %v1373 = vrcp.pop %v1369
      %v1374 = vrcp.pop %v1372
      %v1375 = vmul.f32 %v1364, %v1373
      %v1376 = vmul.f32 %v1366, %v1374
      %v1377 = vmul.f32 %v1375, %v1311
      %v1378 = vmul.f32 %v1376, %v1312
      %1379 = vrot.lane.b32.xlu0 %v1300, 96
      %v1380 = vpop.permute.xlu0 %1379
      %1381 = vrot.lane.b32.xlu0 %v1303, 96
      %v1382 = vpop.permute.xlu0 %1381
      %v1386 = vsel %vm1155, %v1377, 0
      %v1389 = vsel %vm1155, %v1378, 0
      %1391 = vmatpush.msra.mxu0 0.0
      %1392 = vmatpush.msra.mxu0 0.0
      %1393 = vmatpush.msra.mxu0 0.0
      %1394 = vmatpush.msra.mxu0 0.0
      %1395 = vmatpush.msra.mxu0 0.0
      %1396 = vmatpush.msra.mxu0 0.0
      %1397 = vmatpush.msra.mxu0 0.0
      %1398 = vmatpush.msra.mxu0 0.0
      %1399 = vmatpush.msra.mxu0 0.0
      %1400 = vmatpush.msra.mxu0 0.0
      %1401 = vmatpush.msra.mxu0 0.0
      %1402 = vmatpush.msra.mxu0 0.0
      %1403 = vmatpush.msra.mxu0 0.0
      %1404 = vmatpush.msra.mxu0 0.0
      %1405 = vmatpush.msra.mxu0 %v1382
      %1406 = vmatpush.msra.mxu0 %v1380
      %1407 = vmatmul.f32.gmra.mxu0 %v1386
      %v1408 = vpop.f32.mrf.mxu0
      %v1409 = vadd.f32 0.0, %v1408
      %1410 = vmatmul.f32.gmra.mxu0 %v1389
      %v1411 = vpop.f32.mrf.mxu0
      %v1412 = vadd.f32 0.0, %v1411
      %1413 = vdwg.mxu0
      %s1414 = scalar_lea.vmem %s576, 16
      %v1415 = vld [vmem:[%s1414] sm:$0xff]
      %v1416 = vld [vmem:[%s1414 + $0x8] sm:$0xf]
      %s1417 = scalar_lea.vmem %s576, 80
      %v1418 = vld [vmem:[%s1417] sm:$0xff]
      %v1419 = vld [vmem:[%s1417 + $0x8] sm:$0xf]
      %s1420 = scalar_lea.vmem %s576, 144
      %v1421 = vld [vmem:[%s1420] sm:$0xff]
      %v1422 = vld [vmem:[%s1420 + $0x8] sm:$0xf]
      %1423 = vrot.lane.b32.xlu0 %v1255, 120
      %v1424 = vpop.permute.xlu0 %1423
      %1425 = vrot.lane.b32.xlu0 %v1258, 120
      %v1426 = vpop.permute.xlu0 %1425
      %1427 = vrot.lane.b32.xlu0 %v1300, 120
      %v1428 = vpop.permute.xlu0 %1427
      %1429 = vrot.lane.b32.xlu0 %v1303, 120
      %v1430 = vpop.permute.xlu0 %1429
      %v1431 = vsel %vm674, %v1424, 0
      %v1433 = vsel %vm674, %v1426, 0
      %v1435 = vsel %vm674, %v1428, 0
      %v1437 = vsel %vm674, %v1430, 0
      %1439 = vmatpush.xpose.msra.mxu0 0.0
      %1440 = vmatpush.xpose.msra.mxu0 0.0
      %1441 = vmatpush.xpose.msra.mxu0 0.0
      %1442 = vmatpush.xpose.msra.mxu0 0.0
      %1443 = vmatpush.xpose.msra.mxu0 0.0
      %1444 = vmatpush.xpose.msra.mxu0 0.0
      %1445 = vmatpush.xpose.msra.mxu0 0.0
      %1446 = vmatpush.xpose.msra.mxu0 0.0
      %1447 = vmatpush.xpose.msra.mxu0 0.0
      %1448 = vmatpush.xpose.msra.mxu0 0.0
      %1449 = vmatpush.xpose.msra.mxu0 0.0
      %1450 = vmatpush.xpose.msra.mxu0 0.0
      %1451 = vmatpush.xpose.msra.mxu0 0.0
      %1452 = vmatpush.xpose.msra.mxu0 0.0
      %1453 = vmatpush.xpose.msra.mxu0 %v1437
      %1454 = vmatpush.xpose.msra.mxu0 %v1435
      %1455 = vmatmul.f32.gmra.mxu0 %v1431
      %v1456 = vpop.f32.mrf.mxu0
      %v1457 = vadd.f32 0.0, %v1456
      %1458 = vmatmul.f32.gmra.mxu0 %v1433
      %v1459 = vpop.f32.mrf.mxu0
      %v1460 = vadd.f32 0.0, %v1459
      %1461 = vdwg.mxu0
      %v1462 = vmul.f32 %v1415, %v1418
      %v1463 = vmul.f32 %v1416, %v1419
      %v1464 = vmul.f32 %v1462, %v1457
      %v1465 = vmul.f32 %v1463, %v1460
      %v1466 = vmul.f32 %v1464, 0.35355338
      %v1467 = vmul.f32 %v1465, 0.35355338
      %v1468 = vsel %vm1155, %v1466, -inf
      %1469 = vmax.xlane.f32.xlu0 %v1468
      %v1470 = vpop.xlane.xlu0 %1469
      %v1471 = vsel %vm1357, %v1467, -inf
      %1472 = vmax.xlane.f32.xlu0 %v1471
      %v1473 = vpop.xlane.xlu0 %1472
      %v1474 = vsub.f32 %v1466, %v1470
      %v1475 = vsub.f32 %v1467, %v1473
      %v1476 = vmul.f32 %v1474, 1.442695
      %v1477 = vpow.pop %v1476
      %v1478 = vmul.f32 %v1475, 1.442695
      %v1479 = vpow.pop %v1478
      %v1480 = vsel %vm1155, %v1477, 0.0
      %1481 = vadd.xlane.f32.xlu0 %v1480
      %v1482 = vpop.xlane.xlu0 %1481
      %v1483 = vsel %vm1357, %v1479, 0.0
      %1484 = vadd.xlane.f32.xlu0 %v1483
      %v1485 = vpop.xlane.xlu0 %1484
      %v1486 = vrcp.pop %v1482
      %v1487 = vrcp.pop %v1485
      %v1488 = vmul.f32 %v1477, %v1486
      %v1489 = vmul.f32 %v1479, %v1487
      %v1490 = vmul.f32 %v1488, %v1421
      %v1491 = vmul.f32 %v1489, %v1422
      %1492 = vrot.lane.b32.xlu0 %v1300, 88
      %v1493 = vpop.permute.xlu0 %1492
      %1494 = vrot.lane.b32.xlu0 %v1303, 88
      %v1495 = vpop.permute.xlu0 %1494
      %v1499 = vsel %vm1155, %v1490, 0
      %v1502 = vsel %vm1155, %v1491, 0
      %1504 = vmatpush.msra.mxu0 0.0
      %1505 = vmatpush.msra.mxu0 0.0
      %1506 = vmatpush.msra.mxu0 0.0
      %1507 = vmatpush.msra.mxu0 0.0
      %1508 = vmatpush.msra.mxu0 0.0
      %1509 = vmatpush.msra.mxu0 0.0
      %1510 = vmatpush.msra.mxu0 0.0
      %1511 = vmatpush.msra.mxu0 0.0
      %1512 = vmatpush.msra.mxu0 0.0
      %1513 = vmatpush.msra.mxu0 0.0
      %1514 = vmatpush.msra.mxu0 0.0
      %1515 = vmatpush.msra.mxu0 0.0
      %1516 = vmatpush.msra.mxu0 0.0
      %1517 = vmatpush.msra.mxu0 0.0
      %1518 = vmatpush.msra.mxu0 %v1495
      %1519 = vmatpush.msra.mxu0 %v1493
      %1520 = vmatmul.f32.gmra.mxu0 %v1499
      %v1521 = vpop.f32.mrf.mxu0
      %v1522 = vadd.f32 0.0, %v1521
      %1523 = vmatmul.f32.gmra.mxu0 %v1502
      %v1524 = vpop.f32.mrf.mxu0
      %v1525 = vadd.f32 0.0, %v1524
      %1526 = vdwg.mxu0
      %s1527 = scalar_lea.vmem %s576, 32
      %v1528 = vld [vmem:[%s1527] sm:$0xff]
      %v1529 = vld [vmem:[%s1527 + $0x8] sm:$0xf]
      %s1530 = scalar_lea.vmem %s576, 96
      %v1531 = vld [vmem:[%s1530] sm:$0xff]
      %v1532 = vld [vmem:[%s1530 + $0x8] sm:$0xf]
      %s1533 = scalar_lea.vmem %s576, 160
      %v1534 = vld [vmem:[%s1533] sm:$0xff]
      %v1535 = vld [vmem:[%s1533 + $0x8] sm:$0xf]
      %1536 = vrot.lane.b32.xlu0 %v1255, 112
      %v1537 = vpop.permute.xlu0 %1536
      %1538 = vrot.lane.b32.xlu0 %v1258, 112
      %v1539 = vpop.permute.xlu0 %1538
      %1540 = vrot.lane.b32.xlu0 %v1300, 112
      %v1541 = vpop.permute.xlu0 %1540
      %1542 = vrot.lane.b32.xlu0 %v1303, 112
      %v1543 = vpop.permute.xlu0 %1542
      %v1544 = vsel %vm674, %v1537, 0
      %v1546 = vsel %vm674, %v1539, 0
      %v1548 = vsel %vm674, %v1541, 0
      %v1550 = vsel %vm674, %v1543, 0
      %1552 = vmatpush.xpose.msra.mxu0 0.0
      %1553 = vmatpush.xpose.msra.mxu0 0.0
      %1554 = vmatpush.xpose.msra.mxu0 0.0
      %1555 = vmatpush.xpose.msra.mxu0 0.0
      %1556 = vmatpush.xpose.msra.mxu0 0.0
      %1557 = vmatpush.xpose.msra.mxu0 0.0
      %1558 = vmatpush.xpose.msra.mxu0 0.0
      %1559 = vmatpush.xpose.msra.mxu0 0.0
      %1560 = vmatpush.xpose.msra.mxu0 0.0
      %1561 = vmatpush.xpose.msra.mxu0 0.0
      %1562 = vmatpush.xpose.msra.mxu0 0.0
      %1563 = vmatpush.xpose.msra.mxu0 0.0
      %1564 = vmatpush.xpose.msra.mxu0 0.0
      %1565 = vmatpush.xpose.msra.mxu0 0.0
      %1566 = vmatpush.xpose.msra.mxu0 %v1550
      %1567 = vmatpush.xpose.msra.mxu0 %v1548
      %1568 = vmatmul.f32.gmra.mxu0 %v1544
      %v1569 = vpop.f32.mrf.mxu0
      %v1570 = vadd.f32 0.0, %v1569
      %1571 = vmatmul.f32.gmra.mxu0 %v1546
      %v1572 = vpop.f32.mrf.mxu0
      %v1573 = vadd.f32 0.0, %v1572
      %1574 = vdwg.mxu0
      %v1575 = vmul.f32 %v1528, %v1531
      %v1576 = vmul.f32 %v1529, %v1532
      %v1577 = vmul.f32 %v1575, %v1570
      %v1578 = vmul.f32 %v1576, %v1573
      %v1579 = vmul.f32 %v1577, 0.35355338
      %v1580 = vmul.f32 %v1578, 0.35355338
      %v1581 = vsel %vm1155, %v1579, -inf
      %1582 = vmax.xlane.f32.xlu0 %v1581
      %v1583 = vpop.xlane.xlu0 %1582
      %v1584 = vsel %vm1357, %v1580, -inf
      %1585 = vmax.xlane.f32.xlu0 %v1584
      %v1586 = vpop.xlane.xlu0 %1585
      %v1587 = vsub.f32 %v1579, %v1583
      %v1588 = vsub.f32 %v1580, %v1586
      %v1589 = vmul.f32 %v1587, 1.442695
      %v1590 = vpow.pop %v1589
      %v1591 = vmul.f32 %v1588, 1.442695
      %v1592 = vpow.pop %v1591
      %v1593 = vsel %vm1155, %v1590, 0.0
      %1594 = vadd.xlane.f32.xlu0 %v1593
      %v1595 = vpop.xlane.xlu0 %1594
      %v1596 = vsel %vm1357, %v1592, 0.0
      %1597 = vadd.xlane.f32.xlu0 %v1596
      %v1598 = vpop.xlane.xlu0 %1597
      %v1599 = vrcp.pop %v1595
      %v1600 = vrcp.pop %v1598
      %v1601 = vmul.f32 %v1590, %v1599
      %v1602 = vmul.f32 %v1592, %v1600
      %v1603 = vmul.f32 %v1601, %v1534
      %v1604 = vmul.f32 %v1602, %v1535
      %1605 = vrot.lane.b32.xlu0 %v1300, 80
      %v1606 = vpop.permute.xlu0 %1605
      %1607 = vrot.lane.b32.xlu0 %v1303, 80
      %v1608 = vpop.permute.xlu0 %1607
      %v1612 = vsel %vm1155, %v1603, 0
      %v1615 = vsel %vm1155, %v1604, 0
      %1617 = vmatpush.msra.mxu0 0.0
      %1618 = vmatpush.msra.mxu0 0.0
      %1619 = vmatpush.msra.mxu0 0.0
      %1620 = vmatpush.msra.mxu0 0.0
      %1621 = vmatpush.msra.mxu0 0.0
      %1622 = vmatpush.msra.mxu0 0.0
      %1623 = vmatpush.msra.mxu0 0.0
      %1624 = vmatpush.msra.mxu0 0.0
      %1625 = vmatpush.msra.mxu0 0.0
      %1626 = vmatpush.msra.mxu0 0.0
      %1627 = vmatpush.msra.mxu0 0.0
      %1628 = vmatpush.msra.mxu0 0.0
      %1629 = vmatpush.msra.mxu0 0.0
      %1630 = vmatpush.msra.mxu0 0.0
      %1631 = vmatpush.msra.mxu0 %v1608
      %1632 = vmatpush.msra.mxu0 %v1606
      %1633 = vmatmul.f32.gmra.mxu0 %v1612
      %v1634 = vpop.f32.mrf.mxu0
      %v1635 = vadd.f32 0.0, %v1634
      %1636 = vmatmul.f32.gmra.mxu0 %v1615
      %v1637 = vpop.f32.mrf.mxu0
      %v1638 = vadd.f32 0.0, %v1637
      %1639 = vdwg.mxu0
      %s1640 = scalar_lea.vmem %s576, 48
      %v1641 = vld [vmem:[%s1640] sm:$0xff]
      %v1642 = vld [vmem:[%s1640 + $0x8] sm:$0xf]
      %s1643 = scalar_lea.vmem %s576, 112
      %v1644 = vld [vmem:[%s1643] sm:$0xff]
      %v1645 = vld [vmem:[%s1643 + $0x8] sm:$0xf]
      %s1646 = scalar_lea.vmem %s576, 176
      %v1647 = vld [vmem:[%s1646] sm:$0xff]
      %v1648 = vld [vmem:[%s1646 + $0x8] sm:$0xf]
      %1649 = vrot.lane.b32.xlu0 %v1255, 104
      %v1650 = vpop.permute.xlu0 %1649
      %1651 = vrot.lane.b32.xlu0 %v1258, 104
      %v1652 = vpop.permute.xlu0 %1651
      %1653 = vrot.lane.b32.xlu0 %v1300, 104
      %v1654 = vpop.permute.xlu0 %1653
      %1655 = vrot.lane.b32.xlu0 %v1303, 104
      %v1656 = vpop.permute.xlu0 %1655
      %v1657 = vsel %vm674, %v1650, 0
      %v1659 = vsel %vm674, %v1652, 0
      %v1661 = vsel %vm674, %v1654, 0
      %v1663 = vsel %vm674, %v1656, 0
      %1665 = vmatpush.xpose.msra.mxu0 0.0
      %1666 = vmatpush.xpose.msra.mxu0 0.0
      %1667 = vmatpush.xpose.msra.mxu0 0.0
      %1668 = vmatpush.xpose.msra.mxu0 0.0
      %1669 = vmatpush.xpose.msra.mxu0 0.0
      %1670 = vmatpush.xpose.msra.mxu0 0.0
      %1671 = vmatpush.xpose.msra.mxu0 0.0
      %1672 = vmatpush.xpose.msra.mxu0 0.0
      %1673 = vmatpush.xpose.msra.mxu0 0.0
      %1674 = vmatpush.xpose.msra.mxu0 0.0
      %1675 = vmatpush.xpose.msra.mxu0 0.0
      %1676 = vmatpush.xpose.msra.mxu0 0.0
      %1677 = vmatpush.xpose.msra.mxu0 0.0
      %1678 = vmatpush.xpose.msra.mxu0 0.0
      %1679 = vmatpush.xpose.msra.mxu0 %v1663
      %1680 = vmatpush.xpose.msra.mxu0 %v1661
      %1681 = vmatmul.f32.gmra.mxu0 %v1657
      %v1682 = vpop.f32.mrf.mxu0
      %v1683 = vadd.f32 0.0, %v1682
      %1684 = vmatmul.f32.gmra.mxu0 %v1659
      %v1685 = vpop.f32.mrf.mxu0
      %v1686 = vadd.f32 0.0, %v1685
      %1687 = vdwg.mxu0
      %v1688 = vmul.f32 %v1641, %v1644
      %v1689 = vmul.f32 %v1642, %v1645
      %v1690 = vmul.f32 %v1688, %v1683
      %v1691 = vmul.f32 %v1689, %v1686
      %v1692 = vmul.f32 %v1690, 0.35355338
      %v1693 = vmul.f32 %v1691, 0.35355338
      %v1694 = vsel %vm1155, %v1692, -inf
      %1695 = vmax.xlane.f32.xlu0 %v1694
      %v1696 = vpop.xlane.xlu0 %1695
      %v1697 = vsel %vm1357, %v1693, -inf
      %1698 = vmax.xlane.f32.xlu0 %v1697
      %v1699 = vpop.xlane.xlu0 %1698
      %v1700 = vsub.f32 %v1692, %v1696
      %v1701 = vsub.f32 %v1693, %v1699
      %v1702 = vmul.f32 %v1700, 1.442695
      %v1703 = vpow.pop %v1702
      %v1704 = vmul.f32 %v1701, 1.442695
      %v1705 = vpow.pop %v1704
      %v1706 = vsel %vm1155, %v1703, 0.0
      %1707 = vadd.xlane.f32.xlu0 %v1706
      %v1708 = vpop.xlane.xlu0 %1707
      %v1709 = vsel %vm1357, %v1705, 0.0
      %1710 = vadd.xlane.f32.xlu0 %v1709
      %v1711 = vpop.xlane.xlu0 %1710
      %v1712 = vrcp.pop %v1708
      %v1713 = vrcp.pop %v1711
      %v1714 = vmul.f32 %v1703, %v1712
      %v1715 = vmul.f32 %v1705, %v1713
      %v1716 = vmul.f32 %v1714, %v1647
      %v1717 = vmul.f32 %v1715, %v1648
      %1718 = vrot.lane.b32.xlu0 %v1300, 72
      %v1719 = vpop.permute.xlu0 %1718
      %1720 = vrot.lane.b32.xlu0 %v1303, 72
      %v1721 = vpop.permute.xlu0 %1720
      %v1725 = vsel %vm1155, %v1716, 0
      %v1728 = vsel %vm1155, %v1717, 0
      %1730 = vmatpush.msra.mxu0 0.0
      %1731 = vmatpush.msra.mxu0 0.0
      %1732 = vmatpush.msra.mxu0 0.0
      %1733 = vmatpush.msra.mxu0 0.0
      %1734 = vmatpush.msra.mxu0 0.0
      %1735 = vmatpush.msra.mxu0 0.0
      %1736 = vmatpush.msra.mxu0 0.0
      %1737 = vmatpush.msra.mxu0 0.0
      %1738 = vmatpush.msra.mxu0 0.0
      %1739 = vmatpush.msra.mxu0 0.0
      %1740 = vmatpush.msra.mxu0 0.0
      %1741 = vmatpush.msra.mxu0 0.0
      %1742 = vmatpush.msra.mxu0 0.0
      %1743 = vmatpush.msra.mxu0 0.0
      %1744 = vmatpush.msra.mxu0 %v1721
      %1745 = vmatpush.msra.mxu0 %v1719
      %1746 = vmatmul.f32.gmra.mxu0 %v1725
      %v1747 = vpop.f32.mrf.mxu0
      %v1748 = vadd.f32 0.0, %v1747
      %1749 = vmatmul.f32.gmra.mxu0 %v1728
      %v1750 = vpop.f32.mrf.mxu0
      %v1751 = vadd.f32 0.0, %v1750
      %1752 = vdwg.mxu0
      %1755 = vrot.lane.b32.xlu0 %v1522, 8
      %v1756 = vpop.permute.xlu0 %1755
      %1757 = vrot.lane.b32.xlu0 %v1525, 8
      %v1758 = vpop.permute.xlu0 %1757
      %1763 = vrot.lane.b32.xlu0 %v1635, 16
      %v1764 = vpop.permute.xlu0 %1763
      %1765 = vrot.lane.b32.xlu0 %v1638, 16
      %v1766 = vpop.permute.xlu0 %1765
      %1771 = vrot.lane.b32.xlu0 %v1748, 24
      %v1772 = vpop.permute.xlu0 %1771
      %1773 = vrot.lane.b32.xlu0 %v1751, 24
      %v1774 = vpop.permute.xlu0 %1773
      %v1777 = vsel %vm674, %v1409, %v1756
      %v1778 = vsel %vm674, %v1412, %v1758
      %v1779 = vsel %vm1155, %v1777, %v1764
      %v1780 = vsel %vm1155, %v1778, %v1766
      %v1781 = vsel %vm1158, %v1779, %v1772
      %v1782 = vsel %vm1158, %v1780, %v1774
      %v1783 = vadd.f32 %v1225, %v1781
      %v1784 = vadd.f32 %v1226, %v1782
      %v1785 = vld [vmem:[%s8] sm:$0x1]
      %v1786 = vld [vmem:[%s9] sm:$0x1]
      %v1787 = vsel %vm590, %v1783, 0.0
      %1788 = vadd.xlane.f32.xlu0 %v1787
      %v1789 = vpop.xlane.xlu0 %1788
      %v1790 = vsel %vm1168, %v1784, 0.0
      %1791 = vadd.xlane.f32.xlu0 %v1790
      %v1792 = vpop.xlane.xlu0 %1791
      %v1793 = vmul.f32 %v1789, %v1178
      %v1794 = vmul.f32 %v1792, %v1178
      %v1795 = vsub.f32 %v1783, %v1793
      %v1796 = vsub.f32 %v1784, %v1794
      %v1797 = vmul.f32 %v1795, %v1795
      %v1798 = vmul.f32 %v1796, %v1796
      %v1799 = vsel %vm590, %v1797, 0.0
      %1800 = vadd.xlane.f32.xlu0 %v1799
      %v1801 = vpop.xlane.xlu0 %1800
      %v1802 = vsel %vm1168, %v1798, 0.0
      %1803 = vadd.xlane.f32.xlu0 %v1802
      %v1804 = vpop.xlane.xlu0 %1803
      %v1805 = vmul.f32 %v1801, %v1178
      %v1806 = vmul.f32 %v1804, %v1178
      %v1807 = vadd.f32 %v1805, 1e-05
      %v1808 = vadd.f32 %v1806, 1e-05
      %v1809 = vrsqrt.pop %v1807
      %v1810 = vmul.f32 %v1809, %v1807
      %v1811 = vmul.f32 %v1810, %v1809
      %v1812 = vmul.f32 0.5, %v1811
      %v1813 = vsub.f32 1.5, %v1812
      %v1814 = vmul.f32 %v1809, %v1813
      %vm1815 = vweird.f32 %v1807
      %vm1816 = vweird.f32 %v1809
      %vm1817 = vmor %vm1815, %vm1816
      %v1818 = vsel %vm1817, %v1809, %v1814
      %v1819 = vrsqrt.pop %v1808
      %v1820 = vmul.f32 %v1819, %v1808
      %v1821 = vmul.f32 %v1820, %v1819
      %v1822 = vmul.f32 0.5, %v1821
      %v1823 = vsub.f32 1.5, %v1822
      %v1824 = vmul.f32 %v1819, %v1823
      %vm1825 = vweird.f32 %v1808
      %vm1826 = vweird.f32 %v1819
      %vm1827 = vmor %vm1825, %vm1826
      %v1828 = vsel %vm1827, %v1819, %v1824
      %v1829 = vmul.f32 %v1795, %v1818
      %v1830 = vmul.f32 %v1796, %v1828
      %v1832 = vperm.slane %v1785, 0
      %v1834 = vmul.f32 %v1829, %v1832
      %v1835 = vmul.f32 %v1830, %v1832
      %v1837 = vperm.slane %v1786, 0
      %v1839 = vadd.f32 %v1834, %v1837
      %v1840 = vadd.f32 %v1835, %v1837
      %v1841 = vld [vmem:[%s10] sm:$0xff]
      %v1842 = vld [vmem:[%s10 + $0x8] sm:$0xff]
      %v1843 = vld [vmem:[%s10 + $0x10] sm:$0xff]
      %v1844 = vld [vmem:[%s10 + $0x18] sm:$0xff]
      %v1845 = vld [vmem:[%s11] sm:$0x1]
      %v1847 = vperm.slane %v1845, 0
      %v1850 = vsel %vm590, %v1839, 0
      %v1853 = vsel %vm590, %v1840, 0
      %1855 = vmatpush.msra.mxu0 0.0
      %1856 = vmatpush.msra.mxu0 0.0
      %1857 = vmatpush.msra.mxu0 0.0
      %1858 = vmatpush.msra.mxu0 0.0
      %1859 = vmatpush.msra.mxu0 0.0
      %1860 = vmatpush.msra.mxu0 0.0
      %1861 = vmatpush.msra.mxu0 0.0
      %1862 = vmatpush.msra.mxu0 0.0
      %1863 = vmatpush.msra.mxu0 0.0
      %1864 = vmatpush.msra.mxu0 0.0
      %1865 = vmatpush.msra.mxu0 0.0
      %1866 = vmatpush.msra.mxu0 0.0
      %1867 = vmatpush.msra.mxu0 %v1844
      %1868 = vmatpush.msra.mxu0 %v1843
      %1869 = vmatpush.msra.mxu0 %v1842
      %1870 = vmatpush.msra.mxu0 %v1841
      %1871 = vmatmul.f32.gmra.mxu0 %v1850
      %v1872 = vpop.f32.mrf.mxu0
      %v1873 = vadd.f32 %v1847, %v1872
      %1874 = vmatmul.f32.gmra.mxu0 %v1853
      %v1875 = vpop.f32.mrf.mxu0
      %v1876 = vadd.f32 %v1847, %v1875
      %1877 = vdwg.mxu0
      %v1878 = vmax.f32 %v1873, 0.0
      %v1879 = vmax.f32 %v1876, 0.0
      %v1880 = vld [vmem:[%s12] sm:$0xff]
      %v1881 = vld [vmem:[%s12 + $0x8] sm:$0xff]
      %v1882 = vld [vmem:[%s12 + $0x10] sm:$0xff]
      %v1883 = vld [vmem:[%s12 + $0x18] sm:$0xff]
      %v1884 = vld [vmem:[%s12 + $0x20] sm:$0xff]
      %v1885 = vld [vmem:[%s12 + $0x28] sm:$0xff]
      %v1886 = vld [vmem:[%s12 + $0x30] sm:$0xff]
      %v1887 = vld [vmem:[%s12 + $0x38] sm:$0xff]
      %v1888 = vld [vmem:[%s13] sm:$0x1]
      %v1890 = vperm.slane %v1888, 0
      %vm1892 = vcmask 523264
      %v1894 = vsel %vm1892, %v1878, 0
      %v1897 = vsel %vm1892, %v1879, 0
      %1899 = vmatpush.msra.mxu0 0.0
      %1900 = vmatpush.msra.mxu0 0.0
      %1901 = vmatpush.msra.mxu0 0.0
      %1902 = vmatpush.msra.mxu0 0.0
      %1903 = vmatpush.msra.mxu0 0.0
      %1904 = vmatpush.msra.mxu0 0.0
      %1905 = vmatpush.msra.mxu0 0.0
      %1906 = vmatpush.msra.mxu0 0.0
      %1907 = vmatpush.msra.mxu0 %v1887
      %1908 = vmatpush.msra.mxu0 %v1886
      %1909 = vmatpush.msra.mxu0 %v1885
      %1910 = vmatpush.msra.mxu0 %v1884
      %1911 = vmatpush.msra.mxu0 %v1883
      %1912 = vmatpush.msra.mxu0 %v1882
      %1913 = vmatpush.msra.mxu0 %v1881
      %1914 = vmatpush.msra.mxu0 %v1880
      %1915 = vmatmul.f32.gmra.mxu0 %v1894
      %v1916 = vpop.f32.mrf.mxu0
      %v1917 = vadd.f32 %v1890, %v1916
      %1918 = vmatmul.f32.gmra.mxu0 %v1897
      %v1919 = vpop.f32.mrf.mxu0
      %v1920 = vadd.f32 %v1890, %v1919
      %1921 = vdwg.mxu0
      %v1922 = vadd.f32 %v1839, %v1917
      %v1923 = vadd.f32 %v1840, %v1920
      %v1924 = vld [vmem:[%s14] sm:$0x1]
      %v1925 = vld [vmem:[%s15] sm:$0x1]
      %v1926 = vsel %vm590, %v1922, 0.0
      %1927 = vadd.xlane.f32.xlu0 %v1926
      %v1928 = vpop.xlane.xlu0 %1927
      %v1929 = vsel %vm1168, %v1923, 0.0
      %1930 = vadd.xlane.f32.xlu0 %v1929
      %v1931 = vpop.xlane.xlu0 %1930
      %v1932 = vmul.f32 %v1928, %v1178
      %v1933 = vmul.f32 %v1931, %v1178
      %v1934 = vsub.f32 %v1922, %v1932
      %v1935 = vsub.f32 %v1923, %v1933
      %v1936 = vmul.f32 %v1934, %v1934
      %v1937 = vmul.f32 %v1935, %v1935
      %v1938 = vsel %vm590, %v1936, 0.0
      %1939 = vadd.xlane.f32.xlu0 %v1938
      %v1940 = vpop.xlane.xlu0 %1939
      %v1941 = vsel %vm1168, %v1937, 0.0
      %1942 = vadd.xlane.f32.xlu0 %v1941
      %v1943 = vpop.xlane.xlu0 %1942
      %v1944 = vmul.f32 %v1940, %v1178
      %v1945 = vmul.f32 %v1943, %v1178
      %v1946 = vadd.f32 %v1944, 1e-05
      %v1947 = vadd.f32 %v1945, 1e-05
      %v1948 = vrsqrt.pop %v1946
      %v1949 = vmul.f32 %v1948, %v1946
      %v1950 = vmul.f32 %v1949, %v1948
      %v1951 = vmul.f32 0.5, %v1950
      %v1952 = vsub.f32 1.5, %v1951
      %v1953 = vmul.f32 %v1948, %v1952
      %vm1954 = vweird.f32 %v1946
      %vm1955 = vweird.f32 %v1948
      %vm1956 = vmor %vm1954, %vm1955
      %v1957 = vsel %vm1956, %v1948, %v1953
      %v1958 = vrsqrt.pop %v1947
      %v1959 = vmul.f32 %v1958, %v1947
      %v1960 = vmul.f32 %v1959, %v1958
      %v1961 = vmul.f32 0.5, %v1960
      %v1962 = vsub.f32 1.5, %v1961
      %v1963 = vmul.f32 %v1958, %v1962
      %vm1964 = vweird.f32 %v1947
      %vm1965 = vweird.f32 %v1958
      %vm1966 = vmor %vm1964, %vm1965
      %v1967 = vsel %vm1966, %v1958, %v1963
      %v1968 = vmul.f32 %v1934, %v1957
      %v1969 = vmul.f32 %v1935, %v1967
      %v1971 = vperm.slane %v1924, 0
      %v1973 = vmul.f32 %v1968, %v1971
      %v1974 = vmul.f32 %v1969, %v1971
      %v1976 = vperm.slane %v1925, 0
      %v1978 = vadd.f32 %v1973, %v1976
      %v1979 = vadd.f32 %v1974, %v1976
      %1980 = vst.msk [vmem:[%s581] sm:$0xff] %vm590, %v1978
      %1981 = vst.msk [vmem:[%s581 + $0x8] sm:$0xf] %vm1168, %v1979
      %p1982 = scmp.lt.s32.totalorder %s27, 1
      %s1983 = scalar_select %p1982, %s27, 1
      %s1984 = smul.addr %s1983, 2
      %s1985 = smul.addr %s1984, 8
      %s1986 = scalar_lea.vmem %s16, %s1985
      // Predicated region
      $region85: #{run.14} parent=83 // pred_check
        %p1987 = pneg %p401
      $region86: #{run.14} parent=83 // pred_check_branch
        %1989 = sbr.rel (%p1987) target = $region88
      $region87: #{run.14} parent=83 // pred_region
        _
      $region88: #{run.14} parent=83 // pred_fallthru
        _
    $region84: #{run.14} parent=5 // pred_fallthru
      _
    %p1990 = scmp.le.s32.totalorder 2, %s22
    // Predicated region
    $region89: #{run.14} parent=5 // pred_check
      %p1991 = pneg %p1990
    $region90: #{run.14} parent=5 // pred_check_branch
      %1993 = sbr.rel (%p1991) target = $region92
    $region91: #{run.14} parent=5 // pred_region
      %s1994 = ssub.s32 %s22, 2
      // Predicated region
      $region93: #{run.14} parent=91 // pred_check
        %p1995 = pneg %p407
      $region94: #{run.14} parent=91 // pred_check_branch
        %1997 = sbr.rel (%p1995) target = $region96
      $region95: #{run.14} parent=91 // pred_region
        %p1998 = scmp.lt.s32.totalorder %s28, 1
        %s1999 = scalar_select %p1998, %s28, 1
        %s2000 = smul.addr %s1999, 2
        %s2001 = smul.addr %s2000, 8
        %s2002 = scalar_lea.vmem %s16, %s2001
      $region96: #{run.14} parent=91 // pred_fallthru
        _
    $region92: #{run.14} parent=5 // pred_fallthru
      _
  $region6: #{run.14} parent=0 // loop_footer
    %s26 = sadd.s32 1, %s22
  $region7: #{run.14} parent=0 // loop_footer_branch
    %21 = sbr.rel target = $region3
  $region8: #{run.14} parent=0 // loop_exit
    _

</llo_original>
